<compile_context>
chip_gen: v7x
topology: tpu7x:2x2x1
jax: 0.10.0
libtpu: 0.0.40
codegen_flags: <defaults>
</compile_context>

<pallas_src>
import functools
import math

import numpy as np
import jax
import jax.numpy as jnp
from jax.experimental import pallas as pl
from jax.experimental.pallas import tpu as pltpu


_LN_EPS = 1e-5


# ----------------------------- small helpers --------------------------------

def _gelu_tanh(x):
    c = math.sqrt(2.0 / math.pi)
    return 0.5 * x * (1.0 + jnp.tanh(c * (x + 0.044715 * x * x * x)))


def _sigmoid(x):
    return 1.0 / (1.0 + jnp.exp(-x))


def _tpu_info():
    try:
        return pltpu.get_tpu_info()
    except Exception:
        return None


def _num_tensorcores():
    """Best-effort TensorCore count (v5e/v6e: 1, v7x: 2). Falls back to 1."""
    info = _tpu_info()
    if info is not None:
        for name in ("num_cores", "core_count", "tensorcore_count",
                     "num_tensorcores", "num_tensor_cores"):
            v = getattr(info, name, None)
            try:
                if v and int(v) > 0:
                    return int(v)
            except Exception:
                pass
    return 1


def _vmem_capacity_bytes():
    info = _tpu_info()
    if info is not None:
        v = getattr(info, "vmem_capacity_bytes", None)
        try:
            if v and int(v) > 0:
                return int(v)
        except Exception:
            pass
    return 64 * 1024 * 1024  # conservative default (v7x physical size)


def _vmem_limit_bytes():
    # half of physical VMEM: 64 MiB on v5e/v6e (128 MiB), 32 MiB on v7x (64 MiB)
    return int(min(_vmem_capacity_bytes() // 2, 64 * 1024 * 1024))


def _tile_budget_bytes():
    # per-tile working-set budget; leaves room for double-buffering + weights
    return max(2 << 20, _vmem_limit_bytes() // 4)


def _lane_block(total, cap):
    """Tile size on the token/lane axis: a divisor of `total` <= cap, preferring
    multiples of 128 (dense stores), then multiples of 8, else the full extent."""
    cap = int(max(1, min(total, cap)))
    if total <= cap:
        return total
    for d in range(cap, 127, -1):
        if total % d == 0 and d % 128 == 0:
            return d
    for d in range(cap, 7, -1):
        if total % d == 0 and d % 8 == 0:
            return d
    return total


def _pick_group(total, target):
    target = int(max(1, min(total, target)))
    for d in range(target, 0, -1):
        if total % d == 0:
            return d
    return 1


def _token_tile(n_tokens, bytes_per_token):
    cap = max(128, _tile_budget_bytes() // max(1, bytes_per_token))
    cores = _num_tensorcores()
    if cores > 1:
        # keep >= 2 grid steps per core so each core can still double-buffer
        cap = min(cap, max(128, n_tokens // (2 * cores)))
    return _lane_block(n_tokens, cap)


def _compiler_params():
    return pltpu.CompilerParams(
        dimension_semantics=("parallel",),
        vmem_limit_bytes=_vmem_limit_bytes(),
    )


# ------------------------------- kernels -------------------------------------

def _ln_qkv_fm_kernel(x_ref, g_ref, bt_ref, w_ref, b_ref, o_ref, *, eps):
    """LayerNorm over channels + (C -> 3C) projection, feature-major (C, tokens)."""
    x = x_ref[...].astype(jnp.float32)                       # (C, TB)
    mu = jnp.mean(x, axis=0, keepdims=True)
    var = jnp.mean(x * x, axis=0, keepdims=True) - mu * mu   # single-pass variance
    xn = (x - mu) * jax.lax.rsqrt(var + eps) * g_ref[...] + bt_ref[...]
    y = jnp.dot(w_ref[...], xn.astype(jnp.bfloat16),         # bf16 x bf16 -> f32 acc
                preferred_element_type=jnp.float32) + b_ref[...]
    o_ref[...] = y.astype(o_ref.dtype)


def _fuse_ffn_fm_kernel(att_ref, res_ref, wf_ref, bf_ref, g_ref, bt_ref,
                        w1_ref, b1_ref, w2_ref, b2_ref, o_ref, *, eps):
    """Fused: x1 = fuse_out(att) + residual; out = x1 + fc2(gelu(fc1(LN(x1))))."""
    res = res_ref[...].astype(jnp.float32)
    x1 = jnp.dot(wf_ref[...], att_ref[...].astype(jnp.bfloat16),
                 preferred_element_type=jnp.float32) + bf_ref[...]
    x1 = x1 + res
    mu = jnp.mean(x1, axis=0, keepdims=True)
    var = jnp.mean(x1 * x1, axis=0, keepdims=True) - mu * mu
    xn = (x1 - mu) * jax.lax.rsqrt(var + eps) * g_ref[...] + bt_ref[...]
    h1 = jnp.dot(w1_ref[...], xn.astype(jnp.bfloat16),
                 preferred_element_type=jnp.float32) + b1_ref[...]
    h1 = _gelu_tanh(h1)
    y = jnp.dot(w2_ref[...], h1.astype(jnp.bfloat16),
                preferred_element_type=jnp.float32) + b2_ref[...]
    o_ref[...] = (x1 + y).astype(o_ref.dtype)


def _attn_kernel(q_ref, k_ref, v_ref, o_ref, *, head_num, scale):
    """Multi-head attention; q/k/v/out are (G, N, cf) lane-dense, heads split
    inside the kernel with static slices (unrolled over head_num)."""
    q = q_ref[...]
    k = k_ref[...]
    v = v_ref[...]
    cf = q.shape[-1]
    hs = cf // head_num
    ctxs = []
    for h in range(head_num):
        sl = slice(h * hs, (h + 1) * hs)
        qh = q[:, :, sl].astype(jnp.bfloat16)
        kh = k[:, :, sl].astype(jnp.bfloat16)
        vh = v[:, :, sl].astype(jnp.bfloat16)
        s = jnp.einsum("gqd,gkd->gqk", qh, kh,
                       preferred_element_type=jnp.float32) * scale
        s = s - jnp.max(s, axis=-1, keepdims=True)
        p = jnp.exp(s)
        p = p * pl.reciprocal(jnp.sum(p, axis=-1, keepdims=True), approx=True)
        ctx = jnp.einsum("gqk,gkd->gqd", p.astype(jnp.bfloat16), vh,
                         preferred_element_type=jnp.float32)
        ctxs.append(ctx)
    o_ref[...] = jnp.concatenate(ctxs, axis=-1).astype(o_ref.dtype)   # lane-dense


def _peg_fm_kernel(x_ref, k_ref, kb_ref, m_ref, w1_ref, w2_ref, o_ref, *, W):
    """PEG for one image in feature-major layout (C, H*W tokens on lanes):
    depthwise 3x3 conv as 9 shifted slices of a zero-padded token row with
    precomputed border masks, then ChannelAttention (pools are lane reductions),
    then residual."""
    x = x_ref[...].astype(jnp.float32)                 # (C, HW)
    Cc, HW = x.shape
    P = W + 1
    zpad = jnp.zeros((Cc, P), jnp.float32)
    xp = jnp.concatenate([zpad, x, zpad], axis=1)      # (C, HW + 2P), zero-padded

    acc = jnp.zeros((Cc, HW), jnp.float32)
    for ky in range(3):
        for kx in range(3):
            t = ky * 3 + kx
            s = (ky - 1) * W + (kx - 1)
            shifted = xp[:, P + s: P + s + HW]         # shifted[:, i] == x[:, i+s]
            acc = acc + shifted * m_ref[t] * k_ref[t]  # mask (1,HW) * tap (C,1)
    y = acc + kb_ref[...]

    # ChannelAttention: 1x1 pooled maps -> only the 3x3 convs' center taps matter.
    avg = jnp.mean(y, axis=1, keepdims=True)           # (C, 1)
    mx = jnp.max(y, axis=1, keepdims=True)             # (C, 1)

    def ca(pool):
        h1 = jnp.maximum(
            jnp.dot(w1_ref[...], pool, preferred_element_type=jnp.float32), 0.0)
        return jnp.dot(w2_ref[...], h1, preferred_element_type=jnp.float32)

    att = _sigmoid(ca(avg) + ca(mx))                   # (C, 1)
    o_ref[...] = (y * att + x).astype(o_ref.dtype)


# --------------------------- pallas_call wrappers -----------------------------

def _ln_qkv_fm(x_fm, gamma, beta, w_bf16, b):
    c_in, n_tok = x_fm.shape
    d_out = w_bf16.shape[0]
    bytes_per_tok = 4 * (3 * c_in + 3 * d_out)
    tb = _token_tile(n_tok, bytes_per_tok)
    return pl.pallas_call(
        functools.partial(_ln_qkv_fm_kernel, eps=_LN_EPS),
        out_shape=jax.ShapeDtypeStruct((d_out, n_tok), x_fm.dtype),
        grid=(n_tok // tb,),
        in_specs=[
            pl.BlockSpec((c_in, tb), lambda i: (0, i)),
            pl.BlockSpec((c_in, 1), lambda i: (0, 0)),
            pl.BlockSpec((c_in, 1), lambda i: (0, 0)),
            pl.BlockSpec((d_out, c_in), lambda i: (0, 0)),
            pl.BlockSpec((d_out, 1), lambda i: (0, 0)),
        ],
        out_specs=pl.BlockSpec((d_out, tb), lambda i: (0, i)),
        compiler_params=_compiler_params(),
    )(x_fm, gamma[:, None], beta[:, None], w_bf16, b[:, None])


def _fuse_ffn_fm(att_fm, res_fm, wf, bf, g, bt, w1, b1, w2, b2):
    c, n_tok = att_fm.shape
    d_h = w1.shape[0]
    bytes_per_tok = 4 * (6 * c + 2 * d_h)
    tb = _token_tile(n_tok, bytes_per_tok)
    return pl.pallas_call(
        functools.partial(_fuse_ffn_fm_kernel, eps=_LN_EPS),
        out_shape=jax.ShapeDtypeStruct((c, n_tok), att_fm.dtype),
        grid=(n_tok // tb,),
        in_specs=[
            pl.BlockSpec((c, tb), lambda i: (0, i)),     # attention output tokens
            pl.BlockSpec((c, tb), lambda i: (0, i)),     # block-input residual
            pl.BlockSpec((c, c), lambda i: (0, 0)),      # fuse_out weight (bf16)
            pl.BlockSpec((c, 1), lambda i: (0, 0)),      # fuse_out bias
            pl.BlockSpec((c, 1), lambda i: (0, 0)),      # ln2 gamma
            pl.BlockSpec((c, 1), lambda i: (0, 0)),      # ln2 beta
            pl.BlockSpec((d_h, c), lambda i: (0, 0)),    # fc1 weight (bf16)
            pl.BlockSpec((d_h, 1), lambda i: (0, 0)),    # fc1 bias
            pl.BlockSpec((c, d_h), lambda i: (0, 0)),    # fc2 weight (bf16)
            pl.BlockSpec((c, 1), lambda i: (0, 0)),      # fc2 bias
        ],
        out_specs=pl.BlockSpec((c, tb), lambda i: (0, i)),
        compiler_params=_compiler_params(),
    )(att_fm, res_fm, wf, bf[:, None], g[:, None], bt[:, None],
      w1, b1[:, None], w2, b2[:, None])


def _multihead_attention(q, k, v, head_num):
    bq, n, cf = q.shape
    hs = cf // head_num
    n_sub = -(-n // 8) * 8
    n_lane = -(-n // 128) * 128
    # VMEM estimate per group: q/k/v/out (double-buffered), per-head scores + temps
    per_group = 4 * (2 * 4 * n_sub * max(cf, 128)
                     + head_num * n_sub * n_lane
                     + 4 * n_sub * max(hs, 128))
    cap = max(1, _tile_budget_bytes() // per_group)
    cores = _num_tensorcores()
    if cores > 1:
        cap = min(cap, max(1, bq // (2 * cores)))
    gb = _pick_group(bq, cap)

    return pl.pallas_call(
        functools.partial(_attn_kernel, head_num=head_num,
                          scale=1.0 / math.sqrt(hs)),
        out_shape=jax.ShapeDtypeStruct((bq, n, cf), q.dtype),
        grid=(bq // gb,),
        in_specs=[pl.BlockSpec((gb, n, cf), lambda i: (i, 0, 0))] * 3,
        out_specs=pl.BlockSpec((gb, n, cf), lambda i: (i, 0, 0)),
        compiler_params=_compiler_params(),
    )(q, k, v)


def _peg_fm(x_fm, dw_w, dw_b, w1c, w2c, B, H, W):
    C, T = x_fm.shape
    HW = H * W
    taps = jnp.transpose(dw_w, (1, 2, 0)).reshape(9, C)[:, :, None]   # (9, C, 1)
    bias = dw_b[:, None]                                              # (C, 1)

    # Border-validity masks per tap over one image's HW tokens (compile-time constant).
    hh, ww = np.meshgrid(np.arange(H), np.arange(W), indexing="ij")
    masks = np.zeros((9, 1, HW), np.float32)
    for ky in range(3):
        for kx in range(3):
            dy, dx = ky - 1, kx - 1
            ok = ((hh + dy >= 0) & (hh + dy < H) & (ww + dx >= 0) & (ww + dx < W))
            masks[ky * 3 + kx, 0] = ok.reshape(-1).astype(np.float32)
    masks = jnp.asarray(masks)

    return pl.pallas_call(
        functools.partial(_peg_fm_kernel, W=W),
        out_shape=jax.ShapeDtypeStruct((C, T), x_fm.dtype),
        grid=(B,),                       # one image per grid step
        in_specs=[
            pl.BlockSpec((C, HW), lambda b: (0, b)),
            pl.BlockSpec((9, C, 1), lambda b: (0, 0, 0)),
            pl.BlockSpec((C, 1), lambda b: (0, 0)),
            pl.BlockSpec((9, 1, HW), lambda b: (0, 0, 0)),
            pl.BlockSpec((C // 8, C), lambda b: (0, 0)),
            pl.BlockSpec((C, C // 8), lambda b: (0, 0)),
        ],
        out_specs=pl.BlockSpec((C, HW), lambda b: (0, b)),
        compiler_params=_compiler_params(),
    )(x_fm, taps, bias, masks, w1c, w2c)


# ------------------------------- forward --------------------------------------

def inter_sa_q_forward(x, p, *, head_num):
    B, C, H, W = x.shape
    C2 = C // 2
    T = B * H * W

    # feature-major tokens: (C, B*H*W) — token axis lane-dense
    x_fm = jnp.transpose(x, (1, 0, 2, 3)).reshape(C, T)

    # Compose conv_input -> (conv_h | conv_v) 1x1 convolutions into one (C -> 3C)
    # pointwise projection (exact linear-algebra composition), pre-cast to bf16.
    a_h = p["w_h"] @ p["w_in"][:C2, :]
    c_h = p["w_h"] @ p["b_in"][:C2] + p["b_h"]
    a_v = p["w_v"] @ p["w_in"][C2:, :]
    c_v = p["w_v"] @ p["b_in"][C2:] + p["b_v"]
    w_qkv = jnp.concatenate([a_h, a_v], axis=0).astype(jnp.bfloat16)  # (3C, C)
    b_qkv = jnp.concatenate([c_h, c_v], axis=0)                       # (3C,)

    qkv = _ln_qkv_fm(x_fm, p["ln1_g"], p["ln1_b"], w_qkv, b_qkv)      # (3C, T)
    qkv = qkv.reshape(3 * C, B, H, W)

    q_h, k_h, v_h = qkv[0:C2], qkv[C2:2 * C2], qkv[2 * C2:3 * C2]
    q_v, k_v, v_v = qkv[3 * C2:4 * C2], qkv[4 * C2:5 * C2], qkv[5 * C2:6 * C2]

    def to_h(t):    # (C2,B,H,W) -> (B, H, C2*W); feature index = c*W + w
        return jnp.transpose(t, (1, 2, 0, 3)).reshape(B, H, C2 * W)

    def to_v(t):    # (C2,B,H,W) -> (B, W, C2*H); feature index = c*H + h
        return jnp.transpose(t, (1, 3, 0, 2)).reshape(B, W, C2 * H)

    if H == W:
        q = jnp.concatenate([to_h(q_h), to_v(q_v)], axis=0)
        k = jnp.concatenate([to_h(k_h), to_v(k_v)], axis=0)
        v = jnp.concatenate([to_h(v_h), to_v(v_v)], axis=0)
        att = _multihead_attention(q, k, v, head_num)
        att_h, att_v = att[:B], att[B:]
    else:
        att_h = _multihead_attention(to_h(q_h), to_h(k_h), to_h(v_h), head_num)
        att_v = _multihead_attention(to_v(q_v), to_v(k_v), to_v(v_v), head_num)

    att_h = jnp.transpose(att_h.reshape(B, H, C2, W), (2, 0, 1, 3))   # (C2,B,H,W)
    att_v = jnp.transpose(att_v.reshape(B, W, C2, H), (2, 0, 3, 1))   # (C2,B,H,W)
    att_fm = jnp.concatenate([att_h, att_v], axis=0).reshape(C, T)

    # Fused: fuse_out + residual + LayerNorm + MLP + residual (single kernel)
    x2 = _fuse_ffn_fm(att_fm, x_fm,
                      p["w_fuse"].astype(jnp.bfloat16), p["b_fuse"],
                      p["ln2_g"], p["ln2_b"],
                      p["w1"].astype(jnp.bfloat16), p["b1"],
                      p["w2"].astype(jnp.bfloat16), p["b2"])          # (C, T)

    # PEG: depthwise 3x3 conv + ChannelAttention + residual, feature-major
    y_fm = _peg_fm(x2, p["dw_w"], p["dw_b"],
                   p["ca_w1_full"][:, :, 1, 1], p["ca_w2_full"][:, :, 1, 1],
                   B, H, W)                                           # (C, T)
    return jnp.transpose(y_fm.reshape(C, B, H, W), (1, 0, 2, 3))      # NCHW


# ----------------------------- parameter init ---------------------------------

def init_params(key, C, head_num):
    del head_num
    C2 = C // 2
    C8 = C // 8
    ks = jax.random.split(key, 16)

    def qconv_w(k, c_out, c_in):
        # TODO(synk): QuaternionConv2d definition not provided; build the dense 1x1
        # weight with the standard Hamilton-product block structure.
        kk = jax.random.split(k, 4)
        s = 1.0 / math.sqrt(c_in)
        r, i, j, q = [jax.random.normal(kk[t], (c_out // 4, c_in // 4), jnp.float32) * s
                      for t in range(4)]
        row_r = jnp.concatenate([r, -i, -j, -q], axis=1)
        row_i = jnp.concatenate([i, r, -q, j], axis=1)
        row_j = jnp.concatenate([j, q, r, -i], axis=1)
        row_q = jnp.concatenate([q, -j, i, r], axis=1)
        return jnp.concatenate([row_r, row_i, row_j, row_q], axis=0)

    p = {
        "ln1_g": jnp.ones((C,), jnp.float32),
        "ln1_b": jnp.zeros((C,), jnp.float32),
        "w_in": qconv_w(ks[0], C, C),
        "b_in": jax.random.normal(ks[1], (C,), jnp.float32) * 0.01,
        "w_h": qconv_w(ks[2], 3 * C2, C2),
        "b_h": jax.random.normal(ks[3], (3 * C2,), jnp.float32) * 0.01,
        "w_v": qconv_w(ks[4], 3 * C2, C2),
        "b_v": jax.random.normal(ks[5], (3 * C2,), jnp.float32) * 0.01,
        "w_fuse": qconv_w(ks[6], C, C),
        "b_fuse": jax.random.normal(ks[7], (C,), jnp.float32) * 0.01,
        "ln2_g": jnp.ones((C,), jnp.float32),
        "ln2_b": jnp.zeros((C,), jnp.float32),
        "w1": jax.random.normal(ks[8], (4 * C, C), jnp.float32) * math.sqrt(2.0 / (5 * C)),
        "b1": jax.random.normal(ks[9], (4 * C,), jnp.float32) * 1e-6,
        "w2": jax.random.normal(ks[10], (C, 4 * C), jnp.float32) * math.sqrt(2.0 / (5 * C)),
        "b2": jax.random.normal(ks[11], (C,), jnp.float32) * 1e-6,
        "dw_w": jax.random.normal(ks[12], (C, 3, 3), jnp.float32) * (1.0 / 3.0),
        "dw_b": jax.random.normal(ks[13], (C,), jnp.float32) * 0.01,
        # ChannelAttention 3x3 convs act on 1x1 pooled maps -> only center tap matters.
        "ca_w1_full": jax.random.normal(ks[14], (C8, C, 3, 3), jnp.float32) * (1.0 / math.sqrt(9 * C)),
        "ca_w2_full": jax.random.normal(ks[15], (C, C8, 3, 3), jnp.float32) * (1.0 / math.sqrt(9 * C8)),
    }
    return p


# ------------------------------ pure-JAX reference ----------------------------

def _layernorm_ref(x, g, b, eps=_LN_EPS):
    mu = jnp.mean(x, axis=-1, keepdims=True)
    var = jnp.mean(jnp.square(x - mu), axis=-1, keepdims=True)
    return (x - mu) * jax.lax.rsqrt(var + eps) * g + b


def _mha_ref(q, k, v, head_num):
    bq, n, cf = q.shape
    hs = cf // head_num

    def split(t):
        return t.reshape(bq, n, head_num, hs).transpose(0, 2, 1, 3)

    qh, kh, vh = split(q), split(k), split(v)
    s = jnp.einsum("bhqd,bhkd->bhqk", qh, kh) / math.sqrt(hs)
    pr = jax.nn.softmax(s, axis=-1)
    o = jnp.einsum("bhqk,bhkd->bhqd", pr, vh)
    return o.transpose(0, 2, 1, 3).reshape(bq, n, cf)


def _reference_forward(x, p, head_num):
    B, C, H, W = x.shape
    C2 = C // 2
    h0 = x
    tok = x.reshape(B, C, H * W).transpose(0, 2, 1)
    tok = _layernorm_ref(tok, p["ln1_g"], p["ln1_b"])
    xn = tok.transpose(0, 2, 1).reshape(B, C, H, W)
    z = jnp.einsum("oc,bchw->bohw", p["w_in"], xn) + p["b_in"][None, :, None, None]
    fh = jnp.einsum("oc,bchw->bohw", p["w_h"], z[:, :C2]) + p["b_h"][None, :, None, None]
    fv = jnp.einsum("oc,bchw->bohw", p["w_v"], z[:, C2:]) + p["b_v"][None, :, None, None]
    q_h, k_h, v_h = fh[:, :C2], fh[:, C2:2 * C2], fh[:, 2 * C2:]
    q_v, k_v, v_v = fv[:, :C2], fv[:, C2:2 * C2], fv[:, 2 * C2:]

    def h_tok(t):
        return t.transpose(0, 2, 1, 3).reshape(B, H, C2 * W)

    def v_tok(t):
        return t.transpose(0, 3, 1, 2).reshape(B, W, C2 * H)

    out_h = _mha_ref(h_tok(q_h), h_tok(k_h), h_tok(v_h), head_num)
    out_v = _mha_ref(v_tok(q_v), v_tok(k_v), v_tok(v_v), head_num)
    ah = out_h.reshape(B, H, C2, W).transpose(0, 2, 1, 3)
    av = out_v.reshape(B, W, C2, H).transpose(0, 2, 3, 1)
    cat = jnp.concatenate([ah, av], axis=1)
    fo = jnp.einsum("oc,bchw->bohw", p["w_fuse"], cat) + p["b_fuse"][None, :, None, None]
    x1 = fo + h0

    tok = x1.reshape(B, C, H * W).transpose(0, 2, 1)
    h1 = tok
    t = _layernorm_ref(tok, p["ln2_g"], p["ln2_b"])
    t = _gelu_tanh(t @ p["w1"].T + p["b1"])
    t = t @ p["w2"].T + p["b2"]
    tok = t + h1
    x2 = tok.transpose(0, 2, 1).reshape(B, C, H, W)

    xp = jnp.pad(x2, ((0, 0), (0, 0), (1, 1), (1, 1)))
    y = jnp.zeros_like(x2)
    for dy in range(3):
        for dx in range(3):
            y = y + xp[:, :, dy:dy + H, dx:dx + W] * p["dw_w"][None, :, dy, dx, None, None]
    y = y + p["dw_b"][None, :, None, None]
    avg = jnp.mean(y, axis=(2, 3))
    mx = jnp.max(y, axis=(2, 3))
    w1c = p["ca_w1_full"][:, :, 1, 1]
    w2c = p["ca_w2_full"][:, :, 1, 1]

    def ca(pool):
        return jnp.maximum(pool @ w1c.T, 0.0) @ w2c.T

    att = _sigmoid(ca(avg) + ca(mx))[:, :, None, None]
    return y * att + x2


# ---------------------------------- main ---------------------------------------

if __name__ == "__main__":
    B, C, H, W = 2, 32, 16, 16
    head_num = 4

    key = jax.random.PRNGKey(0)
    kx, kp = jax.random.split(key)
    x = jax.random.normal(kx, (B, C, H, W), jnp.float32)
    params = init_params(kp, C, head_num)

    fwd = jax.jit(functools.partial(inter_sa_q_forward, head_num=head_num))
    y = jax.block_until_ready(fwd(x, params))
    assert y.shape == (B, C, H, W), y.shape

    with jax.default_matmul_precision("highest"):
        y_ref = _reference_forward(x, params, head_num)
    y_ref = jax.block_until_ready(y_ref)
    max_err = float(jnp.max(jnp.abs(y - y_ref)))
    assert jnp.allclose(y, y_ref, atol=5e-2, rtol=5e-2), max_err

    print("KERNEL_OK")
</pallas_src>

<mosaic_0001>
module attributes {stable_mosaic.version = 11 : i64} {
  func.func @_ln_qkv_fm_kernel(%arg0: i32, %arg1: memref<32x512xf32, #tpu.memory_space<vmem>>, %arg2: memref<32x1xf32, #tpu.memory_space<vmem>>, %arg3: memref<32x1xf32, #tpu.memory_space<vmem>>, %arg4: memref<96x32xbf16, #tpu.memory_space<vmem>>, %arg5: memref<96x1xf32, #tpu.memory_space<vmem>>, %arg6: memref<96x512xf32, #tpu.memory_space<vmem>>) attributes {dimension_semantics = [#tpu.dimension_semantics<parallel>], iteration_bounds = array<i64: 1>, scalar_prefetch = 0 : i64, scratch_operands = 0 : i64, tpu.core_type = #tpu.core_type<tc>, window_params = [{transform_indices = @transform_0, window_bounds = array<i64: 32, 512>}, {pipeline_mode = #tpu.pipeline_mode<synchronous>, transform_indices = @transform_1, window_bounds = array<i64: 32, 1>}, {pipeline_mode = #tpu.pipeline_mode<synchronous>, transform_indices = @transform_2, window_bounds = array<i64: 32, 1>}, {pipeline_mode = #tpu.pipeline_mode<synchronous>, transform_indices = @transform_3, window_bounds = array<i64: 96, 32>}, {pipeline_mode = #tpu.pipeline_mode<synchronous>, transform_indices = @transform_4, window_bounds = array<i64: 96, 1>}, {transform_indices = @transform_5, window_bounds = array<i64: 96, 512>}]} {
    %c0 = arith.constant 0 : index
    %c0_0 = arith.constant 0 : index
    %0 = vector.load %arg1[%c0, %c0_0] : memref<32x512xf32, #tpu.memory_space<vmem>>, vector<32x512xf32>
    %cst = arith.constant dense<0.000000e+00> : vector<512xf32>
    %1 = vector.multi_reduction <add>, %0, %cst [0] : vector<32x512xf32> to vector<512xf32>
    %2 = vector.shape_cast %1 : vector<512xf32> to vector<1x512xf32>
    %cst_1 = arith.constant 3.200000e+01 : f32
    %3 = vector.broadcast %cst_1 : f32 to vector<1x512xf32>
    %4 = arith.divf %2, %3 : vector<1x512xf32>
    %5 = arith.mulf %0, %0 : vector<32x512xf32>
    %cst_2 = arith.constant dense<0.000000e+00> : vector<512xf32>
    %6 = vector.multi_reduction <add>, %5, %cst_2 [0] : vector<32x512xf32> to vector<512xf32>
    %7 = vector.shape_cast %6 : vector<512xf32> to vector<1x512xf32>
    %cst_3 = arith.constant 3.200000e+01 : f32
    %8 = vector.broadcast %cst_3 : f32 to vector<1x512xf32>
    %9 = arith.divf %7, %8 : vector<1x512xf32>
    %10 = arith.mulf %4, %4 : vector<1x512xf32>
    %11 = arith.subf %9, %10 : vector<1x512xf32>
    %12 = vector.broadcast %4 : vector<1x512xf32> to vector<32x512xf32>
    %13 = arith.subf %0, %12 : vector<32x512xf32>
    %cst_4 = arith.constant 9.99999974E-6 : f32
    %14 = vector.broadcast %cst_4 : f32 to vector<1x512xf32>
    %15 = arith.addf %11, %14 : vector<1x512xf32>
    %16 = math.rsqrt %15 : vector<1x512xf32>
    %17 = vector.broadcast %16 : vector<1x512xf32> to vector<32x512xf32>
    %18 = arith.mulf %13, %17 : vector<32x512xf32>
    %c0_5 = arith.constant 0 : index
    %c0_6 = arith.constant 0 : index
    %19 = vector.load %arg2[%c0_5, %c0_6] : memref<32x1xf32, #tpu.memory_space<vmem>>, vector<32x1xf32>
    %20 = vector.broadcast %19 : vector<32x1xf32> to vector<32x512xf32>
    %21 = arith.mulf %18, %20 : vector<32x512xf32>
    %c0_7 = arith.constant 0 : index
    %c0_8 = arith.constant 0 : index
    %22 = vector.load %arg3[%c0_7, %c0_8] : memref<32x1xf32, #tpu.memory_space<vmem>>, vector<32x1xf32>
    %23 = vector.broadcast %22 : vector<32x1xf32> to vector<32x512xf32>
    %24 = arith.addf %21, %23 : vector<32x512xf32>
    %c0_9 = arith.constant 0 : index
    %c0_10 = arith.constant 0 : index
    %25 = vector.load %arg4[%c0_9, %c0_10] : memref<96x32xbf16, #tpu.memory_space<vmem>>, vector<96x32xbf16>
    %26 = arith.truncf %24 : vector<32x512xf32> to vector<32x512xbf16>
    %cst_11 = arith.constant dense<0.000000e+00> : vector<96x512xf32>
    %27 = tpu.matmul %25, %26, %cst_11 {dimension_numbers = #tpu.dot_dimension_numbers<[1], [0], [0], [1], [0, 0, 1, 1], [], []>} : vector<96x32xbf16>, vector<32x512xbf16>, vector<96x512xf32> -> vector<96x512xf32>
    %c0_12 = arith.constant 0 : index
    %c0_13 = arith.constant 0 : index
    %28 = vector.load %arg5[%c0_12, %c0_13] : memref<96x1xf32, #tpu.memory_space<vmem>>, vector<96x1xf32>
    %29 = vector.broadcast %28 : vector<96x1xf32> to vector<96x512xf32>
    %30 = arith.addf %27, %29 : vector<96x512xf32>
    %c0_14 = arith.constant 0 : index
    %c0_15 = arith.constant 0 : index
    %31 = vector.load %arg6[%c0_14, %c0_15] : memref<96x512xf32, #tpu.memory_space<vmem>>, vector<96x512xf32>
    tpu.vector_store %arg6[%c0_14, %c0_15], %30 {strides = array<i32>} : memref<96x512xf32, #tpu.memory_space<vmem>>, vector<96x512xf32>,
    return
  }
  func.func @transform_0(%arg0: i32) -> (i32, i32) {
    %c0_i32 = arith.constant 0 : i32
    %c0_i32_0 = arith.constant 0 : i32
    return %c0_i32, %arg0 : i32, i32
  }
  func.func @transform_1(%arg0: i32) -> (i32, i32) {
    %c0_i32 = arith.constant 0 : i32
    %c0_i32_0 = arith.constant 0 : i32
    %c0_i32_1 = arith.constant 0 : i32
    return %c0_i32, %c0_i32_0 : i32, i32
  }
  func.func @transform_2(%arg0: i32) -> (i32, i32) {
    %c0_i32 = arith.constant 0 : i32
    %c0_i32_0 = arith.constant 0 : i32
    %c0_i32_1 = arith.constant 0 : i32
    return %c0_i32, %c0_i32_0 : i32, i32
  }
  func.func @transform_3(%arg0: i32) -> (i32, i32) {
    %c0_i32 = arith.constant 0 : i32
    %c0_i32_0 = arith.constant 0 : i32
    %c0_i32_1 = arith.constant 0 : i32
    return %c0_i32, %c0_i32_0 : i32, i32
  }
  func.func @transform_4(%arg0: i32) -> (i32, i32) {
    %c0_i32 = arith.constant 0 : i32
    %c0_i32_0 = arith.constant 0 : i32
    %c0_i32_1 = arith.constant 0 : i32
    return %c0_i32, %c0_i32_0 : i32, i32
  }
  func.func @transform_5(%arg0: i32) -> (i32, i32) {
    %c0_i32 = arith.constant 0 : i32
    %c0_i32_0 = arith.constant 0 : i32
    return %c0_i32, %arg0 : i32, i32
  }
}

module attributes {stable_mosaic.version = 11 : i64} {
  func.func @_attn_kernel(%arg0: i32, %arg1: memref<4x16x256xf32, #tpu.memory_space<vmem>>, %arg2: memref<4x16x256xf32, #tpu.memory_space<vmem>>, %arg3: memref<4x16x256xf32, #tpu.memory_space<vmem>>, %arg4: memref<4x16x256xf32, #tpu.memory_space<vmem>>) attributes {dimension_semantics = [#tpu.dimension_semantics<parallel>], iteration_bounds = array<i64: 1>, scalar_prefetch = 0 : i64, scratch_operands = 0 : i64, tpu.core_type = #tpu.core_type<tc>, window_params = [{transform_indices = @transform_0, window_bounds = array<i64: 4, 16, 256>}, {transform_indices = @transform_1, window_bounds = array<i64: 4, 16, 256>}, {transform_indices = @transform_2, window_bounds = array<i64: 4, 16, 256>}, {transform_indices = @transform_3, window_bounds = array<i64: 4, 16, 256>}]} {
    %c0 = arith.constant 0 : index
    %c0_0 = arith.constant 0 : index
    %c0_1 = arith.constant 0 : index
    %0 = vector.load %arg1[%c0, %c0_0, %c0_1] : memref<4x16x256xf32, #tpu.memory_space<vmem>>, vector<4x16x256xf32>
    %c0_2 = arith.constant 0 : index
    %c0_3 = arith.constant 0 : index
    %c0_4 = arith.constant 0 : index
    %1 = vector.load %arg2[%c0_2, %c0_3, %c0_4] : memref<4x16x256xf32, #tpu.memory_space<vmem>>, vector<4x16x256xf32>
    %c0_5 = arith.constant 0 : index
    %c0_6 = arith.constant 0 : index
    %c0_7 = arith.constant 0 : index
    %2 = vector.load %arg3[%c0_5, %c0_6, %c0_7] : memref<4x16x256xf32, #tpu.memory_space<vmem>>, vector<4x16x256xf32>
    %3 = vector.extract_strided_slice %0 {offsets = [0, 0, 0], sizes = [4, 16, 64], strides = [1, 1, 1]} : vector<4x16x256xf32> to vector<4x16x64xf32>
    %4 = arith.truncf %3 : vector<4x16x64xf32> to vector<4x16x64xbf16>
    %5 = vector.extract_strided_slice %1 {offsets = [0, 0, 0], sizes = [4, 16, 64], strides = [1, 1, 1]} : vector<4x16x256xf32> to vector<4x16x64xf32>
    %6 = arith.truncf %5 : vector<4x16x64xf32> to vector<4x16x64xbf16>
    %7 = vector.extract_strided_slice %2 {offsets = [0, 0, 0], sizes = [4, 16, 64], strides = [1, 1, 1]} : vector<4x16x256xf32> to vector<4x16x64xf32>
    %8 = arith.truncf %7 : vector<4x16x64xf32> to vector<4x16x64xbf16>
    "tpu.trace_start"() <{level = 10 : i32, message = "gqd,gkd->gqk"}> : () -> ()
    %cst = arith.constant dense<0.000000e+00> : vector<4x16x16xf32>
    %9 = tpu.matmul %4, %6, %cst {dimension_numbers = #tpu.dot_dimension_numbers<[2], [2], [1], [1], [0, 0, 0, 1, 1, 1], [0], [0]>} : vector<4x16x64xbf16>, vector<4x16x64xbf16>, vector<4x16x16xf32> -> vector<4x16x16xf32>
    "tpu.trace_stop"() : () -> ()
    %cst_8 = arith.constant 1.250000e-01 : f32
    %10 = vector.broadcast %cst_8 : f32 to vector<4x16x16xf32>
    %11 = arith.mulf %9, %10 : vector<4x16x16xf32>
    %cst_9 = arith.constant dense<0xFF800000> : vector<4x16xf32>
    %12 = vector.multi_reduction <maximumf>, %11, %cst_9 [2] : vector<4x16x16xf32> to vector<4x16xf32>
    %13 = vector.shape_cast %12 : vector<4x16xf32> to vector<4x16x1xf32>
    %14 = vector.broadcast %13 : vector<4x16x1xf32> to vector<4x16x16xf32>
    %15 = arith.subf %11, %14 : vector<4x16x16xf32>
    %16 = math.exp %15 : vector<4x16x16xf32>
    %cst_10 = arith.constant dense<0.000000e+00> : vector<4x16xf32>
    %17 = vector.multi_reduction <add>, %16, %cst_10 [2] : vector<4x16x16xf32> to vector<4x16xf32>
    %18 = vector.shape_cast %17 : vector<4x16xf32> to vector<4x16x1xf32>
    %19 = tpu.reciprocal %18 {approx = true} : vector<4x16x1xf32> -> vector<4x16x1xf32>
    %20 = vector.broadcast %19 : vector<4x16x1xf32> to vector<4x16x16xf32>
    %21 = arith.mulf %16, %20 : vector<4x16x16xf32>
    %22 = arith.truncf %21 : vector<4x16x16xf32> to vector<4x16x16xbf16>
    "tpu.trace_start"() <{level = 10 : i32, message = "gqk,gkd->gqd"}> : () -> ()
    %cst_11 = arith.constant dense<0.000000e+00> : vector<4x16x64xf32>
    %23 = tpu.matmul %22, %8, %cst_11 {dimension_numbers = #tpu.dot_dimension_numbers<[2], [1], [1], [2], [0, 0, 0, 1, 1, 2], [0], [0]>} : vector<4x16x16xbf16>, vector<4x16x64xbf16>, vector<4x16x64xf32> -> vector<4x16x64xf32>
    "tpu.trace_stop"() : () -> ()
    %24 = vector.extract_strided_slice %0 {offsets = [0, 0, 64], sizes = [4, 16, 64], strides = [1, 1, 1]} : vector<4x16x256xf32> to vector<4x16x64xf32>
    %25 = arith.truncf %24 : vector<4x16x64xf32> to vector<4x16x64xbf16>
    %26 = vector.extract_strided_slice %1 {offsets = [0, 0, 64], sizes = [4, 16, 64], strides = [1, 1, 1]} : vector<4x16x256xf32> to vector<4x16x64xf32>
    %27 = arith.truncf %26 : vector<4x16x64xf32> to vector<4x16x64xbf16>
    %28 = vector.extract_strided_slice %2 {offsets = [0, 0, 64], sizes = [4, 16, 64], strides = [1, 1, 1]} : vector<4x16x256xf32> to vector<4x16x64xf32>
    %29 = arith.truncf %28 : vector<4x16x64xf32> to vector<4x16x64xbf16>
    "tpu.trace_start"() <{level = 10 : i32, message = "gqd,gkd->gqk"}> : () -> ()
    %cst_12 = arith.constant dense<0.000000e+00> : vector<4x16x16xf32>
    %30 = tpu.matmul %25, %27, %cst_12 {dimension_numbers = #tpu.dot_dimension_numbers<[2], [2], [1], [1], [0, 0, 0, 1, 1, 1], [0], [0]>} : vector<4x16x64xbf16>, vector<4x16x64xbf16>, vector<4x16x16xf32> -> vector<4x16x16xf32>
    "tpu.trace_stop"() : () -> ()
    %cst_13 = arith.constant 1.250000e-01 : f32
    %31 = vector.broadcast %cst_13 : f32 to vector<4x16x16xf32>
    %32 = arith.mulf %30, %31 : vector<4x16x16xf32>
    %cst_14 = arith.constant dense<0xFF800000> : vector<4x16xf32>
    %33 = vector.multi_reduction <maximumf>, %32, %cst_14 [2] : vector<4x16x16xf32> to vector<4x16xf32>
    %34 = vector.shape_cast %33 : vector<4x16xf32> to vector<4x16x1xf32>
    %35 = vector.broadcast %34 : vector<4x16x1xf32> to vector<4x16x16xf32>
    %36 = arith.subf %32, %35 : vector<4x16x16xf32>
    %37 = math.exp %36 : vector<4x16x16xf32>
    %cst_15 = arith.constant dense<0.000000e+00> : vector<4x16xf32>
    %38 = vector.multi_reduction <add>, %37, %cst_15 [2] : vector<4x16x16xf32> to vector<4x16xf32>
    %39 = vector.shape_cast %38 : vector<4x16xf32> to vector<4x16x1xf32>
    %40 = tpu.reciprocal %39 {approx = true} : vector<4x16x1xf32> -> vector<4x16x1xf32>
    %41 = vector.broadcast %40 : vector<4x16x1xf32> to vector<4x16x16xf32>
    %42 = arith.mulf %37, %41 : vector<4x16x16xf32>
    %43 = arith.truncf %42 : vector<4x16x16xf32> to vector<4x16x16xbf16>
    "tpu.trace_start"() <{level = 10 : i32, message = "gqk,gkd->gqd"}> : () -> ()
    %cst_16 = arith.constant dense<0.000000e+00> : vector<4x16x64xf32>
    %44 = tpu.matmul %43, %29, %cst_16 {dimension_numbers = #tpu.dot_dimension_numbers<[2], [1], [1], [2], [0, 0, 0, 1, 1, 2], [0], [0]>} : vector<4x16x16xbf16>, vector<4x16x64xbf16>, vector<4x16x64xf32> -> vector<4x16x64xf32>
    "tpu.trace_stop"() : () -> ()
    %45 = vector.extract_strided_slice %0 {offsets = [0, 0, 128], sizes = [4, 16, 64], strides = [1, 1, 1]} : vector<4x16x256xf32> to vector<4x16x64xf32>
    %46 = arith.truncf %45 : vector<4x16x64xf32> to vector<4x16x64xbf16>
    %47 = vector.extract_strided_slice %1 {offsets = [0, 0, 128], sizes = [4, 16, 64], strides = [1, 1, 1]} : vector<4x16x256xf32> to vector<4x16x64xf32>
    %48 = arith.truncf %47 : vector<4x16x64xf32> to vector<4x16x64xbf16>
    %49 = vector.extract_strided_slice %2 {offsets = [0, 0, 128], sizes = [4, 16, 64], strides = [1, 1, 1]} : vector<4x16x256xf32> to vector<4x16x64xf32>
    %50 = arith.truncf %49 : vector<4x16x64xf32> to vector<4x16x64xbf16>
    "tpu.trace_start"() <{level = 10 : i32, message = "gqd,gkd->gqk"}> : () -> ()
    %cst_17 = arith.constant dense<0.000000e+00> : vector<4x16x16xf32>
    %51 = tpu.matmul %46, %48, %cst_17 {dimension_numbers = #tpu.dot_dimension_numbers<[2], [2], [1], [1], [0, 0, 0, 1, 1, 1], [0], [0]>} : vector<4x16x64xbf16>, vector<4x16x64xbf16>, vector<4x16x16xf32> -> vector<4x16x16xf32>
    "tpu.trace_stop"() : () -> ()
    %cst_18 = arith.constant 1.250000e-01 : f32
    %52 = vector.broadcast %cst_18 : f32 to vector<4x16x16xf32>
    %53 = arith.mulf %51, %52 : vector<4x16x16xf32>
    %cst_19 = arith.constant dense<0xFF800000> : vector<4x16xf32>
    %54 = vector.multi_reduction <maximumf>, %53, %cst_19 [2] : vector<4x16x16xf32> to vector<4x16xf32>
    %55 = vector.shape_cast %54 : vector<4x16xf32> to vector<4x16x1xf32>
    %56 = vector.broadcast %55 : vector<4x16x1xf32> to vector<4x16x16xf32>
    %57 = arith.subf %53, %56 : vector<4x16x16xf32>
    %58 = math.exp %57 : vector<4x16x16xf32>
    %cst_20 = arith.constant dense<0.000000e+00> : vector<4x16xf32>
    %59 = vector.multi_reduction <add>, %58, %cst_20 [2] : vector<4x16x16xf32> to vector<4x16xf32>
    %60 = vector.shape_cast %59 : vector<4x16xf32> to vector<4x16x1xf32>
    %61 = tpu.reciprocal %60 {approx = true} : vector<4x16x1xf32> -> vector<4x16x1xf32>
    %62 = vector.broadcast %61 : vector<4x16x1xf32> to vector<4x16x16xf32>
    %63 = arith.mulf %58, %62 : vector<4x16x16xf32>
    %64 = arith.truncf %63 : vector<4x16x16xf32> to vector<4x16x16xbf16>
    "tpu.trace_start"() <{level = 10 : i32, message = "gqk,gkd->gqd"}> : () -> ()
    %cst_21 = arith.constant dense<0.000000e+00> : vector<4x16x64xf32>
    %65 = tpu.matmul %64, %50, %cst_21 {dimension_numbers = #tpu.dot_dimension_numbers<[2], [1], [1], [2], [0, 0, 0, 1, 1, 2], [0], [0]>} : vector<4x16x16xbf16>, vector<4x16x64xbf16>, vector<4x16x64xf32> -> vector<4x16x64xf32>
    "tpu.trace_stop"() : () -> ()
    %66 = vector.extract_strided_slice %0 {offsets = [0, 0, 192], sizes = [4, 16, 64], strides = [1, 1, 1]} : vector<4x16x256xf32> to vector<4x16x64xf32>
    %67 = arith.truncf %66 : vector<4x16x64xf32> to vector<4x16x64xbf16>
    %68 = vector.extract_strided_slice %1 {offsets = [0, 0, 192], sizes = [4, 16, 64], strides = [1, 1, 1]} : vector<4x16x256xf32> to vector<4x16x64xf32>
    %69 = arith.truncf %68 : vector<4x16x64xf32> to vector<4x16x64xbf16>
    %70 = vector.extract_strided_slice %2 {offsets = [0, 0, 192], sizes = [4, 16, 64], strides = [1, 1, 1]} : vector<4x16x256xf32> to vector<4x16x64xf32>
    %71 = arith.truncf %70 : vector<4x16x64xf32> to vector<4x16x64xbf16>
    "tpu.trace_start"() <{level = 10 : i32, message = "gqd,gkd->gqk"}> : () -> ()
    %cst_22 = arith.constant dense<0.000000e+00> : vector<4x16x16xf32>
    %72 = tpu.matmul %67, %69, %cst_22 {dimension_numbers = #tpu.dot_dimension_numbers<[2], [2], [1], [1], [0, 0, 0, 1, 1, 1], [0], [0]>} : vector<4x16x64xbf16>, vector<4x16x64xbf16>, vector<4x16x16xf32> -> vector<4x16x16xf32>
    "tpu.trace_stop"() : () -> ()
    %cst_23 = arith.constant 1.250000e-01 : f32
    %73 = vector.broadcast %cst_23 : f32 to vector<4x16x16xf32>
    %74 = arith.mulf %72, %73 : vector<4x16x16xf32>
    %cst_24 = arith.constant dense<0xFF800000> : vector<4x16xf32>
    %75 = vector.multi_reduction <maximumf>, %74, %cst_24 [2] : vector<4x16x16xf32> to vector<4x16xf32>
    %76 = vector.shape_cast %75 : vector<4x16xf32> to vector<4x16x1xf32>
    %77 = vector.broadcast %76 : vector<4x16x1xf32> to vector<4x16x16xf32>
    %78 = arith.subf %74, %77 : vector<4x16x16xf32>
    %79 = math.exp %78 : vector<4x16x16xf32>
    %cst_25 = arith.constant dense<0.000000e+00> : vector<4x16xf32>
    %80 = vector.multi_reduction <add>, %79, %cst_25 [2] : vector<4x16x16xf32> to vector<4x16xf32>
    %81 = vector.shape_cast %80 : vector<4x16xf32> to vector<4x16x1xf32>
    %82 = tpu.reciprocal %81 {approx = true} : vector<4x16x1xf32> -> vector<4x16x1xf32>
    %83 = vector.broadcast %82 : vector<4x16x1xf32> to vector<4x16x16xf32>
    %84 = arith.mulf %79, %83 : vector<4x16x16xf32>
    %85 = arith.truncf %84 : vector<4x16x16xf32> to vector<4x16x16xbf16>
    "tpu.trace_start"() <{level = 10 : i32, message = "gqk,gkd->gqd"}> : () -> ()
    %cst_26 = arith.constant dense<0.000000e+00> : vector<4x16x64xf32>
    %86 = tpu.matmul %85, %71, %cst_26 {dimension_numbers = #tpu.dot_dimension_numbers<[2], [1], [1], [2], [0, 0, 0, 1, 1, 2], [0], [0]>} : vector<4x16x16xbf16>, vector<4x16x64xbf16>, vector<4x16x64xf32> -> vector<4x16x64xf32>
    "tpu.trace_stop"() : () -> ()
    %87 = tpu.concatenate %23, %44, %65, %86 in 2 : vector<4x16x64xf32>, vector<4x16x64xf32>, vector<4x16x64xf32>, vector<4x16x64xf32> -> vector<4x16x256xf32>
    %c0_27 = arith.constant 0 : index
    %c0_28 = arith.constant 0 : index
    %c0_29 = arith.constant 0 : index
    %88 = vector.load %arg4[%c0_27, %c0_28, %c0_29] : memref<4x16x256xf32, #tpu.memory_space<vmem>>, vector<4x16x256xf32>
    tpu.vector_store %arg4[%c0_27, %c0_28, %c0_29], %87 {strides = array<i32>} : memref<4x16x256xf32, #tpu.memory_space<vmem>>, vector<4x16x256xf32>,
    return
  }
  func.func @transform_0(%arg0: i32) -> (i32, i32, i32) {
    %c0_i32 = arith.constant 0 : i32
    %c0_i32_0 = arith.constant 0 : i32
    %c0_i32_1 = arith.constant 0 : i32
    return %arg0, %c0_i32, %c0_i32_0 : i32, i32, i32
  }
  func.func @transform_1(%arg0: i32) -> (i32, i32, i32) {
    %c0_i32 = arith.constant 0 : i32
    %c0_i32_0 = arith.constant 0 : i32
    %c0_i32_1 = arith.constant 0 : i32
    return %arg0, %c0_i32, %c0_i32_0 : i32, i32, i32
  }
  func.func @transform_2(%arg0: i32) -> (i32, i32, i32) {
    %c0_i32 = arith.constant 0 : i32
    %c0_i32_0 = arith.constant 0 : i32
    %c0_i32_1 = arith.constant 0 : i32
    return %arg0, %c0_i32, %c0_i32_0 : i32, i32, i32
  }
  func.func @transform_3(%arg0: i32) -> (i32, i32, i32) {
    %c0_i32 = arith.constant 0 : i32
    %c0_i32_0 = arith.constant 0 : i32
    %c0_i32_1 = arith.constant 0 : i32
    return %arg0, %c0_i32, %c0_i32_0 : i32, i32, i32
  }
}

module attributes {stable_mosaic.version = 11 : i64} {
  func.func @_fuse_ffn_fm_kernel(%arg0: i32, %arg1: memref<32x512xf32, #tpu.memory_space<vmem>>, %arg2: memref<32x512xf32, #tpu.memory_space<vmem>>, %arg3: memref<32x32xbf16, #tpu.memory_space<vmem>>, %arg4: memref<32x1xf32, #tpu.memory_space<vmem>>, %arg5: memref<32x1xf32, #tpu.memory_space<vmem>>, %arg6: memref<32x1xf32, #tpu.memory_space<vmem>>, %arg7: memref<128x32xbf16, #tpu.memory_space<vmem>>, %arg8: memref<128x1xf32, #tpu.memory_space<vmem>>, %arg9: memref<32x128xbf16, #tpu.memory_space<vmem>>, %arg10: memref<32x1xf32, #tpu.memory_space<vmem>>, %arg11: memref<32x512xf32, #tpu.memory_space<vmem>>) attributes {dimension_semantics = [#tpu.dimension_semantics<parallel>], iteration_bounds = array<i64: 1>, scalar_prefetch = 0 : i64, scratch_operands = 0 : i64, tpu.core_type = #tpu.core_type<tc>, window_params = [{transform_indices = @transform_0, window_bounds = array<i64: 32, 512>}, {transform_indices = @transform_1, window_bounds = array<i64: 32, 512>}, {pipeline_mode = #tpu.pipeline_mode<synchronous>, transform_indices = @transform_2, window_bounds = array<i64: 32, 32>}, {pipeline_mode = #tpu.pipeline_mode<synchronous>, transform_indices = @transform_3, window_bounds = array<i64: 32, 1>}, {pipeline_mode = #tpu.pipeline_mode<synchronous>, transform_indices = @transform_4, window_bounds = array<i64: 32, 1>}, {pipeline_mode = #tpu.pipeline_mode<synchronous>, transform_indices = @transform_5, window_bounds = array<i64: 32, 1>}, {pipeline_mode = #tpu.pipeline_mode<synchronous>, transform_indices = @transform_6, window_bounds = array<i64: 128, 32>}, {pipeline_mode = #tpu.pipeline_mode<synchronous>, transform_indices = @transform_7, window_bounds = array<i64: 128, 1>}, {pipeline_mode = #tpu.pipeline_mode<synchronous>, transform_indices = @transform_8, window_bounds = array<i64: 32, 128>}, {pipeline_mode = #tpu.pipeline_mode<synchronous>, transform_indices = @transform_9, window_bounds = array<i64: 32, 1>}, {transform_indices = @transform_10, window_bounds = array<i64: 32, 512>}]} {
    %c0 = arith.constant 0 : index
    %c0_0 = arith.constant 0 : index
    %0 = vector.load %arg2[%c0, %c0_0] : memref<32x512xf32, #tpu.memory_space<vmem>>, vector<32x512xf32>
    %c0_1 = arith.constant 0 : index
    %c0_2 = arith.constant 0 : index
    %1 = vector.load %arg3[%c0_1, %c0_2] : memref<32x32xbf16, #tpu.memory_space<vmem>>, vector<32x32xbf16>
    %c0_3 = arith.constant 0 : index
    %c0_4 = arith.constant 0 : index
    %2 = vector.load %arg1[%c0_3, %c0_4] : memref<32x512xf32, #tpu.memory_space<vmem>>, vector<32x512xf32>
    %3 = arith.truncf %2 : vector<32x512xf32> to vector<32x512xbf16>
    %cst = arith.constant dense<0.000000e+00> : vector<32x512xf32>
    %4 = tpu.matmul %1, %3, %cst {dimension_numbers = #tpu.dot_dimension_numbers<[1], [0], [0], [1], [0, 0, 1, 1], [], []>} : vector<32x32xbf16>, vector<32x512xbf16>, vector<32x512xf32> -> vector<32x512xf32>
    %c0_5 = arith.constant 0 : index
    %c0_6 = arith.constant 0 : index
    %5 = vector.load %arg4[%c0_5, %c0_6] : memref<32x1xf32, #tpu.memory_space<vmem>>, vector<32x1xf32>
    %6 = vector.broadcast %5 : vector<32x1xf32> to vector<32x512xf32>
    %7 = arith.addf %4, %6 : vector<32x512xf32>
    %8 = arith.addf %7, %0 : vector<32x512xf32>
    %cst_7 = arith.constant dense<0.000000e+00> : vector<512xf32>
    %9 = vector.multi_reduction <add>, %8, %cst_7 [0] : vector<32x512xf32> to vector<512xf32>
    %10 = vector.shape_cast %9 : vector<512xf32> to vector<1x512xf32>
    %cst_8 = arith.constant 3.200000e+01 : f32
    %11 = vector.broadcast %cst_8 : f32 to vector<1x512xf32>
    %12 = arith.divf %10, %11 : vector<1x512xf32>
    %13 = arith.mulf %8, %8 : vector<32x512xf32>
    %cst_9 = arith.constant dense<0.000000e+00> : vector<512xf32>
    %14 = vector.multi_reduction <add>, %13, %cst_9 [0] : vector<32x512xf32> to vector<512xf32>
    %15 = vector.shape_cast %14 : vector<512xf32> to vector<1x512xf32>
    %cst_10 = arith.constant 3.200000e+01 : f32
    %16 = vector.broadcast %cst_10 : f32 to vector<1x512xf32>
    %17 = arith.divf %15, %16 : vector<1x512xf32>
    %18 = arith.mulf %12, %12 : vector<1x512xf32>
    %19 = arith.subf %17, %18 : vector<1x512xf32>
    %20 = vector.broadcast %12 : vector<1x512xf32> to vector<32x512xf32>
    %21 = arith.subf %8, %20 : vector<32x512xf32>
    %cst_11 = arith.constant 9.99999974E-6 : f32
    %22 = vector.broadcast %cst_11 : f32 to vector<1x512xf32>
    %23 = arith.addf %19, %22 : vector<1x512xf32>
    %24 = math.rsqrt %23 : vector<1x512xf32>
    %25 = vector.broadcast %24 : vector<1x512xf32> to vector<32x512xf32>
    %26 = arith.mulf %21, %25 : vector<32x512xf32>
    %c0_12 = arith.constant 0 : index
    %c0_13 = arith.constant 0 : index
    %27 = vector.load %arg5[%c0_12, %c0_13] : memref<32x1xf32, #tpu.memory_space<vmem>>, vector<32x1xf32>
    %28 = vector.broadcast %27 : vector<32x1xf32> to vector<32x512xf32>
    %29 = arith.mulf %26, %28 : vector<32x512xf32>
    %c0_14 = arith.constant 0 : index
    %c0_15 = arith.constant 0 : index
    %30 = vector.load %arg6[%c0_14, %c0_15] : memref<32x1xf32, #tpu.memory_space<vmem>>, vector<32x1xf32>
    %31 = vector.broadcast %30 : vector<32x1xf32> to vector<32x512xf32>
    %32 = arith.addf %29, %31 : vector<32x512xf32>
    %c0_16 = arith.constant 0 : index
    %c0_17 = arith.constant 0 : index
    %33 = vector.load %arg7[%c0_16, %c0_17] : memref<128x32xbf16, #tpu.memory_space<vmem>>, vector<128x32xbf16>
    %34 = arith.truncf %32 : vector<32x512xf32> to vector<32x512xbf16>
    %cst_18 = arith.constant dense<0.000000e+00> : vector<128x512xf32>
    %35 = tpu.matmul %33, %34, %cst_18 {dimension_numbers = #tpu.dot_dimension_numbers<[1], [0], [0], [1], [0, 0, 1, 1], [], []>} : vector<128x32xbf16>, vector<32x512xbf16>, vector<128x512xf32> -> vector<128x512xf32>
    %c0_19 = arith.constant 0 : index
    %c0_20 = arith.constant 0 : index
    %36 = vector.load %arg8[%c0_19, %c0_20] : memref<128x1xf32, #tpu.memory_space<vmem>>, vector<128x1xf32>
    %37 = vector.broadcast %36 : vector<128x1xf32> to vector<128x512xf32>
    %38 = arith.addf %35, %37 : vector<128x512xf32>
    %cst_21 = arith.constant 5.000000e-01 : f32
    %39 = vector.broadcast %cst_21 : f32 to vector<128x512xf32>
    %40 = arith.mulf %39, %38 : vector<128x512xf32>
    %cst_22 = arith.constant 4.471500e-02 : f32
    %41 = vector.broadcast %cst_22 : f32 to vector<128x512xf32>
    %42 = arith.mulf %41, %38 : vector<128x512xf32>
    %43 = arith.mulf %42, %38 : vector<128x512xf32>
    %44 = arith.mulf %43, %38 : vector<128x512xf32>
    %45 = arith.addf %38, %44 : vector<128x512xf32>
    %cst_23 = arith.constant 0.797884583 : f32
    %46 = vector.broadcast %cst_23 : f32 to vector<128x512xf32>
    %47 = arith.mulf %46, %45 : vector<128x512xf32>
    %48 = math.tanh %47 : vector<128x512xf32>
    %cst_24 = arith.constant 1.000000e+00 : f32
    %49 = vector.broadcast %cst_24 : f32 to vector<128x512xf32>
    %50 = arith.addf %49, %48 : vector<128x512xf32>
    %51 = arith.mulf %40, %50 : vector<128x512xf32>
    %c0_25 = arith.constant 0 : index
    %c0_26 = arith.constant 0 : index
    %52 = vector.load %arg9[%c0_25, %c0_26] : memref<32x128xbf16, #tpu.memory_space<vmem>>, vector<32x128xbf16>
    %53 = arith.truncf %51 : vector<128x512xf32> to vector<128x512xbf16>
    %cst_27 = arith.constant dense<0.000000e+00> : vector<32x512xf32>
    %54 = tpu.matmul %52, %53, %cst_27 {dimension_numbers = #tpu.dot_dimension_numbers<[1], [0], [0], [1], [0, 0, 1, 1], [], []>} : vector<32x128xbf16>, vector<128x512xbf16>, vector<32x512xf32> -> vector<32x512xf32>
    %c0_28 = arith.constant 0 : index
    %c0_29 = arith.constant 0 : index
    %55 = vector.load %arg10[%c0_28, %c0_29] : memref<32x1xf32, #tpu.memory_space<vmem>>, vector<32x1xf32>
    %56 = vector.broadcast %55 : vector<32x1xf32> to vector<32x512xf32>
    %57 = arith.addf %54, %56 : vector<32x512xf32>
    %58 = arith.addf %8, %57 : vector<32x512xf32>
    %c0_30 = arith.constant 0 : index
    %c0_31 = arith.constant 0 : index
    %59 = vector.load %arg11[%c0_30, %c0_31] : memref<32x512xf32, #tpu.memory_space<vmem>>, vector<32x512xf32>
    tpu.vector_store %arg11[%c0_30, %c0_31], %58 {strides = array<i32>} : memref<32x512xf32, #tpu.memory_space<vmem>>, vector<32x512xf32>,
    return
  }
  func.func @transform_0(%arg0: i32) -> (i32, i32) {
    %c0_i32 = arith.constant 0 : i32
    %c0_i32_0 = arith.constant 0 : i32
    return %c0_i32, %arg0 : i32, i32
  }
  func.func @transform_1(%arg0: i32) -> (i32, i32) {
    %c0_i32 = arith.constant 0 : i32
    %c0_i32_0 = arith.constant 0 : i32
    return %c0_i32, %arg0 : i32, i32
  }
  func.func @transform_2(%arg0: i32) -> (i32, i32) {
    %c0_i32 = arith.constant 0 : i32
    %c0_i32_0 = arith.constant 0 : i32
    %c0_i32_1 = arith.constant 0 : i32
    return %c0_i32, %c0_i32_0 : i32, i32
  }
  func.func @transform_3(%arg0: i32) -> (i32, i32) {
    %c0_i32 = arith.constant 0 : i32
    %c0_i32_0 = arith.constant 0 : i32
    %c0_i32_1 = arith.constant 0 : i32
    return %c0_i32, %c0_i32_0 : i32, i32
  }
  func.func @transform_4(%arg0: i32) -> (i32, i32) {
    %c0_i32 = arith.constant 0 : i32
    %c0_i32_0 = arith.constant 0 : i32
    %c0_i32_1 = arith.constant 0 : i32
    return %c0_i32, %c0_i32_0 : i32, i32
  }
  func.func @transform_5(%arg0: i32) -> (i32, i32) {
    %c0_i32 = arith.constant 0 : i32
    %c0_i32_0 = arith.constant 0 : i32
    %c0_i32_1 = arith.constant 0 : i32
    return %c0_i32, %c0_i32_0 : i32, i32
  }
  func.func @transform_6(%arg0: i32) -> (i32, i32) {
    %c0_i32 = arith.constant 0 : i32
    %c0_i32_0 = arith.constant 0 : i32
    %c0_i32_1 = arith.constant 0 : i32
    return %c0_i32, %c0_i32_0 : i32, i32
  }
  func.func @transform_7(%arg0: i32) -> (i32, i32) {
    %c0_i32 = arith.constant 0 : i32
    %c0_i32_0 = arith.constant 0 : i32
    %c0_i32_1 = arith.constant 0 : i32
    return %c0_i32, %c0_i32_0 : i32, i32
  }
  func.func @transform_8(%arg0: i32) -> (i32, i32) {
    %c0_i32 = arith.constant 0 : i32
    %c0_i32_0 = arith.constant 0 : i32
    %c0_i32_1 = arith.constant 0 : i32
    return %c0_i32, %c0_i32_0 : i32, i32
  }
  func.func @transform_9(%arg0: i32) -> (i32, i32) {
    %c0_i32 = arith.constant 0 : i32
    %c0_i32_0 = arith.constant 0 : i32
    %c0_i32_1 = arith.constant 0 : i32
    return %c0_i32, %c0_i32_0 : i32, i32
  }
  func.func @transform_10(%arg0: i32) -> (i32, i32) {
    %c0_i32 = arith.constant 0 : i32
    %c0_i32_0 = arith.constant 0 : i32
    return %c0_i32, %arg0 : i32, i32
  }
}

module attributes {stable_mosaic.version = 11 : i64} {
  func.func @_peg_fm_kernel(%arg0: i32, %arg1: memref<32x256xf32, #tpu.memory_space<vmem>>, %arg2: memref<9x32x1xf32, #tpu.memory_space<vmem>>, %arg3: memref<32x1xf32, #tpu.memory_space<vmem>>, %arg4: memref<9x1x256xf32, #tpu.memory_space<vmem>>, %arg5: memref<4x32xf32, #tpu.memory_space<vmem>>, %arg6: memref<32x4xf32, #tpu.memory_space<vmem>>, %arg7: memref<32x256xf32, #tpu.memory_space<vmem>>) attributes {dimension_semantics = [#tpu.dimension_semantics<parallel>], iteration_bounds = array<i64: 2>, scalar_prefetch = 0 : i64, scratch_operands = 0 : i64, tpu.core_type = #tpu.core_type<tc>, window_params = [{transform_indices = @transform_0, window_bounds = array<i64: 32, 256>}, {pipeline_mode = #tpu.pipeline_mode<synchronous>, transform_indices = @transform_1, window_bounds = array<i64: 9, 32, 1>}, {pipeline_mode = #tpu.pipeline_mode<synchronous>, transform_indices = @transform_2, window_bounds = array<i64: 32, 1>}, {pipeline_mode = #tpu.pipeline_mode<synchronous>, transform_indices = @transform_3, window_bounds = array<i64: 9, 1, 256>}, {pipeline_mode = #tpu.pipeline_mode<synchronous>, transform_indices = @transform_4, window_bounds = array<i64: 4, 32>}, {pipeline_mode = #tpu.pipeline_mode<synchronous>, transform_indices = @transform_5, window_bounds = array<i64: 32, 4>}, {transform_indices = @transform_6, window_bounds = array<i64: 32, 256>}]} {
    %c0 = arith.constant 0 : index
    %c0_0 = arith.constant 0 : index
    %0 = vector.load %arg1[%c0, %c0_0] : memref<32x256xf32, #tpu.memory_space<vmem>>, vector<32x256xf32>
    %cst = arith.constant 0.000000e+00 : f32
    %1 = vector.broadcast %cst : f32 to vector<32x17xf32>
    %2 = tpu.concatenate %1, %0, %1 in 1 : vector<32x17xf32>, vector<32x256xf32>, vector<32x17xf32> -> vector<32x290xf32>
    %cst_1 = arith.constant 0.000000e+00 : f32
    %3 = vector.broadcast %cst_1 : f32 to vector<32x256xf32>
    %4 = vector.extract_strided_slice %2 {offsets = [0, 0], sizes = [32, 256], strides = [1, 1]} : vector<32x290xf32> to vector<32x256xf32>
    %c0_2 = arith.constant 0 : index
    %c0_3 = arith.constant 0 : index
    %c0_4 = arith.constant 0 : index
    %5 = vector.load %arg4[%c0_2, %c0_3, %c0_4] : memref<9x1x256xf32, #tpu.memory_space<vmem>>, vector<1x1x256xf32>
    %6 = vector.shape_cast %5 : vector<1x1x256xf32> to vector<1x256xf32>
    %7 = vector.broadcast %6 : vector<1x256xf32> to vector<32x256xf32>
    %8 = arith.mulf %4, %7 : vector<32x256xf32>
    %c0_5 = arith.constant 0 : index
    %c0_6 = arith.constant 0 : index
    %c0_7 = arith.constant 0 : index
    %9 = vector.load %arg2[%c0_5, %c0_6, %c0_7] : memref<9x32x1xf32, #tpu.memory_space<vmem>>, vector<1x32x1xf32>
    %10 = vector.shape_cast %9 : vector<1x32x1xf32> to vector<32x1xf32>
    %11 = vector.broadcast %10 : vector<32x1xf32> to vector<32x256xf32>
    %12 = arith.mulf %8, %11 : vector<32x256xf32>
    %13 = arith.addf %3, %12 : vector<32x256xf32>
    %14 = vector.extract_strided_slice %2 {offsets = [0, 1], sizes = [32, 256], strides = [1, 1]} : vector<32x290xf32> to vector<32x256xf32>
    %c1 = arith.constant 1 : index
    %c0_8 = arith.constant 0 : index
    %c0_9 = arith.constant 0 : index
    %15 = vector.load %arg4[%c1, %c0_8, %c0_9] : memref<9x1x256xf32, #tpu.memory_space<vmem>>, vector<1x1x256xf32>
    %16 = vector.shape_cast %15 : vector<1x1x256xf32> to vector<1x256xf32>
    %17 = vector.broadcast %16 : vector<1x256xf32> to vector<32x256xf32>
    %18 = arith.mulf %14, %17 : vector<32x256xf32>
    %c1_10 = arith.constant 1 : index
    %c0_11 = arith.constant 0 : index
    %c0_12 = arith.constant 0 : index
    %19 = vector.load %arg2[%c1_10, %c0_11, %c0_12] : memref<9x32x1xf32, #tpu.memory_space<vmem>>, vector<1x32x1xf32>
    %20 = vector.shape_cast %19 : vector<1x32x1xf32> to vector<32x1xf32>
    %21 = vector.broadcast %20 : vector<32x1xf32> to vector<32x256xf32>
    %22 = arith.mulf %18, %21 : vector<32x256xf32>
    %23 = arith.addf %13, %22 : vector<32x256xf32>
    %24 = vector.extract_strided_slice %2 {offsets = [0, 2], sizes = [32, 256], strides = [1, 1]} : vector<32x290xf32> to vector<32x256xf32>
    %c2 = arith.constant 2 : index
    %c0_13 = arith.constant 0 : index
    %c0_14 = arith.constant 0 : index
    %25 = vector.load %arg4[%c2, %c0_13, %c0_14] : memref<9x1x256xf32, #tpu.memory_space<vmem>>, vector<1x1x256xf32>
    %26 = vector.shape_cast %25 : vector<1x1x256xf32> to vector<1x256xf32>
    %27 = vector.broadcast %26 : vector<1x256xf32> to vector<32x256xf32>
    %28 = arith.mulf %24, %27 : vector<32x256xf32>
    %c2_15 = arith.constant 2 : index
    %c0_16 = arith.constant 0 : index
    %c0_17 = arith.constant 0 : index
    %29 = vector.load %arg2[%c2_15, %c0_16, %c0_17] : memref<9x32x1xf32, #tpu.memory_space<vmem>>, vector<1x32x1xf32>
    %30 = vector.shape_cast %29 : vector<1x32x1xf32> to vector<32x1xf32>
    %31 = vector.broadcast %30 : vector<32x1xf32> to vector<32x256xf32>
    %32 = arith.mulf %28, %31 : vector<32x256xf32>
    %33 = arith.addf %23, %32 : vector<32x256xf32>
    %34 = vector.extract_strided_slice %2 {offsets = [0, 16], sizes = [32, 256], strides = [1, 1]} : vector<32x290xf32> to vector<32x256xf32>
    %c3 = arith.constant 3 : index
    %c0_18 = arith.constant 0 : index
    %c0_19 = arith.constant 0 : index
    %35 = vector.load %arg4[%c3, %c0_18, %c0_19] : memref<9x1x256xf32, #tpu.memory_space<vmem>>, vector<1x1x256xf32>
    %36 = vector.shape_cast %35 : vector<1x1x256xf32> to vector<1x256xf32>
    %37 = vector.broadcast %36 : vector<1x256xf32> to vector<32x256xf32>
    %38 = arith.mulf %34, %37 : vector<32x256xf32>
    %c3_20 = arith.constant 3 : index
    %c0_21 = arith.constant 0 : index
    %c0_22 = arith.constant 0 : index
    %39 = vector.load %arg2[%c3_20, %c0_21, %c0_22] : memref<9x32x1xf32, #tpu.memory_space<vmem>>, vector<1x32x1xf32>
    %40 = vector.shape_cast %39 : vector<1x32x1xf32> to vector<32x1xf32>
    %41 = vector.broadcast %40 : vector<32x1xf32> to vector<32x256xf32>
    %42 = arith.mulf %38, %41 : vector<32x256xf32>
    %43 = arith.addf %33, %42 : vector<32x256xf32>
    %44 = vector.extract_strided_slice %2 {offsets = [0, 17], sizes = [32, 256], strides = [1, 1]} : vector<32x290xf32> to vector<32x256xf32>
    %c4 = arith.constant 4 : index
    %c0_23 = arith.constant 0 : index
    %c0_24 = arith.constant 0 : index
    %45 = vector.load %arg4[%c4, %c0_23, %c0_24] : memref<9x1x256xf32, #tpu.memory_space<vmem>>, vector<1x1x256xf32>
    %46 = vector.shape_cast %45 : vector<1x1x256xf32> to vector<1x256xf32>
    %47 = vector.broadcast %46 : vector<1x256xf32> to vector<32x256xf32>
    %48 = arith.mulf %44, %47 : vector<32x256xf32>
    %c4_25 = arith.constant 4 : index
    %c0_26 = arith.constant 0 : index
    %c0_27 = arith.constant 0 : index
    %49 = vector.load %arg2[%c4_25, %c0_26, %c0_27] : memref<9x32x1xf32, #tpu.memory_space<vmem>>, vector<1x32x1xf32>
    %50 = vector.shape_cast %49 : vector<1x32x1xf32> to vector<32x1xf32>
    %51 = vector.broadcast %50 : vector<32x1xf32> to vector<32x256xf32>
    %52 = arith.mulf %48, %51 : vector<32x256xf32>
    %53 = arith.addf %43, %52 : vector<32x256xf32>
    %54 = vector.extract_strided_slice %2 {offsets = [0, 18], sizes = [32, 256], strides = [1, 1]} : vector<32x290xf32> to vector<32x256xf32>
    %c5 = arith.constant 5 : index
    %c0_28 = arith.constant 0 : index
    %c0_29 = arith.constant 0 : index
    %55 = vector.load %arg4[%c5, %c0_28, %c0_29] : memref<9x1x256xf32, #tpu.memory_space<vmem>>, vector<1x1x256xf32>
    %56 = vector.shape_cast %55 : vector<1x1x256xf32> to vector<1x256xf32>
    %57 = vector.broadcast %56 : vector<1x256xf32> to vector<32x256xf32>
    %58 = arith.mulf %54, %57 : vector<32x256xf32>
    %c5_30 = arith.constant 5 : index
    %c0_31 = arith.constant 0 : index
    %c0_32 = arith.constant 0 : index
    %59 = vector.load %arg2[%c5_30, %c0_31, %c0_32] : memref<9x32x1xf32, #tpu.memory_space<vmem>>, vector<1x32x1xf32>
    %60 = vector.shape_cast %59 : vector<1x32x1xf32> to vector<32x1xf32>
    %61 = vector.broadcast %60 : vector<32x1xf32> to vector<32x256xf32>
    %62 = arith.mulf %58, %61 : vector<32x256xf32>
    %63 = arith.addf %53, %62 : vector<32x256xf32>
    %64 = vector.extract_strided_slice %2 {offsets = [0, 32], sizes = [32, 256], strides = [1, 1]} : vector<32x290xf32> to vector<32x256xf32>
    %c6 = arith.constant 6 : index
    %c0_33 = arith.constant 0 : index
    %c0_34 = arith.constant 0 : index
    %65 = vector.load %arg4[%c6, %c0_33, %c0_34] : memref<9x1x256xf32, #tpu.memory_space<vmem>>, vector<1x1x256xf32>
    %66 = vector.shape_cast %65 : vector<1x1x256xf32> to vector<1x256xf32>
    %67 = vector.broadcast %66 : vector<1x256xf32> to vector<32x256xf32>
    %68 = arith.mulf %64, %67 : vector<32x256xf32>
    %c6_35 = arith.constant 6 : index
    %c0_36 = arith.constant 0 : index
    %c0_37 = arith.constant 0 : index
    %69 = vector.load %arg2[%c6_35, %c0_36, %c0_37] : memref<9x32x1xf32, #tpu.memory_space<vmem>>, vector<1x32x1xf32>
    %70 = vector.shape_cast %69 : vector<1x32x1xf32> to vector<32x1xf32>
    %71 = vector.broadcast %70 : vector<32x1xf32> to vector<32x256xf32>
    %72 = arith.mulf %68, %71 : vector<32x256xf32>
    %73 = arith.addf %63, %72 : vector<32x256xf32>
    %74 = vector.extract_strided_slice %2 {offsets = [0, 33], sizes = [32, 256], strides = [1, 1]} : vector<32x290xf32> to vector<32x256xf32>
    %c7 = arith.constant 7 : index
    %c0_38 = arith.constant 0 : index
    %c0_39 = arith.constant 0 : index
    %75 = vector.load %arg4[%c7, %c0_38, %c0_39] : memref<9x1x256xf32, #tpu.memory_space<vmem>>, vector<1x1x256xf32>
    %76 = vector.shape_cast %75 : vector<1x1x256xf32> to vector<1x256xf32>
    %77 = vector.broadcast %76 : vector<1x256xf32> to vector<32x256xf32>
    %78 = arith.mulf %74, %77 : vector<32x256xf32>
    %c7_40 = arith.constant 7 : index
    %c0_41 = arith.constant 0 : index
    %c0_42 = arith.constant 0 : index
    %79 = vector.load %arg2[%c7_40, %c0_41, %c0_42] : memref<9x32x1xf32, #tpu.memory_space<vmem>>, vector<1x32x1xf32>
    %80 = vector.shape_cast %79 : vector<1x32x1xf32> to vector<32x1xf32>
    %81 = vector.broadcast %80 : vector<32x1xf32> to vector<32x256xf32>
    %82 = arith.mulf %78, %81 : vector<32x256xf32>
    %83 = arith.addf %73, %82 : vector<32x256xf32>
    %84 = vector.extract_strided_slice %2 {offsets = [0, 34], sizes = [32, 256], strides = [1, 1]} : vector<32x290xf32> to vector<32x256xf32>
    %c8 = arith.constant 8 : index
    %c0_43 = arith.constant 0 : index
    %c0_44 = arith.constant 0 : index
    %85 = vector.load %arg4[%c8, %c0_43, %c0_44] : memref<9x1x256xf32, #tpu.memory_space<vmem>>, vector<1x1x256xf32>
    %86 = vector.shape_cast %85 : vector<1x1x256xf32> to vector<1x256xf32>
    %87 = vector.broadcast %86 : vector<1x256xf32> to vector<32x256xf32>
    %88 = arith.mulf %84, %87 : vector<32x256xf32>
    %c8_45 = arith.constant 8 : index
    %c0_46 = arith.constant 0 : index
    %c0_47 = arith.constant 0 : index
    %89 = vector.load %arg2[%c8_45, %c0_46, %c0_47] : memref<9x32x1xf32, #tpu.memory_space<vmem>>, vector<1x32x1xf32>
    %90 = vector.shape_cast %89 : vector<1x32x1xf32> to vector<32x1xf32>
    %91 = vector.broadcast %90 : vector<32x1xf32> to vector<32x256xf32>
    %92 = arith.mulf %88, %91 : vector<32x256xf32>
    %93 = arith.addf %83, %92 : vector<32x256xf32>
    %c0_48 = arith.constant 0 : index
    %c0_49 = arith.constant 0 : index
    %94 = vector.load %arg3[%c0_48, %c0_49] : memref<32x1xf32, #tpu.memory_space<vmem>>, vector<32x1xf32>
    %95 = vector.broadcast %94 : vector<32x1xf32> to vector<32x256xf32>
    %96 = arith.addf %93, %95 : vector<32x256xf32>
    %cst_50 = arith.constant dense<0.000000e+00> : vector<32xf32>
    %97 = vector.multi_reduction <add>, %96, %cst_50 [1] : vector<32x256xf32> to vector<32xf32>
    %98 = vector.shape_cast %97 : vector<32xf32> to vector<32x1xf32>
    %cst_51 = arith.constant 2.560000e+02 : f32
    %99 = vector.broadcast %cst_51 : f32 to vector<32x1xf32>
    %100 = arith.divf %98, %99 : vector<32x1xf32>
    %cst_52 = arith.constant dense<0xFF800000> : vector<32xf32>
    %101 = vector.multi_reduction <maximumf>, %96, %cst_52 [1] : vector<32x256xf32> to vector<32xf32>
    %102 = vector.shape_cast %101 : vector<32xf32> to vector<32x1xf32>
    %c0_53 = arith.constant 0 : index
    %c0_54 = arith.constant 0 : index
    %103 = vector.load %arg5[%c0_53, %c0_54] : memref<4x32xf32, #tpu.memory_space<vmem>>, vector<4x32xf32>
    %cst_55 = arith.constant dense<0.000000e+00> : vector<4x1xf32>
    %104 = tpu.matmul %103, %100, %cst_55 {dimension_numbers = #tpu.dot_dimension_numbers<[1], [0], [0], [1], [0, 0, 1, 1], [], []>} : vector<4x32xf32>, vector<32x1xf32>, vector<4x1xf32> -> vector<4x1xf32>
    %cst_56 = arith.constant 0.000000e+00 : f32
    %105 = vector.broadcast %cst_56 : f32 to vector<4x1xf32>
    %106 = arith.maximumf %104, %105 : vector<4x1xf32>
    %c0_57 = arith.constant 0 : index
    %c0_58 = arith.constant 0 : index
    %107 = vector.load %arg6[%c0_57, %c0_58] : memref<32x4xf32, #tpu.memory_space<vmem>>, vector<32x4xf32>
    %cst_59 = arith.constant dense<0.000000e+00> : vector<32x1xf32>
    %108 = tpu.matmul %107, %106, %cst_59 {dimension_numbers = #tpu.dot_dimension_numbers<[1], [0], [0], [1], [0, 0, 1, 1], [], []>} : vector<32x4xf32>, vector<4x1xf32>, vector<32x1xf32> -> vector<32x1xf32>
    %c0_60 = arith.constant 0 : index
    %c0_61 = arith.constant 0 : index
    %109 = vector.load %arg5[%c0_60, %c0_61] : memref<4x32xf32, #tpu.memory_space<vmem>>, vector<4x32xf32>
    %cst_62 = arith.constant dense<0.000000e+00> : vector<4x1xf32>
    %110 = tpu.matmul %109, %102, %cst_62 {dimension_numbers = #tpu.dot_dimension_numbers<[1], [0], [0], [1], [0, 0, 1, 1], [], []>} : vector<4x32xf32>, vector<32x1xf32>, vector<4x1xf32> -> vector<4x1xf32>
    %cst_63 = arith.constant 0.000000e+00 : f32
    %111 = vector.broadcast %cst_63 : f32 to vector<4x1xf32>
    %112 = arith.maximumf %110, %111 : vector<4x1xf32>
    %c0_64 = arith.constant 0 : index
    %c0_65 = arith.constant 0 : index
    %113 = vector.load %arg6[%c0_64, %c0_65] : memref<32x4xf32, #tpu.memory_space<vmem>>, vector<32x4xf32>
    %cst_66 = arith.constant dense<0.000000e+00> : vector<32x1xf32>
    %114 = tpu.matmul %113, %112, %cst_66 {dimension_numbers = #tpu.dot_dimension_numbers<[1], [0], [0], [1], [0, 0, 1, 1], [], []>} : vector<32x4xf32>, vector<4x1xf32>, vector<32x1xf32> -> vector<32x1xf32>
    %115 = arith.addf %108, %114 : vector<32x1xf32>
    %cst_67 = arith.constant 0.000000e+00 : f32
    %116 = vector.broadcast %cst_67 : f32 to vector<32x1xf32>
    %117 = arith.subf %116, %115 : vector<32x1xf32>
    %118 = math.exp %117 : vector<32x1xf32>
    %cst_68 = arith.constant 1.000000e+00 : f32
    %119 = vector.broadcast %cst_68 : f32 to vector<32x1xf32>
    %120 = arith.addf %119, %118 : vector<32x1xf32>
    %cst_69 = arith.constant 1.000000e+00 : f32
    %121 = vector.broadcast %cst_69 : f32 to vector<32x1xf32>
    %122 = arith.divf %121, %120 : vector<32x1xf32>
    %123 = vector.broadcast %122 : vector<32x1xf32> to vector<32x256xf32>
    %124 = arith.mulf %96, %123 : vector<32x256xf32>
    %125 = arith.addf %124, %0 : vector<32x256xf32>
    %c0_70 = arith.constant 0 : index
    %c0_71 = arith.constant 0 : index
    %126 = vector.load %arg7[%c0_70, %c0_71] : memref<32x256xf32, #tpu.memory_space<vmem>>, vector<32x256xf32>
    tpu.vector_store %arg7[%c0_70, %c0_71], %125 {strides = array<i32>} : memref<32x256xf32, #tpu.memory_space<vmem>>, vector<32x256xf32>,
    return
  }
  func.func @transform_0(%arg0: i32) -> (i32, i32) {
    %c0_i32 = arith.constant 0 : i32
    %c0_i32_0 = arith.constant 0 : i32
    return %c0_i32, %arg0 : i32, i32
  }
  func.func @transform_1(%arg0: i32) -> (i32, i32, i32) {
    %c0_i32 = arith.constant 0 : i32
    %c0_i32_0 = arith.constant 0 : i32
    %c0_i32_1 = arith.constant 0 : i32
    %c0_i32_2 = arith.constant 0 : i32
    return %c0_i32, %c0_i32_0, %c0_i32_1 : i32, i32, i32
  }
  func.func @transform_2(%arg0: i32) -> (i32, i32) {
    %c0_i32 = arith.constant 0 : i32
    %c0_i32_0 = arith.constant 0 : i32
    %c0_i32_1 = arith.constant 0 : i32
    return %c0_i32, %c0_i32_0 : i32, i32
  }
  func.func @transform_3(%arg0: i32) -> (i32, i32, i32) {
    %c0_i32 = arith.constant 0 : i32
    %c0_i32_0 = arith.constant 0 : i32
    %c0_i32_1 = arith.constant 0 : i32
    %c0_i32_2 = arith.constant 0 : i32
    return %c0_i32, %c0_i32_0, %c0_i32_1 : i32, i32, i32
  }
  func.func @transform_4(%arg0: i32) -> (i32, i32) {
    %c0_i32 = arith.constant 0 : i32
    %c0_i32_0 = arith.constant 0 : i32
    %c0_i32_1 = arith.constant 0 : i32
    return %c0_i32, %c0_i32_0 : i32, i32
  }
  func.func @transform_5(%arg0: i32) -> (i32, i32) {
    %c0_i32 = arith.constant 0 : i32
    %c0_i32_0 = arith.constant 0 : i32
    %c0_i32_1 = arith.constant 0 : i32
    return %c0_i32, %c0_i32_0 : i32, i32
  }
  func.func @transform_6(%arg0: i32) -> (i32, i32) {
    %c0_i32 = arith.constant 0 : i32
    %c0_i32_0 = arith.constant 0 : i32
    return %c0_i32, %arg0 : i32, i32
  }
}

</mosaic_0001>

<llo_original>
// kernel: inter_sa_q_forward.4
$region0: #{inter_sa_q_forward.4}
  #allocation0 [shape = 'u32[]', space=smem, size = 0x4, offset = 0x4, fixed_abs, tag = 'smem constant byte address 0x4 - core index']
  #allocation1 [shape = 'u32[144,128]{1,0:T(1,128)}', space=vmem, size = 0x12000, scoped, tag = 'internal scratch']
  %s0 = inlined_call_operand.vmem [shape: f32[32,512], index: 0, kind: input, shape index: {}]
  %s1 = inlined_call_operand.vmem [shape: f32[32,1], index: 1, kind: input, shape index: {}]
  %s2 = inlined_call_operand.vmem [shape: f32[32,1], index: 2, kind: input, shape index: {}]
  %s3 = inlined_call_operand.vmem [shape: bf16[96,32], index: 3, kind: input, shape index: {}]
  %s4 = inlined_call_operand.vmem [shape: f32[96,1], index: 4, kind: input, shape index: {}]
  %s5 = inlined_call_operand.vmem [shape: f32[96,512], index: 5, kind: output, shape index: {}]
  %s6 = sld [smem:[#allocation0]]
  $region30: #{inter_sa_q_forward.4} parent=0
    _
  %s8 = ssub.s32 1, %s6
  %s9 = scalar_select 0, %s8, %s6
  // Predicated region
  $region2: #{inter_sa_q_forward.4} parent=0 // pred_check
    _
  $region3: #{inter_sa_q_forward.4} parent=0 // pred_check_branch
    %11 = sbr.rel (0) target = $region5
  $region4: #{inter_sa_q_forward.4} parent=0 // pred_region
    _
  $region5: #{inter_sa_q_forward.4} parent=0 // pred_fallthru
    _
  // Predicated region
  $region6: #{inter_sa_q_forward.4} parent=0 // pred_check
    _
  $region7: #{inter_sa_q_forward.4} parent=0 // pred_check_branch
    %13 = sbr.rel (0) target = $region9
  $region8: #{inter_sa_q_forward.4} parent=0 // pred_region
    _
  $region9: #{inter_sa_q_forward.4} parent=0 // pred_fallthru
    _
  // Predicated region
  $region10: #{inter_sa_q_forward.4} parent=0 // pred_check
    _
  $region11: #{inter_sa_q_forward.4} parent=0 // pred_check_branch
    %15 = sbr.rel (0) target = $region13
  $region12: #{inter_sa_q_forward.4} parent=0 // pred_region
    _
  $region13: #{inter_sa_q_forward.4} parent=0 // pred_fallthru
    _
  // Predicated region
  $region14: #{inter_sa_q_forward.4} parent=0 // pred_check
    _
  $region15: #{inter_sa_q_forward.4} parent=0 // pred_check_branch
    %17 = sbr.rel (0) target = $region17
  $region16: #{inter_sa_q_forward.4} parent=0 // pred_region
    _
  $region17: #{inter_sa_q_forward.4} parent=0 // pred_fallthru
    _
  // Predicated region
  $region18: #{inter_sa_q_forward.4} parent=0 // pred_check
    _
  $region19: #{inter_sa_q_forward.4} parent=0 // pred_check_branch
    %19 = sbr.rel (0) target = $region21
  $region20: #{inter_sa_q_forward.4} parent=0 // pred_region
    _
  $region21: #{inter_sa_q_forward.4} parent=0 // pred_fallthru
    _
  %v21 = vld [vmem:[%s0] sm:$0xff]
  %v22 = vld [vmem:[%s0 + $0x8] sm:$0xff]
  %v23 = vld [vmem:[%s0 + $0x10] sm:$0xff]
  %v24 = vld [vmem:[%s0 + $0x18] sm:$0xff]
  %v25 = vld [vmem:[%s0 + $0x20] sm:$0xff]
  %v26 = vld [vmem:[%s0 + $0x28] sm:$0xff]
  %v27 = vld [vmem:[%s0 + $0x30] sm:$0xff]
  %v28 = vld [vmem:[%s0 + $0x38] sm:$0xff]
  %v29 = vld [vmem:[%s0 + $0x40] sm:$0xff]
  %v30 = vld [vmem:[%s0 + $0x48] sm:$0xff]
  %v31 = vld [vmem:[%s0 + $0x50] sm:$0xff]
  %v32 = vld [vmem:[%s0 + $0x58] sm:$0xff]
  %v33 = vld [vmem:[%s0 + $0x60] sm:$0xff]
  %v34 = vld [vmem:[%s0 + $0x68] sm:$0xff]
  %v35 = vld [vmem:[%s0 + $0x70] sm:$0xff]
  %v36 = vld [vmem:[%s0 + $0x78] sm:$0xff]
  %v37 = vadd.f32 %v21, %v25
  %v38 = vadd.f32 %v37, %v29
  %v39 = vadd.f32 %v38, %v33
  %v40 = vrot.slane %v39, 4
  %v41 = vadd.f32 %v39, %v40
  %v42 = vrot.slane %v41, 2
  %v43 = vadd.f32 %v41, %v42
  %v44 = vrot.slane %v43, 1
  %v45 = vadd.f32 %v43, %v44
  %v46 = vadd.f32 %v22, %v26
  %v47 = vadd.f32 %v46, %v30
  %v48 = vadd.f32 %v47, %v34
  %v49 = vrot.slane %v48, 4
  %v50 = vadd.f32 %v48, %v49
  %v51 = vrot.slane %v50, 2
  %v52 = vadd.f32 %v50, %v51
  %v53 = vrot.slane %v52, 1
  %v54 = vadd.f32 %v52, %v53
  %v55 = vadd.f32 %v23, %v27
  %v56 = vadd.f32 %v55, %v31
  %v57 = vadd.f32 %v56, %v35
  %v58 = vrot.slane %v57, 4
  %v59 = vadd.f32 %v57, %v58
  %v60 = vrot.slane %v59, 2
  %v61 = vadd.f32 %v59, %v60
  %v62 = vrot.slane %v61, 1
  %v63 = vadd.f32 %v61, %v62
  %v64 = vadd.f32 %v24, %v28
  %v65 = vadd.f32 %v64, %v32
  %v66 = vadd.f32 %v65, %v36
  %v67 = vrot.slane %v66, 4
  %v68 = vadd.f32 %v66, %v67
  %v69 = vrot.slane %v68, 2
  %v70 = vadd.f32 %v68, %v69
  %v71 = vrot.slane %v70, 1
  %v72 = vadd.f32 %v70, %v71
  %v73 = vrcp.pop 32.0
  %v74 = vmul.f32 %v45, %v73
  %v75 = vmul.f32 %v54, %v73
  %v76 = vmul.f32 %v63, %v73
  %v77 = vmul.f32 %v72, %v73
  %v78 = vmul.f32 %v21, %v21
  %v79 = vmul.f32 %v22, %v22
  %v80 = vmul.f32 %v23, %v23
  %v81 = vmul.f32 %v24, %v24
  %v82 = vmul.f32 %v25, %v25
  %v83 = vmul.f32 %v26, %v26
  %v84 = vmul.f32 %v27, %v27
  %v85 = vmul.f32 %v28, %v28
  %v86 = vmul.f32 %v29, %v29
  %v87 = vmul.f32 %v30, %v30
  %v88 = vmul.f32 %v31, %v31
  %v89 = vmul.f32 %v32, %v32
  %v90 = vmul.f32 %v33, %v33
  %v91 = vmul.f32 %v34, %v34
  %v92 = vmul.f32 %v35, %v35
  %v93 = vmul.f32 %v36, %v36
  %v94 = vadd.f32 %v78, %v82
  %v95 = vadd.f32 %v94, %v86
  %v96 = vadd.f32 %v95, %v90
  %v97 = vrot.slane %v96, 4
  %v98 = vadd.f32 %v96, %v97
  %v99 = vrot.slane %v98, 2
  %v100 = vadd.f32 %v98, %v99
  %v101 = vrot.slane %v100, 1
  %v102 = vadd.f32 %v100, %v101
  %v103 = vadd.f32 %v79, %v83
  %v104 = vadd.f32 %v103, %v87
  %v105 = vadd.f32 %v104, %v91
  %v106 = vrot.slane %v105, 4
  %v107 = vadd.f32 %v105, %v106
  %v108 = vrot.slane %v107, 2
  %v109 = vadd.f32 %v107, %v108
  %v110 = vrot.slane %v109, 1
  %v111 = vadd.f32 %v109, %v110
  %v112 = vadd.f32 %v80, %v84
  %v113 = vadd.f32 %v112, %v88
  %v114 = vadd.f32 %v113, %v92
  %v115 = vrot.slane %v114, 4
  %v116 = vadd.f32 %v114, %v115
  %v117 = vrot.slane %v116, 2
  %v118 = vadd.f32 %v116, %v117
  %v119 = vrot.slane %v118, 1
  %v120 = vadd.f32 %v118, %v119
  %v121 = vadd.f32 %v81, %v85
  %v122 = vadd.f32 %v121, %v89
  %v123 = vadd.f32 %v122, %v93
  %v124 = vrot.slane %v123, 4
  %v125 = vadd.f32 %v123, %v124
  %v126 = vrot.slane %v125, 2
  %v127 = vadd.f32 %v125, %v126
  %v128 = vrot.slane %v127, 1
  %v129 = vadd.f32 %v127, %v128
  %v130 = vmul.f32 %v102, %v73
  %v131 = vmul.f32 %v111, %v73
  %v132 = vmul.f32 %v120, %v73
  %v133 = vmul.f32 %v129, %v73
  %v134 = vmul.f32 %v74, %v74
  %v135 = vmul.f32 %v75, %v75
  %v136 = vmul.f32 %v76, %v76
  %v137 = vmul.f32 %v77, %v77
  %v138 = vsub.f32 %v130, %v134
  %v139 = vsub.f32 %v131, %v135
  %v140 = vsub.f32 %v132, %v136
  %v141 = vsub.f32 %v133, %v137
  %v142 = vsub.f32 %v21, %v74
  %v143 = vsub.f32 %v22, %v75
  %v144 = vsub.f32 %v23, %v76
  %v145 = vsub.f32 %v24, %v77
  %v146 = vsub.f32 %v25, %v74
  %v147 = vsub.f32 %v26, %v75
  %v148 = vsub.f32 %v27, %v76
  %v149 = vsub.f32 %v28, %v77
  %v150 = vsub.f32 %v29, %v74
  %v151 = vsub.f32 %v30, %v75
  %v152 = vsub.f32 %v31, %v76
  %v153 = vsub.f32 %v32, %v77
  %v154 = vsub.f32 %v33, %v74
  %v155 = vsub.f32 %v34, %v75
  %v156 = vsub.f32 %v35, %v76
  %v157 = vsub.f32 %v36, %v77
  %v158 = vadd.f32 %v138, 1e-05
  %v159 = vadd.f32 %v139, 1e-05
  %v160 = vadd.f32 %v140, 1e-05
  %v161 = vadd.f32 %v141, 1e-05
  %v162 = vrsqrt.pop %v158
  %v163 = vrsqrt.pop %v159
  %v164 = vrsqrt.pop %v160
  %v165 = vrsqrt.pop %v161
  %v166 = vmul.f32 %v142, %v162
  %v167 = vmul.f32 %v143, %v163
  %v168 = vmul.f32 %v144, %v164
  %v169 = vmul.f32 %v145, %v165
  %v170 = vmul.f32 %v146, %v162
  %v171 = vmul.f32 %v147, %v163
  %v172 = vmul.f32 %v148, %v164
  %v173 = vmul.f32 %v149, %v165
  %v174 = vmul.f32 %v150, %v162
  %v175 = vmul.f32 %v151, %v163
  %v176 = vmul.f32 %v152, %v164
  %v177 = vmul.f32 %v153, %v165
  %v178 = vmul.f32 %v154, %v162
  %v179 = vmul.f32 %v155, %v163
  %v180 = vmul.f32 %v156, %v164
  %v181 = vmul.f32 %v157, %v165
  %v182 = vld [vmem:[%s1] sm:$0xff]
  %v183 = vld [vmem:[%s1 + $0x8] sm:$0xff]
  %v184 = vld [vmem:[%s1 + $0x10] sm:$0xff]
  %v185 = vld [vmem:[%s1 + $0x18] sm:$0xff]
  %187 = vset.pattern.permute.xlu0 0
  %188 = vperm.xlu0 %187, %v182
  %v189 = vpop.permute.xlu0 %188
  %192 = vset.pattern.permute.xlu0 0
  %193 = vperm.xlu0 %192, %v183
  %v194 = vpop.permute.xlu0 %193
  %197 = vset.pattern.permute.xlu0 0
  %198 = vperm.xlu0 %197, %v184
  %v199 = vpop.permute.xlu0 %198
  %202 = vset.pattern.permute.xlu0 0
  %203 = vperm.xlu0 %202, %v185
  %v204 = vpop.permute.xlu0 %203
  %v206 = vmul.f32 %v166, %v189
  %v207 = vmul.f32 %v167, %v189
  %v208 = vmul.f32 %v168, %v189
  %v209 = vmul.f32 %v169, %v189
  %v210 = vmul.f32 %v170, %v194
  %v211 = vmul.f32 %v171, %v194
  %v212 = vmul.f32 %v172, %v194
  %v213 = vmul.f32 %v173, %v194
  %v214 = vmul.f32 %v174, %v199
  %v215 = vmul.f32 %v175, %v199
  %v216 = vmul.f32 %v176, %v199
  %v217 = vmul.f32 %v177, %v199
  %v218 = vmul.f32 %v178, %v204
  %v219 = vmul.f32 %v179, %v204
  %v220 = vmul.f32 %v180, %v204
  %v221 = vmul.f32 %v181, %v204
  %v222 = vld [vmem:[%s2] sm:$0xff]
  %v223 = vld [vmem:[%s2 + $0x8] sm:$0xff]
  %v224 = vld [vmem:[%s2 + $0x10] sm:$0xff]
  %v225 = vld [vmem:[%s2 + $0x18] sm:$0xff]
  %227 = vset.pattern.permute.xlu0 0
  %228 = vperm.xlu0 %227, %v222
  %v229 = vpop.permute.xlu0 %228
  %232 = vset.pattern.permute.xlu0 0
  %233 = vperm.xlu0 %232, %v223
  %v234 = vpop.permute.xlu0 %233
  %237 = vset.pattern.permute.xlu0 0
  %238 = vperm.xlu0 %237, %v224
  %v239 = vpop.permute.xlu0 %238
  %242 = vset.pattern.permute.xlu0 0
  %243 = vperm.xlu0 %242, %v225
  %v244 = vpop.permute.xlu0 %243
  %v246 = vadd.f32 %v206, %v229
  %v247 = vadd.f32 %v207, %v229
  %v248 = vadd.f32 %v208, %v229
  %v249 = vadd.f32 %v209, %v229
  %v250 = vadd.f32 %v210, %v234
  %v251 = vadd.f32 %v211, %v234
  %v252 = vadd.f32 %v212, %v234
  %v253 = vadd.f32 %v213, %v234
  %v254 = vadd.f32 %v214, %v239
  %v255 = vadd.f32 %v215, %v239
  %v256 = vadd.f32 %v216, %v239
  %v257 = vadd.f32 %v217, %v239
  %v258 = vadd.f32 %v218, %v244
  %v259 = vadd.f32 %v219, %v244
  %v260 = vadd.f32 %v220, %v244
  %v261 = vadd.f32 %v221, %v244
  %v262 = vld [vmem:[%s3] sm:$0xf]
  %v263 = vld [vmem:[%s3 + $0x4] sm:$0xf]
  %v264 = vld [vmem:[%s3 + $0x8] sm:$0xf]
  %v265 = vld [vmem:[%s3 + $0xc] sm:$0xf]
  %v266 = vld [vmem:[%s3 + $0x10] sm:$0xf]
  %v267 = vld [vmem:[%s3 + $0x14] sm:$0xf]
  %v268 = vld [vmem:[%s3 + $0x18] sm:$0xf]
  %v269 = vld [vmem:[%s3 + $0x1c] sm:$0xf]
  %v270 = vld [vmem:[%s3 + $0x20] sm:$0xf]
  %v271 = vld [vmem:[%s3 + $0x24] sm:$0xf]
  %v272 = vld [vmem:[%s3 + $0x28] sm:$0xf]
  %v273 = vld [vmem:[%s3 + $0x2c] sm:$0xf]
  %v274 = vpack.c.bf16 %v250, %v246
  %v275 = vpack.c.bf16 %v251, %v247
  %v276 = vpack.c.bf16 %v252, %v248
  %v277 = vpack.c.bf16 %v253, %v249
  %v278 = vpack.c.bf16 %v258, %v254
  %v279 = vpack.c.bf16 %v259, %v255
  %v280 = vpack.c.bf16 %v260, %v256
  %v281 = vpack.c.bf16 %v261, %v257
  %v282 = vld [vmem:[%s4] sm:$0xff]
  %v283 = vld [vmem:[%s4 + $0x8] sm:$0xff]
  %v284 = vld [vmem:[%s4 + $0x10] sm:$0xff]
  %v285 = vld [vmem:[%s4 + $0x18] sm:$0xff]
  %v286 = vld [vmem:[%s4 + $0x20] sm:$0xff]
  %v287 = vld [vmem:[%s4 + $0x28] sm:$0xff]
  %v288 = vld [vmem:[%s4 + $0x30] sm:$0xff]
  %v289 = vld [vmem:[%s4 + $0x38] sm:$0xff]
  %v290 = vld [vmem:[%s4 + $0x40] sm:$0xff]
  %v291 = vld [vmem:[%s4 + $0x48] sm:$0xff]
  %v292 = vld [vmem:[%s4 + $0x50] sm:$0xff]
  %v293 = vld [vmem:[%s4 + $0x58] sm:$0xff]
  %295 = vset.pattern.permute.xlu0 0
  %296 = vperm.xlu0 %295, %v282
  %v297 = vpop.permute.xlu0 %296
  %300 = vset.pattern.permute.xlu0 0
  %301 = vperm.xlu0 %300, %v283
  %v302 = vpop.permute.xlu0 %301
  %305 = vset.pattern.permute.xlu0 0
  %306 = vperm.xlu0 %305, %v284
  %v307 = vpop.permute.xlu0 %306
  %310 = vset.pattern.permute.xlu0 0
  %311 = vperm.xlu0 %310, %v285
  %v312 = vpop.permute.xlu0 %311
  %315 = vset.pattern.permute.xlu0 0
  %316 = vperm.xlu0 %315, %v286
  %v317 = vpop.permute.xlu0 %316
  %320 = vset.pattern.permute.xlu0 0
  %321 = vperm.xlu0 %320, %v287
  %v322 = vpop.permute.xlu0 %321
  %325 = vset.pattern.permute.xlu0 0
  %326 = vperm.xlu0 %325, %v288
  %v327 = vpop.permute.xlu0 %326
  %330 = vset.pattern.permute.xlu0 0
  %331 = vperm.xlu0 %330, %v289
  %v332 = vpop.permute.xlu0 %331
  %335 = vset.pattern.permute.xlu0 0
  %336 = vperm.xlu0 %335, %v290
  %v337 = vpop.permute.xlu0 %336
  %340 = vset.pattern.permute.xlu0 0
  %341 = vperm.xlu0 %340, %v291
  %v342 = vpop.permute.xlu0 %341
  %345 = vset.pattern.permute.xlu0 0
  %346 = vperm.xlu0 %345, %v292
  %v347 = vpop.permute.xlu0 %346
  %350 = vset.pattern.permute.xlu0 0
  %351 = vperm.xlu0 %350, %v293
  %v352 = vpop.permute.xlu0 %351
  %v366 = vunpack.c.l.b16 %v262
  %v367 = vunpack.c.l.b16 %v263
  %v368 = vunpack.c.l.b16 %v264
  %v369 = vunpack.c.l.b16 %v265
  %v370 = vunpack.c.l.b16 %v266
  %v371 = vunpack.c.l.b16 %v267
  %v372 = vunpack.c.l.b16 %v268
  %v373 = vunpack.c.l.b16 %v269
  %v374 = vunpack.c.l.b16 %v270
  %v375 = vunpack.c.l.b16 %v271
  %v376 = vunpack.c.l.b16 %v272
  %v377 = vunpack.c.l.b16 %v273
  %v378 = vpack.c.b16 %v367, %v366
  %v379 = vpack.c.b16 %v369, %v368
  %v380 = vpack.c.b16 %v371, %v370
  %v381 = vpack.c.b16 %v373, %v372
  %v382 = vpack.c.b16 %v375, %v374
  %v383 = vpack.c.b16 %v377, %v376
  %vm384 = vcmask 261120
  %v386 = vsel %vm384, %v378, 0
  %v389 = vsel %vm384, %v379, 0
  %v392 = vsel %vm384, %v380, 0
  %v395 = vsel %vm384, %v381, 0
  %v398 = vsel %vm384, %v382, 0
  %v401 = vsel %vm384, %v383, 0
  %403 = vmatprep.subr.bf16.mxu0 %v275
  %404 = vmatpush1.bf16.msra.mxu0 %v274
  %405 = vmatprep.subr.bf16.mxu0 %v279
  %406 = vmatpush1.bf16.msra.mxu0 %v278
  %407 = vmatprep.subr.bf16.mxu0 0
  %408 = vmatpush1.bf16.msra.mxu0 0
  %409 = vmatprep.subr.bf16.mxu0 0
  %410 = vmatpush1.bf16.msra.mxu0 0
  %411 = vmatprep.subr.bf16.mxu0 0
  %412 = vmatpush1.bf16.msra.mxu0 0
  %413 = vmatprep.subr.bf16.mxu0 0
  %414 = vmatpush1.bf16.msra.mxu0 0
  %415 = vmatprep.subr.bf16.mxu0 0
  %416 = vmatpush1.bf16.msra.mxu0 0
  %417 = vmatprep.subr.bf16.mxu0 0
  %418 = vmatpush1.bf16.msra.mxu0 0
  %419 = vmatprep.subr.bf16.mxu0 0
  %420 = vmatpush1.bf16.msra.mxu0 0
  %421 = vmatprep.subr.bf16.mxu0 0
  %422 = vmatpush1.bf16.msra.mxu0 0
  %423 = vmatprep.subr.bf16.mxu0 0
  %424 = vmatpush1.bf16.msra.mxu0 0
  %425 = vmatprep.subr.bf16.mxu0 0
  %426 = vmatpush1.bf16.msra.mxu0 0
  %427 = vmatprep.subr.bf16.mxu0 0
  %428 = vmatpush1.bf16.msra.mxu0 0
  %429 = vmatprep.subr.bf16.mxu0 0
  %430 = vmatpush1.bf16.msra.mxu0 0
  %431 = vmatprep.subr.bf16.mxu0 0
  %432 = vmatpush1.bf16.msra.mxu0 0
  %433 = vmatprep.subr.bf16.mxu0 0
  %434 = vmatpush1.bf16.msra.mxu0 0
  %435 = vmatprep.mubr.bf16.mxu0 0
  %436 = vmatmul.mubr.bf16.gmra.mrb[0].mxu0 %v386
  %v437 = vpop.f32.mrb[0].mxu0
  %v438 = vadd.f32 %v297, %v437
  %v439 = vpop.f32.mrb[0].mxu0
  %v440 = vadd.f32 %v297, %v439
  %v441 = vpop.f32.mrb[0].mxu0
  %v442 = vadd.f32 %v302, %v441
  %v443 = vpop.f32.mrb[0].mxu0
  %v444 = vadd.f32 %v302, %v443
  %445 = vmatprep.mubr.bf16.mxu0 0
  %446 = vmatmul.mubr.bf16.gmra.mrb[0].mxu0 %v389
  %v447 = vpop.f32.mrb[0].mxu0
  %v448 = vadd.f32 %v307, %v447
  %v449 = vpop.f32.mrb[0].mxu0
  %v450 = vadd.f32 %v307, %v449
  %v451 = vpop.f32.mrb[0].mxu0
  %v452 = vadd.f32 %v312, %v451
  %v453 = vpop.f32.mrb[0].mxu0
  %v454 = vadd.f32 %v312, %v453
  %455 = vmatprep.mubr.bf16.mxu0 0
  %456 = vmatmul.mubr.bf16.gmra.mrb[0].mxu0 %v392
  %v457 = vpop.f32.mrb[0].mxu0
  %v458 = vadd.f32 %v317, %v457
  %v459 = vpop.f32.mrb[0].mxu0
  %v460 = vadd.f32 %v317, %v459
  %v461 = vpop.f32.mrb[0].mxu0
  %v462 = vadd.f32 %v322, %v461
  %v463 = vpop.f32.mrb[0].mxu0
  %v464 = vadd.f32 %v322, %v463
  %465 = vmatprep.mubr.bf16.mxu0 0
  %466 = vmatmul.mubr.bf16.gmra.mrb[0].mxu0 %v395
  %v467 = vpop.f32.mrb[0].mxu0
  %v468 = vadd.f32 %v327, %v467
  %v469 = vpop.f32.mrb[0].mxu0
  %v470 = vadd.f32 %v327, %v469
  %v471 = vpop.f32.mrb[0].mxu0
  %v472 = vadd.f32 %v332, %v471
  %v473 = vpop.f32.mrb[0].mxu0
  %v474 = vadd.f32 %v332, %v473
  %475 = vmatprep.mubr.bf16.mxu0 0
  %476 = vmatmul.mubr.bf16.gmra.mrb[0].mxu0 %v398
  %v477 = vpop.f32.mrb[0].mxu0
  %v478 = vadd.f32 %v337, %v477
  %v479 = vpop.f32.mrb[0].mxu0
  %v480 = vadd.f32 %v337, %v479
  %v481 = vpop.f32.mrb[0].mxu0
  %v482 = vadd.f32 %v342, %v481
  %v483 = vpop.f32.mrb[0].mxu0
  %v484 = vadd.f32 %v342, %v483
  %485 = vmatprep.mubr.bf16.mxu0 0
  %486 = vmatmul.mubr.bf16.gmra.mrb[0].mxu0 %v401
  %v487 = vpop.f32.mrb[0].mxu0
  %v488 = vadd.f32 %v347, %v487
  %v489 = vpop.f32.mrb[0].mxu0
  %v490 = vadd.f32 %v347, %v489
  %v491 = vpop.f32.mrb[0].mxu0
  %v492 = vadd.f32 %v352, %v491
  %v493 = vpop.f32.mrb[0].mxu0
  %v494 = vadd.f32 %v352, %v493
  %495 = vdwg.mxu0
  %496 = vmatprep.subr.bf16.mxu0 %v277
  %497 = vmatpush1.bf16.msra.mxu0 %v276
  %498 = vmatprep.subr.bf16.mxu0 %v281
  %499 = vmatpush1.bf16.msra.mxu0 %v280
  %500 = vmatprep.subr.bf16.mxu0 0
  %501 = vmatpush1.bf16.msra.mxu0 0
  %502 = vmatprep.subr.bf16.mxu0 0
  %503 = vmatpush1.bf16.msra.mxu0 0
  %504 = vmatprep.subr.bf16.mxu0 0
  %505 = vmatpush1.bf16.msra.mxu0 0
  %506 = vmatprep.subr.bf16.mxu0 0
  %507 = vmatpush1.bf16.msra.mxu0 0
  %508 = vmatprep.subr.bf16.mxu0 0
  %509 = vmatpush1.bf16.msra.mxu0 0
  %510 = vmatprep.subr.bf16.mxu0 0
  %511 = vmatpush1.bf16.msra.mxu0 0
  %512 = vmatprep.subr.bf16.mxu0 0
  %513 = vmatpush1.bf16.msra.mxu0 0
  %514 = vmatprep.subr.bf16.mxu0 0
  %515 = vmatpush1.bf16.msra.mxu0 0
  %516 = vmatprep.subr.bf16.mxu0 0
  %517 = vmatpush1.bf16.msra.mxu0 0
  %518 = vmatprep.subr.bf16.mxu0 0
  %519 = vmatpush1.bf16.msra.mxu0 0
  %520 = vmatprep.subr.bf16.mxu0 0
  %521 = vmatpush1.bf16.msra.mxu0 0
  %522 = vmatprep.subr.bf16.mxu0 0
  %523 = vmatpush1.bf16.msra.mxu0 0
  %524 = vmatprep.subr.bf16.mxu0 0
  %525 = vmatpush1.bf16.msra.mxu0 0
  %526 = vmatprep.subr.bf16.mxu0 0
  %527 = vmatpush1.bf16.msra.mxu0 0
  %528 = vmatprep.mubr.bf16.mxu0 0
  %529 = vmatmul.mubr.bf16.gmra.mrb[0].mxu0 %v386
  %v530 = vpop.f32.mrb[0].mxu0
  %v531 = vadd.f32 %v297, %v530
  %v532 = vpop.f32.mrb[0].mxu0
  %v533 = vadd.f32 %v297, %v532
  %v534 = vpop.f32.mrb[0].mxu0
  %v535 = vadd.f32 %v302, %v534
  %v536 = vpop.f32.mrb[0].mxu0
  %v537 = vadd.f32 %v302, %v536
  %538 = vmatprep.mubr.bf16.mxu0 0
  %539 = vmatmul.mubr.bf16.gmra.mrb[0].mxu0 %v389
  %v540 = vpop.f32.mrb[0].mxu0
  %v541 = vadd.f32 %v307, %v540
  %v542 = vpop.f32.mrb[0].mxu0
  %v543 = vadd.f32 %v307, %v542
  %v544 = vpop.f32.mrb[0].mxu0
  %v545 = vadd.f32 %v312, %v544
  %v546 = vpop.f32.mrb[0].mxu0
  %v547 = vadd.f32 %v312, %v546
  %548 = vmatprep.mubr.bf16.mxu0 0
  %549 = vmatmul.mubr.bf16.gmra.mrb[0].mxu0 %v392
  %v550 = vpop.f32.mrb[0].mxu0
  %v551 = vadd.f32 %v317, %v550
  %v552 = vpop.f32.mrb[0].mxu0
  %v553 = vadd.f32 %v317, %v552
  %v554 = vpop.f32.mrb[0].mxu0
  %v555 = vadd.f32 %v322, %v554
  %v556 = vpop.f32.mrb[0].mxu0
  %v557 = vadd.f32 %v322, %v556
  %558 = vmatprep.mubr.bf16.mxu0 0
  %559 = vmatmul.mubr.bf16.gmra.mrb[0].mxu0 %v395
  %v560 = vpop.f32.mrb[0].mxu0
  %v561 = vadd.f32 %v327, %v560
  %v562 = vpop.f32.mrb[0].mxu0
  %v563 = vadd.f32 %v327, %v562
  %v564 = vpop.f32.mrb[0].mxu0
  %v565 = vadd.f32 %v332, %v564
  %v566 = vpop.f32.mrb[0].mxu0
  %v567 = vadd.f32 %v332, %v566
  %568 = vmatprep.mubr.bf16.mxu0 0
  %569 = vmatmul.mubr.bf16.gmra.mrb[0].mxu0 %v398
  %v570 = vpop.f32.mrb[0].mxu0
  %v571 = vadd.f32 %v337, %v570
  %v572 = vpop.f32.mrb[0].mxu0
  %v573 = vadd.f32 %v337, %v572
  %v574 = vpop.f32.mrb[0].mxu0
  %v575 = vadd.f32 %v342, %v574
  %v576 = vpop.f32.mrb[0].mxu0
  %v577 = vadd.f32 %v342, %v576
  %578 = vmatprep.mubr.bf16.mxu0 0
  %579 = vmatmul.mubr.bf16.gmra.mrb[0].mxu0 %v401
  %v580 = vpop.f32.mrb[0].mxu0
  %v581 = vadd.f32 %v347, %v580
  %v582 = vpop.f32.mrb[0].mxu0
  %v583 = vadd.f32 %v347, %v582
  %v584 = vpop.f32.mrb[0].mxu0
  %v585 = vadd.f32 %v352, %v584
  %v586 = vpop.f32.mrb[0].mxu0
  %v587 = vadd.f32 %v352, %v586
  %588 = vdwg.mxu0
  %589 = vst [vmem:[%s5] sm:$0xff] %v438
  %590 = vst [vmem:[%s5 + $0x8] sm:$0xff] %v440
  %591 = vst [vmem:[%s5 + $0x10] sm:$0xff] %v531
  %592 = vst [vmem:[%s5 + $0x18] sm:$0xff] %v533
  %593 = vst [vmem:[%s5 + $0x20] sm:$0xff] %v442
  %594 = vst [vmem:[%s5 + $0x28] sm:$0xff] %v444
  %595 = vst [vmem:[%s5 + $0x30] sm:$0xff] %v535
  %596 = vst [vmem:[%s5 + $0x38] sm:$0xff] %v537
  %597 = vst [vmem:[%s5 + $0x40] sm:$0xff] %v448
  %598 = vst [vmem:[%s5 + $0x48] sm:$0xff] %v450
  %599 = vst [vmem:[%s5 + $0x50] sm:$0xff] %v541
  %600 = vst [vmem:[%s5 + $0x58] sm:$0xff] %v543
  %601 = vst [vmem:[%s5 + $0x60] sm:$0xff] %v452
  %602 = vst [vmem:[%s5 + $0x68] sm:$0xff] %v454
  %603 = vst [vmem:[%s5 + $0x70] sm:$0xff] %v545
  %604 = vst [vmem:[%s5 + $0x78] sm:$0xff] %v547
  %605 = vst [vmem:[%s5 + $0x80] sm:$0xff] %v458
  %606 = vst [vmem:[%s5 + $0x88] sm:$0xff] %v460
  %607 = vst [vmem:[%s5 + $0x90] sm:$0xff] %v551
  %608 = vst [vmem:[%s5 + $0x98] sm:$0xff] %v553
  %609 = vst [vmem:[%s5 + $0xa0] sm:$0xff] %v462
  %610 = vst [vmem:[%s5 + $0xa8] sm:$0xff] %v464
  %611 = vst [vmem:[%s5 + $0xb0] sm:$0xff] %v555
  %612 = vst [vmem:[%s5 + $0xb8] sm:$0xff] %v557
  %613 = vst [vmem:[%s5 + $0xc0] sm:$0xff] %v468
  %614 = vst [vmem:[%s5 + $0xc8] sm:$0xff] %v470
  %615 = vst [vmem:[%s5 + $0xd0] sm:$0xff] %v561
  %616 = vst [vmem:[%s5 + $0xd8] sm:$0xff] %v563
  %617 = vst [vmem:[%s5 + $0xe0] sm:$0xff] %v472
  %618 = vst [vmem:[%s5 + $0xe8] sm:$0xff] %v474
  %619 = vst [vmem:[%s5 + $0xf0] sm:$0xff] %v565
  %620 = vst [vmem:[%s5 + $0xf8] sm:$0xff] %v567
  %621 = vst [vmem:[%s5 + $0x100] sm:$0xff] %v478
  %622 = vst [vmem:[%s5 + $0x108] sm:$0xff] %v480
  %623 = vst [vmem:[%s5 + $0x110] sm:$0xff] %v571
  %624 = vst [vmem:[%s5 + $0x118] sm:$0xff] %v573
  %625 = vst [vmem:[%s5 + $0x120] sm:$0xff] %v482
  %626 = vst [vmem:[%s5 + $0x128] sm:$0xff] %v484
  %627 = vst [vmem:[%s5 + $0x130] sm:$0xff] %v575
  %628 = vst [vmem:[%s5 + $0x138] sm:$0xff] %v577
  %629 = vst [vmem:[%s5 + $0x140] sm:$0xff] %v488
  %630 = vst [vmem:[%s5 + $0x148] sm:$0xff] %v490
  %631 = vst [vmem:[%s5 + $0x150] sm:$0xff] %v581
  %632 = vst [vmem:[%s5 + $0x158] sm:$0xff] %v583
  %633 = vst [vmem:[%s5 + $0x160] sm:$0xff] %v492
  %634 = vst [vmem:[%s5 + $0x168] sm:$0xff] %v494
  %635 = vst [vmem:[%s5 + $0x170] sm:$0xff] %v585
  %636 = vst [vmem:[%s5 + $0x178] sm:$0xff] %v587
  // Predicated region
  $region22: #{inter_sa_q_forward.4} parent=0 // pred_check
    _
  $region23: #{inter_sa_q_forward.4} parent=0 // pred_check_branch
    %638 = sbr.rel (0) target = $region25
  $region24: #{inter_sa_q_forward.4} parent=0 // pred_region
    _
  $region25: #{inter_sa_q_forward.4} parent=0 // pred_fallthru
    _
  // Predicated region
  $region26: #{inter_sa_q_forward.4} parent=0 // pred_check
    _
  $region27: #{inter_sa_q_forward.4} parent=0 // pred_check_branch
    %640 = sbr.rel (0) target = $region29
  $region28: #{inter_sa_q_forward.4} parent=0 // pred_region
    _
  $region29: #{inter_sa_q_forward.4} parent=0 // pred_fallthru
    _

// kernel: inter_sa_q_forward.5
$region0: #{inter_sa_q_forward.5}
  #allocation0 [shape = 'u32[]', space=smem, size = 0x4, offset = 0x4, fixed_abs, tag = 'smem constant byte address 0x4 - core index']
  #allocation1 [shape = 'u32[144,128]{1,0:T(1,128)}', space=vmem, size = 0x12000, scoped, tag = 'internal scratch']
  %s0 = inlined_call_operand.vmem [shape: f32[4,16,256], index: 0, kind: input, shape index: {}]
  %s1 = inlined_call_operand.vmem [shape: f32[4,16,256], index: 1, kind: input, shape index: {}]
  %s2 = inlined_call_operand.vmem [shape: f32[4,16,256], index: 2, kind: input, shape index: {}]
  %s3 = inlined_call_operand.vmem [shape: f32[4,16,256], index: 3, kind: output, shape index: {}]
  %s4 = sld [smem:[#allocation0]]
  $region22: #{inter_sa_q_forward.5} parent=0
    _
  %s6 = ssub.s32 1, %s4
  %s7 = scalar_select 0, %s6, %s4
  // Predicated region
  $region2: #{inter_sa_q_forward.5} parent=0 // pred_check
    _
  $region3: #{inter_sa_q_forward.5} parent=0 // pred_check_branch
    %9 = sbr.rel (0) target = $region5
  $region4: #{inter_sa_q_forward.5} parent=0 // pred_region
    _
  $region5: #{inter_sa_q_forward.5} parent=0 // pred_fallthru
    _
  // Predicated region
  $region6: #{inter_sa_q_forward.5} parent=0 // pred_check
    _
  $region7: #{inter_sa_q_forward.5} parent=0 // pred_check_branch
    %11 = sbr.rel (0) target = $region9
  $region8: #{inter_sa_q_forward.5} parent=0 // pred_region
    _
  $region9: #{inter_sa_q_forward.5} parent=0 // pred_fallthru
    _
  // Predicated region
  $region10: #{inter_sa_q_forward.5} parent=0 // pred_check
    _
  $region11: #{inter_sa_q_forward.5} parent=0 // pred_check_branch
    %13 = sbr.rel (0) target = $region13
  $region12: #{inter_sa_q_forward.5} parent=0 // pred_region
    _
  $region13: #{inter_sa_q_forward.5} parent=0 // pred_fallthru
    _
  %v15 = vld [vmem:[%s0] sm:$0xff]
  %v16 = vld [vmem:[%s0 + $0x8] sm:$0xff]
  %v17 = vld [vmem:[%s0 + $0x10] sm:$0xff]
  %v18 = vld [vmem:[%s0 + $0x18] sm:$0xff]
  %v19 = vld [vmem:[%s0 + $0x20] sm:$0xff]
  %v20 = vld [vmem:[%s0 + $0x28] sm:$0xff]
  %v21 = vld [vmem:[%s0 + $0x30] sm:$0xff]
  %v22 = vld [vmem:[%s0 + $0x38] sm:$0xff]
  %v23 = vld [vmem:[%s0 + $0x40] sm:$0xff]
  %v24 = vld [vmem:[%s0 + $0x48] sm:$0xff]
  %v25 = vld [vmem:[%s0 + $0x50] sm:$0xff]
  %v26 = vld [vmem:[%s0 + $0x58] sm:$0xff]
  %v27 = vld [vmem:[%s0 + $0x60] sm:$0xff]
  %v28 = vld [vmem:[%s0 + $0x68] sm:$0xff]
  %v29 = vld [vmem:[%s0 + $0x70] sm:$0xff]
  %v30 = vld [vmem:[%s0 + $0x78] sm:$0xff]
  %v31 = vld [vmem:[%s1] sm:$0xff]
  %v32 = vld [vmem:[%s1 + $0x8] sm:$0xff]
  %v33 = vld [vmem:[%s1 + $0x10] sm:$0xff]
  %v34 = vld [vmem:[%s1 + $0x18] sm:$0xff]
  %v35 = vld [vmem:[%s1 + $0x20] sm:$0xff]
  %v36 = vld [vmem:[%s1 + $0x28] sm:$0xff]
  %v37 = vld [vmem:[%s1 + $0x30] sm:$0xff]
  %v38 = vld [vmem:[%s1 + $0x38] sm:$0xff]
  %v39 = vld [vmem:[%s1 + $0x40] sm:$0xff]
  %v40 = vld [vmem:[%s1 + $0x48] sm:$0xff]
  %v41 = vld [vmem:[%s1 + $0x50] sm:$0xff]
  %v42 = vld [vmem:[%s1 + $0x58] sm:$0xff]
  %v43 = vld [vmem:[%s1 + $0x60] sm:$0xff]
  %v44 = vld [vmem:[%s1 + $0x68] sm:$0xff]
  %v45 = vld [vmem:[%s1 + $0x70] sm:$0xff]
  %v46 = vld [vmem:[%s1 + $0x78] sm:$0xff]
  %v47 = vld [vmem:[%s2] sm:$0xff]
  %v48 = vld [vmem:[%s2 + $0x8] sm:$0xff]
  %v49 = vld [vmem:[%s2 + $0x10] sm:$0xff]
  %v50 = vld [vmem:[%s2 + $0x18] sm:$0xff]
  %v51 = vld [vmem:[%s2 + $0x20] sm:$0xff]
  %v52 = vld [vmem:[%s2 + $0x28] sm:$0xff]
  %v53 = vld [vmem:[%s2 + $0x30] sm:$0xff]
  %v54 = vld [vmem:[%s2 + $0x38] sm:$0xff]
  %v55 = vld [vmem:[%s2 + $0x40] sm:$0xff]
  %v56 = vld [vmem:[%s2 + $0x48] sm:$0xff]
  %v57 = vld [vmem:[%s2 + $0x50] sm:$0xff]
  %v58 = vld [vmem:[%s2 + $0x58] sm:$0xff]
  %v59 = vld [vmem:[%s2 + $0x60] sm:$0xff]
  %v60 = vld [vmem:[%s2 + $0x68] sm:$0xff]
  %v61 = vld [vmem:[%s2 + $0x70] sm:$0xff]
  %v62 = vld [vmem:[%s2 + $0x78] sm:$0xff]
  %v63 = vpack.c.bf16 %v17, %v15
  %v64 = vpack.c.bf16 %v21, %v19
  %v65 = vpack.c.bf16 %v25, %v23
  %v66 = vpack.c.bf16 %v29, %v27
  %v67 = vpack.c.bf16 %v33, %v31
  %v68 = vpack.c.bf16 %v37, %v35
  %v69 = vpack.c.bf16 %v41, %v39
  %v70 = vpack.c.bf16 %v45, %v43
  %v71 = vpack.c.bf16 %v49, %v47
  %v72 = vpack.c.bf16 %v53, %v51
  %v73 = vpack.c.bf16 %v57, %v55
  %v74 = vpack.c.bf16 %v61, %v59
  %vm75 = vcmask 523264
  %v77 = vsel %vm75, %v63, 0
  %v80 = vsel %vm75, %v67, 0
  %82 = vmatprep.subr.bf16.mxu0 0
  %83 = vmatpush1.bf16.xpose.msra.mxu0 %v80
  %84 = vmatprep.subr.bf16.mxu0 0
  %85 = vmatpush1.bf16.xpose.msra.mxu0 0
  %86 = vmatprep.subr.bf16.mxu0 0
  %87 = vmatpush1.bf16.xpose.msra.mxu0 0
  %88 = vmatprep.subr.bf16.mxu0 0
  %89 = vmatpush1.bf16.xpose.msra.mxu0 0
  %90 = vmatprep.subr.bf16.mxu0 0
  %91 = vmatpush1.bf16.xpose.msra.mxu0 0
  %92 = vmatprep.subr.bf16.mxu0 0
  %93 = vmatpush1.bf16.xpose.msra.mxu0 0
  %94 = vmatprep.subr.bf16.mxu0 0
  %95 = vmatpush1.bf16.xpose.msra.mxu0 0
  %96 = vmatprep.subr.bf16.mxu0 0
  %97 = vmatpush1.bf16.xpose.msra.mxu0 0
  %98 = vmatprep.subr.bf16.mxu0 0
  %99 = vmatpush1.bf16.xpose.msra.mxu0 0
  %100 = vmatprep.subr.bf16.mxu0 0
  %101 = vmatpush1.bf16.xpose.msra.mxu0 0
  %102 = vmatprep.subr.bf16.mxu0 0
  %103 = vmatpush1.bf16.xpose.msra.mxu0 0
  %104 = vmatprep.subr.bf16.mxu0 0
  %105 = vmatpush1.bf16.xpose.msra.mxu0 0
  %106 = vmatprep.subr.bf16.mxu0 0
  %107 = vmatpush1.bf16.xpose.msra.mxu0 0
  %108 = vmatprep.subr.bf16.mxu0 0
  %109 = vmatpush1.bf16.xpose.msra.mxu0 0
  %110 = vmatprep.subr.bf16.mxu0 0
  %111 = vmatpush1.bf16.xpose.msra.mxu0 0
  %112 = vmatprep.subr.bf16.mxu0 0
  %113 = vmatpush1.bf16.xpose.msra.mxu0 0
  %114 = vmatprep.mubr.bf16.mxu0 0
  %115 = vmatmul.mubr.bf16.gmra.mrb[0].mxu0 %v77
  %v116 = vpop.f32.mrb[0].mxu0
  %v117 = vadd.f32 0.0, %v116
  %v118 = vpop.f32.mrb[0].mxu0
  %v119 = vpop.f32.mrb[0].mxu0
  %v120 = vadd.f32 0.0, %v119
  %v121 = vpop.f32.mrb[0].mxu0
  %122 = vdwg.mxu0
  %v124 = vsel %vm75, %v64, 0
  %v127 = vsel %vm75, %v68, 0
  %129 = vmatprep.subr.bf16.mxu0 0
  %130 = vmatpush1.bf16.xpose.msra.mxu0 %v127
  %131 = vmatprep.subr.bf16.mxu0 0
  %132 = vmatpush1.bf16.xpose.msra.mxu0 0
  %133 = vmatprep.subr.bf16.mxu0 0
  %134 = vmatpush1.bf16.xpose.msra.mxu0 0
  %135 = vmatprep.subr.bf16.mxu0 0
  %136 = vmatpush1.bf16.xpose.msra.mxu0 0
  %137 = vmatprep.subr.bf16.mxu0 0
  %138 = vmatpush1.bf16.xpose.msra.mxu0 0
  %139 = vmatprep.subr.bf16.mxu0 0
  %140 = vmatpush1.bf16.xpose.msra.mxu0 0
  %141 = vmatprep.subr.bf16.mxu0 0
  %142 = vmatpush1.bf16.xpose.msra.mxu0 0
  %143 = vmatprep.subr.bf16.mxu0 0
  %144 = vmatpush1.bf16.xpose.msra.mxu0 0
  %145 = vmatprep.subr.bf16.mxu0 0
  %146 = vmatpush1.bf16.xpose.msra.mxu0 0
  %147 = vmatprep.subr.bf16.mxu0 0
  %148 = vmatpush1.bf16.xpose.msra.mxu0 0
  %149 = vmatprep.subr.bf16.mxu0 0
  %150 = vmatpush1.bf16.xpose.msra.mxu0 0
  %151 = vmatprep.subr.bf16.mxu0 0
  %152 = vmatpush1.bf16.xpose.msra.mxu0 0
  %153 = vmatprep.subr.bf16.mxu0 0
  %154 = vmatpush1.bf16.xpose.msra.mxu0 0
  %155 = vmatprep.subr.bf16.mxu0 0
  %156 = vmatpush1.bf16.xpose.msra.mxu0 0
  %157 = vmatprep.subr.bf16.mxu0 0
  %158 = vmatpush1.bf16.xpose.msra.mxu0 0
  %159 = vmatprep.subr.bf16.mxu0 0
  %160 = vmatpush1.bf16.xpose.msra.mxu0 0
  %161 = vmatprep.mubr.bf16.mxu0 0
  %162 = vmatmul.mubr.bf16.gmra.mrb[0].mxu0 %v124
  %v163 = vpop.f32.mrb[0].mxu0
  %v164 = vadd.f32 0.0, %v163
  %v165 = vpop.f32.mrb[0].mxu0
  %v166 = vpop.f32.mrb[0].mxu0
  %v167 = vadd.f32 0.0, %v166
  %v168 = vpop.f32.mrb[0].mxu0
  %169 = vdwg.mxu0
  %v171 = vsel %vm75, %v65, 0
  %v174 = vsel %vm75, %v69, 0
  %176 = vmatprep.subr.bf16.mxu0 0
  %177 = vmatpush1.bf16.xpose.msra.mxu0 %v174
  %178 = vmatprep.subr.bf16.mxu0 0
  %179 = vmatpush1.bf16.xpose.msra.mxu0 0
  %180 = vmatprep.subr.bf16.mxu0 0
  %181 = vmatpush1.bf16.xpose.msra.mxu0 0
  %182 = vmatprep.subr.bf16.mxu0 0
  %183 = vmatpush1.bf16.xpose.msra.mxu0 0
  %184 = vmatprep.subr.bf16.mxu0 0
  %185 = vmatpush1.bf16.xpose.msra.mxu0 0
  %186 = vmatprep.subr.bf16.mxu0 0
  %187 = vmatpush1.bf16.xpose.msra.mxu0 0
  %188 = vmatprep.subr.bf16.mxu0 0
  %189 = vmatpush1.bf16.xpose.msra.mxu0 0
  %190 = vmatprep.subr.bf16.mxu0 0
  %191 = vmatpush1.bf16.xpose.msra.mxu0 0
  %192 = vmatprep.subr.bf16.mxu0 0
  %193 = vmatpush1.bf16.xpose.msra.mxu0 0
  %194 = vmatprep.subr.bf16.mxu0 0
  %195 = vmatpush1.bf16.xpose.msra.mxu0 0
  %196 = vmatprep.subr.bf16.mxu0 0
  %197 = vmatpush1.bf16.xpose.msra.mxu0 0
  %198 = vmatprep.subr.bf16.mxu0 0
  %199 = vmatpush1.bf16.xpose.msra.mxu0 0
  %200 = vmatprep.subr.bf16.mxu0 0
  %201 = vmatpush1.bf16.xpose.msra.mxu0 0
  %202 = vmatprep.subr.bf16.mxu0 0
  %203 = vmatpush1.bf16.xpose.msra.mxu0 0
  %204 = vmatprep.subr.bf16.mxu0 0
  %205 = vmatpush1.bf16.xpose.msra.mxu0 0
  %206 = vmatprep.subr.bf16.mxu0 0
  %207 = vmatpush1.bf16.xpose.msra.mxu0 0
  %208 = vmatprep.mubr.bf16.mxu0 0
  %209 = vmatmul.mubr.bf16.gmra.mrb[0].mxu0 %v171
  %v210 = vpop.f32.mrb[0].mxu0
  %v211 = vadd.f32 0.0, %v210
  %v212 = vpop.f32.mrb[0].mxu0
  %v213 = vpop.f32.mrb[0].mxu0
  %v214 = vadd.f32 0.0, %v213
  %v215 = vpop.f32.mrb[0].mxu0
  %216 = vdwg.mxu0
  %v218 = vsel %vm75, %v66, 0
  %v221 = vsel %vm75, %v70, 0
  %223 = vmatprep.subr.bf16.mxu0 0
  %224 = vmatpush1.bf16.xpose.msra.mxu0 %v221
  %225 = vmatprep.subr.bf16.mxu0 0
  %226 = vmatpush1.bf16.xpose.msra.mxu0 0
  %227 = vmatprep.subr.bf16.mxu0 0
  %228 = vmatpush1.bf16.xpose.msra.mxu0 0
  %229 = vmatprep.subr.bf16.mxu0 0
  %230 = vmatpush1.bf16.xpose.msra.mxu0 0
  %231 = vmatprep.subr.bf16.mxu0 0
  %232 = vmatpush1.bf16.xpose.msra.mxu0 0
  %233 = vmatprep.subr.bf16.mxu0 0
  %234 = vmatpush1.bf16.xpose.msra.mxu0 0
  %235 = vmatprep.subr.bf16.mxu0 0
  %236 = vmatpush1.bf16.xpose.msra.mxu0 0
  %237 = vmatprep.subr.bf16.mxu0 0
  %238 = vmatpush1.bf16.xpose.msra.mxu0 0
  %239 = vmatprep.subr.bf16.mxu0 0
  %240 = vmatpush1.bf16.xpose.msra.mxu0 0
  %241 = vmatprep.subr.bf16.mxu0 0
  %242 = vmatpush1.bf16.xpose.msra.mxu0 0
  %243 = vmatprep.subr.bf16.mxu0 0
  %244 = vmatpush1.bf16.xpose.msra.mxu0 0
  %245 = vmatprep.subr.bf16.mxu0 0
  %246 = vmatpush1.bf16.xpose.msra.mxu0 0
  %247 = vmatprep.subr.bf16.mxu0 0
  %248 = vmatpush1.bf16.xpose.msra.mxu0 0
  %249 = vmatprep.subr.bf16.mxu0 0
  %250 = vmatpush1.bf16.xpose.msra.mxu0 0
  %251 = vmatprep.subr.bf16.mxu0 0
  %252 = vmatpush1.bf16.xpose.msra.mxu0 0
  %253 = vmatprep.subr.bf16.mxu0 0
  %254 = vmatpush1.bf16.xpose.msra.mxu0 0
  %255 = vmatprep.mubr.bf16.mxu0 0
  %256 = vmatmul.mubr.bf16.gmra.mrb[0].mxu0 %v218
  %v257 = vpop.f32.mrb[0].mxu0
  %v258 = vadd.f32 0.0, %v257
  %v259 = vpop.f32.mrb[0].mxu0
  %v260 = vpop.f32.mrb[0].mxu0
  %v261 = vadd.f32 0.0, %v260
  %v262 = vpop.f32.mrb[0].mxu0
  %263 = vdwg.mxu0
  %v264 = vmul.f32 %v117, 0.125
  %v265 = vmul.f32 %v120, 0.125
  %v266 = vmul.f32 %v164, 0.125
  %v267 = vmul.f32 %v167, 0.125
  %v268 = vmul.f32 %v211, 0.125
  %v269 = vmul.f32 %v214, 0.125
  %v270 = vmul.f32 %v258, 0.125
  %v271 = vmul.f32 %v261, 0.125
  %vm272 = vcmask 130048
  %v273 = vsel %vm272, %v264, -inf
  %274 = vmax.xlane.f32.xlu0 %v273
  %v275 = vpop.xlane.xlu0 %274
  %v276 = vsel %vm272, %v265, -inf
  %277 = vmax.xlane.f32.xlu0 %v276
  %v278 = vpop.xlane.xlu0 %277
  %v279 = vsel %vm272, %v266, -inf
  %280 = vmax.xlane.f32.xlu0 %v279
  %v281 = vpop.xlane.xlu0 %280
  %v282 = vsel %vm272, %v267, -inf
  %283 = vmax.xlane.f32.xlu0 %v282
  %v284 = vpop.xlane.xlu0 %283
  %v285 = vsel %vm272, %v268, -inf
  %286 = vmax.xlane.f32.xlu0 %v285
  %v287 = vpop.xlane.xlu0 %286
  %v288 = vsel %vm272, %v269, -inf
  %289 = vmax.xlane.f32.xlu0 %v288
  %v290 = vpop.xlane.xlu0 %289
  %v291 = vsel %vm272, %v270, -inf
  %292 = vmax.xlane.f32.xlu0 %v291
  %v293 = vpop.xlane.xlu0 %292
  %v294 = vsel %vm272, %v271, -inf
  %295 = vmax.xlane.f32.xlu0 %v294
  %v296 = vpop.xlane.xlu0 %295
  %v297 = vsub.f32 %v264, %v275
  %v298 = vsub.f32 %v265, %v278
  %v299 = vsub.f32 %v266, %v281
  %v300 = vsub.f32 %v267, %v284
  %v301 = vsub.f32 %v268, %v287
  %v302 = vsub.f32 %v269, %v290
  %v303 = vsub.f32 %v270, %v293
  %v304 = vsub.f32 %v271, %v296
  %v305 = vmul.f32 %v297, 1.442695
  %v306 = vpow.pop %v305
  %v307 = vmul.f32 %v298, 1.442695
  %v308 = vpow.pop %v307
  %v309 = vmul.f32 %v299, 1.442695
  %v310 = vpow.pop %v309
  %v311 = vmul.f32 %v300, 1.442695
  %v312 = vpow.pop %v311
  %v313 = vmul.f32 %v301, 1.442695
  %v314 = vpow.pop %v313
  %v315 = vmul.f32 %v302, 1.442695
  %v316 = vpow.pop %v315
  %v317 = vmul.f32 %v303, 1.442695
  %v318 = vpow.pop %v317
  %v319 = vmul.f32 %v304, 1.442695
  %v320 = vpow.pop %v319
  %v321 = vsel %vm272, %v306, 0.0
  %322 = vadd.xlane.f32.xlu0 %v321
  %v323 = vpop.xlane.xlu0 %322
  %v324 = vsel %vm272, %v308, 0.0
  %325 = vadd.xlane.f32.xlu0 %v324
  %v326 = vpop.xlane.xlu0 %325
  %v327 = vsel %vm272, %v310, 0.0
  %328 = vadd.xlane.f32.xlu0 %v327
  %v329 = vpop.xlane.xlu0 %328
  %v330 = vsel %vm272, %v312, 0.0
  %331 = vadd.xlane.f32.xlu0 %v330
  %v332 = vpop.xlane.xlu0 %331
  %v333 = vsel %vm272, %v314, 0.0
  %334 = vadd.xlane.f32.xlu0 %v333
  %v335 = vpop.xlane.xlu0 %334
  %v336 = vsel %vm272, %v316, 0.0
  %337 = vadd.xlane.f32.xlu0 %v336
  %v338 = vpop.xlane.xlu0 %337
  %v339 = vsel %vm272, %v318, 0.0
  %340 = vadd.xlane.f32.xlu0 %v339
  %v341 = vpop.xlane.xlu0 %340
  %v342 = vsel %vm272, %v320, 0.0
  %343 = vadd.xlane.f32.xlu0 %v342
  %v344 = vpop.xlane.xlu0 %343
  %v345 = vrcp.pop %v323
  %v346 = vrcp.pop %v326
  %v347 = vrcp.pop %v329
  %v348 = vrcp.pop %v332
  %v349 = vrcp.pop %v335
  %v350 = vrcp.pop %v338
  %v351 = vrcp.pop %v341
  %v352 = vrcp.pop %v344
  %v353 = vmul.f32 %v306, %v345
  %v354 = vmul.f32 %v308, %v346
  %v355 = vmul.f32 %v310, %v347
  %v356 = vmul.f32 %v312, %v348
  %v357 = vmul.f32 %v314, %v349
  %v358 = vmul.f32 %v316, %v350
  %v359 = vmul.f32 %v318, %v351
  %v360 = vmul.f32 %v320, %v352
  %v361 = vpack.c.bf16 %v354, %v353
  %v362 = vpack.c.bf16 %v356, %v355
  %v363 = vpack.c.bf16 %v358, %v357
  %v364 = vpack.c.bf16 %v360, %v359
  %v366 = vsel %vm272, %v361, 0
  %368 = vmatprep.subr.bf16.mxu0 0
  %369 = vmatpush1.bf16.msra.mxu0 %v71
  %370 = vmatprep.subr.bf16.mxu0 0
  %371 = vmatpush1.bf16.msra.mxu0 0
  %372 = vmatprep.subr.bf16.mxu0 0
  %373 = vmatpush1.bf16.msra.mxu0 0
  %374 = vmatprep.subr.bf16.mxu0 0
  %375 = vmatpush1.bf16.msra.mxu0 0
  %376 = vmatprep.subr.bf16.mxu0 0
  %377 = vmatpush1.bf16.msra.mxu0 0
  %378 = vmatprep.subr.bf16.mxu0 0
  %379 = vmatpush1.bf16.msra.mxu0 0
  %380 = vmatprep.subr.bf16.mxu0 0
  %381 = vmatpush1.bf16.msra.mxu0 0
  %382 = vmatprep.subr.bf16.mxu0 0
  %383 = vmatpush1.bf16.msra.mxu0 0
  %384 = vmatprep.subr.bf16.mxu0 0
  %385 = vmatpush1.bf16.msra.mxu0 0
  %386 = vmatprep.subr.bf16.mxu0 0
  %387 = vmatpush1.bf16.msra.mxu0 0
  %388 = vmatprep.subr.bf16.mxu0 0
  %389 = vmatpush1.bf16.msra.mxu0 0
  %390 = vmatprep.subr.bf16.mxu0 0
  %391 = vmatpush1.bf16.msra.mxu0 0
  %392 = vmatprep.subr.bf16.mxu0 0
  %393 = vmatpush1.bf16.msra.mxu0 0
  %394 = vmatprep.subr.bf16.mxu0 0
  %395 = vmatpush1.bf16.msra.mxu0 0
  %396 = vmatprep.subr.bf16.mxu0 0
  %397 = vmatpush1.bf16.msra.mxu0 0
  %398 = vmatprep.subr.bf16.mxu0 0
  %399 = vmatpush1.bf16.msra.mxu0 0
  %400 = vmatprep.mubr.bf16.mxu0 0
  %401 = vmatmul.mubr.bf16.gmra.mrb[0].mxu0 %v366
  %v402 = vpop.f32.mrb[0].mxu0
  %v403 = vadd.f32 0.0, %v402
  %v404 = vpop.f32.mrb[0].mxu0
  %v405 = vpop.f32.mrb[0].mxu0
  %v406 = vadd.f32 0.0, %v405
  %v407 = vpop.f32.mrb[0].mxu0
  %408 = vdwg.mxu0
  %v410 = vsel %vm272, %v362, 0
  %412 = vmatprep.subr.bf16.mxu0 0
  %413 = vmatpush1.bf16.msra.mxu0 %v72
  %414 = vmatprep.subr.bf16.mxu0 0
  %415 = vmatpush1.bf16.msra.mxu0 0
  %416 = vmatprep.subr.bf16.mxu0 0
  %417 = vmatpush1.bf16.msra.mxu0 0
  %418 = vmatprep.subr.bf16.mxu0 0
  %419 = vmatpush1.bf16.msra.mxu0 0
  %420 = vmatprep.subr.bf16.mxu0 0
  %421 = vmatpush1.bf16.msra.mxu0 0
  %422 = vmatprep.subr.bf16.mxu0 0
  %423 = vmatpush1.bf16.msra.mxu0 0
  %424 = vmatprep.subr.bf16.mxu0 0
  %425 = vmatpush1.bf16.msra.mxu0 0
  %426 = vmatprep.subr.bf16.mxu0 0
  %427 = vmatpush1.bf16.msra.mxu0 0
  %428 = vmatprep.subr.bf16.mxu0 0
  %429 = vmatpush1.bf16.msra.mxu0 0
  %430 = vmatprep.subr.bf16.mxu0 0
  %431 = vmatpush1.bf16.msra.mxu0 0
  %432 = vmatprep.subr.bf16.mxu0 0
  %433 = vmatpush1.bf16.msra.mxu0 0
  %434 = vmatprep.subr.bf16.mxu0 0
  %435 = vmatpush1.bf16.msra.mxu0 0
  %436 = vmatprep.subr.bf16.mxu0 0
  %437 = vmatpush1.bf16.msra.mxu0 0
  %438 = vmatprep.subr.bf16.mxu0 0
  %439 = vmatpush1.bf16.msra.mxu0 0
  %440 = vmatprep.subr.bf16.mxu0 0
  %441 = vmatpush1.bf16.msra.mxu0 0
  %442 = vmatprep.subr.bf16.mxu0 0
  %443 = vmatpush1.bf16.msra.mxu0 0
  %444 = vmatprep.mubr.bf16.mxu0 0
  %445 = vmatmul.mubr.bf16.gmra.mrb[0].mxu0 %v410
  %v446 = vpop.f32.mrb[0].mxu0
  %v447 = vadd.f32 0.0, %v446
  %v448 = vpop.f32.mrb[0].mxu0
  %v449 = vpop.f32.mrb[0].mxu0
  %v450 = vadd.f32 0.0, %v449
  %v451 = vpop.f32.mrb[0].mxu0
  %452 = vdwg.mxu0
  %v454 = vsel %vm272, %v363, 0
  %456 = vmatprep.subr.bf16.mxu0 0
  %457 = vmatpush1.bf16.msra.mxu0 %v73
  %458 = vmatprep.subr.bf16.mxu0 0
  %459 = vmatpush1.bf16.msra.mxu0 0
  %460 = vmatprep.subr.bf16.mxu0 0
  %461 = vmatpush1.bf16.msra.mxu0 0
  %462 = vmatprep.subr.bf16.mxu0 0
  %463 = vmatpush1.bf16.msra.mxu0 0
  %464 = vmatprep.subr.bf16.mxu0 0
  %465 = vmatpush1.bf16.msra.mxu0 0
  %466 = vmatprep.subr.bf16.mxu0 0
  %467 = vmatpush1.bf16.msra.mxu0 0
  %468 = vmatprep.subr.bf16.mxu0 0
  %469 = vmatpush1.bf16.msra.mxu0 0
  %470 = vmatprep.subr.bf16.mxu0 0
  %471 = vmatpush1.bf16.msra.mxu0 0
  %472 = vmatprep.subr.bf16.mxu0 0
  %473 = vmatpush1.bf16.msra.mxu0 0
  %474 = vmatprep.subr.bf16.mxu0 0
  %475 = vmatpush1.bf16.msra.mxu0 0
  %476 = vmatprep.subr.bf16.mxu0 0
  %477 = vmatpush1.bf16.msra.mxu0 0
  %478 = vmatprep.subr.bf16.mxu0 0
  %479 = vmatpush1.bf16.msra.mxu0 0
  %480 = vmatprep.subr.bf16.mxu0 0
  %481 = vmatpush1.bf16.msra.mxu0 0
  %482 = vmatprep.subr.bf16.mxu0 0
  %483 = vmatpush1.bf16.msra.mxu0 0
  %484 = vmatprep.subr.bf16.mxu0 0
  %485 = vmatpush1.bf16.msra.mxu0 0
  %486 = vmatprep.subr.bf16.mxu0 0
  %487 = vmatpush1.bf16.msra.mxu0 0
  %488 = vmatprep.mubr.bf16.mxu0 0
  %489 = vmatmul.mubr.bf16.gmra.mrb[0].mxu0 %v454
  %v490 = vpop.f32.mrb[0].mxu0
  %v491 = vadd.f32 0.0, %v490
  %v492 = vpop.f32.mrb[0].mxu0
  %v493 = vpop.f32.mrb[0].mxu0
  %v494 = vadd.f32 0.0, %v493
  %v495 = vpop.f32.mrb[0].mxu0
  %496 = vdwg.mxu0
  %v498 = vsel %vm272, %v364, 0
  %500 = vmatprep.subr.bf16.mxu0 0
  %501 = vmatpush1.bf16.msra.mxu0 %v74
  %502 = vmatprep.subr.bf16.mxu0 0
  %503 = vmatpush1.bf16.msra.mxu0 0
  %504 = vmatprep.subr.bf16.mxu0 0
  %505 = vmatpush1.bf16.msra.mxu0 0
  %506 = vmatprep.subr.bf16.mxu0 0
  %507 = vmatpush1.bf16.msra.mxu0 0
  %508 = vmatprep.subr.bf16.mxu0 0
  %509 = vmatpush1.bf16.msra.mxu0 0
  %510 = vmatprep.subr.bf16.mxu0 0
  %511 = vmatpush1.bf16.msra.mxu0 0
  %512 = vmatprep.subr.bf16.mxu0 0
  %513 = vmatpush1.bf16.msra.mxu0 0
  %514 = vmatprep.subr.bf16.mxu0 0
  %515 = vmatpush1.bf16.msra.mxu0 0
  %516 = vmatprep.subr.bf16.mxu0 0
  %517 = vmatpush1.bf16.msra.mxu0 0
  %518 = vmatprep.subr.bf16.mxu0 0
  %519 = vmatpush1.bf16.msra.mxu0 0
  %520 = vmatprep.subr.bf16.mxu0 0
  %521 = vmatpush1.bf16.msra.mxu0 0
  %522 = vmatprep.subr.bf16.mxu0 0
  %523 = vmatpush1.bf16.msra.mxu0 0
  %524 = vmatprep.subr.bf16.mxu0 0
  %525 = vmatpush1.bf16.msra.mxu0 0
  %526 = vmatprep.subr.bf16.mxu0 0
  %527 = vmatpush1.bf16.msra.mxu0 0
  %528 = vmatprep.subr.bf16.mxu0 0
  %529 = vmatpush1.bf16.msra.mxu0 0
  %530 = vmatprep.subr.bf16.mxu0 0
  %531 = vmatpush1.bf16.msra.mxu0 0
  %532 = vmatprep.mubr.bf16.mxu0 0
  %533 = vmatmul.mubr.bf16.gmra.mrb[0].mxu0 %v498
  %v534 = vpop.f32.mrb[0].mxu0
  %v535 = vadd.f32 0.0, %v534
  %v536 = vpop.f32.mrb[0].mxu0
  %v537 = vpop.f32.mrb[0].mxu0
  %v538 = vadd.f32 0.0, %v537
  %v539 = vpop.f32.mrb[0].mxu0
  %540 = vdwg.mxu0
  %542 = vrot.lane.b32.xlu0 %v63, 64
  %v543 = vpop.permute.xlu0 %542
  %545 = vrot.lane.b32.xlu0 %v67, 64
  %v546 = vpop.permute.xlu0 %545
  %v548 = vsel %vm75, %v543, 0
  %v551 = vsel %vm75, %v546, 0
  %553 = vmatprep.subr.bf16.mxu0 0
  %554 = vmatpush1.bf16.xpose.msra.mxu0 %v551
  %555 = vmatprep.subr.bf16.mxu0 0
  %556 = vmatpush1.bf16.xpose.msra.mxu0 0
  %557 = vmatprep.subr.bf16.mxu0 0
  %558 = vmatpush1.bf16.xpose.msra.mxu0 0
  %559 = vmatprep.subr.bf16.mxu0 0
  %560 = vmatpush1.bf16.xpose.msra.mxu0 0
  %561 = vmatprep.subr.bf16.mxu0 0
  %562 = vmatpush1.bf16.xpose.msra.mxu0 0
  %563 = vmatprep.subr.bf16.mxu0 0
  %564 = vmatpush1.bf16.xpose.msra.mxu0 0
  %565 = vmatprep.subr.bf16.mxu0 0
  %566 = vmatpush1.bf16.xpose.msra.mxu0 0
  %567 = vmatprep.subr.bf16.mxu0 0
  %568 = vmatpush1.bf16.xpose.msra.mxu0 0
  %569 = vmatprep.subr.bf16.mxu0 0
  %570 = vmatpush1.bf16.xpose.msra.mxu0 0
  %571 = vmatprep.subr.bf16.mxu0 0
  %572 = vmatpush1.bf16.xpose.msra.mxu0 0
  %573 = vmatprep.subr.bf16.mxu0 0
  %574 = vmatpush1.bf16.xpose.msra.mxu0 0
  %575 = vmatprep.subr.bf16.mxu0 0
  %576 = vmatpush1.bf16.xpose.msra.mxu0 0
  %577 = vmatprep.subr.bf16.mxu0 0
  %578 = vmatpush1.bf16.xpose.msra.mxu0 0
  %579 = vmatprep.subr.bf16.mxu0 0
  %580 = vmatpush1.bf16.xpose.msra.mxu0 0
  %581 = vmatprep.subr.bf16.mxu0 0
  %582 = vmatpush1.bf16.xpose.msra.mxu0 0
  %583 = vmatprep.subr.bf16.mxu0 0
  %584 = vmatpush1.bf16.xpose.msra.mxu0 0
  %585 = vmatprep.mubr.bf16.mxu0 0
  %586 = vmatmul.mubr.bf16.gmra.mrb[0].mxu0 %v548
  %v587 = vpop.f32.mrb[0].mxu0
  %v588 = vadd.f32 0.0, %v587
  %v589 = vpop.f32.mrb[0].mxu0
  %v590 = vpop.f32.mrb[0].mxu0
  %v591 = vadd.f32 0.0, %v590
  %v592 = vpop.f32.mrb[0].mxu0
  %593 = vdwg.mxu0
  %595 = vrot.lane.b32.xlu0 %v64, 64
  %v596 = vpop.permute.xlu0 %595
  %598 = vrot.lane.b32.xlu0 %v68, 64
  %v599 = vpop.permute.xlu0 %598
  %v601 = vsel %vm75, %v596, 0
  %v604 = vsel %vm75, %v599, 0
  %606 = vmatprep.subr.bf16.mxu0 0
  %607 = vmatpush1.bf16.xpose.msra.mxu0 %v604
  %608 = vmatprep.subr.bf16.mxu0 0
  %609 = vmatpush1.bf16.xpose.msra.mxu0 0
  %610 = vmatprep.subr.bf16.mxu0 0
  %611 = vmatpush1.bf16.xpose.msra.mxu0 0
  %612 = vmatprep.subr.bf16.mxu0 0
  %613 = vmatpush1.bf16.xpose.msra.mxu0 0
  %614 = vmatprep.subr.bf16.mxu0 0
  %615 = vmatpush1.bf16.xpose.msra.mxu0 0
  %616 = vmatprep.subr.bf16.mxu0 0
  %617 = vmatpush1.bf16.xpose.msra.mxu0 0
  %618 = vmatprep.subr.bf16.mxu0 0
  %619 = vmatpush1.bf16.xpose.msra.mxu0 0
  %620 = vmatprep.subr.bf16.mxu0 0
  %621 = vmatpush1.bf16.xpose.msra.mxu0 0
  %622 = vmatprep.subr.bf16.mxu0 0
  %623 = vmatpush1.bf16.xpose.msra.mxu0 0
  %624 = vmatprep.subr.bf16.mxu0 0
  %625 = vmatpush1.bf16.xpose.msra.mxu0 0
  %626 = vmatprep.subr.bf16.mxu0 0
  %627 = vmatpush1.bf16.xpose.msra.mxu0 0
  %628 = vmatprep.subr.bf16.mxu0 0
  %629 = vmatpush1.bf16.xpose.msra.mxu0 0
  %630 = vmatprep.subr.bf16.mxu0 0
  %631 = vmatpush1.bf16.xpose.msra.mxu0 0
  %632 = vmatprep.subr.bf16.mxu0 0
  %633 = vmatpush1.bf16.xpose.msra.mxu0 0
  %634 = vmatprep.subr.bf16.mxu0 0
  %635 = vmatpush1.bf16.xpose.msra.mxu0 0
  %636 = vmatprep.subr.bf16.mxu0 0
  %637 = vmatpush1.bf16.xpose.msra.mxu0 0
  %638 = vmatprep.mubr.bf16.mxu0 0
  %639 = vmatmul.mubr.bf16.gmra.mrb[0].mxu0 %v601
  %v640 = vpop.f32.mrb[0].mxu0
  %v641 = vadd.f32 0.0, %v640
  %v642 = vpop.f32.mrb[0].mxu0
  %v643 = vpop.f32.mrb[0].mxu0
  %v644 = vadd.f32 0.0, %v643
  %v645 = vpop.f32.mrb[0].mxu0
  %646 = vdwg.mxu0
  %648 = vrot.lane.b32.xlu0 %v65, 64
  %v649 = vpop.permute.xlu0 %648
  %651 = vrot.lane.b32.xlu0 %v69, 64
  %v652 = vpop.permute.xlu0 %651
  %v654 = vsel %vm75, %v649, 0
  %v657 = vsel %vm75, %v652, 0
  %659 = vmatprep.subr.bf16.mxu0 0
  %660 = vmatpush1.bf16.xpose.msra.mxu0 %v657
  %661 = vmatprep.subr.bf16.mxu0 0
  %662 = vmatpush1.bf16.xpose.msra.mxu0 0
  %663 = vmatprep.subr.bf16.mxu0 0
  %664 = vmatpush1.bf16.xpose.msra.mxu0 0
  %665 = vmatprep.subr.bf16.mxu0 0
  %666 = vmatpush1.bf16.xpose.msra.mxu0 0
  %667 = vmatprep.subr.bf16.mxu0 0
  %668 = vmatpush1.bf16.xpose.msra.mxu0 0
  %669 = vmatprep.subr.bf16.mxu0 0
  %670 = vmatpush1.bf16.xpose.msra.mxu0 0
  %671 = vmatprep.subr.bf16.mxu0 0
  %672 = vmatpush1.bf16.xpose.msra.mxu0 0
  %673 = vmatprep.subr.bf16.mxu0 0
  %674 = vmatpush1.bf16.xpose.msra.mxu0 0
  %675 = vmatprep.subr.bf16.mxu0 0
  %676 = vmatpush1.bf16.xpose.msra.mxu0 0
  %677 = vmatprep.subr.bf16.mxu0 0
  %678 = vmatpush1.bf16.xpose.msra.mxu0 0
  %679 = vmatprep.subr.bf16.mxu0 0
  %680 = vmatpush1.bf16.xpose.msra.mxu0 0
  %681 = vmatprep.subr.bf16.mxu0 0
  %682 = vmatpush1.bf16.xpose.msra.mxu0 0
  %683 = vmatprep.subr.bf16.mxu0 0
  %684 = vmatpush1.bf16.xpose.msra.mxu0 0
  %685 = vmatprep.subr.bf16.mxu0 0
  %686 = vmatpush1.bf16.xpose.msra.mxu0 0
  %687 = vmatprep.subr.bf16.mxu0 0
  %688 = vmatpush1.bf16.xpose.msra.mxu0 0
  %689 = vmatprep.subr.bf16.mxu0 0
  %690 = vmatpush1.bf16.xpose.msra.mxu0 0
  %691 = vmatprep.mubr.bf16.mxu0 0
  %692 = vmatmul.mubr.bf16.gmra.mrb[0].mxu0 %v654
  %v693 = vpop.f32.mrb[0].mxu0
  %v694 = vadd.f32 0.0, %v693
  %v695 = vpop.f32.mrb[0].mxu0
  %v696 = vpop.f32.mrb[0].mxu0
  %v697 = vadd.f32 0.0, %v696
  %v698 = vpop.f32.mrb[0].mxu0
  %699 = vdwg.mxu0
  %701 = vrot.lane.b32.xlu0 %v66, 64
  %v702 = vpop.permute.xlu0 %701
  %704 = vrot.lane.b32.xlu0 %v70, 64
  %v705 = vpop.permute.xlu0 %704
  %v707 = vsel %vm75, %v702, 0
  %v710 = vsel %vm75, %v705, 0
  %712 = vmatprep.subr.bf16.mxu0 0
  %713 = vmatpush1.bf16.xpose.msra.mxu0 %v710
  %714 = vmatprep.subr.bf16.mxu0 0
  %715 = vmatpush1.bf16.xpose.msra.mxu0 0
  %716 = vmatprep.subr.bf16.mxu0 0
  %717 = vmatpush1.bf16.xpose.msra.mxu0 0
  %718 = vmatprep.subr.bf16.mxu0 0
  %719 = vmatpush1.bf16.xpose.msra.mxu0 0
  %720 = vmatprep.subr.bf16.mxu0 0
  %721 = vmatpush1.bf16.xpose.msra.mxu0 0
  %722 = vmatprep.subr.bf16.mxu0 0
  %723 = vmatpush1.bf16.xpose.msra.mxu0 0
  %724 = vmatprep.subr.bf16.mxu0 0
  %725 = vmatpush1.bf16.xpose.msra.mxu0 0
  %726 = vmatprep.subr.bf16.mxu0 0
  %727 = vmatpush1.bf16.xpose.msra.mxu0 0
  %728 = vmatprep.subr.bf16.mxu0 0
  %729 = vmatpush1.bf16.xpose.msra.mxu0 0
  %730 = vmatprep.subr.bf16.mxu0 0
  %731 = vmatpush1.bf16.xpose.msra.mxu0 0
  %732 = vmatprep.subr.bf16.mxu0 0
  %733 = vmatpush1.bf16.xpose.msra.mxu0 0
  %734 = vmatprep.subr.bf16.mxu0 0
  %735 = vmatpush1.bf16.xpose.msra.mxu0 0
  %736 = vmatprep.subr.bf16.mxu0 0
  %737 = vmatpush1.bf16.xpose.msra.mxu0 0
  %738 = vmatprep.subr.bf16.mxu0 0
  %739 = vmatpush1.bf16.xpose.msra.mxu0 0
  %740 = vmatprep.subr.bf16.mxu0 0
  %741 = vmatpush1.bf16.xpose.msra.mxu0 0
  %742 = vmatprep.subr.bf16.mxu0 0
  %743 = vmatpush1.bf16.xpose.msra.mxu0 0
  %744 = vmatprep.mubr.bf16.mxu0 0
  %745 = vmatmul.mubr.bf16.gmra.mrb[0].mxu0 %v707
  %v746 = vpop.f32.mrb[0].mxu0
  %v747 = vadd.f32 0.0, %v746
  %v748 = vpop.f32.mrb[0].mxu0
  %v749 = vpop.f32.mrb[0].mxu0
  %v750 = vadd.f32 0.0, %v749
  %v751 = vpop.f32.mrb[0].mxu0
  %752 = vdwg.mxu0
  %v753 = vmul.f32 %v588, 0.125
  %v754 = vmul.f32 %v591, 0.125
  %v755 = vmul.f32 %v641, 0.125
  %v756 = vmul.f32 %v644, 0.125
  %v757 = vmul.f32 %v694, 0.125
  %v758 = vmul.f32 %v697, 0.125
  %v759 = vmul.f32 %v747, 0.125
  %v760 = vmul.f32 %v750, 0.125
  %v761 = vsel %vm272, %v753, -inf
  %762 = vmax.xlane.f32.xlu0 %v761
  %v763 = vpop.xlane.xlu0 %762
  %v764 = vsel %vm272, %v754, -inf
  %765 = vmax.xlane.f32.xlu0 %v764
  %v766 = vpop.xlane.xlu0 %765
  %v767 = vsel %vm272, %v755, -inf
  %768 = vmax.xlane.f32.xlu0 %v767
  %v769 = vpop.xlane.xlu0 %768
  %v770 = vsel %vm272, %v756, -inf
  %771 = vmax.xlane.f32.xlu0 %v770
  %v772 = vpop.xlane.xlu0 %771
  %v773 = vsel %vm272, %v757, -inf
  %774 = vmax.xlane.f32.xlu0 %v773
  %v775 = vpop.xlane.xlu0 %774
  %v776 = vsel %vm272, %v758, -inf
  %777 = vmax.xlane.f32.xlu0 %v776
  %v778 = vpop.xlane.xlu0 %777
  %v779 = vsel %vm272, %v759, -inf
  %780 = vmax.xlane.f32.xlu0 %v779
  %v781 = vpop.xlane.xlu0 %780
  %v782 = vsel %vm272, %v760, -inf
  %783 = vmax.xlane.f32.xlu0 %v782
  %v784 = vpop.xlane.xlu0 %783
  %v785 = vsub.f32 %v753, %v763
  %v786 = vsub.f32 %v754, %v766
  %v787 = vsub.f32 %v755, %v769
  %v788 = vsub.f32 %v756, %v772
  %v789 = vsub.f32 %v757, %v775
  %v790 = vsub.f32 %v758, %v778
  %v791 = vsub.f32 %v759, %v781
  %v792 = vsub.f32 %v760, %v784
  %v793 = vmul.f32 %v785, 1.442695
  %v794 = vpow.pop %v793
  %v795 = vmul.f32 %v786, 1.442695
  %v796 = vpow.pop %v795
  %v797 = vmul.f32 %v787, 1.442695
  %v798 = vpow.pop %v797
  %v799 = vmul.f32 %v788, 1.442695
  %v800 = vpow.pop %v799
  %v801 = vmul.f32 %v789, 1.442695
  %v802 = vpow.pop %v801
  %v803 = vmul.f32 %v790, 1.442695
  %v804 = vpow.pop %v803
  %v805 = vmul.f32 %v791, 1.442695
  %v806 = vpow.pop %v805
  %v807 = vmul.f32 %v792, 1.442695
  %v808 = vpow.pop %v807
  %v809 = vsel %vm272, %v794, 0.0
  %810 = vadd.xlane.f32.xlu0 %v809
  %v811 = vpop.xlane.xlu0 %810
  %v812 = vsel %vm272, %v796, 0.0
  %813 = vadd.xlane.f32.xlu0 %v812
  %v814 = vpop.xlane.xlu0 %813
  %v815 = vsel %vm272, %v798, 0.0
  %816 = vadd.xlane.f32.xlu0 %v815
  %v817 = vpop.xlane.xlu0 %816
  %v818 = vsel %vm272, %v800, 0.0
  %819 = vadd.xlane.f32.xlu0 %v818
  %v820 = vpop.xlane.xlu0 %819
  %v821 = vsel %vm272, %v802, 0.0
  %822 = vadd.xlane.f32.xlu0 %v821
  %v823 = vpop.xlane.xlu0 %822
  %v824 = vsel %vm272, %v804, 0.0
  %825 = vadd.xlane.f32.xlu0 %v824
  %v826 = vpop.xlane.xlu0 %825
  %v827 = vsel %vm272, %v806, 0.0
  %828 = vadd.xlane.f32.xlu0 %v827
  %v829 = vpop.xlane.xlu0 %828
  %v830 = vsel %vm272, %v808, 0.0
  %831 = vadd.xlane.f32.xlu0 %v830
  %v832 = vpop.xlane.xlu0 %831
  %v833 = vrcp.pop %v811
  %v834 = vrcp.pop %v814
  %v835 = vrcp.pop %v817
  %v836 = vrcp.pop %v820
  %v837 = vrcp.pop %v823
  %v838 = vrcp.pop %v826
  %v839 = vrcp.pop %v829
  %v840 = vrcp.pop %v832
  %v841 = vmul.f32 %v794, %v833
  %v842 = vmul.f32 %v796, %v834
  %v843 = vmul.f32 %v798, %v835
  %v844 = vmul.f32 %v800, %v836
  %v845 = vmul.f32 %v802, %v837
  %v846 = vmul.f32 %v804, %v838
  %v847 = vmul.f32 %v806, %v839
  %v848 = vmul.f32 %v808, %v840
  %v849 = vpack.c.bf16 %v842, %v841
  %v850 = vpack.c.bf16 %v844, %v843
  %v851 = vpack.c.bf16 %v846, %v845
  %v852 = vpack.c.bf16 %v848, %v847
  %854 = vrot.lane.b32.xlu0 %v71, 64
  %v855 = vpop.permute.xlu0 %854
  %v858 = vsel %vm272, %v849, 0
  %860 = vmatprep.subr.bf16.mxu0 0
  %861 = vmatpush1.bf16.msra.mxu0 %v855
  %862 = vmatprep.subr.bf16.mxu0 0
  %863 = vmatpush1.bf16.msra.mxu0 0
  %864 = vmatprep.subr.bf16.mxu0 0
  %865 = vmatpush1.bf16.msra.mxu0 0
  %866 = vmatprep.subr.bf16.mxu0 0
  %867 = vmatpush1.bf16.msra.mxu0 0
  %868 = vmatprep.subr.bf16.mxu0 0
  %869 = vmatpush1.bf16.msra.mxu0 0
  %870 = vmatprep.subr.bf16.mxu0 0
  %871 = vmatpush1.bf16.msra.mxu0 0
  %872 = vmatprep.subr.bf16.mxu0 0
  %873 = vmatpush1.bf16.msra.mxu0 0
  %874 = vmatprep.subr.bf16.mxu0 0
  %875 = vmatpush1.bf16.msra.mxu0 0
  %876 = vmatprep.subr.bf16.mxu0 0
  %877 = vmatpush1.bf16.msra.mxu0 0
  %878 = vmatprep.subr.bf16.mxu0 0
  %879 = vmatpush1.bf16.msra.mxu0 0
  %880 = vmatprep.subr.bf16.mxu0 0
  %881 = vmatpush1.bf16.msra.mxu0 0
  %882 = vmatprep.subr.bf16.mxu0 0
  %883 = vmatpush1.bf16.msra.mxu0 0
  %884 = vmatprep.subr.bf16.mxu0 0
  %885 = vmatpush1.bf16.msra.mxu0 0
  %886 = vmatprep.subr.bf16.mxu0 0
  %887 = vmatpush1.bf16.msra.mxu0 0
  %888 = vmatprep.subr.bf16.mxu0 0
  %889 = vmatpush1.bf16.msra.mxu0 0
  %890 = vmatprep.subr.bf16.mxu0 0
  %891 = vmatpush1.bf16.msra.mxu0 0
  %892 = vmatprep.mubr.bf16.mxu0 0
  %893 = vmatmul.mubr.bf16.gmra.mrb[0].mxu0 %v858
  %v894 = vpop.f32.mrb[0].mxu0
  %v895 = vadd.f32 0.0, %v894
  %v896 = vpop.f32.mrb[0].mxu0
  %v897 = vpop.f32.mrb[0].mxu0
  %v898 = vadd.f32 0.0, %v897
  %v899 = vpop.f32.mrb[0].mxu0
  %900 = vdwg.mxu0
  %902 = vrot.lane.b32.xlu0 %v72, 64
  %v903 = vpop.permute.xlu0 %902
  %v906 = vsel %vm272, %v850, 0
  %908 = vmatprep.subr.bf16.mxu0 0
  %909 = vmatpush1.bf16.msra.mxu0 %v903
  %910 = vmatprep.subr.bf16.mxu0 0
  %911 = vmatpush1.bf16.msra.mxu0 0
  %912 = vmatprep.subr.bf16.mxu0 0
  %913 = vmatpush1.bf16.msra.mxu0 0
  %914 = vmatprep.subr.bf16.mxu0 0
  %915 = vmatpush1.bf16.msra.mxu0 0
  %916 = vmatprep.subr.bf16.mxu0 0
  %917 = vmatpush1.bf16.msra.mxu0 0
  %918 = vmatprep.subr.bf16.mxu0 0
  %919 = vmatpush1.bf16.msra.mxu0 0
  %920 = vmatprep.subr.bf16.mxu0 0
  %921 = vmatpush1.bf16.msra.mxu0 0
  %922 = vmatprep.subr.bf16.mxu0 0
  %923 = vmatpush1.bf16.msra.mxu0 0
  %924 = vmatprep.subr.bf16.mxu0 0
  %925 = vmatpush1.bf16.msra.mxu0 0
  %926 = vmatprep.subr.bf16.mxu0 0
  %927 = vmatpush1.bf16.msra.mxu0 0
  %928 = vmatprep.subr.bf16.mxu0 0
  %929 = vmatpush1.bf16.msra.mxu0 0
  %930 = vmatprep.subr.bf16.mxu0 0
  %931 = vmatpush1.bf16.msra.mxu0 0
  %932 = vmatprep.subr.bf16.mxu0 0
  %933 = vmatpush1.bf16.msra.mxu0 0
  %934 = vmatprep.subr.bf16.mxu0 0
  %935 = vmatpush1.bf16.msra.mxu0 0
  %936 = vmatprep.subr.bf16.mxu0 0
  %937 = vmatpush1.bf16.msra.mxu0 0
  %938 = vmatprep.subr.bf16.mxu0 0
  %939 = vmatpush1.bf16.msra.mxu0 0
  %940 = vmatprep.mubr.bf16.mxu0 0
  %941 = vmatmul.mubr.bf16.gmra.mrb[0].mxu0 %v906
  %v942 = vpop.f32.mrb[0].mxu0
  %v943 = vadd.f32 0.0, %v942
  %v944 = vpop.f32.mrb[0].mxu0
  %v945 = vpop.f32.mrb[0].mxu0
  %v946 = vadd.f32 0.0, %v945
  %v947 = vpop.f32.mrb[0].mxu0
  %948 = vdwg.mxu0
  %950 = vrot.lane.b32.xlu0 %v73, 64
  %v951 = vpop.permute.xlu0 %950
  %v954 = vsel %vm272, %v851, 0
  %956 = vmatprep.subr.bf16.mxu0 0
  %957 = vmatpush1.bf16.msra.mxu0 %v951
  %958 = vmatprep.subr.bf16.mxu0 0
  %959 = vmatpush1.bf16.msra.mxu0 0
  %960 = vmatprep.subr.bf16.mxu0 0
  %961 = vmatpush1.bf16.msra.mxu0 0
  %962 = vmatprep.subr.bf16.mxu0 0
  %963 = vmatpush1.bf16.msra.mxu0 0
  %964 = vmatprep.subr.bf16.mxu0 0
  %965 = vmatpush1.bf16.msra.mxu0 0
  %966 = vmatprep.subr.bf16.mxu0 0
  %967 = vmatpush1.bf16.msra.mxu0 0
  %968 = vmatprep.subr.bf16.mxu0 0
  %969 = vmatpush1.bf16.msra.mxu0 0
  %970 = vmatprep.subr.bf16.mxu0 0
  %971 = vmatpush1.bf16.msra.mxu0 0
  %972 = vmatprep.subr.bf16.mxu0 0
  %973 = vmatpush1.bf16.msra.mxu0 0
  %974 = vmatprep.subr.bf16.mxu0 0
  %975 = vmatpush1.bf16.msra.mxu0 0
  %976 = vmatprep.subr.bf16.mxu0 0
  %977 = vmatpush1.bf16.msra.mxu0 0
  %978 = vmatprep.subr.bf16.mxu0 0
  %979 = vmatpush1.bf16.msra.mxu0 0
  %980 = vmatprep.subr.bf16.mxu0 0
  %981 = vmatpush1.bf16.msra.mxu0 0
  %982 = vmatprep.subr.bf16.mxu0 0
  %983 = vmatpush1.bf16.msra.mxu0 0
  %984 = vmatprep.subr.bf16.mxu0 0
  %985 = vmatpush1.bf16.msra.mxu0 0
  %986 = vmatprep.subr.bf16.mxu0 0
  %987 = vmatpush1.bf16.msra.mxu0 0
  %988 = vmatprep.mubr.bf16.mxu0 0
  %989 = vmatmul.mubr.bf16.gmra.mrb[0].mxu0 %v954
  %v990 = vpop.f32.mrb[0].mxu0
  %v991 = vadd.f32 0.0, %v990
  %v992 = vpop.f32.mrb[0].mxu0
  %v993 = vpop.f32.mrb[0].mxu0
  %v994 = vadd.f32 0.0, %v993
  %v995 = vpop.f32.mrb[0].mxu0
  %996 = vdwg.mxu0
  %998 = vrot.lane.b32.xlu0 %v74, 64
  %v999 = vpop.permute.xlu0 %998
  %v1002 = vsel %vm272, %v852, 0
  %1004 = vmatprep.subr.bf16.mxu0 0
  %1005 = vmatpush1.bf16.msra.mxu0 %v999
  %1006 = vmatprep.subr.bf16.mxu0 0
  %1007 = vmatpush1.bf16.msra.mxu0 0
  %1008 = vmatprep.subr.bf16.mxu0 0
  %1009 = vmatpush1.bf16.msra.mxu0 0
  %1010 = vmatprep.subr.bf16.mxu0 0
  %1011 = vmatpush1.bf16.msra.mxu0 0
  %1012 = vmatprep.subr.bf16.mxu0 0
  %1013 = vmatpush1.bf16.msra.mxu0 0
  %1014 = vmatprep.subr.bf16.mxu0 0
  %1015 = vmatpush1.bf16.msra.mxu0 0
  %1016 = vmatprep.subr.bf16.mxu0 0
  %1017 = vmatpush1.bf16.msra.mxu0 0
  %1018 = vmatprep.subr.bf16.mxu0 0
  %1019 = vmatpush1.bf16.msra.mxu0 0
  %1020 = vmatprep.subr.bf16.mxu0 0
  %1021 = vmatpush1.bf16.msra.mxu0 0
  %1022 = vmatprep.subr.bf16.mxu0 0
  %1023 = vmatpush1.bf16.msra.mxu0 0
  %1024 = vmatprep.subr.bf16.mxu0 0
  %1025 = vmatpush1.bf16.msra.mxu0 0
  %1026 = vmatprep.subr.bf16.mxu0 0
  %1027 = vmatpush1.bf16.msra.mxu0 0
  %1028 = vmatprep.subr.bf16.mxu0 0
  %1029 = vmatpush1.bf16.msra.mxu0 0
  %1030 = vmatprep.subr.bf16.mxu0 0
  %1031 = vmatpush1.bf16.msra.mxu0 0
  %1032 = vmatprep.subr.bf16.mxu0 0
  %1033 = vmatpush1.bf16.msra.mxu0 0
  %1034 = vmatprep.subr.bf16.mxu0 0
  %1035 = vmatpush1.bf16.msra.mxu0 0
  %1036 = vmatprep.mubr.bf16.mxu0 0
  %1037 = vmatmul.mubr.bf16.gmra.mrb[0].mxu0 %v1002
  %v1038 = vpop.f32.mrb[0].mxu0
  %v1039 = vadd.f32 0.0, %v1038
  %v1040 = vpop.f32.mrb[0].mxu0
  %v1041 = vpop.f32.mrb[0].mxu0
  %v1042 = vadd.f32 0.0, %v1041
  %v1043 = vpop.f32.mrb[0].mxu0
  %1044 = vdwg.mxu0
  %v1045 = vpack.c.bf16 %v18, %v16
  %v1046 = vpack.c.bf16 %v22, %v20
  %v1047 = vpack.c.bf16 %v26, %v24
  %v1048 = vpack.c.bf16 %v30, %v28
  %v1049 = vpack.c.bf16 %v34, %v32
  %v1050 = vpack.c.bf16 %v38, %v36
  %v1051 = vpack.c.bf16 %v42, %v40
  %v1052 = vpack.c.bf16 %v46, %v44
  %v1053 = vpack.c.bf16 %v50, %v48
  %v1054 = vpack.c.bf16 %v54, %v52
  %v1055 = vpack.c.bf16 %v58, %v56
  %v1056 = vpack.c.bf16 %v62, %v60
  %v1058 = vsel %vm75, %v1045, 0
  %v1061 = vsel %vm75, %v1049, 0
  %1063 = vmatprep.subr.bf16.mxu0 0
  %1064 = vmatpush1.bf16.xpose.msra.mxu0 %v1061
  %1065 = vmatprep.subr.bf16.mxu0 0
  %1066 = vmatpush1.bf16.xpose.msra.mxu0 0
  %1067 = vmatprep.subr.bf16.mxu0 0
  %1068 = vmatpush1.bf16.xpose.msra.mxu0 0
  %1069 = vmatprep.subr.bf16.mxu0 0
  %1070 = vmatpush1.bf16.xpose.msra.mxu0 0
  %1071 = vmatprep.subr.bf16.mxu0 0
  %1072 = vmatpush1.bf16.xpose.msra.mxu0 0
  %1073 = vmatprep.subr.bf16.mxu0 0
  %1074 = vmatpush1.bf16.xpose.msra.mxu0 0
  %1075 = vmatprep.subr.bf16.mxu0 0
  %1076 = vmatpush1.bf16.xpose.msra.mxu0 0
  %1077 = vmatprep.subr.bf16.mxu0 0
  %1078 = vmatpush1.bf16.xpose.msra.mxu0 0
  %1079 = vmatprep.subr.bf16.mxu0 0
  %1080 = vmatpush1.bf16.xpose.msra.mxu0 0
  %1081 = vmatprep.subr.bf16.mxu0 0
  %1082 = vmatpush1.bf16.xpose.msra.mxu0 0
  %1083 = vmatprep.subr.bf16.mxu0 0
  %1084 = vmatpush1.bf16.xpose.msra.mxu0 0
  %1085 = vmatprep.subr.bf16.mxu0 0
  %1086 = vmatpush1.bf16.xpose.msra.mxu0 0
  %1087 = vmatprep.subr.bf16.mxu0 0
  %1088 = vmatpush1.bf16.xpose.msra.mxu0 0
  %1089 = vmatprep.subr.bf16.mxu0 0
  %1090 = vmatpush1.bf16.xpose.msra.mxu0 0
  %1091 = vmatprep.subr.bf16.mxu0 0
  %1092 = vmatpush1.bf16.xpose.msra.mxu0 0
  %1093 = vmatprep.subr.bf16.mxu0 0
  %1094 = vmatpush1.bf16.xpose.msra.mxu0 0
  %1095 = vmatprep.mubr.bf16.mxu0 0
  %1096 = vmatmul.mubr.bf16.gmra.mrb[0].mxu0 %v1058
  %v1097 = vpop.f32.mrb[0].mxu0
  %v1098 = vadd.f32 0.0, %v1097
  %v1099 = vpop.f32.mrb[0].mxu0
  %v1100 = vpop.f32.mrb[0].mxu0
  %v1101 = vadd.f32 0.0, %v1100
  %v1102 = vpop.f32.mrb[0].mxu0
  %1103 = vdwg.mxu0
  %v1105 = vsel %vm75, %v1046, 0
  %v1108 = vsel %vm75, %v1050, 0
  %1110 = vmatprep.subr.bf16.mxu0 0
  %1111 = vmatpush1.bf16.xpose.msra.mxu0 %v1108
  %1112 = vmatprep.subr.bf16.mxu0 0
  %1113 = vmatpush1.bf16.xpose.msra.mxu0 0
  %1114 = vmatprep.subr.bf16.mxu0 0
  %1115 = vmatpush1.bf16.xpose.msra.mxu0 0
  %1116 = vmatprep.subr.bf16.mxu0 0
  %1117 = vmatpush1.bf16.xpose.msra.mxu0 0
  %1118 = vmatprep.subr.bf16.mxu0 0
  %1119 = vmatpush1.bf16.xpose.msra.mxu0 0
  %1120 = vmatprep.subr.bf16.mxu0 0
  %1121 = vmatpush1.bf16.xpose.msra.mxu0 0
  %1122 = vmatprep.subr.bf16.mxu0 0
  %1123 = vmatpush1.bf16.xpose.msra.mxu0 0
  %1124 = vmatprep.subr.bf16.mxu0 0
  %1125 = vmatpush1.bf16.xpose.msra.mxu0 0
  %1126 = vmatprep.subr.bf16.mxu0 0
  %1127 = vmatpush1.bf16.xpose.msra.mxu0 0
  %1128 = vmatprep.subr.bf16.mxu0 0
  %1129 = vmatpush1.bf16.xpose.msra.mxu0 0
  %1130 = vmatprep.subr.bf16.mxu0 0
  %1131 = vmatpush1.bf16.xpose.msra.mxu0 0
  %1132 = vmatprep.subr.bf16.mxu0 0
  %1133 = vmatpush1.bf16.xpose.msra.mxu0 0
  %1134 = vmatprep.subr.bf16.mxu0 0
  %1135 = vmatpush1.bf16.xpose.msra.mxu0 0
  %1136 = vmatprep.subr.bf16.mxu0 0
  %1137 = vmatpush1.bf16.xpose.msra.mxu0 0
  %1138 = vmatprep.subr.bf16.mxu0 0
  %1139 = vmatpush1.bf16.xpose.msra.mxu0 0
  %1140 = vmatprep.subr.bf16.mxu0 0
  %1141 = vmatpush1.bf16.xpose.msra.mxu0 0
  %1142 = vmatprep.mubr.bf16.mxu0 0
  %1143 = vmatmul.mubr.bf16.gmra.mrb[0].mxu0 %v1105
  %v1144 = vpop.f32.mrb[0].mxu0
  %v1145 = vadd.f32 0.0, %v1144
  %v1146 = vpop.f32.mrb[0].mxu0
  %v1147 = vpop.f32.mrb[0].mxu0
  %v1148 = vadd.f32 0.0, %v1147
  %v1149 = vpop.f32.mrb[0].mxu0
  %1150 = vdwg.mxu0
  %v1152 = vsel %vm75, %v1047, 0
  %v1155 = vsel %vm75, %v1051, 0
  %1157 = vmatprep.subr.bf16.mxu0 0
  %1158 = vmatpush1.bf16.xpose.msra.mxu0 %v1155
  %1159 = vmatprep.subr.bf16.mxu0 0
  %1160 = vmatpush1.bf16.xpose.msra.mxu0 0
  %1161 = vmatprep.subr.bf16.mxu0 0
  %1162 = vmatpush1.bf16.xpose.msra.mxu0 0
  %1163 = vmatprep.subr.bf16.mxu0 0
  %1164 = vmatpush1.bf16.xpose.msra.mxu0 0
  %1165 = vmatprep.subr.bf16.mxu0 0
  %1166 = vmatpush1.bf16.xpose.msra.mxu0 0
  %1167 = vmatprep.subr.bf16.mxu0 0
  %1168 = vmatpush1.bf16.xpose.msra.mxu0 0
  %1169 = vmatprep.subr.bf16.mxu0 0
  %1170 = vmatpush1.bf16.xpose.msra.mxu0 0
  %1171 = vmatprep.subr.bf16.mxu0 0
  %1172 = vmatpush1.bf16.xpose.msra.mxu0 0
  %1173 = vmatprep.subr.bf16.mxu0 0
  %1174 = vmatpush1.bf16.xpose.msra.mxu0 0
  %1175 = vmatprep.subr.bf16.mxu0 0
  %1176 = vmatpush1.bf16.xpose.msra.mxu0 0
  %1177 = vmatprep.subr.bf16.mxu0 0
  %1178 = vmatpush1.bf16.xpose.msra.mxu0 0
  %1179 = vmatprep.subr.bf16.mxu0 0
  %1180 = vmatpush1.bf16.xpose.msra.mxu0 0
  %1181 = vmatprep.subr.bf16.mxu0 0
  %1182 = vmatpush1.bf16.xpose.msra.mxu0 0
  %1183 = vmatprep.subr.bf16.mxu0 0
  %1184 = vmatpush1.bf16.xpose.msra.mxu0 0
  %1185 = vmatprep.subr.bf16.mxu0 0
  %1186 = vmatpush1.bf16.xpose.msra.mxu0 0
  %1187 = vmatprep.subr.bf16.mxu0 0
  %1188 = vmatpush1.bf16.xpose.msra.mxu0 0
  %1189 = vmatprep.mubr.bf16.mxu0 0
  %1190 = vmatmul.mubr.bf16.gmra.mrb[0].mxu0 %v1152
  %v1191 = vpop.f32.mrb[0].mxu0
  %v1192 = vadd.f32 0.0, %v1191
  %v1193 = vpop.f32.mrb[0].mxu0
  %v1194 = vpop.f32.mrb[0].mxu0
  %v1195 = vadd.f32 0.0, %v1194
  %v1196 = vpop.f32.mrb[0].mxu0
  %1197 = vdwg.mxu0
  %v1199 = vsel %vm75, %v1048, 0
  %v1202 = vsel %vm75, %v1052, 0
  %1204 = vmatprep.subr.bf16.mxu0 0
  %1205 = vmatpush1.bf16.xpose.msra.mxu0 %v1202
  %1206 = vmatprep.subr.bf16.mxu0 0
  %1207 = vmatpush1.bf16.xpose.msra.mxu0 0
  %1208 = vmatprep.subr.bf16.mxu0 0
  %1209 = vmatpush1.bf16.xpose.msra.mxu0 0
  %1210 = vmatprep.subr.bf16.mxu0 0
  %1211 = vmatpush1.bf16.xpose.msra.mxu0 0
  %1212 = vmatprep.subr.bf16.mxu0 0
  %1213 = vmatpush1.bf16.xpose.msra.mxu0 0
  %1214 = vmatprep.subr.bf16.mxu0 0
  %1215 = vmatpush1.bf16.xpose.msra.mxu0 0
  %1216 = vmatprep.subr.bf16.mxu0 0
  %1217 = vmatpush1.bf16.xpose.msra.mxu0 0
  %1218 = vmatprep.subr.bf16.mxu0 0
  %1219 = vmatpush1.bf16.xpose.msra.mxu0 0
  %1220 = vmatprep.subr.bf16.mxu0 0
  %1221 = vmatpush1.bf16.xpose.msra.mxu0 0
  %1222 = vmatprep.subr.bf16.mxu0 0
  %1223 = vmatpush1.bf16.xpose.msra.mxu0 0
  %1224 = vmatprep.subr.bf16.mxu0 0
  %1225 = vmatpush1.bf16.xpose.msra.mxu0 0
  %1226 = vmatprep.subr.bf16.mxu0 0
  %1227 = vmatpush1.bf16.xpose.msra.mxu0 0
  %1228 = vmatprep.subr.bf16.mxu0 0
  %1229 = vmatpush1.bf16.xpose.msra.mxu0 0
  %1230 = vmatprep.subr.bf16.mxu0 0
  %1231 = vmatpush1.bf16.xpose.msra.mxu0 0
  %1232 = vmatprep.subr.bf16.mxu0 0
  %1233 = vmatpush1.bf16.xpose.msra.mxu0 0
  %1234 = vmatprep.subr.bf16.mxu0 0
  %1235 = vmatpush1.bf16.xpose.msra.mxu0 0
  %1236 = vmatprep.mubr.bf16.mxu0 0
  %1237 = vmatmul.mubr.bf16.gmra.mrb[0].mxu0 %v1199
  %v1238 = vpop.f32.mrb[0].mxu0
  %v1239 = vadd.f32 0.0, %v1238
  %v1240 = vpop.f32.mrb[0].mxu0
  %v1241 = vpop.f32.mrb[0].mxu0
  %v1242 = vadd.f32 0.0, %v1241
  %v1243 = vpop.f32.mrb[0].mxu0
  %1244 = vdwg.mxu0
  %v1245 = vmul.f32 %v1098, 0.125
  %v1246 = vmul.f32 %v1101, 0.125
  %v1247 = vmul.f32 %v1145, 0.125
  %v1248 = vmul.f32 %v1148, 0.125
  %v1249 = vmul.f32 %v1192, 0.125
  %v1250 = vmul.f32 %v1195, 0.125
  %v1251 = vmul.f32 %v1239, 0.125
  %v1252 = vmul.f32 %v1242, 0.125
  %v1253 = vsel %vm272, %v1245, -inf
  %1254 = vmax.xlane.f32.xlu0 %v1253
  %v1255 = vpop.xlane.xlu0 %1254
  %v1256 = vsel %vm272, %v1246, -inf
  %1257 = vmax.xlane.f32.xlu0 %v1256
  %v1258 = vpop.xlane.xlu0 %1257
  %v1259 = vsel %vm272, %v1247, -inf
  %1260 = vmax.xlane.f32.xlu0 %v1259
  %v1261 = vpop.xlane.xlu0 %1260
  %v1262 = vsel %vm272, %v1248, -inf
  %1263 = vmax.xlane.f32.xlu0 %v1262
  %v1264 = vpop.xlane.xlu0 %1263
  %v1265 = vsel %vm272, %v1249, -inf
  %1266 = vmax.xlane.f32.xlu0 %v1265
  %v1267 = vpop.xlane.xlu0 %1266
  %v1268 = vsel %vm272, %v1250, -inf
  %1269 = vmax.xlane.f32.xlu0 %v1268
  %v1270 = vpop.xlane.xlu0 %1269
  %v1271 = vsel %vm272, %v1251, -inf
  %1272 = vmax.xlane.f32.xlu0 %v1271
  %v1273 = vpop.xlane.xlu0 %1272
  %v1274 = vsel %vm272, %v1252, -inf
  %1275 = vmax.xlane.f32.xlu0 %v1274
  %v1276 = vpop.xlane.xlu0 %1275
  %v1277 = vsub.f32 %v1245, %v1255
  %v1278 = vsub.f32 %v1246, %v1258
  %v1279 = vsub.f32 %v1247, %v1261
  %v1280 = vsub.f32 %v1248, %v1264
  %v1281 = vsub.f32 %v1249, %v1267
  %v1282 = vsub.f32 %v1250, %v1270
  %v1283 = vsub.f32 %v1251, %v1273
  %v1284 = vsub.f32 %v1252, %v1276
  %v1285 = vmul.f32 %v1277, 1.442695
  %v1286 = vpow.pop %v1285
  %v1287 = vmul.f32 %v1278, 1.442695
  %v1288 = vpow.pop %v1287
  %v1289 = vmul.f32 %v1279, 1.442695
  %v1290 = vpow.pop %v1289
  %v1291 = vmul.f32 %v1280, 1.442695
  %v1292 = vpow.pop %v1291
  %v1293 = vmul.f32 %v1281, 1.442695
  %v1294 = vpow.pop %v1293
  %v1295 = vmul.f32 %v1282, 1.442695
  %v1296 = vpow.pop %v1295
  %v1297 = vmul.f32 %v1283, 1.442695
  %v1298 = vpow.pop %v1297
  %v1299 = vmul.f32 %v1284, 1.442695
  %v1300 = vpow.pop %v1299
  %v1301 = vsel %vm272, %v1286, 0.0
  %1302 = vadd.xlane.f32.xlu0 %v1301
  %v1303 = vpop.xlane.xlu0 %1302
  %v1304 = vsel %vm272, %v1288, 0.0
  %1305 = vadd.xlane.f32.xlu0 %v1304
  %v1306 = vpop.xlane.xlu0 %1305
  %v1307 = vsel %vm272, %v1290, 0.0
  %1308 = vadd.xlane.f32.xlu0 %v1307
  %v1309 = vpop.xlane.xlu0 %1308
  %v1310 = vsel %vm272, %v1292, 0.0
  %1311 = vadd.xlane.f32.xlu0 %v1310
  %v1312 = vpop.xlane.xlu0 %1311
  %v1313 = vsel %vm272, %v1294, 0.0
  %1314 = vadd.xlane.f32.xlu0 %v1313
  %v1315 = vpop.xlane.xlu0 %1314
  %v1316 = vsel %vm272, %v1296, 0.0
  %1317 = vadd.xlane.f32.xlu0 %v1316
  %v1318 = vpop.xlane.xlu0 %1317
  %v1319 = vsel %vm272, %v1298, 0.0
  %1320 = vadd.xlane.f32.xlu0 %v1319
  %v1321 = vpop.xlane.xlu0 %1320
  %v1322 = vsel %vm272, %v1300, 0.0
  %1323 = vadd.xlane.f32.xlu0 %v1322
  %v1324 = vpop.xlane.xlu0 %1323
  %v1325 = vrcp.pop %v1303
  %v1326 = vrcp.pop %v1306
  %v1327 = vrcp.pop %v1309
  %v1328 = vrcp.pop %v1312
  %v1329 = vrcp.pop %v1315
  %v1330 = vrcp.pop %v1318
  %v1331 = vrcp.pop %v1321
  %v1332 = vrcp.pop %v1324
  %v1333 = vmul.f32 %v1286, %v1325
  %v1334 = vmul.f32 %v1288, %v1326
  %v1335 = vmul.f32 %v1290, %v1327
  %v1336 = vmul.f32 %v1292, %v1328
  %v1337 = vmul.f32 %v1294, %v1329
  %v1338 = vmul.f32 %v1296, %v1330
  %v1339 = vmul.f32 %v1298, %v1331
  %v1340 = vmul.f32 %v1300, %v1332
  %v1341 = vpack.c.bf16 %v1334, %v1333
  %v1342 = vpack.c.bf16 %v1336, %v1335
  %v1343 = vpack.c.bf16 %v1338, %v1337
  %v1344 = vpack.c.bf16 %v1340, %v1339
  %v1346 = vsel %vm272, %v1341, 0
  %1348 = vmatprep.subr.bf16.mxu0 0
  %1349 = vmatpush1.bf16.msra.mxu0 %v1053
  %1350 = vmatprep.subr.bf16.mxu0 0
  %1351 = vmatpush1.bf16.msra.mxu0 0
  %1352 = vmatprep.subr.bf16.mxu0 0
  %1353 = vmatpush1.bf16.msra.mxu0 0
  %1354 = vmatprep.subr.bf16.mxu0 0
  %1355 = vmatpush1.bf16.msra.mxu0 0
  %1356 = vmatprep.subr.bf16.mxu0 0
  %1357 = vmatpush1.bf16.msra.mxu0 0
  %1358 = vmatprep.subr.bf16.mxu0 0
  %1359 = vmatpush1.bf16.msra.mxu0 0
  %1360 = vmatprep.subr.bf16.mxu0 0
  %1361 = vmatpush1.bf16.msra.mxu0 0
  %1362 = vmatprep.subr.bf16.mxu0 0
  %1363 = vmatpush1.bf16.msra.mxu0 0
  %1364 = vmatprep.subr.bf16.mxu0 0
  %1365 = vmatpush1.bf16.msra.mxu0 0
  %1366 = vmatprep.subr.bf16.mxu0 0
  %1367 = vmatpush1.bf16.msra.mxu0 0
  %1368 = vmatprep.subr.bf16.mxu0 0
  %1369 = vmatpush1.bf16.msra.mxu0 0
  %1370 = vmatprep.subr.bf16.mxu0 0
  %1371 = vmatpush1.bf16.msra.mxu0 0
  %1372 = vmatprep.subr.bf16.mxu0 0
  %1373 = vmatpush1.bf16.msra.mxu0 0
  %1374 = vmatprep.subr.bf16.mxu0 0
  %1375 = vmatpush1.bf16.msra.mxu0 0
  %1376 = vmatprep.subr.bf16.mxu0 0
  %1377 = vmatpush1.bf16.msra.mxu0 0
  %1378 = vmatprep.subr.bf16.mxu0 0
  %1379 = vmatpush1.bf16.msra.mxu0 0
  %1380 = vmatprep.mubr.bf16.mxu0 0
  %1381 = vmatmul.mubr.bf16.gmra.mrb[0].mxu0 %v1346
  %v1382 = vpop.f32.mrb[0].mxu0
  %v1383 = vadd.f32 0.0, %v1382
  %v1384 = vpop.f32.mrb[0].mxu0
  %v1385 = vpop.f32.mrb[0].mxu0
  %v1386 = vadd.f32 0.0, %v1385
  %v1387 = vpop.f32.mrb[0].mxu0
  %1388 = vdwg.mxu0
  %v1390 = vsel %vm272, %v1342, 0
  %1392 = vmatprep.subr.bf16.mxu0 0
  %1393 = vmatpush1.bf16.msra.mxu0 %v1054
  %1394 = vmatprep.subr.bf16.mxu0 0
  %1395 = vmatpush1.bf16.msra.mxu0 0
  %1396 = vmatprep.subr.bf16.mxu0 0
  %1397 = vmatpush1.bf16.msra.mxu0 0
  %1398 = vmatprep.subr.bf16.mxu0 0
  %1399 = vmatpush1.bf16.msra.mxu0 0
  %1400 = vmatprep.subr.bf16.mxu0 0
  %1401 = vmatpush1.bf16.msra.mxu0 0
  %1402 = vmatprep.subr.bf16.mxu0 0
  %1403 = vmatpush1.bf16.msra.mxu0 0
  %1404 = vmatprep.subr.bf16.mxu0 0
  %1405 = vmatpush1.bf16.msra.mxu0 0
  %1406 = vmatprep.subr.bf16.mxu0 0
  %1407 = vmatpush1.bf16.msra.mxu0 0
  %1408 = vmatprep.subr.bf16.mxu0 0
  %1409 = vmatpush1.bf16.msra.mxu0 0
  %1410 = vmatprep.subr.bf16.mxu0 0
  %1411 = vmatpush1.bf16.msra.mxu0 0
  %1412 = vmatprep.subr.bf16.mxu0 0
  %1413 = vmatpush1.bf16.msra.mxu0 0
  %1414 = vmatprep.subr.bf16.mxu0 0
  %1415 = vmatpush1.bf16.msra.mxu0 0
  %1416 = vmatprep.subr.bf16.mxu0 0
  %1417 = vmatpush1.bf16.msra.mxu0 0
  %1418 = vmatprep.subr.bf16.mxu0 0
  %1419 = vmatpush1.bf16.msra.mxu0 0
  %1420 = vmatprep.subr.bf16.mxu0 0
  %1421 = vmatpush1.bf16.msra.mxu0 0
  %1422 = vmatprep.subr.bf16.mxu0 0
  %1423 = vmatpush1.bf16.msra.mxu0 0
  %1424 = vmatprep.mubr.bf16.mxu0 0
  %1425 = vmatmul.mubr.bf16.gmra.mrb[0].mxu0 %v1390
  %v1426 = vpop.f32.mrb[0].mxu0
  %v1427 = vadd.f32 0.0, %v1426
  %v1428 = vpop.f32.mrb[0].mxu0
  %v1429 = vpop.f32.mrb[0].mxu0
  %v1430 = vadd.f32 0.0, %v1429
  %v1431 = vpop.f32.mrb[0].mxu0
  %1432 = vdwg.mxu0
  %v1434 = vsel %vm272, %v1343, 0
  %1436 = vmatprep.subr.bf16.mxu0 0
  %1437 = vmatpush1.bf16.msra.mxu0 %v1055
  %1438 = vmatprep.subr.bf16.mxu0 0
  %1439 = vmatpush1.bf16.msra.mxu0 0
  %1440 = vmatprep.subr.bf16.mxu0 0
  %1441 = vmatpush1.bf16.msra.mxu0 0
  %1442 = vmatprep.subr.bf16.mxu0 0
  %1443 = vmatpush1.bf16.msra.mxu0 0
  %1444 = vmatprep.subr.bf16.mxu0 0
  %1445 = vmatpush1.bf16.msra.mxu0 0
  %1446 = vmatprep.subr.bf16.mxu0 0
  %1447 = vmatpush1.bf16.msra.mxu0 0
  %1448 = vmatprep.subr.bf16.mxu0 0
  %1449 = vmatpush1.bf16.msra.mxu0 0
  %1450 = vmatprep.subr.bf16.mxu0 0
  %1451 = vmatpush1.bf16.msra.mxu0 0
  %1452 = vmatprep.subr.bf16.mxu0 0
  %1453 = vmatpush1.bf16.msra.mxu0 0
  %1454 = vmatprep.subr.bf16.mxu0 0
  %1455 = vmatpush1.bf16.msra.mxu0 0
  %1456 = vmatprep.subr.bf16.mxu0 0
  %1457 = vmatpush1.bf16.msra.mxu0 0
  %1458 = vmatprep.subr.bf16.mxu0 0
  %1459 = vmatpush1.bf16.msra.mxu0 0
  %1460 = vmatprep.subr.bf16.mxu0 0
  %1461 = vmatpush1.bf16.msra.mxu0 0
  %1462 = vmatprep.subr.bf16.mxu0 0
  %1463 = vmatpush1.bf16.msra.mxu0 0
  %1464 = vmatprep.subr.bf16.mxu0 0
  %1465 = vmatpush1.bf16.msra.mxu0 0
  %1466 = vmatprep.subr.bf16.mxu0 0
  %1467 = vmatpush1.bf16.msra.mxu0 0
  %1468 = vmatprep.mubr.bf16.mxu0 0
  %1469 = vmatmul.mubr.bf16.gmra.mrb[0].mxu0 %v1434
  %v1470 = vpop.f32.mrb[0].mxu0
  %v1471 = vadd.f32 0.0, %v1470
  %v1472 = vpop.f32.mrb[0].mxu0
  %v1473 = vpop.f32.mrb[0].mxu0
  %v1474 = vadd.f32 0.0, %v1473
  %v1475 = vpop.f32.mrb[0].mxu0
  %1476 = vdwg.mxu0
  %v1478 = vsel %vm272, %v1344, 0
  %1480 = vmatprep.subr.bf16.mxu0 0
  %1481 = vmatpush1.bf16.msra.mxu0 %v1056
  %1482 = vmatprep.subr.bf16.mxu0 0
  %1483 = vmatpush1.bf16.msra.mxu0 0
  %1484 = vmatprep.subr.bf16.mxu0 0
  %1485 = vmatpush1.bf16.msra.mxu0 0
  %1486 = vmatprep.subr.bf16.mxu0 0
  %1487 = vmatpush1.bf16.msra.mxu0 0
  %1488 = vmatprep.subr.bf16.mxu0 0
  %1489 = vmatpush1.bf16.msra.mxu0 0
  %1490 = vmatprep.subr.bf16.mxu0 0
  %1491 = vmatpush1.bf16.msra.mxu0 0
  %1492 = vmatprep.subr.bf16.mxu0 0
  %1493 = vmatpush1.bf16.msra.mxu0 0
  %1494 = vmatprep.subr.bf16.mxu0 0
  %1495 = vmatpush1.bf16.msra.mxu0 0
  %1496 = vmatprep.subr.bf16.mxu0 0
  %1497 = vmatpush1.bf16.msra.mxu0 0
  %1498 = vmatprep.subr.bf16.mxu0 0
  %1499 = vmatpush1.bf16.msra.mxu0 0
  %1500 = vmatprep.subr.bf16.mxu0 0
  %1501 = vmatpush1.bf16.msra.mxu0 0
  %1502 = vmatprep.subr.bf16.mxu0 0
  %1503 = vmatpush1.bf16.msra.mxu0 0
  %1504 = vmatprep.subr.bf16.mxu0 0
  %1505 = vmatpush1.bf16.msra.mxu0 0
  %1506 = vmatprep.subr.bf16.mxu0 0
  %1507 = vmatpush1.bf16.msra.mxu0 0
  %1508 = vmatprep.subr.bf16.mxu0 0
  %1509 = vmatpush1.bf16.msra.mxu0 0
  %1510 = vmatprep.subr.bf16.mxu0 0
  %1511 = vmatpush1.bf16.msra.mxu0 0
  %1512 = vmatprep.mubr.bf16.mxu0 0
  %1513 = vmatmul.mubr.bf16.gmra.mrb[0].mxu0 %v1478
  %v1514 = vpop.f32.mrb[0].mxu0
  %v1515 = vadd.f32 0.0, %v1514
  %v1516 = vpop.f32.mrb[0].mxu0
  %v1517 = vpop.f32.mrb[0].mxu0
  %v1518 = vadd.f32 0.0, %v1517
  %v1519 = vpop.f32.mrb[0].mxu0
  %1520 = vdwg.mxu0
  %1522 = vrot.lane.b32.xlu0 %v1045, 64
  %v1523 = vpop.permute.xlu0 %1522
  %1525 = vrot.lane.b32.xlu0 %v1049, 64
  %v1526 = vpop.permute.xlu0 %1525
  %v1528 = vsel %vm75, %v1523, 0
  %v1531 = vsel %vm75, %v1526, 0
  %1533 = vmatprep.subr.bf16.mxu0 0
  %1534 = vmatpush1.bf16.xpose.msra.mxu0 %v1531
  %1535 = vmatprep.subr.bf16.mxu0 0
  %1536 = vmatpush1.bf16.xpose.msra.mxu0 0
  %1537 = vmatprep.subr.bf16.mxu0 0
  %1538 = vmatpush1.bf16.xpose.msra.mxu0 0
  %1539 = vmatprep.subr.bf16.mxu0 0
  %1540 = vmatpush1.bf16.xpose.msra.mxu0 0
  %1541 = vmatprep.subr.bf16.mxu0 0
  %1542 = vmatpush1.bf16.xpose.msra.mxu0 0
  %1543 = vmatprep.subr.bf16.mxu0 0
  %1544 = vmatpush1.bf16.xpose.msra.mxu0 0
  %1545 = vmatprep.subr.bf16.mxu0 0
  %1546 = vmatpush1.bf16.xpose.msra.mxu0 0
  %1547 = vmatprep.subr.bf16.mxu0 0
  %1548 = vmatpush1.bf16.xpose.msra.mxu0 0
  %1549 = vmatprep.subr.bf16.mxu0 0
  %1550 = vmatpush1.bf16.xpose.msra.mxu0 0
  %1551 = vmatprep.subr.bf16.mxu0 0
  %1552 = vmatpush1.bf16.xpose.msra.mxu0 0
  %1553 = vmatprep.subr.bf16.mxu0 0
  %1554 = vmatpush1.bf16.xpose.msra.mxu0 0
  %1555 = vmatprep.subr.bf16.mxu0 0
  %1556 = vmatpush1.bf16.xpose.msra.mxu0 0
  %1557 = vmatprep.subr.bf16.mxu0 0
  %1558 = vmatpush1.bf16.xpose.msra.mxu0 0
  %1559 = vmatprep.subr.bf16.mxu0 0
  %1560 = vmatpush1.bf16.xpose.msra.mxu0 0
  %1561 = vmatprep.subr.bf16.mxu0 0
  %1562 = vmatpush1.bf16.xpose.msra.mxu0 0
  %1563 = vmatprep.subr.bf16.mxu0 0
  %1564 = vmatpush1.bf16.xpose.msra.mxu0 0
  %1565 = vmatprep.mubr.bf16.mxu0 0
  %1566 = vmatmul.mubr.bf16.gmra.mrb[0].mxu0 %v1528
  %v1567 = vpop.f32.mrb[0].mxu0
  %v1568 = vadd.f32 0.0, %v1567
  %v1569 = vpop.f32.mrb[0].mxu0
  %v1570 = vpop.f32.mrb[0].mxu0
  %v1571 = vadd.f32 0.0, %v1570
  %v1572 = vpop.f32.mrb[0].mxu0
  %1573 = vdwg.mxu0
  %1575 = vrot.lane.b32.xlu0 %v1046, 64
  %v1576 = vpop.permute.xlu0 %1575
  %1578 = vrot.lane.b32.xlu0 %v1050, 64
  %v1579 = vpop.permute.xlu0 %1578
  %v1581 = vsel %vm75, %v1576, 0
  %v1584 = vsel %vm75, %v1579, 0
  %1586 = vmatprep.subr.bf16.mxu0 0
  %1587 = vmatpush1.bf16.xpose.msra.mxu0 %v1584
  %1588 = vmatprep.subr.bf16.mxu0 0
  %1589 = vmatpush1.bf16.xpose.msra.mxu0 0
  %1590 = vmatprep.subr.bf16.mxu0 0
  %1591 = vmatpush1.bf16.xpose.msra.mxu0 0
  %1592 = vmatprep.subr.bf16.mxu0 0
  %1593 = vmatpush1.bf16.xpose.msra.mxu0 0
  %1594 = vmatprep.subr.bf16.mxu0 0
  %1595 = vmatpush1.bf16.xpose.msra.mxu0 0
  %1596 = vmatprep.subr.bf16.mxu0 0
  %1597 = vmatpush1.bf16.xpose.msra.mxu0 0
  %1598 = vmatprep.subr.bf16.mxu0 0
  %1599 = vmatpush1.bf16.xpose.msra.mxu0 0
  %1600 = vmatprep.subr.bf16.mxu0 0
  %1601 = vmatpush1.bf16.xpose.msra.mxu0 0
  %1602 = vmatprep.subr.bf16.mxu0 0
  %1603 = vmatpush1.bf16.xpose.msra.mxu0 0
  %1604 = vmatprep.subr.bf16.mxu0 0
  %1605 = vmatpush1.bf16.xpose.msra.mxu0 0
  %1606 = vmatprep.subr.bf16.mxu0 0
  %1607 = vmatpush1.bf16.xpose.msra.mxu0 0
  %1608 = vmatprep.subr.bf16.mxu0 0
  %1609 = vmatpush1.bf16.xpose.msra.mxu0 0
  %1610 = vmatprep.subr.bf16.mxu0 0
  %1611 = vmatpush1.bf16.xpose.msra.mxu0 0
  %1612 = vmatprep.subr.bf16.mxu0 0
  %1613 = vmatpush1.bf16.xpose.msra.mxu0 0
  %1614 = vmatprep.subr.bf16.mxu0 0
  %1615 = vmatpush1.bf16.xpose.msra.mxu0 0
  %1616 = vmatprep.subr.bf16.mxu0 0
  %1617 = vmatpush1.bf16.xpose.msra.mxu0 0
  %1618 = vmatprep.mubr.bf16.mxu0 0
  %1619 = vmatmul.mubr.bf16.gmra.mrb[0].mxu0 %v1581
  %v1620 = vpop.f32.mrb[0].mxu0
  %v1621 = vadd.f32 0.0, %v1620
  %v1622 = vpop.f32.mrb[0].mxu0
  %v1623 = vpop.f32.mrb[0].mxu0
  %v1624 = vadd.f32 0.0, %v1623
  %v1625 = vpop.f32.mrb[0].mxu0
  %1626 = vdwg.mxu0
  %1628 = vrot.lane.b32.xlu0 %v1047, 64
  %v1629 = vpop.permute.xlu0 %1628
  %1631 = vrot.lane.b32.xlu0 %v1051, 64
  %v1632 = vpop.permute.xlu0 %1631
  %v1634 = vsel %vm75, %v1629, 0
  %v1637 = vsel %vm75, %v1632, 0
  %1639 = vmatprep.subr.bf16.mxu0 0
  %1640 = vmatpush1.bf16.xpose.msra.mxu0 %v1637
  %1641 = vmatprep.subr.bf16.mxu0 0
  %1642 = vmatpush1.bf16.xpose.msra.mxu0 0
  %1643 = vmatprep.subr.bf16.mxu0 0
  %1644 = vmatpush1.bf16.xpose.msra.mxu0 0
  %1645 = vmatprep.subr.bf16.mxu0 0
  %1646 = vmatpush1.bf16.xpose.msra.mxu0 0
  %1647 = vmatprep.subr.bf16.mxu0 0
  %1648 = vmatpush1.bf16.xpose.msra.mxu0 0
  %1649 = vmatprep.subr.bf16.mxu0 0
  %1650 = vmatpush1.bf16.xpose.msra.mxu0 0
  %1651 = vmatprep.subr.bf16.mxu0 0
  %1652 = vmatpush1.bf16.xpose.msra.mxu0 0
  %1653 = vmatprep.subr.bf16.mxu0 0
  %1654 = vmatpush1.bf16.xpose.msra.mxu0 0
  %1655 = vmatprep.subr.bf16.mxu0 0
  %1656 = vmatpush1.bf16.xpose.msra.mxu0 0
  %1657 = vmatprep.subr.bf16.mxu0 0
  %1658 = vmatpush1.bf16.xpose.msra.mxu0 0
  %1659 = vmatprep.subr.bf16.mxu0 0
  %1660 = vmatpush1.bf16.xpose.msra.mxu0 0
  %1661 = vmatprep.subr.bf16.mxu0 0
  %1662 = vmatpush1.bf16.xpose.msra.mxu0 0
  %1663 = vmatprep.subr.bf16.mxu0 0
  %1664 = vmatpush1.bf16.xpose.msra.mxu0 0
  %1665 = vmatprep.subr.bf16.mxu0 0
  %1666 = vmatpush1.bf16.xpose.msra.mxu0 0
  %1667 = vmatprep.subr.bf16.mxu0 0
  %1668 = vmatpush1.bf16.xpose.msra.mxu0 0
  %1669 = vmatprep.subr.bf16.mxu0 0
  %1670 = vmatpush1.bf16.xpose.msra.mxu0 0
  %1671 = vmatprep.mubr.bf16.mxu0 0
  %1672 = vmatmul.mubr.bf16.gmra.mrb[0].mxu0 %v1634
  %v1673 = vpop.f32.mrb[0].mxu0
  %v1674 = vadd.f32 0.0, %v1673
  %v1675 = vpop.f32.mrb[0].mxu0
  %v1676 = vpop.f32.mrb[0].mxu0
  %v1677 = vadd.f32 0.0, %v1676
  %v1678 = vpop.f32.mrb[0].mxu0
  %1679 = vdwg.mxu0
  %1681 = vrot.lane.b32.xlu0 %v1048, 64
  %v1682 = vpop.permute.xlu0 %1681
  %1684 = vrot.lane.b32.xlu0 %v1052, 64
  %v1685 = vpop.permute.xlu0 %1684
  %v1687 = vsel %vm75, %v1682, 0
  %v1690 = vsel %vm75, %v1685, 0
  %1692 = vmatprep.subr.bf16.mxu0 0
  %1693 = vmatpush1.bf16.xpose.msra.mxu0 %v1690
  %1694 = vmatprep.subr.bf16.mxu0 0
  %1695 = vmatpush1.bf16.xpose.msra.mxu0 0
  %1696 = vmatprep.subr.bf16.mxu0 0
  %1697 = vmatpush1.bf16.xpose.msra.mxu0 0
  %1698 = vmatprep.subr.bf16.mxu0 0
  %1699 = vmatpush1.bf16.xpose.msra.mxu0 0
  %1700 = vmatprep.subr.bf16.mxu0 0
  %1701 = vmatpush1.bf16.xpose.msra.mxu0 0
  %1702 = vmatprep.subr.bf16.mxu0 0
  %1703 = vmatpush1.bf16.xpose.msra.mxu0 0
  %1704 = vmatprep.subr.bf16.mxu0 0
  %1705 = vmatpush1.bf16.xpose.msra.mxu0 0
  %1706 = vmatprep.subr.bf16.mxu0 0
  %1707 = vmatpush1.bf16.xpose.msra.mxu0 0
  %1708 = vmatprep.subr.bf16.mxu0 0
  %1709 = vmatpush1.bf16.xpose.msra.mxu0 0
  %1710 = vmatprep.subr.bf16.mxu0 0
  %1711 = vmatpush1.bf16.xpose.msra.mxu0 0
  %1712 = vmatprep.subr.bf16.mxu0 0
  %1713 = vmatpush1.bf16.xpose.msra.mxu0 0
  %1714 = vmatprep.subr.bf16.mxu0 0
  %1715 = vmatpush1.bf16.xpose.msra.mxu0 0
  %1716 = vmatprep.subr.bf16.mxu0 0
  %1717 = vmatpush1.bf16.xpose.msra.mxu0 0
  %1718 = vmatprep.subr.bf16.mxu0 0
  %1719 = vmatpush1.bf16.xpose.msra.mxu0 0
  %1720 = vmatprep.subr.bf16.mxu0 0
  %1721 = vmatpush1.bf16.xpose.msra.mxu0 0
  %1722 = vmatprep.subr.bf16.mxu0 0
  %1723 = vmatpush1.bf16.xpose.msra.mxu0 0
  %1724 = vmatprep.mubr.bf16.mxu0 0
  %1725 = vmatmul.mubr.bf16.gmra.mrb[0].mxu0 %v1687
  %v1726 = vpop.f32.mrb[0].mxu0
  %v1727 = vadd.f32 0.0, %v1726
  %v1728 = vpop.f32.mrb[0].mxu0
  %v1729 = vpop.f32.mrb[0].mxu0
  %v1730 = vadd.f32 0.0, %v1729
  %v1731 = vpop.f32.mrb[0].mxu0
  %1732 = vdwg.mxu0
  %v1733 = vmul.f32 %v1568, 0.125
  %v1734 = vmul.f32 %v1571, 0.125
  %v1735 = vmul.f32 %v1621, 0.125
  %v1736 = vmul.f32 %v1624, 0.125
  %v1737 = vmul.f32 %v1674, 0.125
  %v1738 = vmul.f32 %v1677, 0.125
  %v1739 = vmul.f32 %v1727, 0.125
  %v1740 = vmul.f32 %v1730, 0.125
  %v1741 = vsel %vm272, %v1733, -inf
  %1742 = vmax.xlane.f32.xlu0 %v1741
  %v1743 = vpop.xlane.xlu0 %1742
  %v1744 = vsel %vm272, %v1734, -inf
  %1745 = vmax.xlane.f32.xlu0 %v1744
  %v1746 = vpop.xlane.xlu0 %1745
  %v1747 = vsel %vm272, %v1735, -inf
  %1748 = vmax.xlane.f32.xlu0 %v1747
  %v1749 = vpop.xlane.xlu0 %1748
  %v1750 = vsel %vm272, %v1736, -inf
  %1751 = vmax.xlane.f32.xlu0 %v1750
  %v1752 = vpop.xlane.xlu0 %1751
  %v1753 = vsel %vm272, %v1737, -inf
  %1754 = vmax.xlane.f32.xlu0 %v1753
  %v1755 = vpop.xlane.xlu0 %1754
  %v1756 = vsel %vm272, %v1738, -inf
  %1757 = vmax.xlane.f32.xlu0 %v1756
  %v1758 = vpop.xlane.xlu0 %1757
  %v1759 = vsel %vm272, %v1739, -inf
  %1760 = vmax.xlane.f32.xlu0 %v1759
  %v1761 = vpop.xlane.xlu0 %1760
  %v1762 = vsel %vm272, %v1740, -inf
  %1763 = vmax.xlane.f32.xlu0 %v1762
  %v1764 = vpop.xlane.xlu0 %1763
  %v1765 = vsub.f32 %v1733, %v1743
  %v1766 = vsub.f32 %v1734, %v1746
  %v1767 = vsub.f32 %v1735, %v1749
  %v1768 = vsub.f32 %v1736, %v1752
  %v1769 = vsub.f32 %v1737, %v1755
  %v1770 = vsub.f32 %v1738, %v1758
  %v1771 = vsub.f32 %v1739, %v1761
  %v1772 = vsub.f32 %v1740, %v1764
  %v1773 = vmul.f32 %v1765, 1.442695
  %v1774 = vpow.pop %v1773
  %v1775 = vmul.f32 %v1766, 1.442695
  %v1776 = vpow.pop %v1775
  %v1777 = vmul.f32 %v1767, 1.442695
  %v1778 = vpow.pop %v1777
  %v1779 = vmul.f32 %v1768, 1.442695
  %v1780 = vpow.pop %v1779
  %v1781 = vmul.f32 %v1769, 1.442695
  %v1782 = vpow.pop %v1781
  %v1783 = vmul.f32 %v1770, 1.442695
  %v1784 = vpow.pop %v1783
  %v1785 = vmul.f32 %v1771, 1.442695
  %v1786 = vpow.pop %v1785
  %v1787 = vmul.f32 %v1772, 1.442695
  %v1788 = vpow.pop %v1787
  %v1789 = vsel %vm272, %v1774, 0.0
  %1790 = vadd.xlane.f32.xlu0 %v1789
  %v1791 = vpop.xlane.xlu0 %1790
  %v1792 = vsel %vm272, %v1776, 0.0
  %1793 = vadd.xlane.f32.xlu0 %v1792
  %v1794 = vpop.xlane.xlu0 %1793
  %v1795 = vsel %vm272, %v1778, 0.0
  %1796 = vadd.xlane.f32.xlu0 %v1795
  %v1797 = vpop.xlane.xlu0 %1796
  %v1798 = vsel %vm272, %v1780, 0.0
  %1799 = vadd.xlane.f32.xlu0 %v1798
  %v1800 = vpop.xlane.xlu0 %1799
  %v1801 = vsel %vm272, %v1782, 0.0
  %1802 = vadd.xlane.f32.xlu0 %v1801
  %v1803 = vpop.xlane.xlu0 %1802
  %v1804 = vsel %vm272, %v1784, 0.0
  %1805 = vadd.xlane.f32.xlu0 %v1804
  %v1806 = vpop.xlane.xlu0 %1805
  %v1807 = vsel %vm272, %v1786, 0.0
  %1808 = vadd.xlane.f32.xlu0 %v1807
  %v1809 = vpop.xlane.xlu0 %1808
  %v1810 = vsel %vm272, %v1788, 0.0
  %1811 = vadd.xlane.f32.xlu0 %v1810
  %v1812 = vpop.xlane.xlu0 %1811
  %v1813 = vrcp.pop %v1791
  %v1814 = vrcp.pop %v1794
  %v1815 = vrcp.pop %v1797
  %v1816 = vrcp.pop %v1800
  %v1817 = vrcp.pop %v1803
  %v1818 = vrcp.pop %v1806
  %v1819 = vrcp.pop %v1809
  %v1820 = vrcp.pop %v1812
  %v1821 = vmul.f32 %v1774, %v1813
  %v1822 = vmul.f32 %v1776, %v1814
  %v1823 = vmul.f32 %v1778, %v1815
  %v1824 = vmul.f32 %v1780, %v1816
  %v1825 = vmul.f32 %v1782, %v1817
  %v1826 = vmul.f32 %v1784, %v1818
  %v1827 = vmul.f32 %v1786, %v1819
  %v1828 = vmul.f32 %v1788, %v1820
  %v1829 = vpack.c.bf16 %v1822, %v1821
  %v1830 = vpack.c.bf16 %v1824, %v1823
  %v1831 = vpack.c.bf16 %v1826, %v1825
  %v1832 = vpack.c.bf16 %v1828, %v1827
  %1834 = vrot.lane.b32.xlu0 %v1053, 64
  %v1835 = vpop.permute.xlu0 %1834
  %v1838 = vsel %vm272, %v1829, 0
  %1840 = vmatprep.subr.bf16.mxu0 0
  %1841 = vmatpush1.bf16.msra.mxu0 %v1835
  %1842 = vmatprep.subr.bf16.mxu0 0
  %1843 = vmatpush1.bf16.msra.mxu0 0
  %1844 = vmatprep.subr.bf16.mxu0 0
  %1845 = vmatpush1.bf16.msra.mxu0 0
  %1846 = vmatprep.subr.bf16.mxu0 0
  %1847 = vmatpush1.bf16.msra.mxu0 0
  %1848 = vmatprep.subr.bf16.mxu0 0
  %1849 = vmatpush1.bf16.msra.mxu0 0
  %1850 = vmatprep.subr.bf16.mxu0 0
  %1851 = vmatpush1.bf16.msra.mxu0 0
  %1852 = vmatprep.subr.bf16.mxu0 0
  %1853 = vmatpush1.bf16.msra.mxu0 0
  %1854 = vmatprep.subr.bf16.mxu0 0
  %1855 = vmatpush1.bf16.msra.mxu0 0
  %1856 = vmatprep.subr.bf16.mxu0 0
  %1857 = vmatpush1.bf16.msra.mxu0 0
  %1858 = vmatprep.subr.bf16.mxu0 0
  %1859 = vmatpush1.bf16.msra.mxu0 0
  %1860 = vmatprep.subr.bf16.mxu0 0
  %1861 = vmatpush1.bf16.msra.mxu0 0
  %1862 = vmatprep.subr.bf16.mxu0 0
  %1863 = vmatpush1.bf16.msra.mxu0 0
  %1864 = vmatprep.subr.bf16.mxu0 0
  %1865 = vmatpush1.bf16.msra.mxu0 0
  %1866 = vmatprep.subr.bf16.mxu0 0
  %1867 = vmatpush1.bf16.msra.mxu0 0
  %1868 = vmatprep.subr.bf16.mxu0 0
  %1869 = vmatpush1.bf16.msra.mxu0 0
  %1870 = vmatprep.subr.bf16.mxu0 0
  %1871 = vmatpush1.bf16.msra.mxu0 0
  %1872 = vmatprep.mubr.bf16.mxu0 0
  %1873 = vmatmul.mubr.bf16.gmra.mrb[0].mxu0 %v1838
  %v1874 = vpop.f32.mrb[0].mxu0
  %v1875 = vadd.f32 0.0, %v1874
  %v1876 = vpop.f32.mrb[0].mxu0
  %v1877 = vpop.f32.mrb[0].mxu0
  %v1878 = vadd.f32 0.0, %v1877
  %v1879 = vpop.f32.mrb[0].mxu0
  %1880 = vdwg.mxu0
  %1882 = vrot.lane.b32.xlu0 %v1054, 64
  %v1883 = vpop.permute.xlu0 %1882
  %v1886 = vsel %vm272, %v1830, 0
  %1888 = vmatprep.subr.bf16.mxu0 0
  %1889 = vmatpush1.bf16.msra.mxu0 %v1883
  %1890 = vmatprep.subr.bf16.mxu0 0
  %1891 = vmatpush1.bf16.msra.mxu0 0
  %1892 = vmatprep.subr.bf16.mxu0 0
  %1893 = vmatpush1.bf16.msra.mxu0 0
  %1894 = vmatprep.subr.bf16.mxu0 0
  %1895 = vmatpush1.bf16.msra.mxu0 0
  %1896 = vmatprep.subr.bf16.mxu0 0
  %1897 = vmatpush1.bf16.msra.mxu0 0
  %1898 = vmatprep.subr.bf16.mxu0 0
  %1899 = vmatpush1.bf16.msra.mxu0 0
  %1900 = vmatprep.subr.bf16.mxu0 0
  %1901 = vmatpush1.bf16.msra.mxu0 0
  %1902 = vmatprep.subr.bf16.mxu0 0
  %1903 = vmatpush1.bf16.msra.mxu0 0
  %1904 = vmatprep.subr.bf16.mxu0 0
  %1905 = vmatpush1.bf16.msra.mxu0 0
  %1906 = vmatprep.subr.bf16.mxu0 0
  %1907 = vmatpush1.bf16.msra.mxu0 0
  %1908 = vmatprep.subr.bf16.mxu0 0
  %1909 = vmatpush1.bf16.msra.mxu0 0
  %1910 = vmatprep.subr.bf16.mxu0 0
  %1911 = vmatpush1.bf16.msra.mxu0 0
  %1912 = vmatprep.subr.bf16.mxu0 0
  %1913 = vmatpush1.bf16.msra.mxu0 0
  %1914 = vmatprep.subr.bf16.mxu0 0
  %1915 = vmatpush1.bf16.msra.mxu0 0
  %1916 = vmatprep.subr.bf16.mxu0 0
  %1917 = vmatpush1.bf16.msra.mxu0 0
  %1918 = vmatprep.subr.bf16.mxu0 0
  %1919 = vmatpush1.bf16.msra.mxu0 0
  %1920 = vmatprep.mubr.bf16.mxu0 0
  %1921 = vmatmul.mubr.bf16.gmra.mrb[0].mxu0 %v1886
  %v1922 = vpop.f32.mrb[0].mxu0
  %v1923 = vadd.f32 0.0, %v1922
  %v1924 = vpop.f32.mrb[0].mxu0
  %v1925 = vpop.f32.mrb[0].mxu0
  %v1926 = vadd.f32 0.0, %v1925
  %v1927 = vpop.f32.mrb[0].mxu0
  %1928 = vdwg.mxu0
  %1930 = vrot.lane.b32.xlu0 %v1055, 64
  %v1931 = vpop.permute.xlu0 %1930
  %v1934 = vsel %vm272, %v1831, 0
  %1936 = vmatprep.subr.bf16.mxu0 0
  %1937 = vmatpush1.bf16.msra.mxu0 %v1931
  %1938 = vmatprep.subr.bf16.mxu0 0
  %1939 = vmatpush1.bf16.msra.mxu0 0
  %1940 = vmatprep.subr.bf16.mxu0 0
  %1941 = vmatpush1.bf16.msra.mxu0 0
  %1942 = vmatprep.subr.bf16.mxu0 0
  %1943 = vmatpush1.bf16.msra.mxu0 0
  %1944 = vmatprep.subr.bf16.mxu0 0
  %1945 = vmatpush1.bf16.msra.mxu0 0
  %1946 = vmatprep.subr.bf16.mxu0 0
  %1947 = vmatpush1.bf16.msra.mxu0 0
  %1948 = vmatprep.subr.bf16.mxu0 0
  %1949 = vmatpush1.bf16.msra.mxu0 0
  %1950 = vmatprep.subr.bf16.mxu0 0
  %1951 = vmatpush1.bf16.msra.mxu0 0
  %1952 = vmatprep.subr.bf16.mxu0 0
  %1953 = vmatpush1.bf16.msra.mxu0 0
  %1954 = vmatprep.subr.bf16.mxu0 0
  %1955 = vmatpush1.bf16.msra.mxu0 0
  %1956 = vmatprep.subr.bf16.mxu0 0
  %1957 = vmatpush1.bf16.msra.mxu0 0
  %1958 = vmatprep.subr.bf16.mxu0 0
  %1959 = vmatpush1.bf16.msra.mxu0 0
  %1960 = vmatprep.subr.bf16.mxu0 0
  %1961 = vmatpush1.bf16.msra.mxu0 0
  %1962 = vmatprep.subr.bf16.mxu0 0
  %1963 = vmatpush1.bf16.msra.mxu0 0
  %1964 = vmatprep.subr.bf16.mxu0 0
  %1965 = vmatpush1.bf16.msra.mxu0 0
  %1966 = vmatprep.subr.bf16.mxu0 0
  %1967 = vmatpush1.bf16.msra.mxu0 0
  %1968 = vmatprep.mubr.bf16.mxu0 0
  %1969 = vmatmul.mubr.bf16.gmra.mrb[0].mxu0 %v1934
  %v1970 = vpop.f32.mrb[0].mxu0
  %v1971 = vadd.f32 0.0, %v1970
  %v1972 = vpop.f32.mrb[0].mxu0
  %v1973 = vpop.f32.mrb[0].mxu0
  %v1974 = vadd.f32 0.0, %v1973
  %v1975 = vpop.f32.mrb[0].mxu0
  %1976 = vdwg.mxu0
  %1978 = vrot.lane.b32.xlu0 %v1056, 64
  %v1979 = vpop.permute.xlu0 %1978
  %v1982 = vsel %vm272, %v1832, 0
  %1984 = vmatprep.subr.bf16.mxu0 0
  %1985 = vmatpush1.bf16.msra.mxu0 %v1979
  %1986 = vmatprep.subr.bf16.mxu0 0
  %1987 = vmatpush1.bf16.msra.mxu0 0
  %1988 = vmatprep.subr.bf16.mxu0 0
  %1989 = vmatpush1.bf16.msra.mxu0 0
  %1990 = vmatprep.subr.bf16.mxu0 0
  %1991 = vmatpush1.bf16.msra.mxu0 0
  %1992 = vmatprep.subr.bf16.mxu0 0
  %1993 = vmatpush1.bf16.msra.mxu0 0
  %1994 = vmatprep.subr.bf16.mxu0 0
  %1995 = vmatpush1.bf16.msra.mxu0 0
  %1996 = vmatprep.subr.bf16.mxu0 0
  %1997 = vmatpush1.bf16.msra.mxu0 0
  %1998 = vmatprep.subr.bf16.mxu0 0
  %1999 = vmatpush1.bf16.msra.mxu0 0
  %2000 = vmatprep.subr.bf16.mxu0 0
  %2001 = vmatpush1.bf16.msra.mxu0 0
  %2002 = vmatprep.subr.bf16.mxu0 0
  %2003 = vmatpush1.bf16.msra.mxu0 0
  %2004 = vmatprep.subr.bf16.mxu0 0
  %2005 = vmatpush1.bf16.msra.mxu0 0
  %2006 = vmatprep.subr.bf16.mxu0 0
  %2007 = vmatpush1.bf16.msra.mxu0 0
  %2008 = vmatprep.subr.bf16.mxu0 0
  %2009 = vmatpush1.bf16.msra.mxu0 0
  %2010 = vmatprep.subr.bf16.mxu0 0
  %2011 = vmatpush1.bf16.msra.mxu0 0
  %2012 = vmatprep.subr.bf16.mxu0 0
  %2013 = vmatpush1.bf16.msra.mxu0 0
  %2014 = vmatprep.subr.bf16.mxu0 0
  %2015 = vmatpush1.bf16.msra.mxu0 0
  %2016 = vmatprep.mubr.bf16.mxu0 0
  %2017 = vmatmul.mubr.bf16.gmra.mrb[0].mxu0 %v1982
  %v2018 = vpop.f32.mrb[0].mxu0
  %v2019 = vadd.f32 0.0, %v2018
  %v2020 = vpop.f32.mrb[0].mxu0
  %v2021 = vpop.f32.mrb[0].mxu0
  %v2022 = vadd.f32 0.0, %v2021
  %v2023 = vpop.f32.mrb[0].mxu0
  %2024 = vdwg.mxu0
  %2033 = vrot.lane.b32.xlu0 %v895, 64
  %v2034 = vpop.permute.xlu0 %2033
  %2035 = vrot.lane.b32.xlu0 %v898, 64
  %v2036 = vpop.permute.xlu0 %2035
  %2037 = vrot.lane.b32.xlu0 %v943, 64
  %v2038 = vpop.permute.xlu0 %2037
  %2039 = vrot.lane.b32.xlu0 %v946, 64
  %v2040 = vpop.permute.xlu0 %2039
  %2041 = vrot.lane.b32.xlu0 %v991, 64
  %v2042 = vpop.permute.xlu0 %2041
  %2043 = vrot.lane.b32.xlu0 %v994, 64
  %v2044 = vpop.permute.xlu0 %2043
  %2045 = vrot.lane.b32.xlu0 %v1039, 64
  %v2046 = vpop.permute.xlu0 %2045
  %2047 = vrot.lane.b32.xlu0 %v1042, 64
  %v2048 = vpop.permute.xlu0 %2047
  %2065 = vrot.lane.b32.xlu0 %v1875, 64
  %v2066 = vpop.permute.xlu0 %2065
  %2067 = vrot.lane.b32.xlu0 %v1878, 64
  %v2068 = vpop.permute.xlu0 %2067
  %2069 = vrot.lane.b32.xlu0 %v1923, 64
  %v2070 = vpop.permute.xlu0 %2069
  %2071 = vrot.lane.b32.xlu0 %v1926, 64
  %v2072 = vpop.permute.xlu0 %2071
  %2073 = vrot.lane.b32.xlu0 %v1971, 64
  %v2074 = vpop.permute.xlu0 %2073
  %2075 = vrot.lane.b32.xlu0 %v1974, 64
  %v2076 = vpop.permute.xlu0 %2075
  %2077 = vrot.lane.b32.xlu0 %v2019, 64
  %v2078 = vpop.permute.xlu0 %2077
  %2079 = vrot.lane.b32.xlu0 %v2022, 64
  %v2080 = vpop.permute.xlu0 %2079
  %v2089 = vsel %vm75, %v403, %v2034
  %v2090 = vsel %vm75, %v406, %v2036
  %v2091 = vsel %vm75, %v447, %v2038
  %v2092 = vsel %vm75, %v450, %v2040
  %v2093 = vsel %vm75, %v491, %v2042
  %v2094 = vsel %vm75, %v494, %v2044
  %v2095 = vsel %vm75, %v535, %v2046
  %v2096 = vsel %vm75, %v538, %v2048
  %v2097 = vsel %vm75, %v1383, %v2066
  %v2098 = vsel %vm75, %v1386, %v2068
  %v2099 = vsel %vm75, %v1427, %v2070
  %v2100 = vsel %vm75, %v1430, %v2072
  %v2101 = vsel %vm75, %v1471, %v2074
  %v2102 = vsel %vm75, %v1474, %v2076
  %v2103 = vsel %vm75, %v1515, %v2078
  %v2104 = vsel %vm75, %v1518, %v2080
  %2105 = vst [vmem:[%s3] sm:$0xff] %v2089
  %2106 = vst [vmem:[%s3 + $0x8] sm:$0xff] %v2097
  %2107 = vst [vmem:[%s3 + $0x10] sm:$0xff] %v2090
  %2108 = vst [vmem:[%s3 + $0x18] sm:$0xff] %v2098
  %2109 = vst [vmem:[%s3 + $0x20] sm:$0xff] %v2091
  %2110 = vst [vmem:[%s3 + $0x28] sm:$0xff] %v2099
  %2111 = vst [vmem:[%s3 + $0x30] sm:$0xff] %v2092
  %2112 = vst [vmem:[%s3 + $0x38] sm:$0xff] %v2100
  %2113 = vst [vmem:[%s3 + $0x40] sm:$0xff] %v2093
  %2114 = vst [vmem:[%s3 + $0x48] sm:$0xff] %v2101
  %2115 = vst [vmem:[%s3 + $0x50] sm:$0xff] %v2094
  %2116 = vst [vmem:[%s3 + $0x58] sm:$0xff] %v2102
  %2117 = vst [vmem:[%s3 + $0x60] sm:$0xff] %v2095
  %2118 = vst [vmem:[%s3 + $0x68] sm:$0xff] %v2103
  %2119 = vst [vmem:[%s3 + $0x70] sm:$0xff] %v2096
  %2120 = vst [vmem:[%s3 + $0x78] sm:$0xff] %v2104
  // Predicated region
  $region14: #{inter_sa_q_forward.5} parent=0 // pred_check
    _
  $region15: #{inter_sa_q_forward.5} parent=0 // pred_check_branch
    %2122 = sbr.rel (0) target = $region17
  $region16: #{inter_sa_q_forward.5} parent=0 // pred_region
    _
  $region17: #{inter_sa_q_forward.5} parent=0 // pred_fallthru
    _
  // Predicated region
  $region18: #{inter_sa_q_forward.5} parent=0 // pred_check
    _
  $region19: #{inter_sa_q_forward.5} parent=0 // pred_check_branch
    %2124 = sbr.rel (0) target = $region21
  $region20: #{inter_sa_q_forward.5} parent=0 // pred_region
    _
  $region21: #{inter_sa_q_forward.5} parent=0 // pred_fallthru
    _

// kernel: inter_sa_q_forward.6
$region0: #{inter_sa_q_forward.6}
  #allocation0 [shape = 'u32[]', space=smem, size = 0x4, offset = 0x4, fixed_abs, tag = 'smem constant byte address 0x4 - core index']
  #allocation1 [shape = 'u32[144,128]{1,0:T(1,128)}', space=vmem, size = 0x12000, scoped, tag = 'internal scratch']
  %s0 = inlined_call_operand.vmem [shape: f32[32,512], index: 0, kind: input, shape index: {}]
  %s1 = inlined_call_operand.vmem [shape: f32[32,512], index: 1, kind: input, shape index: {}]
  %s2 = inlined_call_operand.vmem [shape: bf16[32,32], index: 2, kind: input, shape index: {}]
  %s3 = inlined_call_operand.vmem [shape: f32[32,1], index: 3, kind: input, shape index: {}]
  %s4 = inlined_call_operand.vmem [shape: f32[32,1], index: 4, kind: input, shape index: {}]
  %s5 = inlined_call_operand.vmem [shape: f32[32,1], index: 5, kind: input, shape index: {}]
  %s6 = inlined_call_operand.vmem [shape: bf16[128,32], index: 6, kind: input, shape index: {}]
  %s7 = inlined_call_operand.vmem [shape: f32[128,1], index: 7, kind: input, shape index: {}]
  %s8 = inlined_call_operand.vmem [shape: bf16[32,128], index: 8, kind: input, shape index: {}]
  %s9 = inlined_call_operand.vmem [shape: f32[32,1], index: 9, kind: input, shape index: {}]
  %s10 = inlined_call_operand.vmem [shape: f32[32,512], index: 10, kind: output, shape index: {}]
  %s11 = sld [smem:[#allocation0]]
  $region50: #{inter_sa_q_forward.6} parent=0
    _
  %s13 = ssub.s32 1, %s11
  %s14 = scalar_select 0, %s13, %s11
  // Predicated region
  $region2: #{inter_sa_q_forward.6} parent=0 // pred_check
    _
  $region3: #{inter_sa_q_forward.6} parent=0 // pred_check_branch
    %16 = sbr.rel (0) target = $region5
  $region4: #{inter_sa_q_forward.6} parent=0 // pred_region
    _
  $region5: #{inter_sa_q_forward.6} parent=0 // pred_fallthru
    _
  // Predicated region
  $region6: #{inter_sa_q_forward.6} parent=0 // pred_check
    _
  $region7: #{inter_sa_q_forward.6} parent=0 // pred_check_branch
    %18 = sbr.rel (0) target = $region9
  $region8: #{inter_sa_q_forward.6} parent=0 // pred_region
    _
  $region9: #{inter_sa_q_forward.6} parent=0 // pred_fallthru
    _
  // Predicated region
  $region10: #{inter_sa_q_forward.6} parent=0 // pred_check
    _
  $region11: #{inter_sa_q_forward.6} parent=0 // pred_check_branch
    %20 = sbr.rel (0) target = $region13
  $region12: #{inter_sa_q_forward.6} parent=0 // pred_region
    _
  $region13: #{inter_sa_q_forward.6} parent=0 // pred_fallthru
    _
  // Predicated region
  $region14: #{inter_sa_q_forward.6} parent=0 // pred_check
    _
  $region15: #{inter_sa_q_forward.6} parent=0 // pred_check_branch
    %22 = sbr.rel (0) target = $region17
  $region16: #{inter_sa_q_forward.6} parent=0 // pred_region
    _
  $region17: #{inter_sa_q_forward.6} parent=0 // pred_fallthru
    _
  // Predicated region
  $region18: #{inter_sa_q_forward.6} parent=0 // pred_check
    _
  $region19: #{inter_sa_q_forward.6} parent=0 // pred_check_branch
    %24 = sbr.rel (0) target = $region21
  $region20: #{inter_sa_q_forward.6} parent=0 // pred_region
    _
  $region21: #{inter_sa_q_forward.6} parent=0 // pred_fallthru
    _
  // Predicated region
  $region22: #{inter_sa_q_forward.6} parent=0 // pred_check
    _
  $region23: #{inter_sa_q_forward.6} parent=0 // pred_check_branch
    %26 = sbr.rel (0) target = $region25
  $region24: #{inter_sa_q_forward.6} parent=0 // pred_region
    _
  $region25: #{inter_sa_q_forward.6} parent=0 // pred_fallthru
    _
  // Predicated region
  $region26: #{inter_sa_q_forward.6} parent=0 // pred_check
    _
  $region27: #{inter_sa_q_forward.6} parent=0 // pred_check_branch
    %28 = sbr.rel (0) target = $region29
  $region28: #{inter_sa_q_forward.6} parent=0 // pred_region
    _
  $region29: #{inter_sa_q_forward.6} parent=0 // pred_fallthru
    _
  // Predicated region
  $region30: #{inter_sa_q_forward.6} parent=0 // pred_check
    _
  $region31: #{inter_sa_q_forward.6} parent=0 // pred_check_branch
    %30 = sbr.rel (0) target = $region33
  $region32: #{inter_sa_q_forward.6} parent=0 // pred_region
    _
  $region33: #{inter_sa_q_forward.6} parent=0 // pred_fallthru
    _
  // Predicated region
  $region34: #{inter_sa_q_forward.6} parent=0 // pred_check
    _
  $region35: #{inter_sa_q_forward.6} parent=0 // pred_check_branch
    %32 = sbr.rel (0) target = $region37
  $region36: #{inter_sa_q_forward.6} parent=0 // pred_region
    _
  $region37: #{inter_sa_q_forward.6} parent=0 // pred_fallthru
    _
  // Predicated region
  $region38: #{inter_sa_q_forward.6} parent=0 // pred_check
    _
  $region39: #{inter_sa_q_forward.6} parent=0 // pred_check_branch
    %34 = sbr.rel (0) target = $region41
  $region40: #{inter_sa_q_forward.6} parent=0 // pred_region
    _
  $region41: #{inter_sa_q_forward.6} parent=0 // pred_fallthru
    _
  %v36 = vld [vmem:[%s1] sm:$0xff]
  %v37 = vld [vmem:[%s1 + $0x8] sm:$0xff]
  %v38 = vld [vmem:[%s1 + $0x10] sm:$0xff]
  %v39 = vld [vmem:[%s1 + $0x18] sm:$0xff]
  %v40 = vld [vmem:[%s1 + $0x20] sm:$0xff]
  %v41 = vld [vmem:[%s1 + $0x28] sm:$0xff]
  %v42 = vld [vmem:[%s1 + $0x30] sm:$0xff]
  %v43 = vld [vmem:[%s1 + $0x38] sm:$0xff]
  %v44 = vld [vmem:[%s1 + $0x40] sm:$0xff]
  %v45 = vld [vmem:[%s1 + $0x48] sm:$0xff]
  %v46 = vld [vmem:[%s1 + $0x50] sm:$0xff]
  %v47 = vld [vmem:[%s1 + $0x58] sm:$0xff]
  %v48 = vld [vmem:[%s1 + $0x60] sm:$0xff]
  %v49 = vld [vmem:[%s1 + $0x68] sm:$0xff]
  %v50 = vld [vmem:[%s1 + $0x70] sm:$0xff]
  %v51 = vld [vmem:[%s1 + $0x78] sm:$0xff]
  %v52 = vld [vmem:[%s2] sm:$0xf]
  %v53 = vld [vmem:[%s2 + $0x4] sm:$0xf]
  %v54 = vld [vmem:[%s2 + $0x8] sm:$0xf]
  %v55 = vld [vmem:[%s2 + $0xc] sm:$0xf]
  %v56 = vld [vmem:[%s0] sm:$0xff]
  %v57 = vld [vmem:[%s0 + $0x8] sm:$0xff]
  %v58 = vld [vmem:[%s0 + $0x10] sm:$0xff]
  %v59 = vld [vmem:[%s0 + $0x18] sm:$0xff]
  %v60 = vld [vmem:[%s0 + $0x20] sm:$0xff]
  %v61 = vld [vmem:[%s0 + $0x28] sm:$0xff]
  %v62 = vld [vmem:[%s0 + $0x30] sm:$0xff]
  %v63 = vld [vmem:[%s0 + $0x38] sm:$0xff]
  %v64 = vld [vmem:[%s0 + $0x40] sm:$0xff]
  %v65 = vld [vmem:[%s0 + $0x48] sm:$0xff]
  %v66 = vld [vmem:[%s0 + $0x50] sm:$0xff]
  %v67 = vld [vmem:[%s0 + $0x58] sm:$0xff]
  %v68 = vld [vmem:[%s0 + $0x60] sm:$0xff]
  %v69 = vld [vmem:[%s0 + $0x68] sm:$0xff]
  %v70 = vld [vmem:[%s0 + $0x70] sm:$0xff]
  %v71 = vld [vmem:[%s0 + $0x78] sm:$0xff]
  %v72 = vpack.c.bf16 %v60, %v56
  %v73 = vpack.c.bf16 %v61, %v57
  %v74 = vpack.c.bf16 %v62, %v58
  %v75 = vpack.c.bf16 %v63, %v59
  %v76 = vpack.c.bf16 %v68, %v64
  %v77 = vpack.c.bf16 %v69, %v65
  %v78 = vpack.c.bf16 %v70, %v66
  %v79 = vpack.c.bf16 %v71, %v67
  %v80 = vld [vmem:[%s3] sm:$0xff]
  %v81 = vld [vmem:[%s3 + $0x8] sm:$0xff]
  %v82 = vld [vmem:[%s3 + $0x10] sm:$0xff]
  %v83 = vld [vmem:[%s3 + $0x18] sm:$0xff]
  %85 = vset.pattern.permute.xlu0 0
  %86 = vperm.xlu0 %85, %v80
  %v87 = vpop.permute.xlu0 %86
  %90 = vset.pattern.permute.xlu0 0
  %91 = vperm.xlu0 %90, %v81
  %v92 = vpop.permute.xlu0 %91
  %95 = vset.pattern.permute.xlu0 0
  %96 = vperm.xlu0 %95, %v82
  %v97 = vpop.permute.xlu0 %96
  %100 = vset.pattern.permute.xlu0 0
  %101 = vperm.xlu0 %100, %v83
  %v102 = vpop.permute.xlu0 %101
  %v108 = vunpack.c.l.b16 %v52
  %v109 = vunpack.c.l.b16 %v53
  %v110 = vunpack.c.l.b16 %v54
  %v111 = vunpack.c.l.b16 %v55
  %v112 = vpack.c.b16 %v109, %v108
  %v113 = vpack.c.b16 %v111, %v110
  %vm114 = vcmask 261120
  %v116 = vsel %vm114, %v112, 0
  %v119 = vsel %vm114, %v113, 0
  %121 = vmatprep.subr.bf16.mxu0 %v73
  %122 = vmatpush1.bf16.msra.mxu0 %v72
  %123 = vmatprep.subr.bf16.mxu0 %v77
  %124 = vmatpush1.bf16.msra.mxu0 %v76
  %125 = vmatprep.subr.bf16.mxu0 0
  %126 = vmatpush1.bf16.msra.mxu0 0
  %127 = vmatprep.subr.bf16.mxu0 0
  %128 = vmatpush1.bf16.msra.mxu0 0
  %129 = vmatprep.subr.bf16.mxu0 0
  %130 = vmatpush1.bf16.msra.mxu0 0
  %131 = vmatprep.subr.bf16.mxu0 0
  %132 = vmatpush1.bf16.msra.mxu0 0
  %133 = vmatprep.subr.bf16.mxu0 0
  %134 = vmatpush1.bf16.msra.mxu0 0
  %135 = vmatprep.subr.bf16.mxu0 0
  %136 = vmatpush1.bf16.msra.mxu0 0
  %137 = vmatprep.subr.bf16.mxu0 0
  %138 = vmatpush1.bf16.msra.mxu0 0
  %139 = vmatprep.subr.bf16.mxu0 0
  %140 = vmatpush1.bf16.msra.mxu0 0
  %141 = vmatprep.subr.bf16.mxu0 0
  %142 = vmatpush1.bf16.msra.mxu0 0
  %143 = vmatprep.subr.bf16.mxu0 0
  %144 = vmatpush1.bf16.msra.mxu0 0
  %145 = vmatprep.subr.bf16.mxu0 0
  %146 = vmatpush1.bf16.msra.mxu0 0
  %147 = vmatprep.subr.bf16.mxu0 0
  %148 = vmatpush1.bf16.msra.mxu0 0
  %149 = vmatprep.subr.bf16.mxu0 0
  %150 = vmatpush1.bf16.msra.mxu0 0
  %151 = vmatprep.subr.bf16.mxu0 0
  %152 = vmatpush1.bf16.msra.mxu0 0
  %153 = vmatprep.mubr.bf16.mxu0 0
  %154 = vmatmul.mubr.bf16.gmra.mrb[0].mxu0 %v116
  %v155 = vpop.f32.mrb[0].mxu0
  %v156 = vadd.f32 %v87, %v155
  %v157 = vpop.f32.mrb[0].mxu0
  %v158 = vadd.f32 %v87, %v157
  %v159 = vpop.f32.mrb[0].mxu0
  %v160 = vadd.f32 %v92, %v159
  %v161 = vpop.f32.mrb[0].mxu0
  %v162 = vadd.f32 %v92, %v161
  %163 = vmatprep.mubr.bf16.mxu0 0
  %164 = vmatmul.mubr.bf16.gmra.mrb[0].mxu0 %v119
  %v165 = vpop.f32.mrb[0].mxu0
  %v166 = vadd.f32 %v97, %v165
  %v167 = vpop.f32.mrb[0].mxu0
  %v168 = vadd.f32 %v97, %v167
  %v169 = vpop.f32.mrb[0].mxu0
  %v170 = vadd.f32 %v102, %v169
  %v171 = vpop.f32.mrb[0].mxu0
  %v172 = vadd.f32 %v102, %v171
  %173 = vdwg.mxu0
  %174 = vmatprep.subr.bf16.mxu0 %v75
  %175 = vmatpush1.bf16.msra.mxu0 %v74
  %176 = vmatprep.subr.bf16.mxu0 %v79
  %177 = vmatpush1.bf16.msra.mxu0 %v78
  %178 = vmatprep.subr.bf16.mxu0 0
  %179 = vmatpush1.bf16.msra.mxu0 0
  %180 = vmatprep.subr.bf16.mxu0 0
  %181 = vmatpush1.bf16.msra.mxu0 0
  %182 = vmatprep.subr.bf16.mxu0 0
  %183 = vmatpush1.bf16.msra.mxu0 0
  %184 = vmatprep.subr.bf16.mxu0 0
  %185 = vmatpush1.bf16.msra.mxu0 0
  %186 = vmatprep.subr.bf16.mxu0 0
  %187 = vmatpush1.bf16.msra.mxu0 0
  %188 = vmatprep.subr.bf16.mxu0 0
  %189 = vmatpush1.bf16.msra.mxu0 0
  %190 = vmatprep.subr.bf16.mxu0 0
  %191 = vmatpush1.bf16.msra.mxu0 0
  %192 = vmatprep.subr.bf16.mxu0 0
  %193 = vmatpush1.bf16.msra.mxu0 0
  %194 = vmatprep.subr.bf16.mxu0 0
  %195 = vmatpush1.bf16.msra.mxu0 0
  %196 = vmatprep.subr.bf16.mxu0 0
  %197 = vmatpush1.bf16.msra.mxu0 0
  %198 = vmatprep.subr.bf16.mxu0 0
  %199 = vmatpush1.bf16.msra.mxu0 0
  %200 = vmatprep.subr.bf16.mxu0 0
  %201 = vmatpush1.bf16.msra.mxu0 0
  %202 = vmatprep.subr.bf16.mxu0 0
  %203 = vmatpush1.bf16.msra.mxu0 0
  %204 = vmatprep.subr.bf16.mxu0 0
  %205 = vmatpush1.bf16.msra.mxu0 0
  %206 = vmatprep.mubr.bf16.mxu0 0
  %207 = vmatmul.mubr.bf16.gmra.mrb[0].mxu0 %v116
  %v208 = vpop.f32.mrb[0].mxu0
  %v209 = vadd.f32 %v87, %v208
  %v210 = vpop.f32.mrb[0].mxu0
  %v211 = vadd.f32 %v87, %v210
  %v212 = vpop.f32.mrb[0].mxu0
  %v213 = vadd.f32 %v92, %v212
  %v214 = vpop.f32.mrb[0].mxu0
  %v215 = vadd.f32 %v92, %v214
  %216 = vmatprep.mubr.bf16.mxu0 0
  %217 = vmatmul.mubr.bf16.gmra.mrb[0].mxu0 %v119
  %v218 = vpop.f32.mrb[0].mxu0
  %v219 = vadd.f32 %v97, %v218
  %v220 = vpop.f32.mrb[0].mxu0
  %v221 = vadd.f32 %v97, %v220
  %v222 = vpop.f32.mrb[0].mxu0
  %v223 = vadd.f32 %v102, %v222
  %v224 = vpop.f32.mrb[0].mxu0
  %v225 = vadd.f32 %v102, %v224
  %226 = vdwg.mxu0
  %v227 = vadd.f32 %v156, %v36
  %v228 = vadd.f32 %v158, %v37
  %v229 = vadd.f32 %v209, %v38
  %v230 = vadd.f32 %v211, %v39
  %v231 = vadd.f32 %v160, %v40
  %v232 = vadd.f32 %v162, %v41
  %v233 = vadd.f32 %v213, %v42
  %v234 = vadd.f32 %v215, %v43
  %v235 = vadd.f32 %v166, %v44
  %v236 = vadd.f32 %v168, %v45
  %v237 = vadd.f32 %v219, %v46
  %v238 = vadd.f32 %v221, %v47
  %v239 = vadd.f32 %v170, %v48
  %v240 = vadd.f32 %v172, %v49
  %v241 = vadd.f32 %v223, %v50
  %v242 = vadd.f32 %v225, %v51
  %v243 = vadd.f32 %v227, %v231
  %v244 = vadd.f32 %v243, %v235
  %v245 = vadd.f32 %v244, %v239
  %v246 = vrot.slane %v245, 4
  %v247 = vadd.f32 %v245, %v246
  %v248 = vrot.slane %v247, 2
  %v249 = vadd.f32 %v247, %v248
  %v250 = vrot.slane %v249, 1
  %v251 = vadd.f32 %v249, %v250
  %v252 = vadd.f32 %v228, %v232
  %v253 = vadd.f32 %v252, %v236
  %v254 = vadd.f32 %v253, %v240
  %v255 = vrot.slane %v254, 4
  %v256 = vadd.f32 %v254, %v255
  %v257 = vrot.slane %v256, 2
  %v258 = vadd.f32 %v256, %v257
  %v259 = vrot.slane %v258, 1
  %v260 = vadd.f32 %v258, %v259
  %v261 = vadd.f32 %v229, %v233
  %v262 = vadd.f32 %v261, %v237
  %v263 = vadd.f32 %v262, %v241
  %v264 = vrot.slane %v263, 4
  %v265 = vadd.f32 %v263, %v264
  %v266 = vrot.slane %v265, 2
  %v267 = vadd.f32 %v265, %v266
  %v268 = vrot.slane %v267, 1
  %v269 = vadd.f32 %v267, %v268
  %v270 = vadd.f32 %v230, %v234
  %v271 = vadd.f32 %v270, %v238
  %v272 = vadd.f32 %v271, %v242
  %v273 = vrot.slane %v272, 4
  %v274 = vadd.f32 %v272, %v273
  %v275 = vrot.slane %v274, 2
  %v276 = vadd.f32 %v274, %v275
  %v277 = vrot.slane %v276, 1
  %v278 = vadd.f32 %v276, %v277
  %v279 = vrcp.pop 32.0
  %v280 = vmul.f32 %v251, %v279
  %v281 = vmul.f32 %v260, %v279
  %v282 = vmul.f32 %v269, %v279
  %v283 = vmul.f32 %v278, %v279
  %v284 = vmul.f32 %v227, %v227
  %v285 = vmul.f32 %v228, %v228
  %v286 = vmul.f32 %v229, %v229
  %v287 = vmul.f32 %v230, %v230
  %v288 = vmul.f32 %v231, %v231
  %v289 = vmul.f32 %v232, %v232
  %v290 = vmul.f32 %v233, %v233
  %v291 = vmul.f32 %v234, %v234
  %v292 = vmul.f32 %v235, %v235
  %v293 = vmul.f32 %v236, %v236
  %v294 = vmul.f32 %v237, %v237
  %v295 = vmul.f32 %v238, %v238
  %v296 = vmul.f32 %v239, %v239
  %v297 = vmul.f32 %v240, %v240
  %v298 = vmul.f32 %v241, %v241
  %v299 = vmul.f32 %v242, %v242
  %v300 = vadd.f32 %v284, %v288
  %v301 = vadd.f32 %v300, %v292
  %v302 = vadd.f32 %v301, %v296
  %v303 = vrot.slane %v302, 4
  %v304 = vadd.f32 %v302, %v303
  %v305 = vrot.slane %v304, 2
  %v306 = vadd.f32 %v304, %v305
  %v307 = vrot.slane %v306, 1
  %v308 = vadd.f32 %v306, %v307
  %v309 = vadd.f32 %v285, %v289
  %v310 = vadd.f32 %v309, %v293
  %v311 = vadd.f32 %v310, %v297
  %v312 = vrot.slane %v311, 4
  %v313 = vadd.f32 %v311, %v312
  %v314 = vrot.slane %v313, 2
  %v315 = vadd.f32 %v313, %v314
  %v316 = vrot.slane %v315, 1
  %v317 = vadd.f32 %v315, %v316
  %v318 = vadd.f32 %v286, %v290
  %v319 = vadd.f32 %v318, %v294
  %v320 = vadd.f32 %v319, %v298
  %v321 = vrot.slane %v320, 4
  %v322 = vadd.f32 %v320, %v321
  %v323 = vrot.slane %v322, 2
  %v324 = vadd.f32 %v322, %v323
  %v325 = vrot.slane %v324, 1
  %v326 = vadd.f32 %v324, %v325
  %v327 = vadd.f32 %v287, %v291
  %v328 = vadd.f32 %v327, %v295
  %v329 = vadd.f32 %v328, %v299
  %v330 = vrot.slane %v329, 4
  %v331 = vadd.f32 %v329, %v330
  %v332 = vrot.slane %v331, 2
  %v333 = vadd.f32 %v331, %v332
  %v334 = vrot.slane %v333, 1
  %v335 = vadd.f32 %v333, %v334
  %v336 = vmul.f32 %v308, %v279
  %v337 = vmul.f32 %v317, %v279
  %v338 = vmul.f32 %v326, %v279
  %v339 = vmul.f32 %v335, %v279
  %v340 = vmul.f32 %v280, %v280
  %v341 = vmul.f32 %v281, %v281
  %v342 = vmul.f32 %v282, %v282
  %v343 = vmul.f32 %v283, %v283
  %v344 = vsub.f32 %v336, %v340
  %v345 = vsub.f32 %v337, %v341
  %v346 = vsub.f32 %v338, %v342
  %v347 = vsub.f32 %v339, %v343
  %v348 = vsub.f32 %v227, %v280
  %v349 = vsub.f32 %v228, %v281
  %v350 = vsub.f32 %v229, %v282
  %v351 = vsub.f32 %v230, %v283
  %v352 = vsub.f32 %v231, %v280
  %v353 = vsub.f32 %v232, %v281
  %v354 = vsub.f32 %v233, %v282
  %v355 = vsub.f32 %v234, %v283
  %v356 = vsub.f32 %v235, %v280
  %v357 = vsub.f32 %v236, %v281
  %v358 = vsub.f32 %v237, %v282
  %v359 = vsub.f32 %v238, %v283
  %v360 = vsub.f32 %v239, %v280
  %v361 = vsub.f32 %v240, %v281
  %v362 = vsub.f32 %v241, %v282
  %v363 = vsub.f32 %v242, %v283
  %v364 = vadd.f32 %v344, 1e-05
  %v365 = vadd.f32 %v345, 1e-05
  %v366 = vadd.f32 %v346, 1e-05
  %v367 = vadd.f32 %v347, 1e-05
  %v368 = vrsqrt.pop %v364
  %v369 = vrsqrt.pop %v365
  %v370 = vrsqrt.pop %v366
  %v371 = vrsqrt.pop %v367
  %v372 = vmul.f32 %v348, %v368
  %v373 = vmul.f32 %v349, %v369
  %v374 = vmul.f32 %v350, %v370
  %v375 = vmul.f32 %v351, %v371
  %v376 = vmul.f32 %v352, %v368
  %v377 = vmul.f32 %v353, %v369
  %v378 = vmul.f32 %v354, %v370
  %v379 = vmul.f32 %v355, %v371
  %v380 = vmul.f32 %v356, %v368
  %v381 = vmul.f32 %v357, %v369
  %v382 = vmul.f32 %v358, %v370
  %v383 = vmul.f32 %v359, %v371
  %v384 = vmul.f32 %v360, %v368
  %v385 = vmul.f32 %v361, %v369
  %v386 = vmul.f32 %v362, %v370
  %v387 = vmul.f32 %v363, %v371
  %v388 = vld [vmem:[%s4] sm:$0xff]
  %v389 = vld [vmem:[%s4 + $0x8] sm:$0xff]
  %v390 = vld [vmem:[%s4 + $0x10] sm:$0xff]
  %v391 = vld [vmem:[%s4 + $0x18] sm:$0xff]
  %393 = vset.pattern.permute.xlu0 0
  %394 = vperm.xlu0 %393, %v388
  %v395 = vpop.permute.xlu0 %394
  %398 = vset.pattern.permute.xlu0 0
  %399 = vperm.xlu0 %398, %v389
  %v400 = vpop.permute.xlu0 %399
  %403 = vset.pattern.permute.xlu0 0
  %404 = vperm.xlu0 %403, %v390
  %v405 = vpop.permute.xlu0 %404
  %408 = vset.pattern.permute.xlu0 0
  %409 = vperm.xlu0 %408, %v391
  %v410 = vpop.permute.xlu0 %409
  %v412 = vmul.f32 %v372, %v395
  %v413 = vmul.f32 %v373, %v395
  %v414 = vmul.f32 %v374, %v395
  %v415 = vmul.f32 %v375, %v395
  %v416 = vmul.f32 %v376, %v400
  %v417 = vmul.f32 %v377, %v400
  %v418 = vmul.f32 %v378, %v400
  %v419 = vmul.f32 %v379, %v400
  %v420 = vmul.f32 %v380, %v405
  %v421 = vmul.f32 %v381, %v405
  %v422 = vmul.f32 %v382, %v405
  %v423 = vmul.f32 %v383, %v405
  %v424 = vmul.f32 %v384, %v410
  %v425 = vmul.f32 %v385, %v410
  %v426 = vmul.f32 %v386, %v410
  %v427 = vmul.f32 %v387, %v410
  %v428 = vld [vmem:[%s5] sm:$0xff]
  %v429 = vld [vmem:[%s5 + $0x8] sm:$0xff]
  %v430 = vld [vmem:[%s5 + $0x10] sm:$0xff]
  %v431 = vld [vmem:[%s5 + $0x18] sm:$0xff]
  %433 = vset.pattern.permute.xlu0 0
  %434 = vperm.xlu0 %433, %v428
  %v435 = vpop.permute.xlu0 %434
  %438 = vset.pattern.permute.xlu0 0
  %439 = vperm.xlu0 %438, %v429
  %v440 = vpop.permute.xlu0 %439
  %443 = vset.pattern.permute.xlu0 0
  %444 = vperm.xlu0 %443, %v430
  %v445 = vpop.permute.xlu0 %444
  %448 = vset.pattern.permute.xlu0 0
  %449 = vperm.xlu0 %448, %v431
  %v450 = vpop.permute.xlu0 %449
  %v452 = vadd.f32 %v412, %v435
  %v453 = vadd.f32 %v413, %v435
  %v454 = vadd.f32 %v414, %v435
  %v455 = vadd.f32 %v415, %v435
  %v456 = vadd.f32 %v416, %v440
  %v457 = vadd.f32 %v417, %v440
  %v458 = vadd.f32 %v418, %v440
  %v459 = vadd.f32 %v419, %v440
  %v460 = vadd.f32 %v420, %v445
  %v461 = vadd.f32 %v421, %v445
  %v462 = vadd.f32 %v422, %v445
  %v463 = vadd.f32 %v423, %v445
  %v464 = vadd.f32 %v424, %v450
  %v465 = vadd.f32 %v425, %v450
  %v466 = vadd.f32 %v426, %v450
  %v467 = vadd.f32 %v427, %v450
  %v468 = vld [vmem:[%s6] sm:$0xf]
  %v469 = vld [vmem:[%s6 + $0x4] sm:$0xf]
  %v470 = vld [vmem:[%s6 + $0x8] sm:$0xf]
  %v471 = vld [vmem:[%s6 + $0xc] sm:$0xf]
  %v472 = vld [vmem:[%s6 + $0x10] sm:$0xf]
  %v473 = vld [vmem:[%s6 + $0x14] sm:$0xf]
  %v474 = vld [vmem:[%s6 + $0x18] sm:$0xf]
  %v475 = vld [vmem:[%s6 + $0x1c] sm:$0xf]
  %v476 = vld [vmem:[%s6 + $0x20] sm:$0xf]
  %v477 = vld [vmem:[%s6 + $0x24] sm:$0xf]
  %v478 = vld [vmem:[%s6 + $0x28] sm:$0xf]
  %v479 = vld [vmem:[%s6 + $0x2c] sm:$0xf]
  %v480 = vld [vmem:[%s6 + $0x30] sm:$0xf]
  %v481 = vld [vmem:[%s6 + $0x34] sm:$0xf]
  %v482 = vld [vmem:[%s6 + $0x38] sm:$0xf]
  %v483 = vld [vmem:[%s6 + $0x3c] sm:$0xf]
  %v484 = vpack.c.bf16 %v456, %v452
  %v485 = vpack.c.bf16 %v457, %v453
  %v486 = vpack.c.bf16 %v458, %v454
  %v487 = vpack.c.bf16 %v459, %v455
  %v488 = vpack.c.bf16 %v464, %v460
  %v489 = vpack.c.bf16 %v465, %v461
  %v490 = vpack.c.bf16 %v466, %v462
  %v491 = vpack.c.bf16 %v467, %v463
  %v492 = vld [vmem:[%s7] sm:$0xff]
  %v493 = vld [vmem:[%s7 + $0x8] sm:$0xff]
  %v494 = vld [vmem:[%s7 + $0x10] sm:$0xff]
  %v495 = vld [vmem:[%s7 + $0x18] sm:$0xff]
  %v496 = vld [vmem:[%s7 + $0x20] sm:$0xff]
  %v497 = vld [vmem:[%s7 + $0x28] sm:$0xff]
  %v498 = vld [vmem:[%s7 + $0x30] sm:$0xff]
  %v499 = vld [vmem:[%s7 + $0x38] sm:$0xff]
  %v500 = vld [vmem:[%s7 + $0x40] sm:$0xff]
  %v501 = vld [vmem:[%s7 + $0x48] sm:$0xff]
  %v502 = vld [vmem:[%s7 + $0x50] sm:$0xff]
  %v503 = vld [vmem:[%s7 + $0x58] sm:$0xff]
  %v504 = vld [vmem:[%s7 + $0x60] sm:$0xff]
  %v505 = vld [vmem:[%s7 + $0x68] sm:$0xff]
  %v506 = vld [vmem:[%s7 + $0x70] sm:$0xff]
  %v507 = vld [vmem:[%s7 + $0x78] sm:$0xff]
  %509 = vset.pattern.permute.xlu0 0
  %510 = vperm.xlu0 %509, %v492
  %v511 = vpop.permute.xlu0 %510
  %514 = vset.pattern.permute.xlu0 0
  %515 = vperm.xlu0 %514, %v493
  %v516 = vpop.permute.xlu0 %515
  %519 = vset.pattern.permute.xlu0 0
  %520 = vperm.xlu0 %519, %v494
  %v521 = vpop.permute.xlu0 %520
  %524 = vset.pattern.permute.xlu0 0
  %525 = vperm.xlu0 %524, %v495
  %v526 = vpop.permute.xlu0 %525
  %529 = vset.pattern.permute.xlu0 0
  %530 = vperm.xlu0 %529, %v496
  %v531 = vpop.permute.xlu0 %530
  %534 = vset.pattern.permute.xlu0 0
  %535 = vperm.xlu0 %534, %v497
  %v536 = vpop.permute.xlu0 %535
  %539 = vset.pattern.permute.xlu0 0
  %540 = vperm.xlu0 %539, %v498
  %v541 = vpop.permute.xlu0 %540
  %544 = vset.pattern.permute.xlu0 0
  %545 = vperm.xlu0 %544, %v499
  %v546 = vpop.permute.xlu0 %545
  %549 = vset.pattern.permute.xlu0 0
  %550 = vperm.xlu0 %549, %v500
  %v551 = vpop.permute.xlu0 %550
  %554 = vset.pattern.permute.xlu0 0
  %555 = vperm.xlu0 %554, %v501
  %v556 = vpop.permute.xlu0 %555
  %559 = vset.pattern.permute.xlu0 0
  %560 = vperm.xlu0 %559, %v502
  %v561 = vpop.permute.xlu0 %560
  %564 = vset.pattern.permute.xlu0 0
  %565 = vperm.xlu0 %564, %v503
  %v566 = vpop.permute.xlu0 %565
  %569 = vset.pattern.permute.xlu0 0
  %570 = vperm.xlu0 %569, %v504
  %v571 = vpop.permute.xlu0 %570
  %574 = vset.pattern.permute.xlu0 0
  %575 = vperm.xlu0 %574, %v505
  %v576 = vpop.permute.xlu0 %575
  %579 = vset.pattern.permute.xlu0 0
  %580 = vperm.xlu0 %579, %v506
  %v581 = vpop.permute.xlu0 %580
  %584 = vset.pattern.permute.xlu0 0
  %585 = vperm.xlu0 %584, %v507
  %v586 = vpop.permute.xlu0 %585
  %v604 = vunpack.c.l.b16 %v468
  %v605 = vunpack.c.l.b16 %v469
  %v606 = vunpack.c.l.b16 %v470
  %v607 = vunpack.c.l.b16 %v471
  %v608 = vunpack.c.l.b16 %v472
  %v609 = vunpack.c.l.b16 %v473
  %v610 = vunpack.c.l.b16 %v474
  %v611 = vunpack.c.l.b16 %v475
  %v612 = vunpack.c.l.b16 %v476
  %v613 = vunpack.c.l.b16 %v477
  %v614 = vunpack.c.l.b16 %v478
  %v615 = vunpack.c.l.b16 %v479
  %v616 = vunpack.c.l.b16 %v480
  %v617 = vunpack.c.l.b16 %v481
  %v618 = vunpack.c.l.b16 %v482
  %v619 = vunpack.c.l.b16 %v483
  %v620 = vpack.c.b16 %v605, %v604
  %v621 = vpack.c.b16 %v607, %v606
  %v622 = vpack.c.b16 %v609, %v608
  %v623 = vpack.c.b16 %v611, %v610
  %v624 = vpack.c.b16 %v613, %v612
  %v625 = vpack.c.b16 %v615, %v614
  %v626 = vpack.c.b16 %v617, %v616
  %v627 = vpack.c.b16 %v619, %v618
  %v629 = vsel %vm114, %v620, 0
  %v632 = vsel %vm114, %v621, 0
  %v635 = vsel %vm114, %v622, 0
  %v638 = vsel %vm114, %v623, 0
  %v641 = vsel %vm114, %v624, 0
  %v644 = vsel %vm114, %v625, 0
  %v647 = vsel %vm114, %v626, 0
  %v650 = vsel %vm114, %v627, 0
  %652 = vmatprep.subr.bf16.mxu0 %v485
  %653 = vmatpush1.bf16.msra.mxu0 %v484
  %654 = vmatprep.subr.bf16.mxu0 %v489
  %655 = vmatpush1.bf16.msra.mxu0 %v488
  %656 = vmatprep.subr.bf16.mxu0 0
  %657 = vmatpush1.bf16.msra.mxu0 0
  %658 = vmatprep.subr.bf16.mxu0 0
  %659 = vmatpush1.bf16.msra.mxu0 0
  %660 = vmatprep.subr.bf16.mxu0 0
  %661 = vmatpush1.bf16.msra.mxu0 0
  %662 = vmatprep.subr.bf16.mxu0 0
  %663 = vmatpush1.bf16.msra.mxu0 0
  %664 = vmatprep.subr.bf16.mxu0 0
  %665 = vmatpush1.bf16.msra.mxu0 0
  %666 = vmatprep.subr.bf16.mxu0 0
  %667 = vmatpush1.bf16.msra.mxu0 0
  %668 = vmatprep.subr.bf16.mxu0 0
  %669 = vmatpush1.bf16.msra.mxu0 0
  %670 = vmatprep.subr.bf16.mxu0 0
  %671 = vmatpush1.bf16.msra.mxu0 0
  %672 = vmatprep.subr.bf16.mxu0 0
  %673 = vmatpush1.bf16.msra.mxu0 0
  %674 = vmatprep.subr.bf16.mxu0 0
  %675 = vmatpush1.bf16.msra.mxu0 0
  %676 = vmatprep.subr.bf16.mxu0 0
  %677 = vmatpush1.bf16.msra.mxu0 0
  %678 = vmatprep.subr.bf16.mxu0 0
  %679 = vmatpush1.bf16.msra.mxu0 0
  %680 = vmatprep.subr.bf16.mxu0 0
  %681 = vmatpush1.bf16.msra.mxu0 0
  %682 = vmatprep.subr.bf16.mxu0 0
  %683 = vmatpush1.bf16.msra.mxu0 0
  %684 = vmatprep.mubr.bf16.mxu0 0
  %685 = vmatmul.mubr.bf16.gmra.mrb[0].mxu0 %v629
  %v686 = vpop.f32.mrb[0].mxu0
  %v687 = vadd.f32 %v511, %v686
  %v688 = vpop.f32.mrb[0].mxu0
  %v689 = vadd.f32 %v511, %v688
  %v690 = vpop.f32.mrb[0].mxu0
  %v691 = vadd.f32 %v516, %v690
  %v692 = vpop.f32.mrb[0].mxu0
  %v693 = vadd.f32 %v516, %v692
  %694 = vmatprep.mubr.bf16.mxu0 0
  %695 = vmatmul.mubr.bf16.gmra.mrb[0].mxu0 %v632
  %v696 = vpop.f32.mrb[0].mxu0
  %v697 = vadd.f32 %v521, %v696
  %v698 = vpop.f32.mrb[0].mxu0
  %v699 = vadd.f32 %v521, %v698
  %v700 = vpop.f32.mrb[0].mxu0
  %v701 = vadd.f32 %v526, %v700
  %v702 = vpop.f32.mrb[0].mxu0
  %v703 = vadd.f32 %v526, %v702
  %704 = vmatprep.mubr.bf16.mxu0 0
  %705 = vmatmul.mubr.bf16.gmra.mrb[0].mxu0 %v635
  %v706 = vpop.f32.mrb[0].mxu0
  %v707 = vadd.f32 %v531, %v706
  %v708 = vpop.f32.mrb[0].mxu0
  %v709 = vadd.f32 %v531, %v708
  %v710 = vpop.f32.mrb[0].mxu0
  %v711 = vadd.f32 %v536, %v710
  %v712 = vpop.f32.mrb[0].mxu0
  %v713 = vadd.f32 %v536, %v712
  %714 = vmatprep.mubr.bf16.mxu0 0
  %715 = vmatmul.mubr.bf16.gmra.mrb[0].mxu0 %v638
  %v716 = vpop.f32.mrb[0].mxu0
  %v717 = vadd.f32 %v541, %v716
  %v718 = vpop.f32.mrb[0].mxu0
  %v719 = vadd.f32 %v541, %v718
  %v720 = vpop.f32.mrb[0].mxu0
  %v721 = vadd.f32 %v546, %v720
  %v722 = vpop.f32.mrb[0].mxu0
  %v723 = vadd.f32 %v546, %v722
  %724 = vmatprep.mubr.bf16.mxu0 0
  %725 = vmatmul.mubr.bf16.gmra.mrb[0].mxu0 %v641
  %v726 = vpop.f32.mrb[0].mxu0
  %v727 = vadd.f32 %v551, %v726
  %v728 = vpop.f32.mrb[0].mxu0
  %v729 = vadd.f32 %v551, %v728
  %v730 = vpop.f32.mrb[0].mxu0
  %v731 = vadd.f32 %v556, %v730
  %v732 = vpop.f32.mrb[0].mxu0
  %v733 = vadd.f32 %v556, %v732
  %734 = vmatprep.mubr.bf16.mxu0 0
  %735 = vmatmul.mubr.bf16.gmra.mrb[0].mxu0 %v644
  %v736 = vpop.f32.mrb[0].mxu0
  %v737 = vadd.f32 %v561, %v736
  %v738 = vpop.f32.mrb[0].mxu0
  %v739 = vadd.f32 %v561, %v738
  %v740 = vpop.f32.mrb[0].mxu0
  %v741 = vadd.f32 %v566, %v740
  %v742 = vpop.f32.mrb[0].mxu0
  %v743 = vadd.f32 %v566, %v742
  %744 = vmatprep.mubr.bf16.mxu0 0
  %745 = vmatmul.mubr.bf16.gmra.mrb[0].mxu0 %v647
  %v746 = vpop.f32.mrb[0].mxu0
  %v747 = vadd.f32 %v571, %v746
  %v748 = vpop.f32.mrb[0].mxu0
  %v749 = vadd.f32 %v571, %v748
  %v750 = vpop.f32.mrb[0].mxu0
  %v751 = vadd.f32 %v576, %v750
  %v752 = vpop.f32.mrb[0].mxu0
  %v753 = vadd.f32 %v576, %v752
  %754 = vmatprep.mubr.bf16.mxu0 0
  %755 = vmatmul.mubr.bf16.gmra.mrb[0].mxu0 %v650
  %v756 = vpop.f32.mrb[0].mxu0
  %v757 = vadd.f32 %v581, %v756
  %v758 = vpop.f32.mrb[0].mxu0
  %v759 = vadd.f32 %v581, %v758
  %v760 = vpop.f32.mrb[0].mxu0
  %v761 = vadd.f32 %v586, %v760
  %v762 = vpop.f32.mrb[0].mxu0
  %v763 = vadd.f32 %v586, %v762
  %764 = vdwg.mxu0
  %765 = vmatprep.subr.bf16.mxu0 %v487
  %766 = vmatpush1.bf16.msra.mxu0 %v486
  %767 = vmatprep.subr.bf16.mxu0 %v491
  %768 = vmatpush1.bf16.msra.mxu0 %v490
  %769 = vmatprep.subr.bf16.mxu0 0
  %770 = vmatpush1.bf16.msra.mxu0 0
  %771 = vmatprep.subr.bf16.mxu0 0
  %772 = vmatpush1.bf16.msra.mxu0 0
  %773 = vmatprep.subr.bf16.mxu0 0
  %774 = vmatpush1.bf16.msra.mxu0 0
  %775 = vmatprep.subr.bf16.mxu0 0
  %776 = vmatpush1.bf16.msra.mxu0 0
  %777 = vmatprep.subr.bf16.mxu0 0
  %778 = vmatpush1.bf16.msra.mxu0 0
  %779 = vmatprep.subr.bf16.mxu0 0
  %780 = vmatpush1.bf16.msra.mxu0 0
  %781 = vmatprep.subr.bf16.mxu0 0
  %782 = vmatpush1.bf16.msra.mxu0 0
  %783 = vmatprep.subr.bf16.mxu0 0
  %784 = vmatpush1.bf16.msra.mxu0 0
  %785 = vmatprep.subr.bf16.mxu0 0
  %786 = vmatpush1.bf16.msra.mxu0 0
  %787 = vmatprep.subr.bf16.mxu0 0
  %788 = vmatpush1.bf16.msra.mxu0 0
  %789 = vmatprep.subr.bf16.mxu0 0
  %790 = vmatpush1.bf16.msra.mxu0 0
  %791 = vmatprep.subr.bf16.mxu0 0
  %792 = vmatpush1.bf16.msra.mxu0 0
  %793 = vmatprep.subr.bf16.mxu0 0
  %794 = vmatpush1.bf16.msra.mxu0 0
  %795 = vmatprep.subr.bf16.mxu0 0
  %796 = vmatpush1.bf16.msra.mxu0 0
  %797 = vmatprep.mubr.bf16.mxu0 0
  %798 = vmatmul.mubr.bf16.gmra.mrb[0].mxu0 %v629
  %v799 = vpop.f32.mrb[0].mxu0
  %v800 = vadd.f32 %v511, %v799
  %v801 = vpop.f32.mrb[0].mxu0
  %v802 = vadd.f32 %v511, %v801
  %v803 = vpop.f32.mrb[0].mxu0
  %v804 = vadd.f32 %v516, %v803
  %v805 = vpop.f32.mrb[0].mxu0
  %v806 = vadd.f32 %v516, %v805
  %807 = vmatprep.mubr.bf16.mxu0 0
  %808 = vmatmul.mubr.bf16.gmra.mrb[0].mxu0 %v632
  %v809 = vpop.f32.mrb[0].mxu0
  %v810 = vadd.f32 %v521, %v809
  %v811 = vpop.f32.mrb[0].mxu0
  %v812 = vadd.f32 %v521, %v811
  %v813 = vpop.f32.mrb[0].mxu0
  %v814 = vadd.f32 %v526, %v813
  %v815 = vpop.f32.mrb[0].mxu0
  %v816 = vadd.f32 %v526, %v815
  %817 = vmatprep.mubr.bf16.mxu0 0
  %818 = vmatmul.mubr.bf16.gmra.mrb[0].mxu0 %v635
  %v819 = vpop.f32.mrb[0].mxu0
  %v820 = vadd.f32 %v531, %v819
  %v821 = vpop.f32.mrb[0].mxu0
  %v822 = vadd.f32 %v531, %v821
  %v823 = vpop.f32.mrb[0].mxu0
  %v824 = vadd.f32 %v536, %v823
  %v825 = vpop.f32.mrb[0].mxu0
  %v826 = vadd.f32 %v536, %v825
  %827 = vmatprep.mubr.bf16.mxu0 0
  %828 = vmatmul.mubr.bf16.gmra.mrb[0].mxu0 %v638
  %v829 = vpop.f32.mrb[0].mxu0
  %v830 = vadd.f32 %v541, %v829
  %v831 = vpop.f32.mrb[0].mxu0
  %v832 = vadd.f32 %v541, %v831
  %v833 = vpop.f32.mrb[0].mxu0
  %v834 = vadd.f32 %v546, %v833
  %v835 = vpop.f32.mrb[0].mxu0
  %v836 = vadd.f32 %v546, %v835
  %837 = vmatprep.mubr.bf16.mxu0 0
  %838 = vmatmul.mubr.bf16.gmra.mrb[0].mxu0 %v641
  %v839 = vpop.f32.mrb[0].mxu0
  %v840 = vadd.f32 %v551, %v839
  %v841 = vpop.f32.mrb[0].mxu0
  %v842 = vadd.f32 %v551, %v841
  %v843 = vpop.f32.mrb[0].mxu0
  %v844 = vadd.f32 %v556, %v843
  %v845 = vpop.f32.mrb[0].mxu0
  %v846 = vadd.f32 %v556, %v845
  %847 = vmatprep.mubr.bf16.mxu0 0
  %848 = vmatmul.mubr.bf16.gmra.mrb[0].mxu0 %v644
  %v849 = vpop.f32.mrb[0].mxu0
  %v850 = vadd.f32 %v561, %v849
  %v851 = vpop.f32.mrb[0].mxu0
  %v852 = vadd.f32 %v561, %v851
  %v853 = vpop.f32.mrb[0].mxu0
  %v854 = vadd.f32 %v566, %v853
  %v855 = vpop.f32.mrb[0].mxu0
  %v856 = vadd.f32 %v566, %v855
  %857 = vmatprep.mubr.bf16.mxu0 0
  %858 = vmatmul.mubr.bf16.gmra.mrb[0].mxu0 %v647
  %v859 = vpop.f32.mrb[0].mxu0
  %v860 = vadd.f32 %v571, %v859
  %v861 = vpop.f32.mrb[0].mxu0
  %v862 = vadd.f32 %v571, %v861
  %v863 = vpop.f32.mrb[0].mxu0
  %v864 = vadd.f32 %v576, %v863
  %v865 = vpop.f32.mrb[0].mxu0
  %v866 = vadd.f32 %v576, %v865
  %867 = vmatprep.mubr.bf16.mxu0 0
  %868 = vmatmul.mubr.bf16.gmra.mrb[0].mxu0 %v650
  %v869 = vpop.f32.mrb[0].mxu0
  %v870 = vadd.f32 %v581, %v869
  %v871 = vpop.f32.mrb[0].mxu0
  %v872 = vadd.f32 %v581, %v871
  %v873 = vpop.f32.mrb[0].mxu0
  %v874 = vadd.f32 %v586, %v873
  %v875 = vpop.f32.mrb[0].mxu0
  %v876 = vadd.f32 %v586, %v875
  %877 = vdwg.mxu0
  %v878 = vmul.f32 %v687, 0.5
  %v879 = vmul.f32 %v689, 0.5
  %v880 = vmul.f32 %v800, 0.5
  %v881 = vmul.f32 %v802, 0.5
  %v882 = vmul.f32 %v691, 0.5
  %v883 = vmul.f32 %v693, 0.5
  %v884 = vmul.f32 %v804, 0.5
  %v885 = vmul.f32 %v806, 0.5
  %v886 = vmul.f32 %v697, 0.5
  %v887 = vmul.f32 %v699, 0.5
  %v888 = vmul.f32 %v810, 0.5
  %v889 = vmul.f32 %v812, 0.5
  %v890 = vmul.f32 %v701, 0.5
  %v891 = vmul.f32 %v703, 0.5
  %v892 = vmul.f32 %v814, 0.5
  %v893 = vmul.f32 %v816, 0.5
  %v894 = vmul.f32 %v707, 0.5
  %v895 = vmul.f32 %v709, 0.5
  %v896 = vmul.f32 %v820, 0.5
  %v897 = vmul.f32 %v822, 0.5
  %v898 = vmul.f32 %v711, 0.5
  %v899 = vmul.f32 %v713, 0.5
  %v900 = vmul.f32 %v824, 0.5
  %v901 = vmul.f32 %v826, 0.5
  %v902 = vmul.f32 %v717, 0.5
  %v903 = vmul.f32 %v719, 0.5
  %v904 = vmul.f32 %v830, 0.5
  %v905 = vmul.f32 %v832, 0.5
  %v906 = vmul.f32 %v721, 0.5
  %v907 = vmul.f32 %v723, 0.5
  %v908 = vmul.f32 %v834, 0.5
  %v909 = vmul.f32 %v836, 0.5
  %v910 = vmul.f32 %v727, 0.5
  %v911 = vmul.f32 %v729, 0.5
  %v912 = vmul.f32 %v840, 0.5
  %v913 = vmul.f32 %v842, 0.5
  %v914 = vmul.f32 %v731, 0.5
  %v915 = vmul.f32 %v733, 0.5
  %v916 = vmul.f32 %v844, 0.5
  %v917 = vmul.f32 %v846, 0.5
  %v918 = vmul.f32 %v737, 0.5
  %v919 = vmul.f32 %v739, 0.5
  %v920 = vmul.f32 %v850, 0.5
  %v921 = vmul.f32 %v852, 0.5
  %v922 = vmul.f32 %v741, 0.5
  %v923 = vmul.f32 %v743, 0.5
  %v924 = vmul.f32 %v854, 0.5
  %v925 = vmul.f32 %v856, 0.5
  %v926 = vmul.f32 %v747, 0.5
  %v927 = vmul.f32 %v749, 0.5
  %v928 = vmul.f32 %v860, 0.5
  %v929 = vmul.f32 %v862, 0.5
  %v930 = vmul.f32 %v751, 0.5
  %v931 = vmul.f32 %v753, 0.5
  %v932 = vmul.f32 %v864, 0.5
  %v933 = vmul.f32 %v866, 0.5
  %v934 = vmul.f32 %v757, 0.5
  %v935 = vmul.f32 %v759, 0.5
  %v936 = vmul.f32 %v870, 0.5
  %v937 = vmul.f32 %v872, 0.5
  %v938 = vmul.f32 %v761, 0.5
  %v939 = vmul.f32 %v763, 0.5
  %v940 = vmul.f32 %v874, 0.5
  %v941 = vmul.f32 %v876, 0.5
  %v942 = vmul.f32 %v687, 0.044715
  %v943 = vmul.f32 %v689, 0.044715
  %v944 = vmul.f32 %v800, 0.044715
  %v945 = vmul.f32 %v802, 0.044715
  %v946 = vmul.f32 %v691, 0.044715
  %v947 = vmul.f32 %v693, 0.044715
  %v948 = vmul.f32 %v804, 0.044715
  %v949 = vmul.f32 %v806, 0.044715
  %v950 = vmul.f32 %v697, 0.044715
  %v951 = vmul.f32 %v699, 0.044715
  %v952 = vmul.f32 %v810, 0.044715
  %v953 = vmul.f32 %v812, 0.044715
  %v954 = vmul.f32 %v701, 0.044715
  %v955 = vmul.f32 %v703, 0.044715
  %v956 = vmul.f32 %v814, 0.044715
  %v957 = vmul.f32 %v816, 0.044715
  %v958 = vmul.f32 %v707, 0.044715
  %v959 = vmul.f32 %v709, 0.044715
  %v960 = vmul.f32 %v820, 0.044715
  %v961 = vmul.f32 %v822, 0.044715
  %v962 = vmul.f32 %v711, 0.044715
  %v963 = vmul.f32 %v713, 0.044715
  %v964 = vmul.f32 %v824, 0.044715
  %v965 = vmul.f32 %v826, 0.044715
  %v966 = vmul.f32 %v717, 0.044715
  %v967 = vmul.f32 %v719, 0.044715
  %v968 = vmul.f32 %v830, 0.044715
  %v969 = vmul.f32 %v832, 0.044715
  %v970 = vmul.f32 %v721, 0.044715
  %v971 = vmul.f32 %v723, 0.044715
  %v972 = vmul.f32 %v834, 0.044715
  %v973 = vmul.f32 %v836, 0.044715
  %v974 = vmul.f32 %v727, 0.044715
  %v975 = vmul.f32 %v729, 0.044715
  %v976 = vmul.f32 %v840, 0.044715
  %v977 = vmul.f32 %v842, 0.044715
  %v978 = vmul.f32 %v731, 0.044715
  %v979 = vmul.f32 %v733, 0.044715
  %v980 = vmul.f32 %v844, 0.044715
  %v981 = vmul.f32 %v846, 0.044715
  %v982 = vmul.f32 %v737, 0.044715
  %v983 = vmul.f32 %v739, 0.044715
  %v984 = vmul.f32 %v850, 0.044715
  %v985 = vmul.f32 %v852, 0.044715
  %v986 = vmul.f32 %v741, 0.044715
  %v987 = vmul.f32 %v743, 0.044715
  %v988 = vmul.f32 %v854, 0.044715
  %v989 = vmul.f32 %v856, 0.044715
  %v990 = vmul.f32 %v747, 0.044715
  %v991 = vmul.f32 %v749, 0.044715
  %v992 = vmul.f32 %v860, 0.044715
  %v993 = vmul.f32 %v862, 0.044715
  %v994 = vmul.f32 %v751, 0.044715
  %v995 = vmul.f32 %v753, 0.044715
  %v996 = vmul.f32 %v864, 0.044715
  %v997 = vmul.f32 %v866, 0.044715
  %v998 = vmul.f32 %v757, 0.044715
  %v999 = vmul.f32 %v759, 0.044715
  %v1000 = vmul.f32 %v870, 0.044715
  %v1001 = vmul.f32 %v872, 0.044715
  %v1002 = vmul.f32 %v761, 0.044715
  %v1003 = vmul.f32 %v763, 0.044715
  %v1004 = vmul.f32 %v874, 0.044715
  %v1005 = vmul.f32 %v876, 0.044715
  %v1006 = vmul.f32 %v942, %v687
  %v1007 = vmul.f32 %v943, %v689
  %v1008 = vmul.f32 %v944, %v800
  %v1009 = vmul.f32 %v945, %v802
  %v1010 = vmul.f32 %v946, %v691
  %v1011 = vmul.f32 %v947, %v693
  %v1012 = vmul.f32 %v948, %v804
  %v1013 = vmul.f32 %v949, %v806
  %v1014 = vmul.f32 %v950, %v697
  %v1015 = vmul.f32 %v951, %v699
  %v1016 = vmul.f32 %v952, %v810
  %v1017 = vmul.f32 %v953, %v812
  %v1018 = vmul.f32 %v954, %v701
  %v1019 = vmul.f32 %v955, %v703
  %v1020 = vmul.f32 %v956, %v814
  %v1021 = vmul.f32 %v957, %v816
  %v1022 = vmul.f32 %v958, %v707
  %v1023 = vmul.f32 %v959, %v709
  %v1024 = vmul.f32 %v960, %v820
  %v1025 = vmul.f32 %v961, %v822
  %v1026 = vmul.f32 %v962, %v711
  %v1027 = vmul.f32 %v963, %v713
  %v1028 = vmul.f32 %v964, %v824
  %v1029 = vmul.f32 %v965, %v826
  %v1030 = vmul.f32 %v966, %v717
  %v1031 = vmul.f32 %v967, %v719
  %v1032 = vmul.f32 %v968, %v830
  %v1033 = vmul.f32 %v969, %v832
  %v1034 = vmul.f32 %v970, %v721
  %v1035 = vmul.f32 %v971, %v723
  %v1036 = vmul.f32 %v972, %v834
  %v1037 = vmul.f32 %v973, %v836
  %v1038 = vmul.f32 %v974, %v727
  %v1039 = vmul.f32 %v975, %v729
  %v1040 = vmul.f32 %v976, %v840
  %v1041 = vmul.f32 %v977, %v842
  %v1042 = vmul.f32 %v978, %v731
  %v1043 = vmul.f32 %v979, %v733
  %v1044 = vmul.f32 %v980, %v844
  %v1045 = vmul.f32 %v981, %v846
  %v1046 = vmul.f32 %v982, %v737
  %v1047 = vmul.f32 %v983, %v739
  %v1048 = vmul.f32 %v984, %v850
  %v1049 = vmul.f32 %v985, %v852
  %v1050 = vmul.f32 %v986, %v741
  %v1051 = vmul.f32 %v987, %v743
  %v1052 = vmul.f32 %v988, %v854
  %v1053 = vmul.f32 %v989, %v856
  %v1054 = vmul.f32 %v990, %v747
  %v1055 = vmul.f32 %v991, %v749
  %v1056 = vmul.f32 %v992, %v860
  %v1057 = vmul.f32 %v993, %v862
  %v1058 = vmul.f32 %v994, %v751
  %v1059 = vmul.f32 %v995, %v753
  %v1060 = vmul.f32 %v996, %v864
  %v1061 = vmul.f32 %v997, %v866
  %v1062 = vmul.f32 %v998, %v757
  %v1063 = vmul.f32 %v999, %v759
  %v1064 = vmul.f32 %v1000, %v870
  %v1065 = vmul.f32 %v1001, %v872
  %v1066 = vmul.f32 %v1002, %v761
  %v1067 = vmul.f32 %v1003, %v763
  %v1068 = vmul.f32 %v1004, %v874
  %v1069 = vmul.f32 %v1005, %v876
  %v1070 = vmul.f32 %v1006, %v687
  %v1071 = vmul.f32 %v1007, %v689
  %v1072 = vmul.f32 %v1008, %v800
  %v1073 = vmul.f32 %v1009, %v802
  %v1074 = vmul.f32 %v1010, %v691
  %v1075 = vmul.f32 %v1011, %v693
  %v1076 = vmul.f32 %v1012, %v804
  %v1077 = vmul.f32 %v1013, %v806
  %v1078 = vmul.f32 %v1014, %v697
  %v1079 = vmul.f32 %v1015, %v699
  %v1080 = vmul.f32 %v1016, %v810
  %v1081 = vmul.f32 %v1017, %v812
  %v1082 = vmul.f32 %v1018, %v701
  %v1083 = vmul.f32 %v1019, %v703
  %v1084 = vmul.f32 %v1020, %v814
  %v1085 = vmul.f32 %v1021, %v816
  %v1086 = vmul.f32 %v1022, %v707
  %v1087 = vmul.f32 %v1023, %v709
  %v1088 = vmul.f32 %v1024, %v820
  %v1089 = vmul.f32 %v1025, %v822
  %v1090 = vmul.f32 %v1026, %v711
  %v1091 = vmul.f32 %v1027, %v713
  %v1092 = vmul.f32 %v1028, %v824
  %v1093 = vmul.f32 %v1029, %v826
  %v1094 = vmul.f32 %v1030, %v717
  %v1095 = vmul.f32 %v1031, %v719
  %v1096 = vmul.f32 %v1032, %v830
  %v1097 = vmul.f32 %v1033, %v832
  %v1098 = vmul.f32 %v1034, %v721
  %v1099 = vmul.f32 %v1035, %v723
  %v1100 = vmul.f32 %v1036, %v834
  %v1101 = vmul.f32 %v1037, %v836
  %v1102 = vmul.f32 %v1038, %v727
  %v1103 = vmul.f32 %v1039, %v729
  %v1104 = vmul.f32 %v1040, %v840
  %v1105 = vmul.f32 %v1041, %v842
  %v1106 = vmul.f32 %v1042, %v731
  %v1107 = vmul.f32 %v1043, %v733
  %v1108 = vmul.f32 %v1044, %v844
  %v1109 = vmul.f32 %v1045, %v846
  %v1110 = vmul.f32 %v1046, %v737
  %v1111 = vmul.f32 %v1047, %v739
  %v1112 = vmul.f32 %v1048, %v850
  %v1113 = vmul.f32 %v1049, %v852
  %v1114 = vmul.f32 %v1050, %v741
  %v1115 = vmul.f32 %v1051, %v743
  %v1116 = vmul.f32 %v1052, %v854
  %v1117 = vmul.f32 %v1053, %v856
  %v1118 = vmul.f32 %v1054, %v747
  %v1119 = vmul.f32 %v1055, %v749
  %v1120 = vmul.f32 %v1056, %v860
  %v1121 = vmul.f32 %v1057, %v862
  %v1122 = vmul.f32 %v1058, %v751
  %v1123 = vmul.f32 %v1059, %v753
  %v1124 = vmul.f32 %v1060, %v864
  %v1125 = vmul.f32 %v1061, %v866
  %v1126 = vmul.f32 %v1062, %v757
  %v1127 = vmul.f32 %v1063, %v759
  %v1128 = vmul.f32 %v1064, %v870
  %v1129 = vmul.f32 %v1065, %v872
  %v1130 = vmul.f32 %v1066, %v761
  %v1131 = vmul.f32 %v1067, %v763
  %v1132 = vmul.f32 %v1068, %v874
  %v1133 = vmul.f32 %v1069, %v876
  %v1134 = vadd.f32 %v687, %v1070
  %v1135 = vadd.f32 %v689, %v1071
  %v1136 = vadd.f32 %v800, %v1072
  %v1137 = vadd.f32 %v802, %v1073
  %v1138 = vadd.f32 %v691, %v1074
  %v1139 = vadd.f32 %v693, %v1075
  %v1140 = vadd.f32 %v804, %v1076
  %v1141 = vadd.f32 %v806, %v1077
  %v1142 = vadd.f32 %v697, %v1078
  %v1143 = vadd.f32 %v699, %v1079
  %v1144 = vadd.f32 %v810, %v1080
  %v1145 = vadd.f32 %v812, %v1081
  %v1146 = vadd.f32 %v701, %v1082
  %v1147 = vadd.f32 %v703, %v1083
  %v1148 = vadd.f32 %v814, %v1084
  %v1149 = vadd.f32 %v816, %v1085
  %v1150 = vadd.f32 %v707, %v1086
  %v1151 = vadd.f32 %v709, %v1087
  %v1152 = vadd.f32 %v820, %v1088
  %v1153 = vadd.f32 %v822, %v1089
  %v1154 = vadd.f32 %v711, %v1090
  %v1155 = vadd.f32 %v713, %v1091
  %v1156 = vadd.f32 %v824, %v1092
  %v1157 = vadd.f32 %v826, %v1093
  %v1158 = vadd.f32 %v717, %v1094
  %v1159 = vadd.f32 %v719, %v1095
  %v1160 = vadd.f32 %v830, %v1096
  %v1161 = vadd.f32 %v832, %v1097
  %v1162 = vadd.f32 %v721, %v1098
  %v1163 = vadd.f32 %v723, %v1099
  %v1164 = vadd.f32 %v834, %v1100
  %v1165 = vadd.f32 %v836, %v1101
  %v1166 = vadd.f32 %v727, %v1102
  %v1167 = vadd.f32 %v729, %v1103
  %v1168 = vadd.f32 %v840, %v1104
  %v1169 = vadd.f32 %v842, %v1105
  %v1170 = vadd.f32 %v731, %v1106
  %v1171 = vadd.f32 %v733, %v1107
  %v1172 = vadd.f32 %v844, %v1108
  %v1173 = vadd.f32 %v846, %v1109
  %v1174 = vadd.f32 %v737, %v1110
  %v1175 = vadd.f32 %v739, %v1111
  %v1176 = vadd.f32 %v850, %v1112
  %v1177 = vadd.f32 %v852, %v1113
  %v1178 = vadd.f32 %v741, %v1114
  %v1179 = vadd.f32 %v743, %v1115
  %v1180 = vadd.f32 %v854, %v1116
  %v1181 = vadd.f32 %v856, %v1117
  %v1182 = vadd.f32 %v747, %v1118
  %v1183 = vadd.f32 %v749, %v1119
  %v1184 = vadd.f32 %v860, %v1120
  %v1185 = vadd.f32 %v862, %v1121
  %v1186 = vadd.f32 %v751, %v1122
  %v1187 = vadd.f32 %v753, %v1123
  %v1188 = vadd.f32 %v864, %v1124
  %v1189 = vadd.f32 %v866, %v1125
  %v1190 = vadd.f32 %v757, %v1126
  %v1191 = vadd.f32 %v759, %v1127
  %v1192 = vadd.f32 %v870, %v1128
  %v1193 = vadd.f32 %v872, %v1129
  %v1194 = vadd.f32 %v761, %v1130
  %v1195 = vadd.f32 %v763, %v1131
  %v1196 = vadd.f32 %v874, %v1132
  %v1197 = vadd.f32 %v876, %v1133
  %v1198 = vmul.f32 %v1134, 0.7978846
  %v1199 = vmul.f32 %v1135, 0.7978846
  %v1200 = vmul.f32 %v1136, 0.7978846
  %v1201 = vmul.f32 %v1137, 0.7978846
  %v1202 = vmul.f32 %v1138, 0.7978846
  %v1203 = vmul.f32 %v1139, 0.7978846
  %v1204 = vmul.f32 %v1140, 0.7978846
  %v1205 = vmul.f32 %v1141, 0.7978846
  %v1206 = vmul.f32 %v1142, 0.7978846
  %v1207 = vmul.f32 %v1143, 0.7978846
  %v1208 = vmul.f32 %v1144, 0.7978846
  %v1209 = vmul.f32 %v1145, 0.7978846
  %v1210 = vmul.f32 %v1146, 0.7978846
  %v1211 = vmul.f32 %v1147, 0.7978846
  %v1212 = vmul.f32 %v1148, 0.7978846
  %v1213 = vmul.f32 %v1149, 0.7978846
  %v1214 = vmul.f32 %v1150, 0.7978846
  %v1215 = vmul.f32 %v1151, 0.7978846
  %v1216 = vmul.f32 %v1152, 0.7978846
  %v1217 = vmul.f32 %v1153, 0.7978846
  %v1218 = vmul.f32 %v1154, 0.7978846
  %v1219 = vmul.f32 %v1155, 0.7978846
  %v1220 = vmul.f32 %v1156, 0.7978846
  %v1221 = vmul.f32 %v1157, 0.7978846
  %v1222 = vmul.f32 %v1158, 0.7978846
  %v1223 = vmul.f32 %v1159, 0.7978846
  %v1224 = vmul.f32 %v1160, 0.7978846
  %v1225 = vmul.f32 %v1161, 0.7978846
  %v1226 = vmul.f32 %v1162, 0.7978846
  %v1227 = vmul.f32 %v1163, 0.7978846
  %v1228 = vmul.f32 %v1164, 0.7978846
  %v1229 = vmul.f32 %v1165, 0.7978846
  %v1230 = vmul.f32 %v1166, 0.7978846
  %v1231 = vmul.f32 %v1167, 0.7978846
  %v1232 = vmul.f32 %v1168, 0.7978846
  %v1233 = vmul.f32 %v1169, 0.7978846
  %v1234 = vmul.f32 %v1170, 0.7978846
  %v1235 = vmul.f32 %v1171, 0.7978846
  %v1236 = vmul.f32 %v1172, 0.7978846
  %v1237 = vmul.f32 %v1173, 0.7978846
  %v1238 = vmul.f32 %v1174, 0.7978846
  %v1239 = vmul.f32 %v1175, 0.7978846
  %v1240 = vmul.f32 %v1176, 0.7978846
  %v1241 = vmul.f32 %v1177, 0.7978846
  %v1242 = vmul.f32 %v1178, 0.7978846
  %v1243 = vmul.f32 %v1179, 0.7978846
  %v1244 = vmul.f32 %v1180, 0.7978846
  %v1245 = vmul.f32 %v1181, 0.7978846
  %v1246 = vmul.f32 %v1182, 0.7978846
  %v1247 = vmul.f32 %v1183, 0.7978846
  %v1248 = vmul.f32 %v1184, 0.7978846
  %v1249 = vmul.f32 %v1185, 0.7978846
  %v1250 = vmul.f32 %v1186, 0.7978846
  %v1251 = vmul.f32 %v1187, 0.7978846
  %v1252 = vmul.f32 %v1188, 0.7978846
  %v1253 = vmul.f32 %v1189, 0.7978846
  %v1254 = vmul.f32 %v1190, 0.7978846
  %v1255 = vmul.f32 %v1191, 0.7978846
  %v1256 = vmul.f32 %v1192, 0.7978846
  %v1257 = vmul.f32 %v1193, 0.7978846
  %v1258 = vmul.f32 %v1194, 0.7978846
  %v1259 = vmul.f32 %v1195, 0.7978846
  %v1260 = vmul.f32 %v1196, 0.7978846
  %v1261 = vmul.f32 %v1197, 0.7978846
  %v1262 = vtanh.pop %v1198
  %v1263 = vtanh.pop %v1199
  %v1264 = vtanh.pop %v1200
  %v1265 = vtanh.pop %v1201
  %v1266 = vtanh.pop %v1202
  %v1267 = vtanh.pop %v1203
  %v1268 = vtanh.pop %v1204
  %v1269 = vtanh.pop %v1205
  %v1270 = vtanh.pop %v1206
  %v1271 = vtanh.pop %v1207
  %v1272 = vtanh.pop %v1208
  %v1273 = vtanh.pop %v1209
  %v1274 = vtanh.pop %v1210
  %v1275 = vtanh.pop %v1211
  %v1276 = vtanh.pop %v1212
  %v1277 = vtanh.pop %v1213
  %v1278 = vtanh.pop %v1214
  %v1279 = vtanh.pop %v1215
  %v1280 = vtanh.pop %v1216
  %v1281 = vtanh.pop %v1217
  %v1282 = vtanh.pop %v1218
  %v1283 = vtanh.pop %v1219
  %v1284 = vtanh.pop %v1220
  %v1285 = vtanh.pop %v1221
  %v1286 = vtanh.pop %v1222
  %v1287 = vtanh.pop %v1223
  %v1288 = vtanh.pop %v1224
  %v1289 = vtanh.pop %v1225
  %v1290 = vtanh.pop %v1226
  %v1291 = vtanh.pop %v1227
  %v1292 = vtanh.pop %v1228
  %v1293 = vtanh.pop %v1229
  %v1294 = vtanh.pop %v1230
  %v1295 = vtanh.pop %v1231
  %v1296 = vtanh.pop %v1232
  %v1297 = vtanh.pop %v1233
  %v1298 = vtanh.pop %v1234
  %v1299 = vtanh.pop %v1235
  %v1300 = vtanh.pop %v1236
  %v1301 = vtanh.pop %v1237
  %v1302 = vtanh.pop %v1238
  %v1303 = vtanh.pop %v1239
  %v1304 = vtanh.pop %v1240
  %v1305 = vtanh.pop %v1241
  %v1306 = vtanh.pop %v1242
  %v1307 = vtanh.pop %v1243
  %v1308 = vtanh.pop %v1244
  %v1309 = vtanh.pop %v1245
  %v1310 = vtanh.pop %v1246
  %v1311 = vtanh.pop %v1247
  %v1312 = vtanh.pop %v1248
  %v1313 = vtanh.pop %v1249
  %v1314 = vtanh.pop %v1250
  %v1315 = vtanh.pop %v1251
  %v1316 = vtanh.pop %v1252
  %v1317 = vtanh.pop %v1253
  %v1318 = vtanh.pop %v1254
  %v1319 = vtanh.pop %v1255
  %v1320 = vtanh.pop %v1256
  %v1321 = vtanh.pop %v1257
  %v1322 = vtanh.pop %v1258
  %v1323 = vtanh.pop %v1259
  %v1324 = vtanh.pop %v1260
  %v1325 = vtanh.pop %v1261
  %v1326 = vadd.f32 %v1262, 1.0
  %v1327 = vadd.f32 %v1263, 1.0
  %v1328 = vadd.f32 %v1264, 1.0
  %v1329 = vadd.f32 %v1265, 1.0
  %v1330 = vadd.f32 %v1266, 1.0
  %v1331 = vadd.f32 %v1267, 1.0
  %v1332 = vadd.f32 %v1268, 1.0
  %v1333 = vadd.f32 %v1269, 1.0
  %v1334 = vadd.f32 %v1270, 1.0
  %v1335 = vadd.f32 %v1271, 1.0
  %v1336 = vadd.f32 %v1272, 1.0
  %v1337 = vadd.f32 %v1273, 1.0
  %v1338 = vadd.f32 %v1274, 1.0
  %v1339 = vadd.f32 %v1275, 1.0
  %v1340 = vadd.f32 %v1276, 1.0
  %v1341 = vadd.f32 %v1277, 1.0
  %v1342 = vadd.f32 %v1278, 1.0
  %v1343 = vadd.f32 %v1279, 1.0
  %v1344 = vadd.f32 %v1280, 1.0
  %v1345 = vadd.f32 %v1281, 1.0
  %v1346 = vadd.f32 %v1282, 1.0
  %v1347 = vadd.f32 %v1283, 1.0
  %v1348 = vadd.f32 %v1284, 1.0
  %v1349 = vadd.f32 %v1285, 1.0
  %v1350 = vadd.f32 %v1286, 1.0
  %v1351 = vadd.f32 %v1287, 1.0
  %v1352 = vadd.f32 %v1288, 1.0
  %v1353 = vadd.f32 %v1289, 1.0
  %v1354 = vadd.f32 %v1290, 1.0
  %v1355 = vadd.f32 %v1291, 1.0
  %v1356 = vadd.f32 %v1292, 1.0
  %v1357 = vadd.f32 %v1293, 1.0
  %v1358 = vadd.f32 %v1294, 1.0
  %v1359 = vadd.f32 %v1295, 1.0
  %v1360 = vadd.f32 %v1296, 1.0
  %v1361 = vadd.f32 %v1297, 1.0
  %v1362 = vadd.f32 %v1298, 1.0
  %v1363 = vadd.f32 %v1299, 1.0
  %v1364 = vadd.f32 %v1300, 1.0
  %v1365 = vadd.f32 %v1301, 1.0
  %v1366 = vadd.f32 %v1302, 1.0
  %v1367 = vadd.f32 %v1303, 1.0
  %v1368 = vadd.f32 %v1304, 1.0
  %v1369 = vadd.f32 %v1305, 1.0
  %v1370 = vadd.f32 %v1306, 1.0
  %v1371 = vadd.f32 %v1307, 1.0
  %v1372 = vadd.f32 %v1308, 1.0
  %v1373 = vadd.f32 %v1309, 1.0
  %v1374 = vadd.f32 %v1310, 1.0
  %v1375 = vadd.f32 %v1311, 1.0
  %v1376 = vadd.f32 %v1312, 1.0
  %v1377 = vadd.f32 %v1313, 1.0
  %v1378 = vadd.f32 %v1314, 1.0
  %v1379 = vadd.f32 %v1315, 1.0
  %v1380 = vadd.f32 %v1316, 1.0
  %v1381 = vadd.f32 %v1317, 1.0
  %v1382 = vadd.f32 %v1318, 1.0
  %v1383 = vadd.f32 %v1319, 1.0
  %v1384 = vadd.f32 %v1320, 1.0
  %v1385 = vadd.f32 %v1321, 1.0
  %v1386 = vadd.f32 %v1322, 1.0
  %v1387 = vadd.f32 %v1323, 1.0
  %v1388 = vadd.f32 %v1324, 1.0
  %v1389 = vadd.f32 %v1325, 1.0
  %v1390 = vmul.f32 %v878, %v1326
  %v1391 = vmul.f32 %v879, %v1327
  %v1392 = vmul.f32 %v880, %v1328
  %v1393 = vmul.f32 %v881, %v1329
  %v1394 = vmul.f32 %v882, %v1330
  %v1395 = vmul.f32 %v883, %v1331
  %v1396 = vmul.f32 %v884, %v1332
  %v1397 = vmul.f32 %v885, %v1333
  %v1398 = vmul.f32 %v886, %v1334
  %v1399 = vmul.f32 %v887, %v1335
  %v1400 = vmul.f32 %v888, %v1336
  %v1401 = vmul.f32 %v889, %v1337
  %v1402 = vmul.f32 %v890, %v1338
  %v1403 = vmul.f32 %v891, %v1339
  %v1404 = vmul.f32 %v892, %v1340
  %v1405 = vmul.f32 %v893, %v1341
  %v1406 = vmul.f32 %v894, %v1342
  %v1407 = vmul.f32 %v895, %v1343
  %v1408 = vmul.f32 %v896, %v1344
  %v1409 = vmul.f32 %v897, %v1345
  %v1410 = vmul.f32 %v898, %v1346
  %v1411 = vmul.f32 %v899, %v1347
  %v1412 = vmul.f32 %v900, %v1348
  %v1413 = vmul.f32 %v901, %v1349
  %v1414 = vmul.f32 %v902, %v1350
  %v1415 = vmul.f32 %v903, %v1351
  %v1416 = vmul.f32 %v904, %v1352
  %v1417 = vmul.f32 %v905, %v1353
  %v1418 = vmul.f32 %v906, %v1354
  %v1419 = vmul.f32 %v907, %v1355
  %v1420 = vmul.f32 %v908, %v1356
  %v1421 = vmul.f32 %v909, %v1357
  %v1422 = vmul.f32 %v910, %v1358
  %v1423 = vmul.f32 %v911, %v1359
  %v1424 = vmul.f32 %v912, %v1360
  %v1425 = vmul.f32 %v913, %v1361
  %v1426 = vmul.f32 %v914, %v1362
  %v1427 = vmul.f32 %v915, %v1363
  %v1428 = vmul.f32 %v916, %v1364
  %v1429 = vmul.f32 %v917, %v1365
  %v1430 = vmul.f32 %v918, %v1366
  %v1431 = vmul.f32 %v919, %v1367
  %v1432 = vmul.f32 %v920, %v1368
  %v1433 = vmul.f32 %v921, %v1369
  %v1434 = vmul.f32 %v922, %v1370
  %v1435 = vmul.f32 %v923, %v1371
  %v1436 = vmul.f32 %v924, %v1372
  %v1437 = vmul.f32 %v925, %v1373
  %v1438 = vmul.f32 %v926, %v1374
  %v1439 = vmul.f32 %v927, %v1375
  %v1440 = vmul.f32 %v928, %v1376
  %v1441 = vmul.f32 %v929, %v1377
  %v1442 = vmul.f32 %v930, %v1378
  %v1443 = vmul.f32 %v931, %v1379
  %v1444 = vmul.f32 %v932, %v1380
  %v1445 = vmul.f32 %v933, %v1381
  %v1446 = vmul.f32 %v934, %v1382
  %v1447 = vmul.f32 %v935, %v1383
  %v1448 = vmul.f32 %v936, %v1384
  %v1449 = vmul.f32 %v937, %v1385
  %v1450 = vmul.f32 %v938, %v1386
  %v1451 = vmul.f32 %v939, %v1387
  %v1452 = vmul.f32 %v940, %v1388
  %v1453 = vmul.f32 %v941, %v1389
  %v1454 = vld [vmem:[%s8] sm:$0xf]
  %v1455 = vld [vmem:[%s8 + $0x4] sm:$0xf]
  %v1456 = vld [vmem:[%s8 + $0x8] sm:$0xf]
  %v1457 = vld [vmem:[%s8 + $0xc] sm:$0xf]
  %v1458 = vpack.c.bf16 %v1394, %v1390
  %v1459 = vpack.c.bf16 %v1395, %v1391
  %v1460 = vpack.c.bf16 %v1396, %v1392
  %v1461 = vpack.c.bf16 %v1397, %v1393
  %v1462 = vpack.c.bf16 %v1402, %v1398
  %v1463 = vpack.c.bf16 %v1403, %v1399
  %v1464 = vpack.c.bf16 %v1404, %v1400
  %v1465 = vpack.c.bf16 %v1405, %v1401
  %v1466 = vpack.c.bf16 %v1410, %v1406
  %v1467 = vpack.c.bf16 %v1411, %v1407
  %v1468 = vpack.c.bf16 %v1412, %v1408
  %v1469 = vpack.c.bf16 %v1413, %v1409
  %v1470 = vpack.c.bf16 %v1418, %v1414
  %v1471 = vpack.c.bf16 %v1419, %v1415
  %v1472 = vpack.c.bf16 %v1420, %v1416
  %v1473 = vpack.c.bf16 %v1421, %v1417
  %v1474 = vpack.c.bf16 %v1426, %v1422
  %v1475 = vpack.c.bf16 %v1427, %v1423
  %v1476 = vpack.c.bf16 %v1428, %v1424
  %v1477 = vpack.c.bf16 %v1429, %v1425
  %v1478 = vpack.c.bf16 %v1434, %v1430
  %v1479 = vpack.c.bf16 %v1435, %v1431
  %v1480 = vpack.c.bf16 %v1436, %v1432
  %v1481 = vpack.c.bf16 %v1437, %v1433
  %v1482 = vpack.c.bf16 %v1442, %v1438
  %v1483 = vpack.c.bf16 %v1443, %v1439
  %v1484 = vpack.c.bf16 %v1444, %v1440
  %v1485 = vpack.c.bf16 %v1445, %v1441
  %v1486 = vpack.c.bf16 %v1450, %v1446
  %v1487 = vpack.c.bf16 %v1451, %v1447
  %v1488 = vpack.c.bf16 %v1452, %v1448
  %v1489 = vpack.c.bf16 %v1453, %v1449
  %v1490 = vld [vmem:[%s9] sm:$0xff]
  %v1491 = vld [vmem:[%s9 + $0x8] sm:$0xff]
  %v1492 = vld [vmem:[%s9 + $0x10] sm:$0xff]
  %v1493 = vld [vmem:[%s9 + $0x18] sm:$0xff]
  %1495 = vset.pattern.permute.xlu0 0
  %1496 = vperm.xlu0 %1495, %v1490
  %v1497 = vpop.permute.xlu0 %1496
  %1500 = vset.pattern.permute.xlu0 0
  %1501 = vperm.xlu0 %1500, %v1491
  %v1502 = vpop.permute.xlu0 %1501
  %1505 = vset.pattern.permute.xlu0 0
  %1506 = vperm.xlu0 %1505, %v1492
  %v1507 = vpop.permute.xlu0 %1506
  %1510 = vset.pattern.permute.xlu0 0
  %1511 = vperm.xlu0 %1510, %v1493
  %v1512 = vpop.permute.xlu0 %1511
  %v1518 = vunpack.c.l.b16 %v1454
  %v1519 = vunpack.c.l.b16 %v1455
  %v1520 = vunpack.c.l.b16 %v1456
  %v1521 = vunpack.c.l.b16 %v1457
  %v1522 = vpack.c.b16 %v1519, %v1518
  %v1523 = vpack.c.b16 %v1521, %v1520
  %1526 = vmatprep.subr.bf16.mxu0 %v1459
  %1527 = vmatpush1.bf16.msra.mxu0 %v1458
  %1528 = vmatprep.subr.bf16.mxu0 %v1463
  %1529 = vmatpush1.bf16.msra.mxu0 %v1462
  %1530 = vmatprep.subr.bf16.mxu0 %v1467
  %1531 = vmatpush1.bf16.msra.mxu0 %v1466
  %1532 = vmatprep.subr.bf16.mxu0 %v1471
  %1533 = vmatpush1.bf16.msra.mxu0 %v1470
  %1534 = vmatprep.subr.bf16.mxu0 %v1475
  %1535 = vmatpush1.bf16.msra.mxu0 %v1474
  %1536 = vmatprep.subr.bf16.mxu0 %v1479
  %1537 = vmatpush1.bf16.msra.mxu0 %v1478
  %1538 = vmatprep.subr.bf16.mxu0 %v1483
  %1539 = vmatpush1.bf16.msra.mxu0 %v1482
  %1540 = vmatprep.subr.bf16.mxu0 %v1487
  %1541 = vmatpush1.bf16.msra.mxu0 %v1486
  %1542 = vmatprep.subr.bf16.mxu0 0
  %1543 = vmatpush1.bf16.msra.mxu0 0
  %1544 = vmatprep.subr.bf16.mxu0 0
  %1545 = vmatpush1.bf16.msra.mxu0 0
  %1546 = vmatprep.subr.bf16.mxu0 0
  %1547 = vmatpush1.bf16.msra.mxu0 0
  %1548 = vmatprep.subr.bf16.mxu0 0
  %1549 = vmatpush1.bf16.msra.mxu0 0
  %1550 = vmatprep.subr.bf16.mxu0 0
  %1551 = vmatpush1.bf16.msra.mxu0 0
  %1552 = vmatprep.subr.bf16.mxu0 0
  %1553 = vmatpush1.bf16.msra.mxu0 0
  %1554 = vmatprep.subr.bf16.mxu0 0
  %1555 = vmatpush1.bf16.msra.mxu0 0
  %1556 = vmatprep.subr.bf16.mxu0 0
  %1557 = vmatpush1.bf16.msra.mxu0 0
  %1558 = vmatprep.mubr.bf16.mxu0 0
  %1559 = vmatmul.mubr.bf16.gmra.mrb[0].mxu0 %v1522
  %v1560 = vpop.f32.mrb[0].mxu0
  %v1561 = vadd.f32 %v1497, %v1560
  %v1562 = vpop.f32.mrb[0].mxu0
  %v1563 = vadd.f32 %v1497, %v1562
  %v1564 = vpop.f32.mrb[0].mxu0
  %v1565 = vadd.f32 %v1502, %v1564
  %v1566 = vpop.f32.mrb[0].mxu0
  %v1567 = vadd.f32 %v1502, %v1566
  %1568 = vmatprep.mubr.bf16.mxu0 0
  %1569 = vmatmul.mubr.bf16.gmra.mrb[0].mxu0 %v1523
  %v1570 = vpop.f32.mrb[0].mxu0
  %v1571 = vadd.f32 %v1507, %v1570
  %v1572 = vpop.f32.mrb[0].mxu0
  %v1573 = vadd.f32 %v1507, %v1572
  %v1574 = vpop.f32.mrb[0].mxu0
  %v1575 = vadd.f32 %v1512, %v1574
  %v1576 = vpop.f32.mrb[0].mxu0
  %v1577 = vadd.f32 %v1512, %v1576
  %1578 = vdwg.mxu0
  %1579 = vmatprep.subr.bf16.mxu0 %v1461
  %1580 = vmatpush1.bf16.msra.mxu0 %v1460
  %1581 = vmatprep.subr.bf16.mxu0 %v1465
  %1582 = vmatpush1.bf16.msra.mxu0 %v1464
  %1583 = vmatprep.subr.bf16.mxu0 %v1469
  %1584 = vmatpush1.bf16.msra.mxu0 %v1468
  %1585 = vmatprep.subr.bf16.mxu0 %v1473
  %1586 = vmatpush1.bf16.msra.mxu0 %v1472
  %1587 = vmatprep.subr.bf16.mxu0 %v1477
  %1588 = vmatpush1.bf16.msra.mxu0 %v1476
  %1589 = vmatprep.subr.bf16.mxu0 %v1481
  %1590 = vmatpush1.bf16.msra.mxu0 %v1480
  %1591 = vmatprep.subr.bf16.mxu0 %v1485
  %1592 = vmatpush1.bf16.msra.mxu0 %v1484
  %1593 = vmatprep.subr.bf16.mxu0 %v1489
  %1594 = vmatpush1.bf16.msra.mxu0 %v1488
  %1595 = vmatprep.subr.bf16.mxu0 0
  %1596 = vmatpush1.bf16.msra.mxu0 0
  %1597 = vmatprep.subr.bf16.mxu0 0
  %1598 = vmatpush1.bf16.msra.mxu0 0
  %1599 = vmatprep.subr.bf16.mxu0 0
  %1600 = vmatpush1.bf16.msra.mxu0 0
  %1601 = vmatprep.subr.bf16.mxu0 0
  %1602 = vmatpush1.bf16.msra.mxu0 0
  %1603 = vmatprep.subr.bf16.mxu0 0
  %1604 = vmatpush1.bf16.msra.mxu0 0
  %1605 = vmatprep.subr.bf16.mxu0 0
  %1606 = vmatpush1.bf16.msra.mxu0 0
  %1607 = vmatprep.subr.bf16.mxu0 0
  %1608 = vmatpush1.bf16.msra.mxu0 0
  %1609 = vmatprep.subr.bf16.mxu0 0
  %1610 = vmatpush1.bf16.msra.mxu0 0
  %1611 = vmatprep.mubr.bf16.mxu0 0
  %1612 = vmatmul.mubr.bf16.gmra.mrb[0].mxu0 %v1522
  %v1613 = vpop.f32.mrb[0].mxu0
  %v1614 = vadd.f32 %v1497, %v1613
  %v1615 = vpop.f32.mrb[0].mxu0
  %v1616 = vadd.f32 %v1497, %v1615
  %v1617 = vpop.f32.mrb[0].mxu0
  %v1618 = vadd.f32 %v1502, %v1617
  %v1619 = vpop.f32.mrb[0].mxu0
  %v1620 = vadd.f32 %v1502, %v1619
  %1621 = vmatprep.mubr.bf16.mxu0 0
  %1622 = vmatmul.mubr.bf16.gmra.mrb[0].mxu0 %v1523
  %v1623 = vpop.f32.mrb[0].mxu0
  %v1624 = vadd.f32 %v1507, %v1623
  %v1625 = vpop.f32.mrb[0].mxu0
  %v1626 = vadd.f32 %v1507, %v1625
  %v1627 = vpop.f32.mrb[0].mxu0
  %v1628 = vadd.f32 %v1512, %v1627
  %v1629 = vpop.f32.mrb[0].mxu0
  %v1630 = vadd.f32 %v1512, %v1629
  %1631 = vdwg.mxu0
  %v1632 = vadd.f32 %v227, %v1561
  %v1633 = vadd.f32 %v228, %v1563
  %v1634 = vadd.f32 %v229, %v1614
  %v1635 = vadd.f32 %v230, %v1616
  %v1636 = vadd.f32 %v231, %v1565
  %v1637 = vadd.f32 %v232, %v1567
  %v1638 = vadd.f32 %v233, %v1618
  %v1639 = vadd.f32 %v234, %v1620
  %v1640 = vadd.f32 %v235, %v1571
  %v1641 = vadd.f32 %v236, %v1573
  %v1642 = vadd.f32 %v237, %v1624
  %v1643 = vadd.f32 %v238, %v1626
  %v1644 = vadd.f32 %v239, %v1575
  %v1645 = vadd.f32 %v240, %v1577
  %v1646 = vadd.f32 %v241, %v1628
  %v1647 = vadd.f32 %v242, %v1630
  %1648 = vst [vmem:[%s10] sm:$0xff] %v1632
  %1649 = vst [vmem:[%s10 + $0x8] sm:$0xff] %v1633
  %1650 = vst [vmem:[%s10 + $0x10] sm:$0xff] %v1634
  %1651 = vst [vmem:[%s10 + $0x18] sm:$0xff] %v1635
  %1652 = vst [vmem:[%s10 + $0x20] sm:$0xff] %v1636
  %1653 = vst [vmem:[%s10 + $0x28] sm:$0xff] %v1637
  %1654 = vst [vmem:[%s10 + $0x30] sm:$0xff] %v1638
  %1655 = vst [vmem:[%s10 + $0x38] sm:$0xff] %v1639
  %1656 = vst [vmem:[%s10 + $0x40] sm:$0xff] %v1640
  %1657 = vst [vmem:[%s10 + $0x48] sm:$0xff] %v1641
  %1658 = vst [vmem:[%s10 + $0x50] sm:$0xff] %v1642
  %1659 = vst [vmem:[%s10 + $0x58] sm:$0xff] %v1643
  %1660 = vst [vmem:[%s10 + $0x60] sm:$0xff] %v1644
  %1661 = vst [vmem:[%s10 + $0x68] sm:$0xff] %v1645
  %1662 = vst [vmem:[%s10 + $0x70] sm:$0xff] %v1646
  %1663 = vst [vmem:[%s10 + $0x78] sm:$0xff] %v1647
  // Predicated region
  $region42: #{inter_sa_q_forward.6} parent=0 // pred_check
    _
  $region43: #{inter_sa_q_forward.6} parent=0 // pred_check_branch
    %1665 = sbr.rel (0) target = $region45
  $region44: #{inter_sa_q_forward.6} parent=0 // pred_region
    _
  $region45: #{inter_sa_q_forward.6} parent=0 // pred_fallthru
    _
  // Predicated region
  $region46: #{inter_sa_q_forward.6} parent=0 // pred_check
    _
  $region47: #{inter_sa_q_forward.6} parent=0 // pred_check_branch
    %1667 = sbr.rel (0) target = $region49
  $region48: #{inter_sa_q_forward.6} parent=0 // pred_region
    _
  $region49: #{inter_sa_q_forward.6} parent=0 // pred_fallthru
    _

// kernel: inter_sa_q_forward.7
$region0: #{inter_sa_q_forward.7}
  #allocation0 [shape = 'u32[]', space=smem, size = 0x4, offset = 0x4, fixed_abs, tag = 'smem constant byte address 0x4 - core index']
  #allocation1 [shape = 'u32[144,128]{1,0:T(1,128)}', space=vmem, size = 0x12000, scoped, tag = 'internal scratch']
  %s0 = inlined_call_operand.vmem [shape: f32[32,512], index: 0, kind: input, shape index: {}]
  %s1 = inlined_call_operand.vmem [shape: f32[9,32,1], index: 1, kind: input, shape index: {}]
  %s2 = inlined_call_operand.vmem [shape: f32[32,1], index: 2, kind: input, shape index: {}]
  %s3 = inlined_call_operand.vmem [shape: f32[9,1,256], index: 3, kind: input, shape index: {}]
  %s4 = inlined_call_operand.vmem [shape: f32[4,32], index: 4, kind: input, shape index: {}]
  %s5 = inlined_call_operand.vmem [shape: f32[32,4], index: 5, kind: input, shape index: {}]
  %s6 = inlined_call_operand.vmem [shape: f32[32,512], index: 6, kind: output, shape index: {}]
  %s7 = sld [smem:[#allocation0]]
  $region99: #{inter_sa_q_forward.7} parent=0
    _
  %s9 = ssub.s32 1, %s7
  %s10 = scalar_select 0, %s9, %s7
  $region1: #{inter_sa_q_forward.7} parent=0
    #allocation2 [shape = 'u8[65536]{0}', space=vmem, size = 0x10000, scoped, tag = 'input window, operand 0']
    #allocation3 [shape = 'u8[65536]{0}', space=vmem, size = 0x10000, scoped, tag = 'output window, operand 0']
    loop: start=0, step=1, limit=4
    $region2: #{inter_sa_q_forward.7} parent=1 // loop_pre_header
      _
    $region3: #{inter_sa_q_forward.7} parent=1 // loop_header
      %s12 = sphi 0, %s16
      %p13 = scmp.ge.s32.totalorder %s12, 4
      %s22 = sphi 0, %s24
      %s25 = sphi 0, %s22
      %s26 = sphi 0, %s25
      %s42 = sphi 0, %s26
      %s46 = sphi 0, %s46
      %s48 = sphi 0, %s46
      %s49 = sphi 0, %s48
      %s63 = sphi 0, %s49
      %s67 = sphi 0, %s67
      %s69 = sphi 0, %s67
      %s70 = sphi 0, %s69
      %s84 = sphi 0, %s70
      %s88 = sphi 0, %s88
      %s90 = sphi 0, %s88
      %s91 = sphi 0, %s90
      %s105 = sphi 0, %s91
      %s109 = sphi 0, %s109
      %s111 = sphi 0, %s109
      %s112 = sphi 0, %s111
      %s126 = sphi 0, %s112
      %s130 = sphi 0, %s130
      %s132 = sphi 0, %s130
      %s133 = sphi 0, %s132
      %s147 = sphi 0, %s133
      %s153 = sphi 0, %s155
      %s156 = sphi 0, %s153
      %s157 = sphi 0, %s156
      %s173 = sphi 0, %s157
    $region4: #{inter_sa_q_forward.7} parent=1 // loop_header_branch
      %15 = sbr.rel (%p13) target = $region8
    $region5: #{inter_sa_q_forward.7} parent=1 // loop_body
      %s17 = ssub.s32 %s12, 1
      %s18 = ssub.s32 %s12, 2
      %s19 = sadd.s32 %s12, 1
      %s20 = ssub.s32 %s12, %s19
      %p21 = scmp.eq.s32.totalorder %s20, 0
      %s23 = sadd.s32 %s22, 1
      %s24 = scalar_select %p21, %s22, %s23
      %p27 = pneg %p21
      %p28 = scmp.eq.s32.totalorder %s12, 1
      %p29 = por %p27, %p28
      %p30 = scmp.ne.s32.totalorder %s22, %s25
      %p31 = scmp.eq.s32.totalorder %s12, 0
      %p32 = por %p30, %p31
      %p33 = scmp.ne.s32.totalorder %s22, %s25
      %p34 = scmp.eq.s32.totalorder %s17, 1
      %p35 = por %p33, %p34
      %p36 = scmp.ne.s32.totalorder %s25, %s26
      %p37 = scmp.eq.s32.totalorder %s17, 0
      %p38 = por %p36, %p37
      %p39 = scmp.ne.s32.totalorder %s25, %s26
      %p40 = scmp.eq.s32.totalorder %s18, 1
      %p41 = por %p39, %p40
      %p43 = scmp.ne.s32.totalorder %s26, %s42
      %p44 = scmp.eq.s32.totalorder %s18, 0
      %p45 = por %p43, %p44
      %s47 = sadd.s32 %s46, 1
      %p50 = scmp.eq.s32.totalorder %s12, 1
      %p51 = scmp.ne.s32.totalorder %s46, %s48
      %p52 = scmp.eq.s32.totalorder %s12, 0
      %p53 = por %p51, %p52
      %p54 = scmp.ne.s32.totalorder %s46, %s48
      %p55 = scmp.eq.s32.totalorder %s17, 1
      %p56 = por %p54, %p55
      %p57 = scmp.ne.s32.totalorder %s48, %s49
      %p58 = scmp.eq.s32.totalorder %s17, 0
      %p59 = por %p57, %p58
      %p60 = scmp.ne.s32.totalorder %s48, %s49
      %p61 = scmp.eq.s32.totalorder %s18, 1
      %p62 = por %p60, %p61
      %p64 = scmp.ne.s32.totalorder %s49, %s63
      %p65 = scmp.eq.s32.totalorder %s18, 0
      %p66 = por %p64, %p65
      %s68 = sadd.s32 %s67, 1
      %p71 = scmp.eq.s32.totalorder %s12, 1
      %p72 = scmp.ne.s32.totalorder %s67, %s69
      %p73 = scmp.eq.s32.totalorder %s12, 0
      %p74 = por %p72, %p73
      %p75 = scmp.ne.s32.totalorder %s67, %s69
      %p76 = scmp.eq.s32.totalorder %s17, 1
      %p77 = por %p75, %p76
      %p78 = scmp.ne.s32.totalorder %s69, %s70
      %p79 = scmp.eq.s32.totalorder %s17, 0
      %p80 = por %p78, %p79
      %p81 = scmp.ne.s32.totalorder %s69, %s70
      %p82 = scmp.eq.s32.totalorder %s18, 1
      %p83 = por %p81, %p82
      %p85 = scmp.ne.s32.totalorder %s70, %s84
      %p86 = scmp.eq.s32.totalorder %s18, 0
      %p87 = por %p85, %p86
      %s89 = sadd.s32 %s88, 1
      %p92 = scmp.eq.s32.totalorder %s12, 1
      %p93 = scmp.ne.s32.totalorder %s88, %s90
      %p94 = scmp.eq.s32.totalorder %s12, 0
      %p95 = por %p93, %p94
      %p96 = scmp.ne.s32.totalorder %s88, %s90
      %p97 = scmp.eq.s32.totalorder %s17, 1
      %p98 = por %p96, %p97
      %p99 = scmp.ne.s32.totalorder %s90, %s91
      %p100 = scmp.eq.s32.totalorder %s17, 0
      %p101 = por %p99, %p100
      %p102 = scmp.ne.s32.totalorder %s90, %s91
      %p103 = scmp.eq.s32.totalorder %s18, 1
      %p104 = por %p102, %p103
      %p106 = scmp.ne.s32.totalorder %s91, %s105
      %p107 = scmp.eq.s32.totalorder %s18, 0
      %p108 = por %p106, %p107
      %s110 = sadd.s32 %s109, 1
      %p113 = scmp.eq.s32.totalorder %s12, 1
      %p114 = scmp.ne.s32.totalorder %s109, %s111
      %p115 = scmp.eq.s32.totalorder %s12, 0
      %p116 = por %p114, %p115
      %p117 = scmp.ne.s32.totalorder %s109, %s111
      %p118 = scmp.eq.s32.totalorder %s17, 1
      %p119 = por %p117, %p118
      %p120 = scmp.ne.s32.totalorder %s111, %s112
      %p121 = scmp.eq.s32.totalorder %s17, 0
      %p122 = por %p120, %p121
      %p123 = scmp.ne.s32.totalorder %s111, %s112
      %p124 = scmp.eq.s32.totalorder %s18, 1
      %p125 = por %p123, %p124
      %p127 = scmp.ne.s32.totalorder %s112, %s126
      %p128 = scmp.eq.s32.totalorder %s18, 0
      %p129 = por %p127, %p128
      %s131 = sadd.s32 %s130, 1
      %p134 = scmp.eq.s32.totalorder %s12, 1
      %p135 = scmp.ne.s32.totalorder %s130, %s132
      %p136 = scmp.eq.s32.totalorder %s12, 0
      %p137 = por %p135, %p136
      %p138 = scmp.ne.s32.totalorder %s130, %s132
      %p139 = scmp.eq.s32.totalorder %s17, 1
      %p140 = por %p138, %p139
      %p141 = scmp.ne.s32.totalorder %s132, %s133
      %p142 = scmp.eq.s32.totalorder %s17, 0
      %p143 = por %p141, %p142
      %p144 = scmp.ne.s32.totalorder %s132, %s133
      %p145 = scmp.eq.s32.totalorder %s18, 1
      %p146 = por %p144, %p145
      %p148 = scmp.ne.s32.totalorder %s133, %s147
      %p149 = scmp.eq.s32.totalorder %s18, 0
      %p150 = por %p148, %p149
      %s151 = ssub.s32 %s12, %s19
      %p152 = scmp.eq.s32.totalorder %s151, 0
      %s154 = sadd.s32 %s153, 1
      %s155 = scalar_select %p152, %s153, %s154
      %p158 = pneg %p152
      %p159 = scmp.eq.s32.totalorder %s12, 1
      %p160 = por %p158, %p159
      %p161 = scmp.ne.s32.totalorder %s153, %s156
      %p162 = scmp.eq.s32.totalorder %s12, 0
      %p163 = por %p161, %p162
      %p164 = scmp.ne.s32.totalorder %s153, %s156
      %p165 = scmp.eq.s32.totalorder %s17, 1
      %p166 = por %p164, %p165
      %p167 = scmp.ne.s32.totalorder %s156, %s157
      %p168 = scmp.eq.s32.totalorder %s17, 0
      %p169 = por %p167, %p168
      %p170 = scmp.ne.s32.totalorder %s156, %s157
      %p171 = scmp.eq.s32.totalorder %s18, 1
      %p172 = por %p170, %p171
      %p174 = scmp.ne.s32.totalorder %s157, %s173
      %p175 = scmp.eq.s32.totalorder %s18, 0
      %p176 = por %p174, %p175
      %p177 = scmp.le.s32.totalorder 1, %s12
      %p178 = scmp.lt.s32.totalorder %s12, 3
      %p179 = pnand %p177, %p178
      %p180 = pneg %p179
      // Predicated region
      $region9: #{inter_sa_q_forward.7} parent=5 // pred_check
        _
      $region10: #{inter_sa_q_forward.7} parent=5 // pred_check_branch
        %182 = sbr.rel (%p179) target = $region12
      $region11: #{inter_sa_q_forward.7} parent=5 // pred_region
        %s183 = ssub.s32 %s12, 1
        // Predicated region
        $region13: #{inter_sa_q_forward.7} parent=11 // pred_check
          %p184 = pneg %p59
        $region14: #{inter_sa_q_forward.7} parent=11 // pred_check_branch
          %186 = sbr.rel (%p184) target = $region16
        $region15: #{inter_sa_q_forward.7} parent=11 // pred_region
          _
        $region16: #{inter_sa_q_forward.7} parent=11 // pred_fallthru
          _
        // Predicated region
        $region17: #{inter_sa_q_forward.7} parent=11 // pred_check
          %p187 = pneg %p80
        $region18: #{inter_sa_q_forward.7} parent=11 // pred_check_branch
          %189 = sbr.rel (%p187) target = $region20
        $region19: #{inter_sa_q_forward.7} parent=11 // pred_region
          _
        $region20: #{inter_sa_q_forward.7} parent=11 // pred_fallthru
          _
        // Predicated region
        $region21: #{inter_sa_q_forward.7} parent=11 // pred_check
          %p190 = pneg %p101
        $region22: #{inter_sa_q_forward.7} parent=11 // pred_check_branch
          %192 = sbr.rel (%p190) target = $region24
        $region23: #{inter_sa_q_forward.7} parent=11 // pred_region
          _
        $region24: #{inter_sa_q_forward.7} parent=11 // pred_fallthru
          _
        // Predicated region
        $region25: #{inter_sa_q_forward.7} parent=11 // pred_check
          %p193 = pneg %p122
        $region26: #{inter_sa_q_forward.7} parent=11 // pred_check_branch
          %195 = sbr.rel (%p193) target = $region28
        $region27: #{inter_sa_q_forward.7} parent=11 // pred_region
          _
        $region28: #{inter_sa_q_forward.7} parent=11 // pred_fallthru
          _
        // Predicated region
        $region29: #{inter_sa_q_forward.7} parent=11 // pred_check
          %p196 = pneg %p143
        $region30: #{inter_sa_q_forward.7} parent=11 // pred_check_branch
          %198 = sbr.rel (%p196) target = $region32
        $region31: #{inter_sa_q_forward.7} parent=11 // pred_region
          _
        $region32: #{inter_sa_q_forward.7} parent=11 // pred_fallthru
          _
      $region12: #{inter_sa_q_forward.7} parent=5 // pred_fallthru
        _
      %p199 = scmp.lt.s32.totalorder %s12, 2
      // Predicated region
      $region33: #{inter_sa_q_forward.7} parent=5 // pred_check
        %p200 = pneg %p199
      $region34: #{inter_sa_q_forward.7} parent=5 // pred_check_branch
        %202 = sbr.rel (%p200) target = $region36
      $region35: #{inter_sa_q_forward.7} parent=5 // pred_region
        // Predicated region
        $region37: #{inter_sa_q_forward.7} parent=35 // pred_check
          %p203 = pneg %p32
        $region38: #{inter_sa_q_forward.7} parent=35 // pred_check_branch
          %205 = sbr.rel (%p203) target = $region40
        $region39: #{inter_sa_q_forward.7} parent=35 // pred_region
          %s206 = sand.u32 %s22, 1
          %s207 = sand.u32 %s22, 1
          %s208 = smul.addr %s207, 64
          %s209 = scalar_lea.vmem [#allocation2], %s208
          %s210 = smul.u32 2, %s12
          %s211 = smul.addr %s210, 8
          %s212 = scalar_lea.vmem %s0, %s211
          // Predicated region
          $region41: #{inter_sa_q_forward.7} parent=39 // pred_check
            _
          $region42: #{inter_sa_q_forward.7} parent=39 // pred_check_branch
            %214 = sbr.rel (0) target = $region44
          $region43: #{inter_sa_q_forward.7} parent=39 // pred_region
            // Predicated region
            $region45: #{inter_sa_q_forward.7} parent=43 // pred_check
              _
            $region46: #{inter_sa_q_forward.7} parent=43 // pred_check_branch
              %216 = sbr.rel (0) target = $region48
            $region47: #{inter_sa_q_forward.7} parent=43 // pred_region
              loop: start=0, step=1, limit=1
              $region49: #{inter_sa_q_forward.7} parent=47 // loop_pre_header
                _
              $region50: #{inter_sa_q_forward.7} parent=47 // loop_header
                %s218 = sphi 0, %s222
                %p219 = scmp.ge.s32.totalorder %s218, 1
                %s223 = sphi %s212, %s212
                %s224 = sphi %s209, %s209
              $region51: #{inter_sa_q_forward.7} parent=47 // loop_header_branch
                %221 = sbr.rel (%p219) target = $region55
              $region52: #{inter_sa_q_forward.7} parent=47 // loop_body
                %v225 = vld [vmem:[%s223] sm:$0xff]
                %226 = vst [vmem:[%s224] sm:$0xff] %v225
                %v227 = vld [vmem:[%s223 + $0x8] sm:$0xff]
                %228 = vst [vmem:[%s224 + $0x8] sm:$0xff] %v227
                %v229 = vld [vmem:[%s223 + $0x20] sm:$0xff]
                %230 = vst [vmem:[%s224 + $0x10] sm:$0xff] %v229
                %v231 = vld [vmem:[%s223 + $0x28] sm:$0xff]
                %232 = vst [vmem:[%s224 + $0x18] sm:$0xff] %v231
                %v233 = vld [vmem:[%s223 + $0x40] sm:$0xff]
                %234 = vst [vmem:[%s224 + $0x20] sm:$0xff] %v233
                %v235 = vld [vmem:[%s223 + $0x48] sm:$0xff]
                %236 = vst [vmem:[%s224 + $0x28] sm:$0xff] %v235
                %v237 = vld [vmem:[%s223 + $0x60] sm:$0xff]
                %238 = vst [vmem:[%s224 + $0x30] sm:$0xff] %v237
                %v239 = vld [vmem:[%s223 + $0x68] sm:$0xff]
                %240 = vst [vmem:[%s224 + $0x38] sm:$0xff] %v239
              $region53: #{inter_sa_q_forward.7} parent=47 // loop_footer
                %s222 = sadd.s32 1, %s218
              $region54: #{inter_sa_q_forward.7} parent=47 // loop_footer_branch
                %217 = sbr.rel target = $region50
              $region55: #{inter_sa_q_forward.7} parent=47 // loop_exit
                _
            $region48: #{inter_sa_q_forward.7} parent=43 // pred_fallthru
              _
            // Predicated region
            $region56: #{inter_sa_q_forward.7} parent=43 // pred_check
              _
            $region57: #{inter_sa_q_forward.7} parent=43 // pred_check_branch
              %242 = sbr.rel target = $region59
            $region58: #{inter_sa_q_forward.7} parent=43 // pred_region
              _
            $region59: #{inter_sa_q_forward.7} parent=43 // pred_fallthru
              _
          $region44: #{inter_sa_q_forward.7} parent=39 // pred_fallthru
            _
          %243 = vnop
        $region40: #{inter_sa_q_forward.7} parent=35 // pred_fallthru
          _
      $region36: #{inter_sa_q_forward.7} parent=5 // pred_fallthru
        _
      %p244 = scmp.le.s32.totalorder 1, %s12
      %p245 = scmp.lt.s32.totalorder %s12, 3
      %p246 = pnand %p244, %p245
      %p247 = pneg %p246
      // Predicated region
      $region60: #{inter_sa_q_forward.7} parent=5 // pred_check
        _
      $region61: #{inter_sa_q_forward.7} parent=5 // pred_check_branch
        %249 = sbr.rel (%p246) target = $region63
      $region62: #{inter_sa_q_forward.7} parent=5 // pred_region
        %s250 = ssub.s32 %s12, 1
        %s251 = sand.u32 %s25, 1
        %s252 = sand.u32 %s25, 1
        %s253 = smul.addr %s252, 64
        %s254 = scalar_lea.vmem [#allocation2], %s253
        // Predicated region
        $region64: #{inter_sa_q_forward.7} parent=62 // pred_check
          %p255 = pneg %p38
        $region65: #{inter_sa_q_forward.7} parent=62 // pred_check_branch
          %257 = sbr.rel (%p255) target = $region67
        $region66: #{inter_sa_q_forward.7} parent=62 // pred_region
          _
        $region67: #{inter_sa_q_forward.7} parent=62 // pred_fallthru
          _
        %s258 = sand.u32 %s25, 1
        %s259 = sand.u32 %s25, 1
        %s260 = smul.addr %s259, 64
        %s261 = scalar_lea.vmem [#allocation2], %s260
        %p262 = pneg %p38
        %p263 = pneg %p35
        %p264 = pneg %p59
        %p265 = pneg %p56
        %p266 = pneg %p80
        %p267 = pneg %p77
        %p268 = pneg %p101
        %p269 = pneg %p98
        %p270 = pneg %p122
        %p271 = pneg %p119
        %p272 = pneg %p143
        %p273 = pneg %p140
        %p274 = pneg %p169
        %p275 = pneg %p166
        %s276 = sand.u32 %s156, 1
        %s277 = sand.u32 %s156, 1
        %s278 = smul.addr %s277, 64
        %s279 = scalar_lea.vmem [#allocation3], %s278
        %s280 = smul.u32 2, %s17
        %s281 = smul.u32 2, %s17
        %v282 = vld [vmem:[%s254] sm:$0xff]
        %v283 = vld [vmem:[%s254 + $0x8] sm:$0xff]
        %v284 = vld [vmem:[%s254 + $0x10] sm:$0xff]
        %v285 = vld [vmem:[%s254 + $0x18] sm:$0xff]
        %v286 = vld [vmem:[%s254 + $0x20] sm:$0xff]
        %v287 = vld [vmem:[%s254 + $0x28] sm:$0xff]
        %v288 = vld [vmem:[%s254 + $0x30] sm:$0xff]
        %v289 = vld [vmem:[%s254 + $0x38] sm:$0xff]
        %298 = vrot.lane.b32.xlu0 %v282, 17
        %v299 = vpop.permute.xlu0 %298
        %300 = vrot.lane.b32.xlu0 %v283, 17
        %v301 = vpop.permute.xlu0 %300
        %302 = vrot.lane.b32.xlu0 %v284, 17
        %v303 = vpop.permute.xlu0 %302
        %304 = vrot.lane.b32.xlu0 %v285, 17
        %v305 = vpop.permute.xlu0 %304
        %306 = vrot.lane.b32.xlu0 %v286, 17
        %v307 = vpop.permute.xlu0 %306
        %308 = vrot.lane.b32.xlu0 %v287, 17
        %v309 = vpop.permute.xlu0 %308
        %310 = vrot.lane.b32.xlu0 %v288, 17
        %v311 = vpop.permute.xlu0 %310
        %312 = vrot.lane.b32.xlu0 %v289, 17
        %v313 = vpop.permute.xlu0 %312
        %vm314 = vcmask 138240
        %v315 = vsel %vm314, %v299, %v301
        %v316 = vsel %vm314, %v303, %v305
        %v317 = vsel %vm314, %v307, %v309
        %v318 = vsel %vm314, %v311, %v313
        %v331 = vsel %vm314, 0.0, %v299
        %v332 = vsel %vm314, 0.0, %v303
        %v333 = vsel %vm314, 0.0, %v307
        %v334 = vsel %vm314, 0.0, %v311
        %v335 = vsel %vm314, %v301, 0.0
        %v336 = vsel %vm314, %v305, 0.0
        %v337 = vsel %vm314, %v309, 0.0
        %v338 = vsel %vm314, %v313, 0.0
        %v339 = vld [vmem:[%s3] sm:$0x3]
        %v341 = vlaneseq
        %v342 = vshrl.u32 %v341, 7
        %v343 = vsub.s32 0, %v342
        %v344 = vrot.slane %v339, %v343
        %v345 = vlaneseq
        %v346 = vshrl.u32 %v345, 7
        %v347 = vsub.s32 1, %v346
        %v348 = vrot.slane %v339, %v347
        %v351 = vmul.f32 %v331, %v344
        %v352 = vmul.f32 %v315, %v348
        %v353 = vmul.f32 %v332, %v344
        %v354 = vmul.f32 %v316, %v348
        %v355 = vmul.f32 %v333, %v344
        %v356 = vmul.f32 %v317, %v348
        %v357 = vmul.f32 %v334, %v344
        %v358 = vmul.f32 %v318, %v348
        %v359 = vld [vmem:[%s1] sm:$0xff]
        %v360 = vld [vmem:[%s1 + $0x8] sm:$0xff]
        %v361 = vld [vmem:[%s1 + $0x10] sm:$0xff]
        %v362 = vld [vmem:[%s1 + $0x18] sm:$0xff]
        %364 = vset.pattern.permute.xlu0 0
        %365 = vperm.xlu0 %364, %v359
        %v366 = vpop.permute.xlu0 %365
        %369 = vset.pattern.permute.xlu0 0
        %370 = vperm.xlu0 %369, %v360
        %v371 = vpop.permute.xlu0 %370
        %374 = vset.pattern.permute.xlu0 0
        %375 = vperm.xlu0 %374, %v361
        %v376 = vpop.permute.xlu0 %375
        %379 = vset.pattern.permute.xlu0 0
        %380 = vperm.xlu0 %379, %v362
        %v381 = vpop.permute.xlu0 %380
        %v383 = vmul.f32 %v351, %v366
        %v384 = vmul.f32 %v352, %v366
        %v385 = vmul.f32 %v353, %v371
        %v386 = vmul.f32 %v354, %v371
        %v387 = vmul.f32 %v355, %v376
        %v388 = vmul.f32 %v356, %v376
        %v389 = vmul.f32 %v357, %v381
        %v390 = vmul.f32 %v358, %v381
        %v391 = vadd.f32 %v383, 0.0
        %v392 = vadd.f32 %v384, 0.0
        %v393 = vadd.f32 %v385, 0.0
        %v394 = vadd.f32 %v386, 0.0
        %v395 = vadd.f32 %v387, 0.0
        %v396 = vadd.f32 %v388, 0.0
        %v397 = vadd.f32 %v389, 0.0
        %v398 = vadd.f32 %v390, 0.0
        %s399 = scalar_lea.vmem %s3, 2
        %v400 = vld [vmem:[%s399] sm:$0x3]
        %v402 = vlaneseq
        %v403 = vshrl.u32 %v402, 7
        %v404 = vsub.s32 0, %v403
        %v405 = vrot.slane %v400, %v404
        %v406 = vlaneseq
        %v407 = vshrl.u32 %v406, 7
        %v408 = vsub.s32 1, %v407
        %v409 = vrot.slane %v400, %v408
        %410 = vrot.lane.b32.xlu0 %v405, 1
        %v411 = vpop.permute.xlu0 %410
        %412 = vrot.lane.b32.xlu0 %v409, 1
        %v413 = vpop.permute.xlu0 %412
        %vm414 = vcmask 7168
        %v415 = vsel %vm414, %v411, %v413
        %v419 = vmul.f32 %v331, %v411
        %v420 = vmul.f32 %v315, %v415
        %v421 = vmul.f32 %v335, %v413
        %v422 = vmul.f32 %v332, %v411
        %v423 = vmul.f32 %v316, %v415
        %v424 = vmul.f32 %v336, %v413
        %v425 = vmul.f32 %v333, %v411
        %v426 = vmul.f32 %v317, %v415
        %v427 = vmul.f32 %v337, %v413
        %v428 = vmul.f32 %v334, %v411
        %v429 = vmul.f32 %v318, %v415
        %v430 = vmul.f32 %v338, %v413
        %s431 = scalar_lea.vmem %s1, 32
        %v432 = vld [vmem:[%s431] sm:$0xff]
        %v433 = vld [vmem:[%s431 + $0x8] sm:$0xff]
        %v434 = vld [vmem:[%s431 + $0x10] sm:$0xff]
        %v435 = vld [vmem:[%s431 + $0x18] sm:$0xff]
        %437 = vset.pattern.permute.xlu0 0
        %438 = vperm.xlu0 %437, %v432
        %v439 = vpop.permute.xlu0 %438
        %442 = vset.pattern.permute.xlu0 0
        %443 = vperm.xlu0 %442, %v433
        %v444 = vpop.permute.xlu0 %443
        %447 = vset.pattern.permute.xlu0 0
        %448 = vperm.xlu0 %447, %v434
        %v449 = vpop.permute.xlu0 %448
        %452 = vset.pattern.permute.xlu0 0
        %453 = vperm.xlu0 %452, %v435
        %v454 = vpop.permute.xlu0 %453
        %v456 = vmul.f32 %v419, %v439
        %v457 = vmul.f32 %v420, %v439
        %v458 = vmul.f32 %v421, %v439
        %v459 = vmul.f32 %v422, %v444
        %v460 = vmul.f32 %v423, %v444
        %v461 = vmul.f32 %v424, %v444
        %v462 = vmul.f32 %v425, %v449
        %v463 = vmul.f32 %v426, %v449
        %v464 = vmul.f32 %v427, %v449
        %v465 = vmul.f32 %v428, %v454
        %v466 = vmul.f32 %v429, %v454
        %v467 = vmul.f32 %v430, %v454
        %480 = vrot.lane.b32.xlu0 %v456, 127
        %v481 = vpop.permute.xlu0 %480
        %482 = vrot.lane.b32.xlu0 %v457, 127
        %v483 = vpop.permute.xlu0 %482
        %484 = vrot.lane.b32.xlu0 %v458, 127
        %v485 = vpop.permute.xlu0 %484
        %486 = vrot.lane.b32.xlu0 %v459, 127
        %v487 = vpop.permute.xlu0 %486
        %488 = vrot.lane.b32.xlu0 %v460, 127
        %v489 = vpop.permute.xlu0 %488
        %490 = vrot.lane.b32.xlu0 %v461, 127
        %v491 = vpop.permute.xlu0 %490
        %492 = vrot.lane.b32.xlu0 %v462, 127
        %v493 = vpop.permute.xlu0 %492
        %494 = vrot.lane.b32.xlu0 %v463, 127
        %v495 = vpop.permute.xlu0 %494
        %496 = vrot.lane.b32.xlu0 %v464, 127
        %v497 = vpop.permute.xlu0 %496
        %498 = vrot.lane.b32.xlu0 %v465, 127
        %v499 = vpop.permute.xlu0 %498
        %500 = vrot.lane.b32.xlu0 %v466, 127
        %v501 = vpop.permute.xlu0 %500
        %502 = vrot.lane.b32.xlu0 %v467, 127
        %v503 = vpop.permute.xlu0 %502
        %vm504 = vcmask 1039360
        %v505 = vsel %vm504, %v481, %v483
        %v506 = vsel %vm504, %v483, %v485
        %v507 = vsel %vm504, %v487, %v489
        %v508 = vsel %vm504, %v489, %v491
        %v509 = vsel %vm504, %v493, %v495
        %v510 = vsel %vm504, %v495, %v497
        %v511 = vsel %vm504, %v499, %v501
        %v512 = vsel %vm504, %v501, %v503
        %v521 = vadd.f32 %v391, %v505
        %v522 = vadd.f32 %v392, %v506
        %v523 = vadd.f32 %v393, %v507
        %v524 = vadd.f32 %v394, %v508
        %v525 = vadd.f32 %v395, %v509
        %v526 = vadd.f32 %v396, %v510
        %v527 = vadd.f32 %v397, %v511
        %v528 = vadd.f32 %v398, %v512
        %s529 = scalar_lea.vmem %s3, 4
        %v530 = vld [vmem:[%s529] sm:$0x3]
        %v532 = vlaneseq
        %v533 = vshrl.u32 %v532, 7
        %v534 = vsub.s32 0, %v533
        %v535 = vrot.slane %v530, %v534
        %v536 = vlaneseq
        %v537 = vshrl.u32 %v536, 7
        %v538 = vsub.s32 1, %v537
        %v539 = vrot.slane %v530, %v538
        %540 = vrot.lane.b32.xlu0 %v535, 2
        %v541 = vpop.permute.xlu0 %540
        %542 = vrot.lane.b32.xlu0 %v539, 2
        %v543 = vpop.permute.xlu0 %542
        %vm544 = vcmask 15360
        %v545 = vsel %vm544, %v541, %v543
        %v549 = vmul.f32 %v331, %v541
        %v550 = vmul.f32 %v315, %v545
        %v551 = vmul.f32 %v335, %v543
        %v552 = vmul.f32 %v332, %v541
        %v553 = vmul.f32 %v316, %v545
        %v554 = vmul.f32 %v336, %v543
        %v555 = vmul.f32 %v333, %v541
        %v556 = vmul.f32 %v317, %v545
        %v557 = vmul.f32 %v337, %v543
        %v558 = vmul.f32 %v334, %v541
        %v559 = vmul.f32 %v318, %v545
        %v560 = vmul.f32 %v338, %v543
        %s561 = scalar_lea.vmem %s1, 64
        %v562 = vld [vmem:[%s561] sm:$0xff]
        %v563 = vld [vmem:[%s561 + $0x8] sm:$0xff]
        %v564 = vld [vmem:[%s561 + $0x10] sm:$0xff]
        %v565 = vld [vmem:[%s561 + $0x18] sm:$0xff]
        %567 = vset.pattern.permute.xlu0 0
        %568 = vperm.xlu0 %567, %v562
        %v569 = vpop.permute.xlu0 %568
        %572 = vset.pattern.permute.xlu0 0
        %573 = vperm.xlu0 %572, %v563
        %v574 = vpop.permute.xlu0 %573
        %577 = vset.pattern.permute.xlu0 0
        %578 = vperm.xlu0 %577, %v564
        %v579 = vpop.permute.xlu0 %578
        %582 = vset.pattern.permute.xlu0 0
        %583 = vperm.xlu0 %582, %v565
        %v584 = vpop.permute.xlu0 %583
        %v586 = vmul.f32 %v549, %v569
        %v587 = vmul.f32 %v550, %v569
        %v588 = vmul.f32 %v551, %v569
        %v589 = vmul.f32 %v552, %v574
        %v590 = vmul.f32 %v553, %v574
        %v591 = vmul.f32 %v554, %v574
        %v592 = vmul.f32 %v555, %v579
        %v593 = vmul.f32 %v556, %v579
        %v594 = vmul.f32 %v557, %v579
        %v595 = vmul.f32 %v558, %v584
        %v596 = vmul.f32 %v559, %v584
        %v597 = vmul.f32 %v560, %v584
        %610 = vrot.lane.b32.xlu0 %v586, 126
        %v611 = vpop.permute.xlu0 %610
        %612 = vrot.lane.b32.xlu0 %v587, 126
        %v613 = vpop.permute.xlu0 %612
        %614 = vrot.lane.b32.xlu0 %v588, 126
        %v615 = vpop.permute.xlu0 %614
        %616 = vrot.lane.b32.xlu0 %v589, 126
        %v617 = vpop.permute.xlu0 %616
        %618 = vrot.lane.b32.xlu0 %v590, 126
        %v619 = vpop.permute.xlu0 %618
        %620 = vrot.lane.b32.xlu0 %v591, 126
        %v621 = vpop.permute.xlu0 %620
        %622 = vrot.lane.b32.xlu0 %v592, 126
        %v623 = vpop.permute.xlu0 %622
        %624 = vrot.lane.b32.xlu0 %v593, 126
        %v625 = vpop.permute.xlu0 %624
        %626 = vrot.lane.b32.xlu0 %v594, 126
        %v627 = vpop.permute.xlu0 %626
        %628 = vrot.lane.b32.xlu0 %v595, 126
        %v629 = vpop.permute.xlu0 %628
        %630 = vrot.lane.b32.xlu0 %v596, 126
        %v631 = vpop.permute.xlu0 %630
        %632 = vrot.lane.b32.xlu0 %v597, 126
        %v633 = vpop.permute.xlu0 %632
        %vm634 = vcmask 1031168
        %v635 = vsel %vm634, %v611, %v613
        %v636 = vsel %vm634, %v613, %v615
        %v637 = vsel %vm634, %v617, %v619
        %v638 = vsel %vm634, %v619, %v621
        %v639 = vsel %vm634, %v623, %v625
        %v640 = vsel %vm634, %v625, %v627
        %v641 = vsel %vm634, %v629, %v631
        %v642 = vsel %vm634, %v631, %v633
        %v651 = vadd.f32 %v521, %v635
        %v652 = vadd.f32 %v522, %v636
        %v653 = vadd.f32 %v523, %v637
        %v654 = vadd.f32 %v524, %v638
        %v655 = vadd.f32 %v525, %v639
        %v656 = vadd.f32 %v526, %v640
        %v657 = vadd.f32 %v527, %v641
        %v658 = vadd.f32 %v528, %v642
        %s659 = scalar_lea.vmem %s3, 6
        %v660 = vld [vmem:[%s659] sm:$0x3]
        %v662 = vlaneseq
        %v663 = vshrl.u32 %v662, 7
        %v664 = vsub.s32 0, %v663
        %v665 = vrot.slane %v660, %v664
        %v666 = vlaneseq
        %v667 = vshrl.u32 %v666, 7
        %v668 = vsub.s32 1, %v667
        %v669 = vrot.slane %v660, %v668
        %670 = vrot.lane.b32.xlu0 %v665, 16
        %v671 = vpop.permute.xlu0 %670
        %672 = vrot.lane.b32.xlu0 %v669, 16
        %v673 = vpop.permute.xlu0 %672
        %vm674 = vcmask 130048
        %v675 = vsel %vm674, %v671, %v673
        %v679 = vmul.f32 %v331, %v671
        %v680 = vmul.f32 %v315, %v675
        %v681 = vmul.f32 %v335, %v673
        %v682 = vmul.f32 %v332, %v671
        %v683 = vmul.f32 %v316, %v675
        %v684 = vmul.f32 %v336, %v673
        %v685 = vmul.f32 %v333, %v671
        %v686 = vmul.f32 %v317, %v675
        %v687 = vmul.f32 %v337, %v673
        %v688 = vmul.f32 %v334, %v671
        %v689 = vmul.f32 %v318, %v675
        %v690 = vmul.f32 %v338, %v673
        %s691 = scalar_lea.vmem %s1, 96
        %v692 = vld [vmem:[%s691] sm:$0xff]
        %v693 = vld [vmem:[%s691 + $0x8] sm:$0xff]
        %v694 = vld [vmem:[%s691 + $0x10] sm:$0xff]
        %v695 = vld [vmem:[%s691 + $0x18] sm:$0xff]
        %697 = vset.pattern.permute.xlu0 0
        %698 = vperm.xlu0 %697, %v692
        %v699 = vpop.permute.xlu0 %698
        %702 = vset.pattern.permute.xlu0 0
        %703 = vperm.xlu0 %702, %v693
        %v704 = vpop.permute.xlu0 %703
        %707 = vset.pattern.permute.xlu0 0
        %708 = vperm.xlu0 %707, %v694
        %v709 = vpop.permute.xlu0 %708
        %712 = vset.pattern.permute.xlu0 0
        %713 = vperm.xlu0 %712, %v695
        %v714 = vpop.permute.xlu0 %713
        %v716 = vmul.f32 %v679, %v699
        %v717 = vmul.f32 %v680, %v699
        %v718 = vmul.f32 %v681, %v699
        %v719 = vmul.f32 %v682, %v704
        %v720 = vmul.f32 %v683, %v704
        %v721 = vmul.f32 %v684, %v704
        %v722 = vmul.f32 %v685, %v709
        %v723 = vmul.f32 %v686, %v709
        %v724 = vmul.f32 %v687, %v709
        %v725 = vmul.f32 %v688, %v714
        %v726 = vmul.f32 %v689, %v714
        %v727 = vmul.f32 %v690, %v714
        %740 = vrot.lane.b32.xlu0 %v716, 112
        %v741 = vpop.permute.xlu0 %740
        %742 = vrot.lane.b32.xlu0 %v717, 112
        %v743 = vpop.permute.xlu0 %742
        %744 = vrot.lane.b32.xlu0 %v718, 112
        %v745 = vpop.permute.xlu0 %744
        %746 = vrot.lane.b32.xlu0 %v719, 112
        %v747 = vpop.permute.xlu0 %746
        %748 = vrot.lane.b32.xlu0 %v720, 112
        %v749 = vpop.permute.xlu0 %748
        %750 = vrot.lane.b32.xlu0 %v721, 112
        %v751 = vpop.permute.xlu0 %750
        %752 = vrot.lane.b32.xlu0 %v722, 112
        %v753 = vpop.permute.xlu0 %752
        %754 = vrot.lane.b32.xlu0 %v723, 112
        %v755 = vpop.permute.xlu0 %754
        %756 = vrot.lane.b32.xlu0 %v724, 112
        %v757 = vpop.permute.xlu0 %756
        %758 = vrot.lane.b32.xlu0 %v725, 112
        %v759 = vpop.permute.xlu0 %758
        %760 = vrot.lane.b32.xlu0 %v726, 112
        %v761 = vpop.permute.xlu0 %760
        %762 = vrot.lane.b32.xlu0 %v727, 112
        %v763 = vpop.permute.xlu0 %762
        %vm764 = vcmask 916480
        %v765 = vsel %vm764, %v741, %v743
        %v766 = vsel %vm764, %v743, %v745
        %v767 = vsel %vm764, %v747, %v749
        %v768 = vsel %vm764, %v749, %v751
        %v769 = vsel %vm764, %v753, %v755
        %v770 = vsel %vm764, %v755, %v757
        %v771 = vsel %vm764, %v759, %v761
        %v772 = vsel %vm764, %v761, %v763
        %v781 = vadd.f32 %v651, %v765
        %v782 = vadd.f32 %v652, %v766
        %v783 = vadd.f32 %v653, %v767
        %v784 = vadd.f32 %v654, %v768
        %v785 = vadd.f32 %v655, %v769
        %v786 = vadd.f32 %v656, %v770
        %v787 = vadd.f32 %v657, %v771
        %v788 = vadd.f32 %v658, %v772
        %s789 = scalar_lea.vmem %s3, 8
        %v790 = vld [vmem:[%s789] sm:$0x3]
        %v792 = vlaneseq
        %v793 = vshrl.u32 %v792, 7
        %v794 = vsub.s32 0, %v793
        %v795 = vrot.slane %v790, %v794
        %v796 = vlaneseq
        %v797 = vshrl.u32 %v796, 7
        %v798 = vsub.s32 1, %v797
        %v799 = vrot.slane %v790, %v798
        %800 = vrot.lane.b32.xlu0 %v795, 17
        %v801 = vpop.permute.xlu0 %800
        %802 = vrot.lane.b32.xlu0 %v799, 17
        %v803 = vpop.permute.xlu0 %802
        %v804 = vsel %vm314, %v801, %v803
        %v808 = vmul.f32 %v331, %v801
        %v809 = vmul.f32 %v315, %v804
        %v810 = vmul.f32 %v335, %v803
        %v811 = vmul.f32 %v332, %v801
        %v812 = vmul.f32 %v316, %v804
        %v813 = vmul.f32 %v336, %v803
        %v814 = vmul.f32 %v333, %v801
        %v815 = vmul.f32 %v317, %v804
        %v816 = vmul.f32 %v337, %v803
        %v817 = vmul.f32 %v334, %v801
        %v818 = vmul.f32 %v318, %v804
        %v819 = vmul.f32 %v338, %v803
        %s820 = scalar_lea.vmem %s1, 128
        %v821 = vld [vmem:[%s820] sm:$0xff]
        %v822 = vld [vmem:[%s820 + $0x8] sm:$0xff]
        %v823 = vld [vmem:[%s820 + $0x10] sm:$0xff]
        %v824 = vld [vmem:[%s820 + $0x18] sm:$0xff]
        %826 = vset.pattern.permute.xlu0 0
        %827 = vperm.xlu0 %826, %v821
        %v828 = vpop.permute.xlu0 %827
        %831 = vset.pattern.permute.xlu0 0
        %832 = vperm.xlu0 %831, %v822
        %v833 = vpop.permute.xlu0 %832
        %836 = vset.pattern.permute.xlu0 0
        %837 = vperm.xlu0 %836, %v823
        %v838 = vpop.permute.xlu0 %837
        %841 = vset.pattern.permute.xlu0 0
        %842 = vperm.xlu0 %841, %v824
        %v843 = vpop.permute.xlu0 %842
        %v845 = vmul.f32 %v808, %v828
        %v846 = vmul.f32 %v809, %v828
        %v847 = vmul.f32 %v810, %v828
        %v848 = vmul.f32 %v811, %v833
        %v849 = vmul.f32 %v812, %v833
        %v850 = vmul.f32 %v813, %v833
        %v851 = vmul.f32 %v814, %v838
        %v852 = vmul.f32 %v815, %v838
        %v853 = vmul.f32 %v816, %v838
        %v854 = vmul.f32 %v817, %v843
        %v855 = vmul.f32 %v818, %v843
        %v856 = vmul.f32 %v819, %v843
        %869 = vrot.lane.b32.xlu0 %v845, 111
        %v870 = vpop.permute.xlu0 %869
        %871 = vrot.lane.b32.xlu0 %v846, 111
        %v872 = vpop.permute.xlu0 %871
        %873 = vrot.lane.b32.xlu0 %v847, 111
        %v874 = vpop.permute.xlu0 %873
        %875 = vrot.lane.b32.xlu0 %v848, 111
        %v876 = vpop.permute.xlu0 %875
        %877 = vrot.lane.b32.xlu0 %v849, 111
        %v878 = vpop.permute.xlu0 %877
        %879 = vrot.lane.b32.xlu0 %v850, 111
        %v880 = vpop.permute.xlu0 %879
        %881 = vrot.lane.b32.xlu0 %v851, 111
        %v882 = vpop.permute.xlu0 %881
        %883 = vrot.lane.b32.xlu0 %v852, 111
        %v884 = vpop.permute.xlu0 %883
        %885 = vrot.lane.b32.xlu0 %v853, 111
        %v886 = vpop.permute.xlu0 %885
        %887 = vrot.lane.b32.xlu0 %v854, 111
        %v888 = vpop.permute.xlu0 %887
        %889 = vrot.lane.b32.xlu0 %v855, 111
        %v890 = vpop.permute.xlu0 %889
        %891 = vrot.lane.b32.xlu0 %v856, 111
        %v892 = vpop.permute.xlu0 %891
        %vm893 = vcmask 908288
        %v894 = vsel %vm893, %v870, %v872
        %v895 = vsel %vm893, %v872, %v874
        %v896 = vsel %vm893, %v876, %v878
        %v897 = vsel %vm893, %v878, %v880
        %v898 = vsel %vm893, %v882, %v884
        %v899 = vsel %vm893, %v884, %v886
        %v900 = vsel %vm893, %v888, %v890
        %v901 = vsel %vm893, %v890, %v892
        %v910 = vadd.f32 %v781, %v894
        %v911 = vadd.f32 %v782, %v895
        %v912 = vadd.f32 %v783, %v896
        %v913 = vadd.f32 %v784, %v897
        %v914 = vadd.f32 %v785, %v898
        %v915 = vadd.f32 %v786, %v899
        %v916 = vadd.f32 %v787, %v900
        %v917 = vadd.f32 %v788, %v901
        %s918 = scalar_lea.vmem %s3, 10
        %v919 = vld [vmem:[%s918] sm:$0x3]
        %v921 = vlaneseq
        %v922 = vshrl.u32 %v921, 7
        %v923 = vsub.s32 0, %v922
        %v924 = vrot.slane %v919, %v923
        %v925 = vlaneseq
        %v926 = vshrl.u32 %v925, 7
        %v927 = vsub.s32 1, %v926
        %v928 = vrot.slane %v919, %v927
        %929 = vrot.lane.b32.xlu0 %v924, 18
        %v930 = vpop.permute.xlu0 %929
        %931 = vrot.lane.b32.xlu0 %v928, 18
        %v932 = vpop.permute.xlu0 %931
        %vm933 = vcmask 146432
        %v934 = vsel %vm933, %v930, %v932
        %v938 = vmul.f32 %v331, %v930
        %v939 = vmul.f32 %v315, %v934
        %v940 = vmul.f32 %v335, %v932
        %v941 = vmul.f32 %v332, %v930
        %v942 = vmul.f32 %v316, %v934
        %v943 = vmul.f32 %v336, %v932
        %v944 = vmul.f32 %v333, %v930
        %v945 = vmul.f32 %v317, %v934
        %v946 = vmul.f32 %v337, %v932
        %v947 = vmul.f32 %v334, %v930
        %v948 = vmul.f32 %v318, %v934
        %v949 = vmul.f32 %v338, %v932
        %s950 = scalar_lea.vmem %s1, 160
        %v951 = vld [vmem:[%s950] sm:$0xff]
        %v952 = vld [vmem:[%s950 + $0x8] sm:$0xff]
        %v953 = vld [vmem:[%s950 + $0x10] sm:$0xff]
        %v954 = vld [vmem:[%s950 + $0x18] sm:$0xff]
        %956 = vset.pattern.permute.xlu0 0
        %957 = vperm.xlu0 %956, %v951
        %v958 = vpop.permute.xlu0 %957
        %961 = vset.pattern.permute.xlu0 0
        %962 = vperm.xlu0 %961, %v952
        %v963 = vpop.permute.xlu0 %962
        %966 = vset.pattern.permute.xlu0 0
        %967 = vperm.xlu0 %966, %v953
        %v968 = vpop.permute.xlu0 %967
        %971 = vset.pattern.permute.xlu0 0
        %972 = vperm.xlu0 %971, %v954
        %v973 = vpop.permute.xlu0 %972
        %v975 = vmul.f32 %v938, %v958
        %v976 = vmul.f32 %v939, %v958
        %v977 = vmul.f32 %v940, %v958
        %v978 = vmul.f32 %v941, %v963
        %v979 = vmul.f32 %v942, %v963
        %v980 = vmul.f32 %v943, %v963
        %v981 = vmul.f32 %v944, %v968
        %v982 = vmul.f32 %v945, %v968
        %v983 = vmul.f32 %v946, %v968
        %v984 = vmul.f32 %v947, %v973
        %v985 = vmul.f32 %v948, %v973
        %v986 = vmul.f32 %v949, %v973
        %999 = vrot.lane.b32.xlu0 %v975, 110
        %v1000 = vpop.permute.xlu0 %999
        %1001 = vrot.lane.b32.xlu0 %v976, 110
        %v1002 = vpop.permute.xlu0 %1001
        %1003 = vrot.lane.b32.xlu0 %v977, 110
        %v1004 = vpop.permute.xlu0 %1003
        %1005 = vrot.lane.b32.xlu0 %v978, 110
        %v1006 = vpop.permute.xlu0 %1005
        %1007 = vrot.lane.b32.xlu0 %v979, 110
        %v1008 = vpop.permute.xlu0 %1007
        %1009 = vrot.lane.b32.xlu0 %v980, 110
        %v1010 = vpop.permute.xlu0 %1009
        %1011 = vrot.lane.b32.xlu0 %v981, 110
        %v1012 = vpop.permute.xlu0 %1011
        %1013 = vrot.lane.b32.xlu0 %v982, 110
        %v1014 = vpop.permute.xlu0 %1013
        %1015 = vrot.lane.b32.xlu0 %v983, 110
        %v1016 = vpop.permute.xlu0 %1015
        %1017 = vrot.lane.b32.xlu0 %v984, 110
        %v1018 = vpop.permute.xlu0 %1017
        %1019 = vrot.lane.b32.xlu0 %v985, 110
        %v1020 = vpop.permute.xlu0 %1019
        %1021 = vrot.lane.b32.xlu0 %v986, 110
        %v1022 = vpop.permute.xlu0 %1021
        %vm1023 = vcmask 900096
        %v1024 = vsel %vm1023, %v1000, %v1002
        %v1025 = vsel %vm1023, %v1002, %v1004
        %v1026 = vsel %vm1023, %v1006, %v1008
        %v1027 = vsel %vm1023, %v1008, %v1010
        %v1028 = vsel %vm1023, %v1012, %v1014
        %v1029 = vsel %vm1023, %v1014, %v1016
        %v1030 = vsel %vm1023, %v1018, %v1020
        %v1031 = vsel %vm1023, %v1020, %v1022
        %v1040 = vadd.f32 %v910, %v1024
        %v1041 = vadd.f32 %v911, %v1025
        %v1042 = vadd.f32 %v912, %v1026
        %v1043 = vadd.f32 %v913, %v1027
        %v1044 = vadd.f32 %v914, %v1028
        %v1045 = vadd.f32 %v915, %v1029
        %v1046 = vadd.f32 %v916, %v1030
        %v1047 = vadd.f32 %v917, %v1031
        %s1048 = scalar_lea.vmem %s3, 12
        %v1049 = vld [vmem:[%s1048] sm:$0x3]
        %v1051 = vlaneseq
        %v1052 = vshrl.u32 %v1051, 7
        %v1053 = vsub.s32 0, %v1052
        %v1054 = vrot.slane %v1049, %v1053
        %v1055 = vlaneseq
        %v1056 = vshrl.u32 %v1055, 7
        %v1057 = vsub.s32 1, %v1056
        %v1058 = vrot.slane %v1049, %v1057
        %1059 = vrot.lane.b32.xlu0 %v1054, 32
        %v1060 = vpop.permute.xlu0 %1059
        %1061 = vrot.lane.b32.xlu0 %v1058, 32
        %v1062 = vpop.permute.xlu0 %1061
        %vm1063 = vcmask 261120
        %v1064 = vsel %vm1063, %v1060, %v1062
        %v1068 = vmul.f32 %v331, %v1060
        %v1069 = vmul.f32 %v315, %v1064
        %v1070 = vmul.f32 %v335, %v1062
        %v1071 = vmul.f32 %v332, %v1060
        %v1072 = vmul.f32 %v316, %v1064
        %v1073 = vmul.f32 %v336, %v1062
        %v1074 = vmul.f32 %v333, %v1060
        %v1075 = vmul.f32 %v317, %v1064
        %v1076 = vmul.f32 %v337, %v1062
        %v1077 = vmul.f32 %v334, %v1060
        %v1078 = vmul.f32 %v318, %v1064
        %v1079 = vmul.f32 %v338, %v1062
        %s1080 = scalar_lea.vmem %s1, 192
        %v1081 = vld [vmem:[%s1080] sm:$0xff]
        %v1082 = vld [vmem:[%s1080 + $0x8] sm:$0xff]
        %v1083 = vld [vmem:[%s1080 + $0x10] sm:$0xff]
        %v1084 = vld [vmem:[%s1080 + $0x18] sm:$0xff]
        %1086 = vset.pattern.permute.xlu0 0
        %1087 = vperm.xlu0 %1086, %v1081
        %v1088 = vpop.permute.xlu0 %1087
        %1091 = vset.pattern.permute.xlu0 0
        %1092 = vperm.xlu0 %1091, %v1082
        %v1093 = vpop.permute.xlu0 %1092
        %1096 = vset.pattern.permute.xlu0 0
        %1097 = vperm.xlu0 %1096, %v1083
        %v1098 = vpop.permute.xlu0 %1097
        %1101 = vset.pattern.permute.xlu0 0
        %1102 = vperm.xlu0 %1101, %v1084
        %v1103 = vpop.permute.xlu0 %1102
        %v1105 = vmul.f32 %v1068, %v1088
        %v1106 = vmul.f32 %v1069, %v1088
        %v1107 = vmul.f32 %v1070, %v1088
        %v1108 = vmul.f32 %v1071, %v1093
        %v1109 = vmul.f32 %v1072, %v1093
        %v1110 = vmul.f32 %v1073, %v1093
        %v1111 = vmul.f32 %v1074, %v1098
        %v1112 = vmul.f32 %v1075, %v1098
        %v1113 = vmul.f32 %v1076, %v1098
        %v1114 = vmul.f32 %v1077, %v1103
        %v1115 = vmul.f32 %v1078, %v1103
        %v1116 = vmul.f32 %v1079, %v1103
        %1129 = vrot.lane.b32.xlu0 %v1105, 96
        %v1130 = vpop.permute.xlu0 %1129
        %1131 = vrot.lane.b32.xlu0 %v1106, 96
        %v1132 = vpop.permute.xlu0 %1131
        %1133 = vrot.lane.b32.xlu0 %v1107, 96
        %v1134 = vpop.permute.xlu0 %1133
        %1135 = vrot.lane.b32.xlu0 %v1108, 96
        %v1136 = vpop.permute.xlu0 %1135
        %1137 = vrot.lane.b32.xlu0 %v1109, 96
        %v1138 = vpop.permute.xlu0 %1137
        %1139 = vrot.lane.b32.xlu0 %v1110, 96
        %v1140 = vpop.permute.xlu0 %1139
        %1141 = vrot.lane.b32.xlu0 %v1111, 96
        %v1142 = vpop.permute.xlu0 %1141
        %1143 = vrot.lane.b32.xlu0 %v1112, 96
        %v1144 = vpop.permute.xlu0 %1143
        %1145 = vrot.lane.b32.xlu0 %v1113, 96
        %v1146 = vpop.permute.xlu0 %1145
        %1147 = vrot.lane.b32.xlu0 %v1114, 96
        %v1148 = vpop.permute.xlu0 %1147
        %1149 = vrot.lane.b32.xlu0 %v1115, 96
        %v1150 = vpop.permute.xlu0 %1149
        %1151 = vrot.lane.b32.xlu0 %v1116, 96
        %v1152 = vpop.permute.xlu0 %1151
        %vm1153 = vcmask 785408
        %v1154 = vsel %vm1153, %v1130, %v1132
        %v1155 = vsel %vm1153, %v1132, %v1134
        %v1156 = vsel %vm1153, %v1136, %v1138
        %v1157 = vsel %vm1153, %v1138, %v1140
        %v1158 = vsel %vm1153, %v1142, %v1144
        %v1159 = vsel %vm1153, %v1144, %v1146
        %v1160 = vsel %vm1153, %v1148, %v1150
        %v1161 = vsel %vm1153, %v1150, %v1152
        %v1170 = vadd.f32 %v1040, %v1154
        %v1171 = vadd.f32 %v1041, %v1155
        %v1172 = vadd.f32 %v1042, %v1156
        %v1173 = vadd.f32 %v1043, %v1157
        %v1174 = vadd.f32 %v1044, %v1158
        %v1175 = vadd.f32 %v1045, %v1159
        %v1176 = vadd.f32 %v1046, %v1160
        %v1177 = vadd.f32 %v1047, %v1161
        %s1178 = scalar_lea.vmem %s3, 14
        %v1179 = vld [vmem:[%s1178] sm:$0x3]
        %v1181 = vlaneseq
        %v1182 = vshrl.u32 %v1181, 7
        %v1183 = vsub.s32 0, %v1182
        %v1184 = vrot.slane %v1179, %v1183
        %v1185 = vlaneseq
        %v1186 = vshrl.u32 %v1185, 7
        %v1187 = vsub.s32 1, %v1186
        %v1188 = vrot.slane %v1179, %v1187
        %1189 = vrot.lane.b32.xlu0 %v1184, 33
        %v1190 = vpop.permute.xlu0 %1189
        %1191 = vrot.lane.b32.xlu0 %v1188, 33
        %v1192 = vpop.permute.xlu0 %1191
        %vm1193 = vcmask 269312
        %v1194 = vsel %vm1193, %v1190, %v1192
        %v1198 = vmul.f32 %v331, %v1190
        %v1199 = vmul.f32 %v315, %v1194
        %v1200 = vmul.f32 %v335, %v1192
        %v1201 = vmul.f32 %v332, %v1190
        %v1202 = vmul.f32 %v316, %v1194
        %v1203 = vmul.f32 %v336, %v1192
        %v1204 = vmul.f32 %v333, %v1190
        %v1205 = vmul.f32 %v317, %v1194
        %v1206 = vmul.f32 %v337, %v1192
        %v1207 = vmul.f32 %v334, %v1190
        %v1208 = vmul.f32 %v318, %v1194
        %v1209 = vmul.f32 %v338, %v1192
        %s1210 = scalar_lea.vmem %s1, 224
        %v1211 = vld [vmem:[%s1210] sm:$0xff]
        %v1212 = vld [vmem:[%s1210 + $0x8] sm:$0xff]
        %v1213 = vld [vmem:[%s1210 + $0x10] sm:$0xff]
        %v1214 = vld [vmem:[%s1210 + $0x18] sm:$0xff]
        %1216 = vset.pattern.permute.xlu0 0
        %1217 = vperm.xlu0 %1216, %v1211
        %v1218 = vpop.permute.xlu0 %1217
        %1221 = vset.pattern.permute.xlu0 0
        %1222 = vperm.xlu0 %1221, %v1212
        %v1223 = vpop.permute.xlu0 %1222
        %1226 = vset.pattern.permute.xlu0 0
        %1227 = vperm.xlu0 %1226, %v1213
        %v1228 = vpop.permute.xlu0 %1227
        %1231 = vset.pattern.permute.xlu0 0
        %1232 = vperm.xlu0 %1231, %v1214
        %v1233 = vpop.permute.xlu0 %1232
        %v1235 = vmul.f32 %v1198, %v1218
        %v1236 = vmul.f32 %v1199, %v1218
        %v1237 = vmul.f32 %v1200, %v1218
        %v1238 = vmul.f32 %v1201, %v1223
        %v1239 = vmul.f32 %v1202, %v1223
        %v1240 = vmul.f32 %v1203, %v1223
        %v1241 = vmul.f32 %v1204, %v1228
        %v1242 = vmul.f32 %v1205, %v1228
        %v1243 = vmul.f32 %v1206, %v1228
        %v1244 = vmul.f32 %v1207, %v1233
        %v1245 = vmul.f32 %v1208, %v1233
        %v1246 = vmul.f32 %v1209, %v1233
        %1259 = vrot.lane.b32.xlu0 %v1235, 95
        %v1260 = vpop.permute.xlu0 %1259
        %1261 = vrot.lane.b32.xlu0 %v1236, 95
        %v1262 = vpop.permute.xlu0 %1261
        %1263 = vrot.lane.b32.xlu0 %v1237, 95
        %v1264 = vpop.permute.xlu0 %1263
        %1265 = vrot.lane.b32.xlu0 %v1238, 95
        %v1266 = vpop.permute.xlu0 %1265
        %1267 = vrot.lane.b32.xlu0 %v1239, 95
        %v1268 = vpop.permute.xlu0 %1267
        %1269 = vrot.lane.b32.xlu0 %v1240, 95
        %v1270 = vpop.permute.xlu0 %1269
        %1271 = vrot.lane.b32.xlu0 %v1241, 95
        %v1272 = vpop.permute.xlu0 %1271
        %1273 = vrot.lane.b32.xlu0 %v1242, 95
        %v1274 = vpop.permute.xlu0 %1273
        %1275 = vrot.lane.b32.xlu0 %v1243, 95
        %v1276 = vpop.permute.xlu0 %1275
        %1277 = vrot.lane.b32.xlu0 %v1244, 95
        %v1278 = vpop.permute.xlu0 %1277
        %1279 = vrot.lane.b32.xlu0 %v1245, 95
        %v1280 = vpop.permute.xlu0 %1279
        %1281 = vrot.lane.b32.xlu0 %v1246, 95
        %v1282 = vpop.permute.xlu0 %1281
        %vm1283 = vcmask 777216
        %v1284 = vsel %vm1283, %v1260, %v1262
        %v1285 = vsel %vm1283, %v1262, %v1264
        %v1286 = vsel %vm1283, %v1266, %v1268
        %v1287 = vsel %vm1283, %v1268, %v1270
        %v1288 = vsel %vm1283, %v1272, %v1274
        %v1289 = vsel %vm1283, %v1274, %v1276
        %v1290 = vsel %vm1283, %v1278, %v1280
        %v1291 = vsel %vm1283, %v1280, %v1282
        %v1300 = vadd.f32 %v1170, %v1284
        %v1301 = vadd.f32 %v1171, %v1285
        %v1302 = vadd.f32 %v1172, %v1286
        %v1303 = vadd.f32 %v1173, %v1287
        %v1304 = vadd.f32 %v1174, %v1288
        %v1305 = vadd.f32 %v1175, %v1289
        %v1306 = vadd.f32 %v1176, %v1290
        %v1307 = vadd.f32 %v1177, %v1291
        %s1308 = scalar_lea.vmem %s3, 16
        %v1309 = vld [vmem:[%s1308] sm:$0x3]
        %v1311 = vlaneseq
        %v1312 = vshrl.u32 %v1311, 7
        %v1313 = vsub.s32 0, %v1312
        %v1314 = vrot.slane %v1309, %v1313
        %v1315 = vlaneseq
        %v1316 = vshrl.u32 %v1315, 7
        %v1317 = vsub.s32 1, %v1316
        %v1318 = vrot.slane %v1309, %v1317
        %1319 = vrot.lane.b32.xlu0 %v1314, 34
        %v1320 = vpop.permute.xlu0 %1319
        %1321 = vrot.lane.b32.xlu0 %v1318, 34
        %v1322 = vpop.permute.xlu0 %1321
        %vm1323 = vcmask 277504
        %v1324 = vsel %vm1323, %v1320, %v1322
        %v1328 = vmul.f32 %v331, %v1320
        %v1329 = vmul.f32 %v315, %v1324
        %v1330 = vmul.f32 %v335, %v1322
        %v1331 = vmul.f32 %v332, %v1320
        %v1332 = vmul.f32 %v316, %v1324
        %v1333 = vmul.f32 %v336, %v1322
        %v1334 = vmul.f32 %v333, %v1320
        %v1335 = vmul.f32 %v317, %v1324
        %v1336 = vmul.f32 %v337, %v1322
        %v1337 = vmul.f32 %v334, %v1320
        %v1338 = vmul.f32 %v318, %v1324
        %v1339 = vmul.f32 %v338, %v1322
        %s1340 = scalar_lea.vmem %s1, 256
        %v1341 = vld [vmem:[%s1340] sm:$0xff]
        %v1342 = vld [vmem:[%s1340 + $0x8] sm:$0xff]
        %v1343 = vld [vmem:[%s1340 + $0x10] sm:$0xff]
        %v1344 = vld [vmem:[%s1340 + $0x18] sm:$0xff]
        %1346 = vset.pattern.permute.xlu0 0
        %1347 = vperm.xlu0 %1346, %v1341
        %v1348 = vpop.permute.xlu0 %1347
        %1351 = vset.pattern.permute.xlu0 0
        %1352 = vperm.xlu0 %1351, %v1342
        %v1353 = vpop.permute.xlu0 %1352
        %1356 = vset.pattern.permute.xlu0 0
        %1357 = vperm.xlu0 %1356, %v1343
        %v1358 = vpop.permute.xlu0 %1357
        %1361 = vset.pattern.permute.xlu0 0
        %1362 = vperm.xlu0 %1361, %v1344
        %v1363 = vpop.permute.xlu0 %1362
        %v1365 = vmul.f32 %v1328, %v1348
        %v1366 = vmul.f32 %v1329, %v1348
        %v1367 = vmul.f32 %v1330, %v1348
        %v1368 = vmul.f32 %v1331, %v1353
        %v1369 = vmul.f32 %v1332, %v1353
        %v1370 = vmul.f32 %v1333, %v1353
        %v1371 = vmul.f32 %v1334, %v1358
        %v1372 = vmul.f32 %v1335, %v1358
        %v1373 = vmul.f32 %v1336, %v1358
        %v1374 = vmul.f32 %v1337, %v1363
        %v1375 = vmul.f32 %v1338, %v1363
        %v1376 = vmul.f32 %v1339, %v1363
        %1389 = vrot.lane.b32.xlu0 %v1365, 94
        %v1390 = vpop.permute.xlu0 %1389
        %1391 = vrot.lane.b32.xlu0 %v1366, 94
        %v1392 = vpop.permute.xlu0 %1391
        %1393 = vrot.lane.b32.xlu0 %v1367, 94
        %v1394 = vpop.permute.xlu0 %1393
        %1395 = vrot.lane.b32.xlu0 %v1368, 94
        %v1396 = vpop.permute.xlu0 %1395
        %1397 = vrot.lane.b32.xlu0 %v1369, 94
        %v1398 = vpop.permute.xlu0 %1397
        %1399 = vrot.lane.b32.xlu0 %v1370, 94
        %v1400 = vpop.permute.xlu0 %1399
        %1401 = vrot.lane.b32.xlu0 %v1371, 94
        %v1402 = vpop.permute.xlu0 %1401
        %1403 = vrot.lane.b32.xlu0 %v1372, 94
        %v1404 = vpop.permute.xlu0 %1403
        %1405 = vrot.lane.b32.xlu0 %v1373, 94
        %v1406 = vpop.permute.xlu0 %1405
        %1407 = vrot.lane.b32.xlu0 %v1374, 94
        %v1408 = vpop.permute.xlu0 %1407
        %1409 = vrot.lane.b32.xlu0 %v1375, 94
        %v1410 = vpop.permute.xlu0 %1409
        %1411 = vrot.lane.b32.xlu0 %v1376, 94
        %v1412 = vpop.permute.xlu0 %1411
        %vm1413 = vcmask 769024
        %v1414 = vsel %vm1413, %v1390, %v1392
        %v1415 = vsel %vm1413, %v1392, %v1394
        %v1416 = vsel %vm1413, %v1396, %v1398
        %v1417 = vsel %vm1413, %v1398, %v1400
        %v1418 = vsel %vm1413, %v1402, %v1404
        %v1419 = vsel %vm1413, %v1404, %v1406
        %v1420 = vsel %vm1413, %v1408, %v1410
        %v1421 = vsel %vm1413, %v1410, %v1412
        %v1430 = vadd.f32 %v1300, %v1414
        %v1431 = vadd.f32 %v1301, %v1415
        %v1432 = vadd.f32 %v1302, %v1416
        %v1433 = vadd.f32 %v1303, %v1417
        %v1434 = vadd.f32 %v1304, %v1418
        %v1435 = vadd.f32 %v1305, %v1419
        %v1436 = vadd.f32 %v1306, %v1420
        %v1437 = vadd.f32 %v1307, %v1421
        %v1438 = vld [vmem:[%s2] sm:$0xff]
        %v1439 = vld [vmem:[%s2 + $0x8] sm:$0xff]
        %v1440 = vld [vmem:[%s2 + $0x10] sm:$0xff]
        %v1441 = vld [vmem:[%s2 + $0x18] sm:$0xff]
        %1443 = vset.pattern.permute.xlu0 0
        %1444 = vperm.xlu0 %1443, %v1438
        %v1445 = vpop.permute.xlu0 %1444
        %1448 = vset.pattern.permute.xlu0 0
        %1449 = vperm.xlu0 %1448, %v1439
        %v1450 = vpop.permute.xlu0 %1449
        %1453 = vset.pattern.permute.xlu0 0
        %1454 = vperm.xlu0 %1453, %v1440
        %v1455 = vpop.permute.xlu0 %1454
        %1458 = vset.pattern.permute.xlu0 0
        %1459 = vperm.xlu0 %1458, %v1441
        %v1460 = vpop.permute.xlu0 %1459
        %v1462 = vadd.f32 %v1430, %v1445
        %v1463 = vadd.f32 %v1431, %v1445
        %v1464 = vadd.f32 %v1432, %v1450
        %v1465 = vadd.f32 %v1433, %v1450
        %v1466 = vadd.f32 %v1434, %v1455
        %v1467 = vadd.f32 %v1435, %v1455
        %v1468 = vadd.f32 %v1436, %v1460
        %v1469 = vadd.f32 %v1437, %v1460
        %v1470 = vadd.f32 %v1462, %v1463
        %1471 = vadd.xlane.f32.xlu0 %v1470
        %v1472 = vpop.xlane.xlu0 %1471
        %v1473 = vadd.f32 %v1464, %v1465
        %1474 = vadd.xlane.f32.xlu0 %v1473
        %v1475 = vpop.xlane.xlu0 %1474
        %v1476 = vadd.f32 %v1466, %v1467
        %1477 = vadd.xlane.f32.xlu0 %v1476
        %v1478 = vpop.xlane.xlu0 %1477
        %v1479 = vadd.f32 %v1468, %v1469
        %1480 = vadd.xlane.f32.xlu0 %v1479
        %v1481 = vpop.xlane.xlu0 %1480
        %v1482 = vrcp.pop 256.0
        %v1483 = vmul.f32 %v1472, %v1482
        %v1484 = vmul.f32 %v1475, %v1482
        %v1485 = vmul.f32 %v1478, %v1482
        %v1486 = vmul.f32 %v1481, %v1482
        %v1487 = vmax.f32 %v1462, %v1463
        %1488 = vmax.xlane.f32.xlu0 %v1487
        %v1489 = vpop.xlane.xlu0 %1488
        %v1490 = vmax.f32 %v1464, %v1465
        %1491 = vmax.xlane.f32.xlu0 %v1490
        %v1492 = vpop.xlane.xlu0 %1491
        %v1493 = vmax.f32 %v1466, %v1467
        %1494 = vmax.xlane.f32.xlu0 %v1493
        %v1495 = vpop.xlane.xlu0 %1494
        %v1496 = vmax.f32 %v1468, %v1469
        %1497 = vmax.xlane.f32.xlu0 %v1496
        %v1498 = vpop.xlane.xlu0 %1497
        %v1499 = vld [vmem:[%s4] sm:$0xf]
        %v1501 = vsel %vm1063, %v1499, 0
        %1503 = vmatprep.subr.mxu0 0.0
        %1504 = vmatpush1.msra.mxu0 %v1483
        %1505 = vmatprep.subr.mxu0 0.0
        %1506 = vmatpush1.msra.mxu0 %v1484
        %1507 = vmatprep.subr.mxu0 0.0
        %1508 = vmatpush1.msra.mxu0 %v1485
        %1509 = vmatprep.subr.mxu0 0.0
        %1510 = vmatpush1.msra.mxu0 %v1486
        %1511 = vmatprep.subr.mxu0 0.0
        %1512 = vmatpush1.msra.mxu0 0.0
        %1513 = vmatprep.subr.mxu0 0.0
        %1514 = vmatpush1.msra.mxu0 0.0
        %1515 = vmatprep.subr.mxu0 0.0
        %1516 = vmatpush1.msra.mxu0 0.0
        %1517 = vmatprep.subr.mxu0 0.0
        %1518 = vmatpush1.msra.mxu0 0.0
        %1519 = vmatprep.subr.mxu0 0.0
        %1520 = vmatpush1.msra.mxu0 0.0
        %1521 = vmatprep.subr.mxu0 0.0
        %1522 = vmatpush1.msra.mxu0 0.0
        %1523 = vmatprep.subr.mxu0 0.0
        %1524 = vmatpush1.msra.mxu0 0.0
        %1525 = vmatprep.subr.mxu0 0.0
        %1526 = vmatpush1.msra.mxu0 0.0
        %1527 = vmatprep.subr.mxu0 0.0
        %1528 = vmatpush1.msra.mxu0 0.0
        %1529 = vmatprep.subr.mxu0 0.0
        %1530 = vmatpush1.msra.mxu0 0.0
        %1531 = vmatprep.subr.mxu0 0.0
        %1532 = vmatpush1.msra.mxu0 0.0
        %1533 = vmatprep.subr.mxu0 0.0
        %1534 = vmatpush1.msra.mxu0 0.0
        %1535 = vmatprep.subr.mxu0 0.0
        %1536 = vmatpush1.msra.mxu0 0.0
        %1537 = vmatprep.subr.mxu0 0.0
        %1538 = vmatpush1.msra.mxu0 0.0
        %1539 = vmatprep.subr.mxu0 0.0
        %1540 = vmatpush1.msra.mxu0 0.0
        %1541 = vmatprep.subr.mxu0 0.0
        %1542 = vmatpush1.msra.mxu0 0.0
        %1543 = vmatprep.subr.mxu0 0.0
        %1544 = vmatpush1.msra.mxu0 0.0
        %1545 = vmatprep.subr.mxu0 0.0
        %1546 = vmatpush1.msra.mxu0 0.0
        %1547 = vmatprep.subr.mxu0 0.0
        %1548 = vmatpush1.msra.mxu0 0.0
        %1549 = vmatprep.subr.mxu0 0.0
        %1550 = vmatpush1.msra.mxu0 0.0
        %1551 = vmatprep.subr.mxu0 0.0
        %1552 = vmatpush1.msra.mxu0 0.0
        %1553 = vmatprep.subr.mxu0 0.0
        %1554 = vmatpush1.msra.mxu0 0.0
        %1555 = vmatprep.subr.mxu0 0.0
        %1556 = vmatpush1.msra.mxu0 0.0
        %1557 = vmatprep.subr.mxu0 0.0
        %1558 = vmatpush1.msra.mxu0 0.0
        %1559 = vmatprep.subr.mxu0 0.0
        %1560 = vmatpush1.msra.mxu0 0.0
        %1561 = vmatprep.subr.mxu0 0.0
        %1562 = vmatpush1.msra.mxu0 0.0
        %1563 = vmatprep.subr.mxu0 0.0
        %1564 = vmatpush1.msra.mxu0 0.0
        %1565 = vmatprep.subr.mxu0 0.0
        %1566 = vmatpush1.msra.mxu0 0.0
        %1567 = vmatprep.mubr.f32.mxu0 0.0
        %1568 = vmatmul.mubr.f32.gmra.mrb[0].mxu0 %v1501
        %v1569 = vpop.f32.mrb[0].mxu0
        %v1570 = vadd.f32 0.0, %v1569
        %v1571 = vpop.f32.mrb[0].mxu0
        %1572 = vdwg.mxu0
        %v1573 = vmax.f32 %v1570, 0.0
        %v1574 = vld [vmem:[%s5] sm:$0xff]
        %v1575 = vld [vmem:[%s5 + $0x8] sm:$0xff]
        %v1576 = vld [vmem:[%s5 + $0x10] sm:$0xff]
        %v1577 = vld [vmem:[%s5 + $0x18] sm:$0xff]
        %1578 = vmatprep.subr.mxu0 0.0
        %1579 = vmatpush1.msra.mxu0 %v1489
        %1580 = vmatprep.subr.mxu0 0.0
        %1581 = vmatpush1.msra.mxu0 %v1492
        %1582 = vmatprep.subr.mxu0 0.0
        %1583 = vmatpush1.msra.mxu0 %v1495
        %1584 = vmatprep.subr.mxu0 0.0
        %1585 = vmatpush1.msra.mxu0 %v1498
        %1586 = vmatprep.subr.mxu0 0.0
        %1587 = vmatpush1.msra.mxu0 0.0
        %1588 = vmatprep.subr.mxu0 0.0
        %1589 = vmatpush1.msra.mxu0 0.0
        %1590 = vmatprep.subr.mxu0 0.0
        %1591 = vmatpush1.msra.mxu0 0.0
        %1592 = vmatprep.subr.mxu0 0.0
        %1593 = vmatpush1.msra.mxu0 0.0
        %1594 = vmatprep.subr.mxu0 0.0
        %1595 = vmatpush1.msra.mxu0 0.0
        %1596 = vmatprep.subr.mxu0 0.0
        %1597 = vmatpush1.msra.mxu0 0.0
        %1598 = vmatprep.subr.mxu0 0.0
        %1599 = vmatpush1.msra.mxu0 0.0
        %1600 = vmatprep.subr.mxu0 0.0
        %1601 = vmatpush1.msra.mxu0 0.0
        %1602 = vmatprep.subr.mxu0 0.0
        %1603 = vmatpush1.msra.mxu0 0.0
        %1604 = vmatprep.subr.mxu0 0.0
        %1605 = vmatpush1.msra.mxu0 0.0
        %1606 = vmatprep.subr.mxu0 0.0
        %1607 = vmatpush1.msra.mxu0 0.0
        %1608 = vmatprep.subr.mxu0 0.0
        %1609 = vmatpush1.msra.mxu0 0.0
        %1610 = vmatprep.subr.mxu0 0.0
        %1611 = vmatpush1.msra.mxu0 0.0
        %1612 = vmatprep.subr.mxu0 0.0
        %1613 = vmatpush1.msra.mxu0 0.0
        %1614 = vmatprep.subr.mxu0 0.0
        %1615 = vmatpush1.msra.mxu0 0.0
        %1616 = vmatprep.subr.mxu0 0.0
        %1617 = vmatpush1.msra.mxu0 0.0
        %1618 = vmatprep.subr.mxu0 0.0
        %1619 = vmatpush1.msra.mxu0 0.0
        %1620 = vmatprep.subr.mxu0 0.0
        %1621 = vmatpush1.msra.mxu0 0.0
        %1622 = vmatprep.subr.mxu0 0.0
        %1623 = vmatpush1.msra.mxu0 0.0
        %1624 = vmatprep.subr.mxu0 0.0
        %1625 = vmatpush1.msra.mxu0 0.0
        %1626 = vmatprep.subr.mxu0 0.0
        %1627 = vmatpush1.msra.mxu0 0.0
        %1628 = vmatprep.subr.mxu0 0.0
        %1629 = vmatpush1.msra.mxu0 0.0
        %1630 = vmatprep.subr.mxu0 0.0
        %1631 = vmatpush1.msra.mxu0 0.0
        %1632 = vmatprep.subr.mxu0 0.0
        %1633 = vmatpush1.msra.mxu0 0.0
        %1634 = vmatprep.subr.mxu0 0.0
        %1635 = vmatpush1.msra.mxu0 0.0
        %1636 = vmatprep.subr.mxu0 0.0
        %1637 = vmatpush1.msra.mxu0 0.0
        %1638 = vmatprep.subr.mxu0 0.0
        %1639 = vmatpush1.msra.mxu0 0.0
        %1640 = vmatprep.subr.mxu0 0.0
        %1641 = vmatpush1.msra.mxu0 0.0
        %1642 = vmatprep.mubr.f32.mxu0 0.0
        %1643 = vmatmul.mubr.f32.gmra.mrb[0].mxu0 %v1501
        %v1644 = vpop.f32.mrb[0].mxu0
        %v1645 = vadd.f32 0.0, %v1644
        %v1646 = vpop.f32.mrb[0].mxu0
        %1647 = vdwg.mxu0
        %v1648 = vmax.f32 %v1645, 0.0
        %vm1649 = vcmask 31744
        %v1651 = vsel %vm1649, %v1574, 0
        %v1654 = vsel %vm1649, %v1575, 0
        %v1657 = vsel %vm1649, %v1576, 0
        %v1660 = vsel %vm1649, %v1577, 0
        %vm1662 = vcmask 1043456
        %v1664 = vsel %vm1662, %v1648, 0
        %1666 = vmatprep.subr.mxu0 0.0
        %1667 = vmatpush1.msra.mxu0 %v1664
        %1668 = vmatprep.subr.mxu0 0.0
        %1669 = vmatpush1.msra.mxu0 0.0
        %1670 = vmatprep.subr.mxu0 0.0
        %1671 = vmatpush1.msra.mxu0 0.0
        %1672 = vmatprep.subr.mxu0 0.0
        %1673 = vmatpush1.msra.mxu0 0.0
        %1674 = vmatprep.subr.mxu0 0.0
        %1675 = vmatpush1.msra.mxu0 0.0
        %1676 = vmatprep.subr.mxu0 0.0
        %1677 = vmatpush1.msra.mxu0 0.0
        %1678 = vmatprep.subr.mxu0 0.0
        %1679 = vmatpush1.msra.mxu0 0.0
        %1680 = vmatprep.subr.mxu0 0.0
        %1681 = vmatpush1.msra.mxu0 0.0
        %1682 = vmatprep.subr.mxu0 0.0
        %1683 = vmatpush1.msra.mxu0 0.0
        %1684 = vmatprep.subr.mxu0 0.0
        %1685 = vmatpush1.msra.mxu0 0.0
        %1686 = vmatprep.subr.mxu0 0.0
        %1687 = vmatpush1.msra.mxu0 0.0
        %1688 = vmatprep.subr.mxu0 0.0
        %1689 = vmatpush1.msra.mxu0 0.0
        %1690 = vmatprep.subr.mxu0 0.0
        %1691 = vmatpush1.msra.mxu0 0.0
        %1692 = vmatprep.subr.mxu0 0.0
        %1693 = vmatpush1.msra.mxu0 0.0
        %1694 = vmatprep.subr.mxu0 0.0
        %1695 = vmatpush1.msra.mxu0 0.0
        %1696 = vmatprep.subr.mxu0 0.0
        %1697 = vmatpush1.msra.mxu0 0.0
        %1698 = vmatprep.subr.mxu0 0.0
        %1699 = vmatpush1.msra.mxu0 0.0
        %1700 = vmatprep.subr.mxu0 0.0
        %1701 = vmatpush1.msra.mxu0 0.0
        %1702 = vmatprep.subr.mxu0 0.0
        %1703 = vmatpush1.msra.mxu0 0.0
        %1704 = vmatprep.subr.mxu0 0.0
        %1705 = vmatpush1.msra.mxu0 0.0
        %1706 = vmatprep.subr.mxu0 0.0
        %1707 = vmatpush1.msra.mxu0 0.0
        %1708 = vmatprep.subr.mxu0 0.0
        %1709 = vmatpush1.msra.mxu0 0.0
        %1710 = vmatprep.subr.mxu0 0.0
        %1711 = vmatpush1.msra.mxu0 0.0
        %1712 = vmatprep.subr.mxu0 0.0
        %1713 = vmatpush1.msra.mxu0 0.0
        %1714 = vmatprep.subr.mxu0 0.0
        %1715 = vmatpush1.msra.mxu0 0.0
        %1716 = vmatprep.subr.mxu0 0.0
        %1717 = vmatpush1.msra.mxu0 0.0
        %1718 = vmatprep.subr.mxu0 0.0
        %1719 = vmatpush1.msra.mxu0 0.0
        %1720 = vmatprep.subr.mxu0 0.0
        %1721 = vmatpush1.msra.mxu0 0.0
        %1722 = vmatprep.subr.mxu0 0.0
        %1723 = vmatpush1.msra.mxu0 0.0
        %1724 = vmatprep.subr.mxu0 0.0
        %1725 = vmatpush1.msra.mxu0 0.0
        %1726 = vmatprep.subr.mxu0 0.0
        %1727 = vmatpush1.msra.mxu0 0.0
        %1728 = vmatprep.subr.mxu0 0.0
        %1729 = vmatpush1.msra.mxu0 0.0
        %1730 = vmatprep.mubr.f32.mxu0 0.0
        %1731 = vmatmul.mubr.f32.gmra.mrb[0].mxu0 %v1651
        %v1732 = vpop.f32.mrb[0].mxu0
        %v1733 = vadd.f32 0.0, %v1732
        %v1734 = vpop.f32.mrb[0].mxu0
        %1735 = vmatprep.mubr.f32.mxu0 0.0
        %1736 = vmatmul.mubr.f32.gmra.mrb[0].mxu0 %v1654
        %v1737 = vpop.f32.mrb[0].mxu0
        %v1738 = vadd.f32 0.0, %v1737
        %v1739 = vpop.f32.mrb[0].mxu0
        %1740 = vmatprep.mubr.f32.mxu0 0.0
        %1741 = vmatmul.mubr.f32.gmra.mrb[0].mxu0 %v1657
        %v1742 = vpop.f32.mrb[0].mxu0
        %v1743 = vadd.f32 0.0, %v1742
        %v1744 = vpop.f32.mrb[0].mxu0
        %1745 = vmatprep.mubr.f32.mxu0 0.0
        %1746 = vmatmul.mubr.f32.gmra.mrb[0].mxu0 %v1660
        %v1747 = vpop.f32.mrb[0].mxu0
        %v1748 = vadd.f32 0.0, %v1747
        %v1749 = vpop.f32.mrb[0].mxu0
        %1750 = vdwg.mxu0
        %v1752 = vsel %vm1662, %v1573, 0
        %1754 = vmatprep.subr.mxu0 0.0
        %1755 = vmatpush1.msra.mxu0 %v1752
        %1756 = vmatprep.subr.mxu0 0.0
        %1757 = vmatpush1.msra.mxu0 0.0
        %1758 = vmatprep.subr.mxu0 0.0
        %1759 = vmatpush1.msra.mxu0 0.0
        %1760 = vmatprep.subr.mxu0 0.0
        %1761 = vmatpush1.msra.mxu0 0.0
        %1762 = vmatprep.subr.mxu0 0.0
        %1763 = vmatpush1.msra.mxu0 0.0
        %1764 = vmatprep.subr.mxu0 0.0
        %1765 = vmatpush1.msra.mxu0 0.0
        %1766 = vmatprep.subr.mxu0 0.0
        %1767 = vmatpush1.msra.mxu0 0.0
        %1768 = vmatprep.subr.mxu0 0.0
        %1769 = vmatpush1.msra.mxu0 0.0
        %1770 = vmatprep.subr.mxu0 0.0
        %1771 = vmatpush1.msra.mxu0 0.0
        %1772 = vmatprep.subr.mxu0 0.0
        %1773 = vmatpush1.msra.mxu0 0.0
        %1774 = vmatprep.subr.mxu0 0.0
        %1775 = vmatpush1.msra.mxu0 0.0
        %1776 = vmatprep.subr.mxu0 0.0
        %1777 = vmatpush1.msra.mxu0 0.0
        %1778 = vmatprep.subr.mxu0 0.0
        %1779 = vmatpush1.msra.mxu0 0.0
        %1780 = vmatprep.subr.mxu0 0.0
        %1781 = vmatpush1.msra.mxu0 0.0
        %1782 = vmatprep.subr.mxu0 0.0
        %1783 = vmatpush1.msra.mxu0 0.0
        %1784 = vmatprep.subr.mxu0 0.0
        %1785 = vmatpush1.msra.mxu0 0.0
        %1786 = vmatprep.subr.mxu0 0.0
        %1787 = vmatpush1.msra.mxu0 0.0
        %1788 = vmatprep.subr.mxu0 0.0
        %1789 = vmatpush1.msra.mxu0 0.0
        %1790 = vmatprep.subr.mxu0 0.0
        %1791 = vmatpush1.msra.mxu0 0.0
        %1792 = vmatprep.subr.mxu0 0.0
        %1793 = vmatpush1.msra.mxu0 0.0
        %1794 = vmatprep.subr.mxu0 0.0
        %1795 = vmatpush1.msra.mxu0 0.0
        %1796 = vmatprep.subr.mxu0 0.0
        %1797 = vmatpush1.msra.mxu0 0.0
        %1798 = vmatprep.subr.mxu0 0.0
        %1799 = vmatpush1.msra.mxu0 0.0
        %1800 = vmatprep.subr.mxu0 0.0
        %1801 = vmatpush1.msra.mxu0 0.0
        %1802 = vmatprep.subr.mxu0 0.0
        %1803 = vmatpush1.msra.mxu0 0.0
        %1804 = vmatprep.subr.mxu0 0.0
        %1805 = vmatpush1.msra.mxu0 0.0
        %1806 = vmatprep.subr.mxu0 0.0
        %1807 = vmatpush1.msra.mxu0 0.0
        %1808 = vmatprep.subr.mxu0 0.0
        %1809 = vmatpush1.msra.mxu0 0.0
        %1810 = vmatprep.subr.mxu0 0.0
        %1811 = vmatpush1.msra.mxu0 0.0
        %1812 = vmatprep.subr.mxu0 0.0
        %1813 = vmatpush1.msra.mxu0 0.0
        %1814 = vmatprep.subr.mxu0 0.0
        %1815 = vmatpush1.msra.mxu0 0.0
        %1816 = vmatprep.subr.mxu0 0.0
        %1817 = vmatpush1.msra.mxu0 0.0
        %1818 = vmatprep.mubr.f32.mxu0 0.0
        %1819 = vmatmul.mubr.f32.gmra.mrb[0].mxu0 %v1651
        %v1820 = vpop.f32.mrb[0].mxu0
        %v1821 = vadd.f32 %v1733, %v1820
        %v1822 = vpop.f32.mrb[0].mxu0
        %1823 = vmatprep.mubr.f32.mxu0 0.0
        %1824 = vmatmul.mubr.f32.gmra.mrb[0].mxu0 %v1654
        %v1825 = vpop.f32.mrb[0].mxu0
        %v1826 = vadd.f32 %v1738, %v1825
        %v1827 = vpop.f32.mrb[0].mxu0
        %1828 = vmatprep.mubr.f32.mxu0 0.0
        %1829 = vmatmul.mubr.f32.gmra.mrb[0].mxu0 %v1657
        %v1830 = vpop.f32.mrb[0].mxu0
        %v1831 = vadd.f32 %v1743, %v1830
        %v1832 = vpop.f32.mrb[0].mxu0
        %1833 = vmatprep.mubr.f32.mxu0 0.0
        %1834 = vmatmul.mubr.f32.gmra.mrb[0].mxu0 %v1660
        %v1835 = vpop.f32.mrb[0].mxu0
        %v1836 = vadd.f32 %v1748, %v1835
        %v1837 = vpop.f32.mrb[0].mxu0
        %1838 = vdwg.mxu0
        %v1839 = vsub.f32 0.0, %v1821
        %v1840 = vsub.f32 0.0, %v1826
        %v1841 = vsub.f32 0.0, %v1831
        %v1842 = vsub.f32 0.0, %v1836
        %v1843 = vmul.f32 %v1839, 1.442695
        %v1844 = vpow.pop %v1843
        %v1845 = vmul.f32 %v1840, 1.442695
        %v1846 = vpow.pop %v1845
        %v1847 = vmul.f32 %v1841, 1.442695
        %v1848 = vpow.pop %v1847
        %v1849 = vmul.f32 %v1842, 1.442695
        %v1850 = vpow.pop %v1849
        %v1851 = vadd.f32 %v1844, 1.0
        %v1852 = vadd.f32 %v1846, 1.0
        %v1853 = vadd.f32 %v1848, 1.0
        %v1854 = vadd.f32 %v1850, 1.0
        %v1855 = vrcp.pop %v1851
        %v1856 = vmul.f32 1.0, %v1855
        %v1857 = vrcp.pop %v1852
        %v1858 = vmul.f32 1.0, %v1857
        %v1859 = vrcp.pop %v1853
        %v1860 = vmul.f32 1.0, %v1859
        %v1861 = vrcp.pop %v1854
        %v1862 = vmul.f32 1.0, %v1861
        %1864 = vset.pattern.permute.xlu0 0
        %1865 = vperm.xlu0 %1864, %v1856
        %v1866 = vpop.permute.xlu0 %1865
        %1869 = vset.pattern.permute.xlu0 0
        %1870 = vperm.xlu0 %1869, %v1858
        %v1871 = vpop.permute.xlu0 %1870
        %1874 = vset.pattern.permute.xlu0 0
        %1875 = vperm.xlu0 %1874, %v1860
        %v1876 = vpop.permute.xlu0 %1875
        %1879 = vset.pattern.permute.xlu0 0
        %1880 = vperm.xlu0 %1879, %v1862
        %v1881 = vpop.permute.xlu0 %1880
        %v1883 = vmul.f32 %v1462, %v1866
        %v1884 = vmul.f32 %v1463, %v1866
        %v1885 = vmul.f32 %v1464, %v1871
        %v1886 = vmul.f32 %v1465, %v1871
        %v1887 = vmul.f32 %v1466, %v1876
        %v1888 = vmul.f32 %v1467, %v1876
        %v1889 = vmul.f32 %v1468, %v1881
        %v1890 = vmul.f32 %v1469, %v1881
        %v1891 = vadd.f32 %v1883, %v282
        %v1892 = vadd.f32 %v1884, %v283
        %v1893 = vadd.f32 %v1885, %v284
        %v1894 = vadd.f32 %v1886, %v285
        %v1895 = vadd.f32 %v1887, %v286
        %v1896 = vadd.f32 %v1888, %v287
        %v1897 = vadd.f32 %v1889, %v288
        %v1898 = vadd.f32 %v1890, %v289
        %1899 = vst [vmem:[%s279] sm:$0xff] %v1891
        %1900 = vst [vmem:[%s279 + $0x8] sm:$0xff] %v1892
        %1901 = vst [vmem:[%s279 + $0x10] sm:$0xff] %v1893
        %1902 = vst [vmem:[%s279 + $0x18] sm:$0xff] %v1894
        %1903 = vst [vmem:[%s279 + $0x20] sm:$0xff] %v1895
        %1904 = vst [vmem:[%s279 + $0x28] sm:$0xff] %v1896
        %1905 = vst [vmem:[%s279 + $0x30] sm:$0xff] %v1897
        %1906 = vst [vmem:[%s279 + $0x38] sm:$0xff] %v1898
        %s1907 = sand.u32 %s156, 1
        %s1908 = sand.u32 %s156, 1
        %s1909 = smul.addr %s1908, 64
        %s1910 = scalar_lea.vmem [#allocation3], %s1909
        // Predicated region
        $region68: #{inter_sa_q_forward.7} parent=62 // pred_check
          %p1911 = pneg %p166
        $region69: #{inter_sa_q_forward.7} parent=62 // pred_check_branch
          %1913 = sbr.rel (%p1911) target = $region71
        $region70: #{inter_sa_q_forward.7} parent=62 // pred_region
          %s1914 = smul.u32 2, %s17
          %s1915 = smul.addr %s1914, 8
          %s1916 = scalar_lea.vmem %s6, %s1915
          // Predicated region
          $region72: #{inter_sa_q_forward.7} parent=70 // pred_check
            _
          $region73: #{inter_sa_q_forward.7} parent=70 // pred_check_branch
            %1918 = sbr.rel (0) target = $region75
          $region74: #{inter_sa_q_forward.7} parent=70 // pred_region
            // Predicated region
            $region76: #{inter_sa_q_forward.7} parent=74 // pred_check
              _
            $region77: #{inter_sa_q_forward.7} parent=74 // pred_check_branch
              %1920 = sbr.rel (0) target = $region79
            $region78: #{inter_sa_q_forward.7} parent=74 // pred_region
              loop: start=0, step=1, limit=1
              $region80: #{inter_sa_q_forward.7} parent=78 // loop_pre_header
                _
              $region81: #{inter_sa_q_forward.7} parent=78 // loop_header
                %s1922 = sphi 0, %s1926
                %p1923 = scmp.ge.s32.totalorder %s1922, 1
                %s1927 = sphi %s1910, %s1910
                %s1928 = sphi %s1916, %s1916
              $region82: #{inter_sa_q_forward.7} parent=78 // loop_header_branch
                %1925 = sbr.rel (%p1923) target = $region86
              $region83: #{inter_sa_q_forward.7} parent=78 // loop_body
                %v1929 = vld [vmem:[%s1927] sm:$0xff]
                %1930 = vst [vmem:[%s1928] sm:$0xff] %v1929
                %v1931 = vld [vmem:[%s1927 + $0x8] sm:$0xff]
                %1932 = vst [vmem:[%s1928 + $0x8] sm:$0xff] %v1931
                %v1933 = vld [vmem:[%s1927 + $0x10] sm:$0xff]
                %1934 = vst [vmem:[%s1928 + $0x20] sm:$0xff] %v1933
                %v1935 = vld [vmem:[%s1927 + $0x18] sm:$0xff]
                %1936 = vst [vmem:[%s1928 + $0x28] sm:$0xff] %v1935
                %v1937 = vld [vmem:[%s1927 + $0x20] sm:$0xff]
                %1938 = vst [vmem:[%s1928 + $0x40] sm:$0xff] %v1937
                %v1939 = vld [vmem:[%s1927 + $0x28] sm:$0xff]
                %1940 = vst [vmem:[%s1928 + $0x48] sm:$0xff] %v1939
                %v1941 = vld [vmem:[%s1927 + $0x30] sm:$0xff]
                %1942 = vst [vmem:[%s1928 + $0x60] sm:$0xff] %v1941
                %v1943 = vld [vmem:[%s1927 + $0x38] sm:$0xff]
                %1944 = vst [vmem:[%s1928 + $0x68] sm:$0xff] %v1943
              $region84: #{inter_sa_q_forward.7} parent=78 // loop_footer
                %s1926 = sadd.s32 1, %s1922
              $region85: #{inter_sa_q_forward.7} parent=78 // loop_footer_branch
                %1921 = sbr.rel target = $region81
              $region86: #{inter_sa_q_forward.7} parent=78 // loop_exit
                _
            $region79: #{inter_sa_q_forward.7} parent=74 // pred_fallthru
              _
            // Predicated region
            $region87: #{inter_sa_q_forward.7} parent=74 // pred_check
              _
            $region88: #{inter_sa_q_forward.7} parent=74 // pred_check_branch
              %1946 = sbr.rel target = $region90
            $region89: #{inter_sa_q_forward.7} parent=74 // pred_region
              _
            $region90: #{inter_sa_q_forward.7} parent=74 // pred_fallthru
              _
          $region75: #{inter_sa_q_forward.7} parent=70 // pred_fallthru
            _
          %1947 = vnop
        $region71: #{inter_sa_q_forward.7} parent=62 // pred_fallthru
          _
      $region63: #{inter_sa_q_forward.7} parent=5 // pred_fallthru
        _
      %p1948 = scmp.le.s32.totalorder 2, %s12
      // Predicated region
      $region91: #{inter_sa_q_forward.7} parent=5 // pred_check
        %p1949 = pneg %p1948
      $region92: #{inter_sa_q_forward.7} parent=5 // pred_check_branch
        %1951 = sbr.rel (%p1949) target = $region94
      $region93: #{inter_sa_q_forward.7} parent=5 // pred_region
        %s1952 = ssub.s32 %s12, 2
        // Predicated region
        $region95: #{inter_sa_q_forward.7} parent=93 // pred_check
          %p1953 = pneg %p172
        $region96: #{inter_sa_q_forward.7} parent=93 // pred_check_branch
          %1955 = sbr.rel (%p1953) target = $region98
        $region97: #{inter_sa_q_forward.7} parent=93 // pred_region
          %s1956 = sand.u32 %s157, 1
          %s1957 = sand.u32 %s157, 1
          %s1958 = smul.addr %s1957, 64
          %s1959 = scalar_lea.vmem [#allocation3], %s1958
        $region98: #{inter_sa_q_forward.7} parent=93 // pred_fallthru
          _
      $region94: #{inter_sa_q_forward.7} parent=5 // pred_fallthru
        _
    $region6: #{inter_sa_q_forward.7} parent=1 // loop_footer
      %s16 = sadd.s32 1, %s12
    $region7: #{inter_sa_q_forward.7} parent=1 // loop_footer_branch
      %11 = sbr.rel target = $region3
    $region8: #{inter_sa_q_forward.7} parent=1 // loop_exit
      _

</llo_original>
